<compile_context>
chip_gen: v7x
topology: tpu7x:2x2x1
jax: 0.10.0
libtpu: 0.0.40
codegen_flags: <defaults>
</compile_context>

<pallas_src>
import functools

import jax
import jax.numpy as jnp
from jax.experimental import pallas as pl
from jax.experimental.pallas import tpu as pltpu


def _pick_row_tile(h, cap=64):
    """Largest multiple of 8 that divides h and is <= cap."""
    th = min(h, cap) - (min(h, cap) % 8)
    while th > 8 and h % th != 0:
        th -= 8
    return max(th, 8)


@functools.partial(jax.jit, static_argnames=("row_tile",))
def db_fpn_forward(c2, c3, c4, c5, params, *, row_tile=None):
    """DB_fpn forward.  Inputs NHWC; returns the NHWC fused feature map with
    channel order [p5, p4, p3, p2] (matches torch.cat(..., dim=1))."""
    N, H, W, Cin2 = c2.shape
    Cin3, Cin4, Cin5 = c3.shape[-1], c4.shape[-1], c5.shape[-1]
    C = params["in2_w"].shape[1]
    C4 = C // 4
    assert C % 4 == 0
    assert H % 8 == 0 and W % 8 == 0, "DB_fpn expects /8-divisible c2 maps"
    assert (c3.shape[1:3] == (H // 2, W // 2)
            and c4.shape[1:3] == (H // 4, W // 4)
            and c5.shape[1:3] == (H // 8, W // 8)), "expects a /2 /4 /8 pyramid"

    TH = _pick_row_tile(H) if row_tile is None else row_tile
    assert TH % 8 == 0 and H % TH == 0
    nt = H // TH
    H2, W2 = H // 2, W // 2
    H4, W4 = H // 4, W // 4
    H8, W8 = H // 8, W // 8
    TH2, TH4, TH8 = TH // 2, TH // 4, TH // 8

    out_dtype = c2.dtype
    bf16 = jnp.bfloat16
    # MXU operands in bf16 (f32 accumulation); element-wise math stays f32.
    c2b, c3b, c4b, c5b = (x.astype(bf16) for x in (c2, c3, c4, c5))
    w2 = params["in2_w"].astype(bf16)
    w3 = params["in3_w"].astype(bf16)
    w4 = params["in4_w"].astype(bf16)
    w5 = params["in5_w"].astype(bf16)
    # 3x3 weights, HWIO -> (9, C, C4) per level, stacked [p5, p4, p3, p2].
    wp = jnp.concatenate(
        [params[k].reshape(9, C, C4) for k in ("p5_w", "p4_w", "p3_w", "p2_w")],
        axis=0).astype(bf16)                                   # (36, C, C4)

    # ----------------------------- kernel -----------------------------------
    def kernel(c2_ref, c2top_ref, c2bot_ref, c3_ref, c4_ref, c5_ref,
               w2_ref, w3_ref, w4_ref, w5_ref, wp_ref,
               o_ref,
               pad5_ref, pad4_ref, pad3_ref, pad2_ref,
               p5s_ref, p4s_ref, p3s_ref):
        t = pl.program_id(1)

        def conv1x1(x, w_ref):
            h, w, cin = x.shape
            y = jnp.dot(x.reshape(h * w, cin).astype(bf16), w_ref[...],
                        preferred_element_type=jnp.float32)
            return y.reshape(h, w, C)

        def up2_add(coarse, fine):
            # nearest x2 upsample of `coarse` fused into the add with `fine`.
            h, w, c = coarse.shape
            y = fine.reshape(h, 2, w, 2, c) + coarse[:, None, :, None, :]
            return y.reshape(2 * h, 2 * w, c)

        def up2w_add(coarse_row, fine_row):
            # single-row variant (upsample along W only) for the halo rows.
            _, w, c = coarse_row.shape
            y = fine_row.reshape(1, w, 2, c) + coarse_row[:, :, None, :]
            return y.reshape(1, 2 * w, c)

        def upsample(x, s):
            h, w, c = x.shape
            y = jnp.broadcast_to(x[:, None, :, None, :], (h, s, w, s, c))
            return y.reshape(h * s, w * s, c)

        def conv3x3(pad_ref, lvl, h, w):
            # 3x3 conv = 9 statically-unrolled (h*w, C) x (C, C4) MXU matmuls
            # accumulating in f32 (no im2col concat, 1x feature map in VMEM).
            xp = pad_ref[...]
            acc = None
            for dy in range(3):
                for dx in range(3):
                    tap = xp[dy:dy + h, dx:dx + w, :].reshape(h * w, C)
                    y = jnp.dot(tap.astype(bf16),
                                wp_ref[lvl * 9 + dy * 3 + dx],
                                preferred_element_type=jnp.float32)
                    acc = y if acc is None else acc + y
            return acc.reshape(h, w, C4)

        # ---- once per batch (first row tile): borders + coarse pyramid ----
        @pl.when(t == 0)
        def _coarse():
            # Zero only the 1-px borders of the padded scratch maps; their
            # interiors are fully overwritten before every use.
            for ref, (h, w) in ((pad5_ref, (H8, W8)), (pad4_ref, (H4, W4)),
                                (pad3_ref, (H2, W2)), (pad2_ref, (TH, W))):
                ref[0:1, :, :] = jnp.zeros((1, w + 2, C), jnp.float32)
                ref[h + 1:h + 2, :, :] = jnp.zeros((1, w + 2, C), jnp.float32)
                ref[:, 0:1, :] = jnp.zeros((h + 2, 1, C), jnp.float32)
                ref[:, w + 1:w + 2, :] = jnp.zeros((h + 2, 1, C), jnp.float32)

            in5 = conv1x1(c5_ref[0], w5_ref)                   # (H8, W8, C)
            pad5_ref[1:H8 + 1, 1:W8 + 1, :] = in5
            in4 = conv1x1(c4_ref[0], w4_ref)
            out4 = up2_add(in5, in4)                           # (H4, W4, C)
            pad4_ref[1:H4 + 1, 1:W4 + 1, :] = out4
            in3 = conv1x1(c3_ref[0], w3_ref)
            out3 = up2_add(out4, in3)                          # (H2, W2, C)
            pad3_ref[1:H2 + 1, 1:W2 + 1, :] = out3

            p5s_ref[...] = conv3x3(pad5_ref, 0, H8, W8)
            p4s_ref[...] = conv3x3(pad4_ref, 1, H4, W4)
            p3s_ref[...] = conv3x3(pad3_ref, 2, H2, W2)

        # ---- every row tile: full-resolution path --------------------------
        r2 = pl.multiple_of(t * TH2, TH2)
        r4 = pl.multiple_of(t * TH4, TH4)
        r8 = pl.multiple_of(t * TH8, TH8)

        in2 = conv1x1(c2_ref[0], w2_ref)                       # (TH, W, C)
        out3_rows = pad3_ref[pl.ds(1 + r2, TH2), 1:W2 + 1, :]  # (TH2, W2, C)
        out2 = up2_add(out3_rows, in2)                         # (TH, W, C)
        pad2_ref[1:TH + 1, 1:W + 1, :] = out2

        # Halo rows of out2 for the p2 conv (zero at the image border).
        @pl.when(t > 0)
        def _top_halo():
            in2_top = conv1x1(c2top_ref[0], w2_ref)            # (1, W, C)
            o3_top = pad3_ref[pl.ds(r2, 1), 1:W2 + 1, :]       # out3 row t*TH2-1
            pad2_ref[0:1, 1:W + 1, :] = up2w_add(o3_top, in2_top)

        @pl.when(t == 0)
        def _top_zero():
            pad2_ref[0:1, 1:W + 1, :] = jnp.zeros((1, W, C), jnp.float32)

        @pl.when(t < nt - 1)
        def _bot_halo():
            in2_bot = conv1x1(c2bot_ref[0], w2_ref)
            o3_bot = pad3_ref[pl.ds(1 + r2 + TH2, 1), 1:W2 + 1, :]
            pad2_ref[TH + 1:TH + 2, 1:W + 1, :] = up2w_add(o3_bot, in2_bot)

        @pl.when(t == nt - 1)
        def _bot_zero():
            pad2_ref[TH + 1:TH + 2, 1:W + 1, :] = jnp.zeros((1, W, C),
                                                            jnp.float32)

        p2 = conv3x3(pad2_ref, 3, TH, W)                       # (TH, W, C4)

        p5_rows = p5s_ref[pl.ds(r8, TH8), :, :]
        p4_rows = p4s_ref[pl.ds(r4, TH4), :, :]
        p3_rows = p3s_ref[pl.ds(r2, TH2), :, :]
        fused = jnp.concatenate(
            [upsample(p5_rows, 8), upsample(p4_rows, 4),
             upsample(p3_rows, 2), p2], axis=-1)               # (TH, W, 4*C4)
        o_ref[0] = fused.astype(o_ref.dtype)

    # ------------------------- specs & launch --------------------------------
    in_specs = [
        # full-resolution c2 row slab for this tile
        pl.BlockSpec((1, TH, W, Cin2), lambda b, t: (b, t, 0, 0)),
        # 1-row halos; index clamped at the image border (the clamped value is
        # never used there — pl.when skips it)
        pl.BlockSpec((1, 1, W, Cin2),
                     lambda b, t: (b, jnp.maximum(t * TH - 1, 0), 0, 0)),
        pl.BlockSpec((1, 1, W, Cin2),
                     lambda b, t: (b, jnp.minimum((t + 1) * TH, H - 1), 0, 0)),
        # coarse levels: whole maps, constant over t -> fetched once per batch
        pl.BlockSpec((1, H2, W2, Cin3), lambda b, t: (b, 0, 0, 0)),
        pl.BlockSpec((1, H4, W4, Cin4), lambda b, t: (b, 0, 0, 0)),
        pl.BlockSpec((1, H8, W8, Cin5), lambda b, t: (b, 0, 0, 0)),
        # weights: constant index maps -> VMEM-resident across the whole grid
        pl.BlockSpec(w2.shape, lambda b, t: (0, 0)),
        pl.BlockSpec(w3.shape, lambda b, t: (0, 0)),
        pl.BlockSpec(w4.shape, lambda b, t: (0, 0)),
        pl.BlockSpec(w5.shape, lambda b, t: (0, 0)),
        pl.BlockSpec(wp.shape, lambda b, t: (0, 0, 0)),
    ]
    out_specs = pl.BlockSpec((1, TH, W, 4 * C4), lambda b, t: (b, t, 0, 0))

    scratch_shapes = [
        pltpu.VMEM((H8 + 2, W8 + 2, C), jnp.float32),   # padded in5
        pltpu.VMEM((H4 + 2, W4 + 2, C), jnp.float32),   # padded out4
        pltpu.VMEM((H2 + 2, W2 + 2, C), jnp.float32),   # padded out3
        pltpu.VMEM((TH + 2, W + 2, C), jnp.float32),    # padded out2 row tile
        pltpu.VMEM((H8, W8, C4), jnp.float32),          # p5
        pltpu.VMEM((H4, W4, C4), jnp.float32),          # p4
        pltpu.VMEM((H2, W2, C4), jnp.float32),          # p3
    ]

    # Rough per-step VMEM requirement (x2 for double buffering of the tiled
    # operands).  Capped at 56 MiB so it also fits v7x's 64 MiB physical VMEM;
    # on v5e/v6e (128 MiB) raise the cap together with a larger row tile.
    est = (2 * (TH * W * Cin2 + 2 * W * Cin2) * 2            # c2 slab + halos
           + 2 * (H2 * W2 * Cin3 + H4 * W4 * Cin4 + H8 * W8 * Cin5) * 2
           + ((Cin2 + Cin3 + Cin4 + Cin5) * C + 36 * C * C4) * 2
           + 2 * TH * W * 4 * C4 * 4                         # output block
           + sum(((H8 + 2) * (W8 + 2), (H4 + 2) * (W4 + 2),
                  (H2 + 2) * (W2 + 2), (TH + 2) * (W + 2))) * C * 4
           + (H8 * W8 + H4 * W4 + H2 * W2) * C4 * 4)
    vmem_limit = int(min(max(2 * est, 32 * 1024 * 1024), 56 * 1024 * 1024))

    return pl.pallas_call(
        kernel,
        out_shape=jax.ShapeDtypeStruct((N, H, W, 4 * C4), out_dtype),
        grid=(N, nt),
        in_specs=in_specs,
        out_specs=out_specs,
        scratch_shapes=scratch_shapes,
        compiler_params=pltpu.CompilerParams(
            # Row axis stays "arbitrary": row tiles of a batch share the
            # coarse-pyramid VMEM scratch written at t == 0 (scratch is
            # per-core, so the row axis must not be split across cores).
            dimension_semantics=("parallel", "arbitrary"),
            vmem_limit_bytes=vmem_limit),
    )(c2b, c2b, c2b, c3b, c4b, c5b, w2, w3, w4, w5, wp)


# ----------------------------------------------------------------------------
# Pure-JAX reference (PyTorch NCHW output layout) for correctness check.
# Same numeric policy as the kernel: bf16 MXU operands, f32 accumulation.
# ----------------------------------------------------------------------------
def ref_forward(c2, c3, c4, c5, params):
    dn = ("NHWC", "HWIO", "NHWC")
    bf16 = jnp.bfloat16

    def c1(x, w):
        return jax.lax.conv_general_dilated(
            x.astype(bf16), w.reshape(1, 1, *w.shape).astype(bf16), (1, 1),
            "VALID", dimension_numbers=dn, preferred_element_type=jnp.float32)

    def c3x3(x, w):
        return jax.lax.conv_general_dilated(
            x.astype(bf16), w.astype(bf16), (1, 1), ((1, 1), (1, 1)),
            dimension_numbers=dn, preferred_element_type=jnp.float32)

    def up(x, s):
        return jnp.repeat(jnp.repeat(x, s, axis=1), s, axis=2)

    in5 = c1(c5, params["in5_w"])
    in4 = c1(c4, params["in4_w"])
    in3 = c1(c3, params["in3_w"])
    in2 = c1(c2, params["in2_w"])
    out4 = up(in5, 2) + in4
    out3 = up(out4, 2) + in3
    out2 = up(out3, 2) + in2
    p5 = c3x3(in5, params["p5_w"])
    p4 = c3x3(out4, params["p4_w"])
    p3 = c3x3(out3, params["p3_w"])
    p2 = c3x3(out2, params["p2_w"])
    fused = jnp.concatenate([up(p5, 8), up(p4, 4), up(p3, 2), p2], axis=-1)
    return jnp.transpose(fused, (0, 3, 1, 2))          # NCHW like torch


# ----------------------------------------------------------------------------
# Deterministic parameter init (kaiming-normal style, no bias anywhere)
# ----------------------------------------------------------------------------
def init_params(key, in_channels, out_channels):
    keys = jax.random.split(key, 8)
    p = {}
    for i, (name, cin) in enumerate(zip(("in2_w", "in3_w", "in4_w", "in5_w"),
                                        in_channels)):
        std = (2.0 / cin) ** 0.5
        p[name] = std * jax.random.normal(keys[i], (cin, out_channels),
                                          jnp.float32)
    c4 = out_channels // 4
    for i, name in enumerate(("p5_w", "p4_w", "p3_w", "p2_w")):
        std = (2.0 / (out_channels * 9)) ** 0.5
        p[name] = std * jax.random.normal(keys[4 + i],
                                          (3, 3, out_channels, c4), jnp.float32)
    return p


if __name__ == "__main__":
    key = jax.random.PRNGKey(0)
    k1, k2, k3, k4, kp = jax.random.split(key, 5)

    N = 2
    in_channels = [4, 8, 16, 32]
    out_channels = 32
    H = 16          # c2 spatial size; c3 = H/2, c4 = H/4, c5 = H/8

    # Build NCHW inputs (PyTorch convention), then move to NHWC for the kernel.
    c2_nchw = jax.random.normal(k1, (N, in_channels[0], H, H), jnp.float32)
    c3_nchw = jax.random.normal(k2, (N, in_channels[1], H // 2, H // 2),
                                jnp.float32)
    c4_nchw = jax.random.normal(k3, (N, in_channels[2], H // 4, H // 4),
                                jnp.float32)
    c5_nchw = jax.random.normal(k4, (N, in_channels[3], H // 8, H // 8),
                                jnp.float32)
    to_nhwc = lambda t: jnp.transpose(t, (0, 2, 3, 1))
    c2, c3, c4, c5 = map(to_nhwc, (c2_nchw, c3_nchw, c4_nchw, c5_nchw))

    params = init_params(kp, in_channels, out_channels)

    # row_tile=8 -> 2 row tiles per batch: exercises the halo / tiling path.
    out_nhwc = db_fpn_forward(c2, c3, c4, c5, params, row_tile=8)
    out_nhwc = jax.block_until_ready(out_nhwc)
    assert out_nhwc.shape == (N, H, H, out_channels), out_nhwc.shape

    # Verification only (outside the fused compute path): compare in NCHW.
    out_nchw = jnp.transpose(out_nhwc, (0, 3, 1, 2))
    ref_nchw = ref_forward(c2, c3, c4, c5, params)
    err = float(jnp.max(jnp.abs(out_nchw - ref_nchw)))
    if not jnp.allclose(out_nchw, ref_nchw, atol=1e-2, rtol=1e-2):
        raise AssertionError(
            f"Pallas DB_fpn mismatch vs JAX reference (max abs err {err:.3e})")

    print("KERNEL_OK")
</pallas_src>

<mosaic_0001>
module attributes {stable_mosaic.version = 11 : i64} {
  func.func @kernel(%arg0: i32, %arg1: i32, %arg2: memref<1x8x16x4xbf16, #tpu.memory_space<vmem>>, %arg3: memref<1x1x16x4xbf16, #tpu.memory_space<vmem>>, %arg4: memref<1x1x16x4xbf16, #tpu.memory_space<vmem>>, %arg5: memref<1x8x8x8xbf16, #tpu.memory_space<vmem>>, %arg6: memref<1x4x4x16xbf16, #tpu.memory_space<vmem>>, %arg7: memref<1x2x2x32xbf16, #tpu.memory_space<vmem>>, %arg8: memref<4x32xbf16, #tpu.memory_space<vmem>>, %arg9: memref<8x32xbf16, #tpu.memory_space<vmem>>, %arg10: memref<16x32xbf16, #tpu.memory_space<vmem>>, %arg11: memref<32x32xbf16, #tpu.memory_space<vmem>>, %arg12: memref<36x32x8xbf16, #tpu.memory_space<vmem>>, %arg13: memref<1x8x16x32xf32, #tpu.memory_space<vmem>>, %arg14: memref<4x4x32xf32, #tpu.memory_space<vmem>>, %arg15: memref<6x6x32xf32, #tpu.memory_space<vmem>>, %arg16: memref<10x10x32xf32, #tpu.memory_space<vmem>>, %arg17: memref<10x18x32xf32, #tpu.memory_space<vmem>>, %arg18: memref<2x2x8xf32, #tpu.memory_space<vmem>>, %arg19: memref<4x4x8xf32, #tpu.memory_space<vmem>>, %arg20: memref<8x8x8xf32, #tpu.memory_space<vmem>>) attributes {dimension_semantics = [#tpu.dimension_semantics<parallel>, #tpu.dimension_semantics<arbitrary>], iteration_bounds = array<i64: 2, 2>, scalar_prefetch = 0 : i64, scratch_operands = 7 : i64, tpu.core_type = #tpu.core_type<tc>, window_params = [{transform_indices = @transform_0, window_bounds = array<i64: 1, 8, 16, 4>}, {transform_indices = @transform_1, window_bounds = array<i64: 1, 1, 16, 4>}, {transform_indices = @transform_2, window_bounds = array<i64: 1, 1, 16, 4>}, {transform_indices = @transform_3, window_bounds = array<i64: 1, 8, 8, 8>}, {transform_indices = @transform_4, window_bounds = array<i64: 1, 4, 4, 16>}, {transform_indices = @transform_5, window_bounds = array<i64: 1, 2, 2, 32>}, {pipeline_mode = #tpu.pipeline_mode<synchronous>, transform_indices = @transform_6, window_bounds = array<i64: 4, 32>}, {pipeline_mode = #tpu.pipeline_mode<synchronous>, transform_indices = @transform_7, window_bounds = array<i64: 8, 32>}, {pipeline_mode = #tpu.pipeline_mode<synchronous>, transform_indices = @transform_8, window_bounds = array<i64: 16, 32>}, {pipeline_mode = #tpu.pipeline_mode<synchronous>, transform_indices = @transform_9, window_bounds = array<i64: 32, 32>}, {pipeline_mode = #tpu.pipeline_mode<synchronous>, transform_indices = @transform_10, window_bounds = array<i64: 36, 32, 8>}, {transform_indices = @transform_11, window_bounds = array<i64: 1, 8, 16, 32>}]} {
    %c0_i32 = arith.constant 0 : i32
    %0 = arith.cmpi eq, %arg1, %c0_i32 : i32
    %1 = arith.extui %0 : i1 to i32
    %c0_i32_0 = arith.constant 0 : i32
    %2 = arith.cmpi ne, %1, %c0_i32_0 : i32
    scf.if %2 {
      %cst_59 = arith.constant 0.000000e+00 : f32
      %122 = vector.broadcast %cst_59 : f32 to vector<1x4x32xf32>
      %c0_60 = arith.constant 0 : index
      %c0_61 = arith.constant 0 : index
      %c0_62 = arith.constant 0 : index
      %123 = vector.load %arg14[%c0_60, %c0_61, %c0_62] : memref<4x4x32xf32, #tpu.memory_space<vmem>>, vector<1x4x32xf32>
      tpu.vector_store %arg14[%c0_60, %c0_61, %c0_62], %122 {strides = array<i32>} : memref<4x4x32xf32, #tpu.memory_space<vmem>>, vector<1x4x32xf32>,
      %cst_63 = arith.constant 0.000000e+00 : f32
      %124 = vector.broadcast %cst_63 : f32 to vector<1x4x32xf32>
      %c3 = arith.constant 3 : index
      %c0_64 = arith.constant 0 : index
      %c0_65 = arith.constant 0 : index
      %125 = vector.load %arg14[%c3, %c0_64, %c0_65] : memref<4x4x32xf32, #tpu.memory_space<vmem>>, vector<1x4x32xf32>
      tpu.vector_store %arg14[%c3, %c0_64, %c0_65], %124 {strides = array<i32>} : memref<4x4x32xf32, #tpu.memory_space<vmem>>, vector<1x4x32xf32>,
      %cst_66 = arith.constant 0.000000e+00 : f32
      %126 = vector.broadcast %cst_66 : f32 to vector<4x1x32xf32>
      %c0_67 = arith.constant 0 : index
      %c0_68 = arith.constant 0 : index
      %c0_69 = arith.constant 0 : index
      %127 = vector.load %arg14[%c0_67, %c0_68, %c0_69] : memref<4x4x32xf32, #tpu.memory_space<vmem>>, vector<4x1x32xf32>
      tpu.vector_store %arg14[%c0_67, %c0_68, %c0_69], %126 {strides = array<i32>} : memref<4x4x32xf32, #tpu.memory_space<vmem>>, vector<4x1x32xf32>,
      %cst_70 = arith.constant 0.000000e+00 : f32
      %128 = vector.broadcast %cst_70 : f32 to vector<4x1x32xf32>
      %c0_71 = arith.constant 0 : index
      %c3_72 = arith.constant 3 : index
      %c0_73 = arith.constant 0 : index
      %129 = vector.load %arg14[%c0_71, %c3_72, %c0_73] : memref<4x4x32xf32, #tpu.memory_space<vmem>>, vector<4x1x32xf32>
      tpu.vector_store %arg14[%c0_71, %c3_72, %c0_73], %128 {strides = array<i32>} : memref<4x4x32xf32, #tpu.memory_space<vmem>>, vector<4x1x32xf32>,
      %cst_74 = arith.constant 0.000000e+00 : f32
      %130 = vector.broadcast %cst_74 : f32 to vector<1x6x32xf32>
      %c0_75 = arith.constant 0 : index
      %c0_76 = arith.constant 0 : index
      %c0_77 = arith.constant 0 : index
      %131 = vector.load %arg15[%c0_75, %c0_76, %c0_77] : memref<6x6x32xf32, #tpu.memory_space<vmem>>, vector<1x6x32xf32>
      tpu.vector_store %arg15[%c0_75, %c0_76, %c0_77], %130 {strides = array<i32>} : memref<6x6x32xf32, #tpu.memory_space<vmem>>, vector<1x6x32xf32>,
      %cst_78 = arith.constant 0.000000e+00 : f32
      %132 = vector.broadcast %cst_78 : f32 to vector<1x6x32xf32>
      %c5 = arith.constant 5 : index
      %c0_79 = arith.constant 0 : index
      %c0_80 = arith.constant 0 : index
      %133 = vector.load %arg15[%c5, %c0_79, %c0_80] : memref<6x6x32xf32, #tpu.memory_space<vmem>>, vector<1x6x32xf32>
      tpu.vector_store %arg15[%c5, %c0_79, %c0_80], %132 {strides = array<i32>} : memref<6x6x32xf32, #tpu.memory_space<vmem>>, vector<1x6x32xf32>,
      %cst_81 = arith.constant 0.000000e+00 : f32
      %134 = vector.broadcast %cst_81 : f32 to vector<6x1x32xf32>
      %c0_82 = arith.constant 0 : index
      %c0_83 = arith.constant 0 : index
      %c0_84 = arith.constant 0 : index
      %135 = vector.load %arg15[%c0_82, %c0_83, %c0_84] : memref<6x6x32xf32, #tpu.memory_space<vmem>>, vector<6x1x32xf32>
      tpu.vector_store %arg15[%c0_82, %c0_83, %c0_84], %134 {strides = array<i32>} : memref<6x6x32xf32, #tpu.memory_space<vmem>>, vector<6x1x32xf32>,
      %cst_85 = arith.constant 0.000000e+00 : f32
      %136 = vector.broadcast %cst_85 : f32 to vector<6x1x32xf32>
      %c0_86 = arith.constant 0 : index
      %c5_87 = arith.constant 5 : index
      %c0_88 = arith.constant 0 : index
      %137 = vector.load %arg15[%c0_86, %c5_87, %c0_88] : memref<6x6x32xf32, #tpu.memory_space<vmem>>, vector<6x1x32xf32>
      tpu.vector_store %arg15[%c0_86, %c5_87, %c0_88], %136 {strides = array<i32>} : memref<6x6x32xf32, #tpu.memory_space<vmem>>, vector<6x1x32xf32>,
      %cst_89 = arith.constant 0.000000e+00 : f32
      %138 = vector.broadcast %cst_89 : f32 to vector<1x10x32xf32>
      %c0_90 = arith.constant 0 : index
      %c0_91 = arith.constant 0 : index
      %c0_92 = arith.constant 0 : index
      %139 = vector.load %arg16[%c0_90, %c0_91, %c0_92] : memref<10x10x32xf32, #tpu.memory_space<vmem>>, vector<1x10x32xf32>
      tpu.vector_store %arg16[%c0_90, %c0_91, %c0_92], %138 {strides = array<i32>} : memref<10x10x32xf32, #tpu.memory_space<vmem>>, vector<1x10x32xf32>,
      %cst_93 = arith.constant 0.000000e+00 : f32
      %140 = vector.broadcast %cst_93 : f32 to vector<1x10x32xf32>
      %c9 = arith.constant 9 : index
      %c0_94 = arith.constant 0 : index
      %c0_95 = arith.constant 0 : index
      %141 = vector.load %arg16[%c9, %c0_94, %c0_95] : memref<10x10x32xf32, #tpu.memory_space<vmem>>, vector<1x10x32xf32>
      tpu.vector_store %arg16[%c9, %c0_94, %c0_95], %140 {strides = array<i32>} : memref<10x10x32xf32, #tpu.memory_space<vmem>>, vector<1x10x32xf32>,
      %cst_96 = arith.constant 0.000000e+00 : f32
      %142 = vector.broadcast %cst_96 : f32 to vector<10x1x32xf32>
      %c0_97 = arith.constant 0 : index
      %c0_98 = arith.constant 0 : index
      %c0_99 = arith.constant 0 : index
      %143 = vector.load %arg16[%c0_97, %c0_98, %c0_99] : memref<10x10x32xf32, #tpu.memory_space<vmem>>, vector<10x1x32xf32>
      tpu.vector_store %arg16[%c0_97, %c0_98, %c0_99], %142 {strides = array<i32>} : memref<10x10x32xf32, #tpu.memory_space<vmem>>, vector<10x1x32xf32>,
      %cst_100 = arith.constant 0.000000e+00 : f32
      %144 = vector.broadcast %cst_100 : f32 to vector<10x1x32xf32>
      %c0_101 = arith.constant 0 : index
      %c9_102 = arith.constant 9 : index
      %c0_103 = arith.constant 0 : index
      %145 = vector.load %arg16[%c0_101, %c9_102, %c0_103] : memref<10x10x32xf32, #tpu.memory_space<vmem>>, vector<10x1x32xf32>
      tpu.vector_store %arg16[%c0_101, %c9_102, %c0_103], %144 {strides = array<i32>} : memref<10x10x32xf32, #tpu.memory_space<vmem>>, vector<10x1x32xf32>,
      %cst_104 = arith.constant 0.000000e+00 : f32
      %146 = vector.broadcast %cst_104 : f32 to vector<1x18x32xf32>
      %c0_105 = arith.constant 0 : index
      %c0_106 = arith.constant 0 : index
      %c0_107 = arith.constant 0 : index
      %147 = vector.load %arg17[%c0_105, %c0_106, %c0_107] : memref<10x18x32xf32, #tpu.memory_space<vmem>>, vector<1x18x32xf32>
      tpu.vector_store %arg17[%c0_105, %c0_106, %c0_107], %146 {strides = array<i32>} : memref<10x18x32xf32, #tpu.memory_space<vmem>>, vector<1x18x32xf32>,
      %cst_108 = arith.constant 0.000000e+00 : f32
      %148 = vector.broadcast %cst_108 : f32 to vector<1x18x32xf32>
      %c9_109 = arith.constant 9 : index
      %c0_110 = arith.constant 0 : index
      %c0_111 = arith.constant 0 : index
      %149 = vector.load %arg17[%c9_109, %c0_110, %c0_111] : memref<10x18x32xf32, #tpu.memory_space<vmem>>, vector<1x18x32xf32>
      tpu.vector_store %arg17[%c9_109, %c0_110, %c0_111], %148 {strides = array<i32>} : memref<10x18x32xf32, #tpu.memory_space<vmem>>, vector<1x18x32xf32>,
      %cst_112 = arith.constant 0.000000e+00 : f32
      %150 = vector.broadcast %cst_112 : f32 to vector<10x1x32xf32>
      %c0_113 = arith.constant 0 : index
      %c0_114 = arith.constant 0 : index
      %c0_115 = arith.constant 0 : index
      %151 = vector.load %arg17[%c0_113, %c0_114, %c0_115] : memref<10x18x32xf32, #tpu.memory_space<vmem>>, vector<10x1x32xf32>
      tpu.vector_store %arg17[%c0_113, %c0_114, %c0_115], %150 {strides = array<i32>} : memref<10x18x32xf32, #tpu.memory_space<vmem>>, vector<10x1x32xf32>,
      %cst_116 = arith.constant 0.000000e+00 : f32
      %152 = vector.broadcast %cst_116 : f32 to vector<10x1x32xf32>
      %c0_117 = arith.constant 0 : index
      %c17 = arith.constant 17 : index
      %c0_118 = arith.constant 0 : index
      %153 = vector.load %arg17[%c0_117, %c17, %c0_118] : memref<10x18x32xf32, #tpu.memory_space<vmem>>, vector<10x1x32xf32>
      tpu.vector_store %arg17[%c0_117, %c17, %c0_118], %152 {strides = array<i32>} : memref<10x18x32xf32, #tpu.memory_space<vmem>>, vector<10x1x32xf32>,
      %c0_119 = arith.constant 0 : index
      %c0_120 = arith.constant 0 : index
      %c0_121 = arith.constant 0 : index
      %c0_122 = arith.constant 0 : index
      %154 = vector.load %arg7[%c0_119, %c0_120, %c0_121, %c0_122] : memref<1x2x2x32xbf16, #tpu.memory_space<vmem>>, vector<1x2x2x32xbf16>
      %155 = vector.shape_cast %154 : vector<1x2x2x32xbf16> to vector<2x2x32xbf16>
      %156 = vector.shape_cast %155 : vector<2x2x32xbf16> to vector<4x32xbf16>
      %c0_123 = arith.constant 0 : index
      %c0_124 = arith.constant 0 : index
      %157 = vector.load %arg11[%c0_123, %c0_124] : memref<32x32xbf16, #tpu.memory_space<vmem>>, vector<32x32xbf16>
      %cst_125 = arith.constant dense<0.000000e+00> : vector<4x32xf32>
      %158 = tpu.matmul %156, %157, %cst_125 {dimension_numbers = #tpu.dot_dimension_numbers<[1], [0], [0], [1], [0, 0, 1, 1], [], []>} : vector<4x32xbf16>, vector<32x32xbf16>, vector<4x32xf32> -> vector<4x32xf32>
      %159 = vector.shape_cast %158 : vector<4x32xf32> to vector<2x2x32xf32>
      %c1_126 = arith.constant 1 : index
      %c1_127 = arith.constant 1 : index
      %c0_128 = arith.constant 0 : index
      %160 = vector.load %arg14[%c1_126, %c1_127, %c0_128] : memref<4x4x32xf32, #tpu.memory_space<vmem>>, vector<2x2x32xf32>
      tpu.vector_store %arg14[%c1_126, %c1_127, %c0_128], %159 {strides = array<i32>} : memref<4x4x32xf32, #tpu.memory_space<vmem>>, vector<2x2x32xf32>,
      %c0_129 = arith.constant 0 : index
      %c0_130 = arith.constant 0 : index
      %c0_131 = arith.constant 0 : index
      %c0_132 = arith.constant 0 : index
      %161 = vector.load %arg6[%c0_129, %c0_130, %c0_131, %c0_132] : memref<1x4x4x16xbf16, #tpu.memory_space<vmem>>, vector<1x4x4x16xbf16>
      %162 = vector.shape_cast %161 : vector<1x4x4x16xbf16> to vector<4x4x16xbf16>
      %163 = vector.shape_cast %162 : vector<4x4x16xbf16> to vector<16x16xbf16>
      %c0_133 = arith.constant 0 : index
      %c0_134 = arith.constant 0 : index
      %164 = vector.load %arg10[%c0_133, %c0_134] : memref<16x32xbf16, #tpu.memory_space<vmem>>, vector<16x32xbf16>
      %cst_135 = arith.constant dense<0.000000e+00> : vector<16x32xf32>
      %165 = tpu.matmul %163, %164, %cst_135 {dimension_numbers = #tpu.dot_dimension_numbers<[1], [0], [0], [1], [0, 0, 1, 1], [], []>} : vector<16x16xbf16>, vector<16x32xbf16>, vector<16x32xf32> -> vector<16x32xf32>
      %166 = vector.shape_cast %165 : vector<16x32xf32> to vector<4x4x32xf32>
      %167 = vector.shape_cast %166 : vector<4x4x32xf32> to vector<2x2x2x2x32xf32>
      %168 = vector.shape_cast %159 : vector<2x2x32xf32> to vector<2x1x2x1x32xf32>
      %169 = vector.broadcast %168 : vector<2x1x2x1x32xf32> to vector<2x2x2x2x32xf32>
      %170 = arith.addf %167, %169 : vector<2x2x2x2x32xf32>
      %171 = vector.shape_cast %170 : vector<2x2x2x2x32xf32> to vector<4x4x32xf32>
      %c1_136 = arith.constant 1 : index
      %c1_137 = arith.constant 1 : index
      %c0_138 = arith.constant 0 : index
      %172 = vector.load %arg15[%c1_136, %c1_137, %c0_138] : memref<6x6x32xf32, #tpu.memory_space<vmem>>, vector<4x4x32xf32>
      tpu.vector_store %arg15[%c1_136, %c1_137, %c0_138], %171 {strides = array<i32>} : memref<6x6x32xf32, #tpu.memory_space<vmem>>, vector<4x4x32xf32>,
      %c0_139 = arith.constant 0 : index
      %c0_140 = arith.constant 0 : index
      %c0_141 = arith.constant 0 : index
      %c0_142 = arith.constant 0 : index
      %173 = vector.load %arg5[%c0_139, %c0_140, %c0_141, %c0_142] : memref<1x8x8x8xbf16, #tpu.memory_space<vmem>>, vector<1x8x8x8xbf16>
      %174 = vector.shape_cast %173 : vector<1x8x8x8xbf16> to vector<8x8x8xbf16>
      %175 = vector.shape_cast %174 : vector<8x8x8xbf16> to vector<64x8xbf16>
      %c0_143 = arith.constant 0 : index
      %c0_144 = arith.constant 0 : index
      %176 = vector.load %arg9[%c0_143, %c0_144] : memref<8x32xbf16, #tpu.memory_space<vmem>>, vector<8x32xbf16>
      %cst_145 = arith.constant dense<0.000000e+00> : vector<64x32xf32>
      %177 = tpu.matmul %175, %176, %cst_145 {dimension_numbers = #tpu.dot_dimension_numbers<[1], [0], [0], [1], [0, 0, 1, 1], [], []>} : vector<64x8xbf16>, vector<8x32xbf16>, vector<64x32xf32> -> vector<64x32xf32>
      %178 = vector.shape_cast %177 : vector<64x32xf32> to vector<8x8x32xf32>
      %179 = vector.shape_cast %178 : vector<8x8x32xf32> to vector<4x2x4x2x32xf32>
      %180 = vector.shape_cast %171 : vector<4x4x32xf32> to vector<4x1x4x1x32xf32>
      %181 = vector.broadcast %180 : vector<4x1x4x1x32xf32> to vector<4x2x4x2x32xf32>
      %182 = arith.addf %179, %181 : vector<4x2x4x2x32xf32>
      %183 = vector.shape_cast %182 : vector<4x2x4x2x32xf32> to vector<8x8x32xf32>
      %c1_146 = arith.constant 1 : index
      %c1_147 = arith.constant 1 : index
      %c0_148 = arith.constant 0 : index
      %184 = vector.load %arg16[%c1_146, %c1_147, %c0_148] : memref<10x10x32xf32, #tpu.memory_space<vmem>>, vector<8x8x32xf32>
      tpu.vector_store %arg16[%c1_146, %c1_147, %c0_148], %183 {strides = array<i32>} : memref<10x10x32xf32, #tpu.memory_space<vmem>>, vector<8x8x32xf32>,
      %c0_149 = arith.constant 0 : index
      %c0_150 = arith.constant 0 : index
      %c0_151 = arith.constant 0 : index
      %185 = vector.load %arg14[%c0_149, %c0_150, %c0_151] : memref<4x4x32xf32, #tpu.memory_space<vmem>>, vector<4x4x32xf32>
      %186 = vector.extract_strided_slice %185 {offsets = [0, 0, 0], sizes = [2, 2, 32], strides = [1, 1, 1]} : vector<4x4x32xf32> to vector<2x2x32xf32>
      %187 = vector.shape_cast %186 : vector<2x2x32xf32> to vector<4x32xf32>
      %188 = arith.truncf %187 : vector<4x32xf32> to vector<4x32xbf16>
      %c0_152 = arith.constant 0 : index
      %c0_153 = arith.constant 0 : index
      %c0_154 = arith.constant 0 : index
      %189 = vector.load %arg12[%c0_152, %c0_153, %c0_154] : memref<36x32x8xbf16, #tpu.memory_space<vmem>>, vector<1x32x8xbf16>
      %190 = vector.shape_cast %189 : vector<1x32x8xbf16> to vector<32x8xbf16>
      %cst_155 = arith.constant dense<0.000000e+00> : vector<4x8xf32>
      %191 = tpu.matmul %188, %190, %cst_155 {dimension_numbers = #tpu.dot_dimension_numbers<[1], [0], [0], [1], [0, 0, 1, 1], [], []>} : vector<4x32xbf16>, vector<32x8xbf16>, vector<4x8xf32> -> vector<4x8xf32>
      %192 = vector.extract_strided_slice %185 {offsets = [0, 1, 0], sizes = [2, 2, 32], strides = [1, 1, 1]} : vector<4x4x32xf32> to vector<2x2x32xf32>
      %193 = vector.shape_cast %192 : vector<2x2x32xf32> to vector<4x32xf32>
      %194 = arith.truncf %193 : vector<4x32xf32> to vector<4x32xbf16>
      %c1_156 = arith.constant 1 : index
      %c0_157 = arith.constant 0 : index
      %c0_158 = arith.constant 0 : index
      %195 = vector.load %arg12[%c1_156, %c0_157, %c0_158] : memref<36x32x8xbf16, #tpu.memory_space<vmem>>, vector<1x32x8xbf16>
      %196 = vector.shape_cast %195 : vector<1x32x8xbf16> to vector<32x8xbf16>
      %cst_159 = arith.constant dense<0.000000e+00> : vector<4x8xf32>
      %197 = tpu.matmul %194, %196, %cst_159 {dimension_numbers = #tpu.dot_dimension_numbers<[1], [0], [0], [1], [0, 0, 1, 1], [], []>} : vector<4x32xbf16>, vector<32x8xbf16>, vector<4x8xf32> -> vector<4x8xf32>
      %198 = arith.addf %191, %197 : vector<4x8xf32>
      %199 = vector.extract_strided_slice %185 {offsets = [0, 2, 0], sizes = [2, 2, 32], strides = [1, 1, 1]} : vector<4x4x32xf32> to vector<2x2x32xf32>
      %200 = vector.shape_cast %199 : vector<2x2x32xf32> to vector<4x32xf32>
      %201 = arith.truncf %200 : vector<4x32xf32> to vector<4x32xbf16>
      %c2 = arith.constant 2 : index
      %c0_160 = arith.constant 0 : index
      %c0_161 = arith.constant 0 : index
      %202 = vector.load %arg12[%c2, %c0_160, %c0_161] : memref<36x32x8xbf16, #tpu.memory_space<vmem>>, vector<1x32x8xbf16>
      %203 = vector.shape_cast %202 : vector<1x32x8xbf16> to vector<32x8xbf16>
      %cst_162 = arith.constant dense<0.000000e+00> : vector<4x8xf32>
      %204 = tpu.matmul %201, %203, %cst_162 {dimension_numbers = #tpu.dot_dimension_numbers<[1], [0], [0], [1], [0, 0, 1, 1], [], []>} : vector<4x32xbf16>, vector<32x8xbf16>, vector<4x8xf32> -> vector<4x8xf32>
      %205 = arith.addf %198, %204 : vector<4x8xf32>
      %206 = vector.extract_strided_slice %185 {offsets = [1, 0, 0], sizes = [2, 2, 32], strides = [1, 1, 1]} : vector<4x4x32xf32> to vector<2x2x32xf32>
      %207 = vector.shape_cast %206 : vector<2x2x32xf32> to vector<4x32xf32>
      %208 = arith.truncf %207 : vector<4x32xf32> to vector<4x32xbf16>
      %c3_163 = arith.constant 3 : index
      %c0_164 = arith.constant 0 : index
      %c0_165 = arith.constant 0 : index
      %209 = vector.load %arg12[%c3_163, %c0_164, %c0_165] : memref<36x32x8xbf16, #tpu.memory_space<vmem>>, vector<1x32x8xbf16>
      %210 = vector.shape_cast %209 : vector<1x32x8xbf16> to vector<32x8xbf16>
      %cst_166 = arith.constant dense<0.000000e+00> : vector<4x8xf32>
      %211 = tpu.matmul %208, %210, %cst_166 {dimension_numbers = #tpu.dot_dimension_numbers<[1], [0], [0], [1], [0, 0, 1, 1], [], []>} : vector<4x32xbf16>, vector<32x8xbf16>, vector<4x8xf32> -> vector<4x8xf32>
      %212 = arith.addf %205, %211 : vector<4x8xf32>
      %213 = vector.extract_strided_slice %185 {offsets = [1, 1, 0], sizes = [2, 2, 32], strides = [1, 1, 1]} : vector<4x4x32xf32> to vector<2x2x32xf32>
      %214 = vector.shape_cast %213 : vector<2x2x32xf32> to vector<4x32xf32>
      %215 = arith.truncf %214 : vector<4x32xf32> to vector<4x32xbf16>
      %c4 = arith.constant 4 : index
      %c0_167 = arith.constant 0 : index
      %c0_168 = arith.constant 0 : index
      %216 = vector.load %arg12[%c4, %c0_167, %c0_168] : memref<36x32x8xbf16, #tpu.memory_space<vmem>>, vector<1x32x8xbf16>
      %217 = vector.shape_cast %216 : vector<1x32x8xbf16> to vector<32x8xbf16>
      %cst_169 = arith.constant dense<0.000000e+00> : vector<4x8xf32>
      %218 = tpu.matmul %215, %217, %cst_169 {dimension_numbers = #tpu.dot_dimension_numbers<[1], [0], [0], [1], [0, 0, 1, 1], [], []>} : vector<4x32xbf16>, vector<32x8xbf16>, vector<4x8xf32> -> vector<4x8xf32>
      %219 = arith.addf %212, %218 : vector<4x8xf32>
      %220 = vector.extract_strided_slice %185 {offsets = [1, 2, 0], sizes = [2, 2, 32], strides = [1, 1, 1]} : vector<4x4x32xf32> to vector<2x2x32xf32>
      %221 = vector.shape_cast %220 : vector<2x2x32xf32> to vector<4x32xf32>
      %222 = arith.truncf %221 : vector<4x32xf32> to vector<4x32xbf16>
      %c5_170 = arith.constant 5 : index
      %c0_171 = arith.constant 0 : index
      %c0_172 = arith.constant 0 : index
      %223 = vector.load %arg12[%c5_170, %c0_171, %c0_172] : memref<36x32x8xbf16, #tpu.memory_space<vmem>>, vector<1x32x8xbf16>
      %224 = vector.shape_cast %223 : vector<1x32x8xbf16> to vector<32x8xbf16>
      %cst_173 = arith.constant dense<0.000000e+00> : vector<4x8xf32>
      %225 = tpu.matmul %222, %224, %cst_173 {dimension_numbers = #tpu.dot_dimension_numbers<[1], [0], [0], [1], [0, 0, 1, 1], [], []>} : vector<4x32xbf16>, vector<32x8xbf16>, vector<4x8xf32> -> vector<4x8xf32>
      %226 = arith.addf %219, %225 : vector<4x8xf32>
      %227 = vector.extract_strided_slice %185 {offsets = [2, 0, 0], sizes = [2, 2, 32], strides = [1, 1, 1]} : vector<4x4x32xf32> to vector<2x2x32xf32>
      %228 = vector.shape_cast %227 : vector<2x2x32xf32> to vector<4x32xf32>
      %229 = arith.truncf %228 : vector<4x32xf32> to vector<4x32xbf16>
      %c6 = arith.constant 6 : index
      %c0_174 = arith.constant 0 : index
      %c0_175 = arith.constant 0 : index
      %230 = vector.load %arg12[%c6, %c0_174, %c0_175] : memref<36x32x8xbf16, #tpu.memory_space<vmem>>, vector<1x32x8xbf16>
      %231 = vector.shape_cast %230 : vector<1x32x8xbf16> to vector<32x8xbf16>
      %cst_176 = arith.constant dense<0.000000e+00> : vector<4x8xf32>
      %232 = tpu.matmul %229, %231, %cst_176 {dimension_numbers = #tpu.dot_dimension_numbers<[1], [0], [0], [1], [0, 0, 1, 1], [], []>} : vector<4x32xbf16>, vector<32x8xbf16>, vector<4x8xf32> -> vector<4x8xf32>
      %233 = arith.addf %226, %232 : vector<4x8xf32>
      %234 = vector.extract_strided_slice %185 {offsets = [2, 1, 0], sizes = [2, 2, 32], strides = [1, 1, 1]} : vector<4x4x32xf32> to vector<2x2x32xf32>
      %235 = vector.shape_cast %234 : vector<2x2x32xf32> to vector<4x32xf32>
      %236 = arith.truncf %235 : vector<4x32xf32> to vector<4x32xbf16>
      %c7 = arith.constant 7 : index
      %c0_177 = arith.constant 0 : index
      %c0_178 = arith.constant 0 : index
      %237 = vector.load %arg12[%c7, %c0_177, %c0_178] : memref<36x32x8xbf16, #tpu.memory_space<vmem>>, vector<1x32x8xbf16>
      %238 = vector.shape_cast %237 : vector<1x32x8xbf16> to vector<32x8xbf16>
      %cst_179 = arith.constant dense<0.000000e+00> : vector<4x8xf32>
      %239 = tpu.matmul %236, %238, %cst_179 {dimension_numbers = #tpu.dot_dimension_numbers<[1], [0], [0], [1], [0, 0, 1, 1], [], []>} : vector<4x32xbf16>, vector<32x8xbf16>, vector<4x8xf32> -> vector<4x8xf32>
      %240 = arith.addf %233, %239 : vector<4x8xf32>
      %241 = vector.extract_strided_slice %185 {offsets = [2, 2, 0], sizes = [2, 2, 32], strides = [1, 1, 1]} : vector<4x4x32xf32> to vector<2x2x32xf32>
      %242 = vector.shape_cast %241 : vector<2x2x32xf32> to vector<4x32xf32>
      %243 = arith.truncf %242 : vector<4x32xf32> to vector<4x32xbf16>
      %c8 = arith.constant 8 : index
      %c0_180 = arith.constant 0 : index
      %c0_181 = arith.constant 0 : index
      %244 = vector.load %arg12[%c8, %c0_180, %c0_181] : memref<36x32x8xbf16, #tpu.memory_space<vmem>>, vector<1x32x8xbf16>
      %245 = vector.shape_cast %244 : vector<1x32x8xbf16> to vector<32x8xbf16>
      %cst_182 = arith.constant dense<0.000000e+00> : vector<4x8xf32>
      %246 = tpu.matmul %243, %245, %cst_182 {dimension_numbers = #tpu.dot_dimension_numbers<[1], [0], [0], [1], [0, 0, 1, 1], [], []>} : vector<4x32xbf16>, vector<32x8xbf16>, vector<4x8xf32> -> vector<4x8xf32>
      %247 = arith.addf %240, %246 : vector<4x8xf32>
      %248 = vector.shape_cast %247 : vector<4x8xf32> to vector<2x2x8xf32>
      %c0_183 = arith.constant 0 : index
      %c0_184 = arith.constant 0 : index
      %c0_185 = arith.constant 0 : index
      %249 = vector.load %arg18[%c0_183, %c0_184, %c0_185] : memref<2x2x8xf32, #tpu.memory_space<vmem>>, vector<2x2x8xf32>
      tpu.vector_store %arg18[%c0_183, %c0_184, %c0_185], %248 {strides = array<i32>} : memref<2x2x8xf32, #tpu.memory_space<vmem>>, vector<2x2x8xf32>,
      %c0_186 = arith.constant 0 : index
      %c0_187 = arith.constant 0 : index
      %c0_188 = arith.constant 0 : index
      %250 = vector.load %arg15[%c0_186, %c0_187, %c0_188] : memref<6x6x32xf32, #tpu.memory_space<vmem>>, vector<6x6x32xf32>
      %251 = vector.extract_strided_slice %250 {offsets = [0, 0, 0], sizes = [4, 4, 32], strides = [1, 1, 1]} : vector<6x6x32xf32> to vector<4x4x32xf32>
      %252 = vector.shape_cast %251 : vector<4x4x32xf32> to vector<16x32xf32>
      %253 = arith.truncf %252 : vector<16x32xf32> to vector<16x32xbf16>
      %c9_189 = arith.constant 9 : index
      %c0_190 = arith.constant 0 : index
      %c0_191 = arith.constant 0 : index
      %254 = vector.load %arg12[%c9_189, %c0_190, %c0_191] : memref<36x32x8xbf16, #tpu.memory_space<vmem>>, vector<1x32x8xbf16>
      %255 = vector.shape_cast %254 : vector<1x32x8xbf16> to vector<32x8xbf16>
      %cst_192 = arith.constant dense<0.000000e+00> : vector<16x8xf32>
      %256 = tpu.matmul %253, %255, %cst_192 {dimension_numbers = #tpu.dot_dimension_numbers<[1], [0], [0], [1], [0, 0, 1, 1], [], []>} : vector<16x32xbf16>, vector<32x8xbf16>, vector<16x8xf32> -> vector<16x8xf32>
      %257 = vector.extract_strided_slice %250 {offsets = [0, 1, 0], sizes = [4, 4, 32], strides = [1, 1, 1]} : vector<6x6x32xf32> to vector<4x4x32xf32>
      %258 = vector.shape_cast %257 : vector<4x4x32xf32> to vector<16x32xf32>
      %259 = arith.truncf %258 : vector<16x32xf32> to vector<16x32xbf16>
      %c10 = arith.constant 10 : index
      %c0_193 = arith.constant 0 : index
      %c0_194 = arith.constant 0 : index
      %260 = vector.load %arg12[%c10, %c0_193, %c0_194] : memref<36x32x8xbf16, #tpu.memory_space<vmem>>, vector<1x32x8xbf16>
      %261 = vector.shape_cast %260 : vector<1x32x8xbf16> to vector<32x8xbf16>
      %cst_195 = arith.constant dense<0.000000e+00> : vector<16x8xf32>
      %262 = tpu.matmul %259, %261, %cst_195 {dimension_numbers = #tpu.dot_dimension_numbers<[1], [0], [0], [1], [0, 0, 1, 1], [], []>} : vector<16x32xbf16>, vector<32x8xbf16>, vector<16x8xf32> -> vector<16x8xf32>
      %263 = arith.addf %256, %262 : vector<16x8xf32>
      %264 = vector.extract_strided_slice %250 {offsets = [0, 2, 0], sizes = [4, 4, 32], strides = [1, 1, 1]} : vector<6x6x32xf32> to vector<4x4x32xf32>
      %265 = vector.shape_cast %264 : vector<4x4x32xf32> to vector<16x32xf32>
      %266 = arith.truncf %265 : vector<16x32xf32> to vector<16x32xbf16>
      %c11 = arith.constant 11 : index
      %c0_196 = arith.constant 0 : index
      %c0_197 = arith.constant 0 : index
      %267 = vector.load %arg12[%c11, %c0_196, %c0_197] : memref<36x32x8xbf16, #tpu.memory_space<vmem>>, vector<1x32x8xbf16>
      %268 = vector.shape_cast %267 : vector<1x32x8xbf16> to vector<32x8xbf16>
      %cst_198 = arith.constant dense<0.000000e+00> : vector<16x8xf32>
      %269 = tpu.matmul %266, %268, %cst_198 {dimension_numbers = #tpu.dot_dimension_numbers<[1], [0], [0], [1], [0, 0, 1, 1], [], []>} : vector<16x32xbf16>, vector<32x8xbf16>, vector<16x8xf32> -> vector<16x8xf32>
      %270 = arith.addf %263, %269 : vector<16x8xf32>
      %271 = vector.extract_strided_slice %250 {offsets = [1, 0, 0], sizes = [4, 4, 32], strides = [1, 1, 1]} : vector<6x6x32xf32> to vector<4x4x32xf32>
      %272 = vector.shape_cast %271 : vector<4x4x32xf32> to vector<16x32xf32>
      %273 = arith.truncf %272 : vector<16x32xf32> to vector<16x32xbf16>
      %c12 = arith.constant 12 : index
      %c0_199 = arith.constant 0 : index
      %c0_200 = arith.constant 0 : index
      %274 = vector.load %arg12[%c12, %c0_199, %c0_200] : memref<36x32x8xbf16, #tpu.memory_space<vmem>>, vector<1x32x8xbf16>
      %275 = vector.shape_cast %274 : vector<1x32x8xbf16> to vector<32x8xbf16>
      %cst_201 = arith.constant dense<0.000000e+00> : vector<16x8xf32>
      %276 = tpu.matmul %273, %275, %cst_201 {dimension_numbers = #tpu.dot_dimension_numbers<[1], [0], [0], [1], [0, 0, 1, 1], [], []>} : vector<16x32xbf16>, vector<32x8xbf16>, vector<16x8xf32> -> vector<16x8xf32>
      %277 = arith.addf %270, %276 : vector<16x8xf32>
      %278 = vector.extract_strided_slice %250 {offsets = [1, 1, 0], sizes = [4, 4, 32], strides = [1, 1, 1]} : vector<6x6x32xf32> to vector<4x4x32xf32>
      %279 = vector.shape_cast %278 : vector<4x4x32xf32> to vector<16x32xf32>
      %280 = arith.truncf %279 : vector<16x32xf32> to vector<16x32xbf16>
      %c13 = arith.constant 13 : index
      %c0_202 = arith.constant 0 : index
      %c0_203 = arith.constant 0 : index
      %281 = vector.load %arg12[%c13, %c0_202, %c0_203] : memref<36x32x8xbf16, #tpu.memory_space<vmem>>, vector<1x32x8xbf16>
      %282 = vector.shape_cast %281 : vector<1x32x8xbf16> to vector<32x8xbf16>
      %cst_204 = arith.constant dense<0.000000e+00> : vector<16x8xf32>
      %283 = tpu.matmul %280, %282, %cst_204 {dimension_numbers = #tpu.dot_dimension_numbers<[1], [0], [0], [1], [0, 0, 1, 1], [], []>} : vector<16x32xbf16>, vector<32x8xbf16>, vector<16x8xf32> -> vector<16x8xf32>
      %284 = arith.addf %277, %283 : vector<16x8xf32>
      %285 = vector.extract_strided_slice %250 {offsets = [1, 2, 0], sizes = [4, 4, 32], strides = [1, 1, 1]} : vector<6x6x32xf32> to vector<4x4x32xf32>
      %286 = vector.shape_cast %285 : vector<4x4x32xf32> to vector<16x32xf32>
      %287 = arith.truncf %286 : vector<16x32xf32> to vector<16x32xbf16>
      %c14 = arith.constant 14 : index
      %c0_205 = arith.constant 0 : index
      %c0_206 = arith.constant 0 : index
      %288 = vector.load %arg12[%c14, %c0_205, %c0_206] : memref<36x32x8xbf16, #tpu.memory_space<vmem>>, vector<1x32x8xbf16>
      %289 = vector.shape_cast %288 : vector<1x32x8xbf16> to vector<32x8xbf16>
      %cst_207 = arith.constant dense<0.000000e+00> : vector<16x8xf32>
      %290 = tpu.matmul %287, %289, %cst_207 {dimension_numbers = #tpu.dot_dimension_numbers<[1], [0], [0], [1], [0, 0, 1, 1], [], []>} : vector<16x32xbf16>, vector<32x8xbf16>, vector<16x8xf32> -> vector<16x8xf32>
      %291 = arith.addf %284, %290 : vector<16x8xf32>
      %292 = vector.extract_strided_slice %250 {offsets = [2, 0, 0], sizes = [4, 4, 32], strides = [1, 1, 1]} : vector<6x6x32xf32> to vector<4x4x32xf32>
      %293 = vector.shape_cast %292 : vector<4x4x32xf32> to vector<16x32xf32>
      %294 = arith.truncf %293 : vector<16x32xf32> to vector<16x32xbf16>
      %c15 = arith.constant 15 : index
      %c0_208 = arith.constant 0 : index
      %c0_209 = arith.constant 0 : index
      %295 = vector.load %arg12[%c15, %c0_208, %c0_209] : memref<36x32x8xbf16, #tpu.memory_space<vmem>>, vector<1x32x8xbf16>
      %296 = vector.shape_cast %295 : vector<1x32x8xbf16> to vector<32x8xbf16>
      %cst_210 = arith.constant dense<0.000000e+00> : vector<16x8xf32>
      %297 = tpu.matmul %294, %296, %cst_210 {dimension_numbers = #tpu.dot_dimension_numbers<[1], [0], [0], [1], [0, 0, 1, 1], [], []>} : vector<16x32xbf16>, vector<32x8xbf16>, vector<16x8xf32> -> vector<16x8xf32>
      %298 = arith.addf %291, %297 : vector<16x8xf32>
      %299 = vector.extract_strided_slice %250 {offsets = [2, 1, 0], sizes = [4, 4, 32], strides = [1, 1, 1]} : vector<6x6x32xf32> to vector<4x4x32xf32>
      %300 = vector.shape_cast %299 : vector<4x4x32xf32> to vector<16x32xf32>
      %301 = arith.truncf %300 : vector<16x32xf32> to vector<16x32xbf16>
      %c16 = arith.constant 16 : index
      %c0_211 = arith.constant 0 : index
      %c0_212 = arith.constant 0 : index
      %302 = vector.load %arg12[%c16, %c0_211, %c0_212] : memref<36x32x8xbf16, #tpu.memory_space<vmem>>, vector<1x32x8xbf16>
      %303 = vector.shape_cast %302 : vector<1x32x8xbf16> to vector<32x8xbf16>
      %cst_213 = arith.constant dense<0.000000e+00> : vector<16x8xf32>
      %304 = tpu.matmul %301, %303, %cst_213 {dimension_numbers = #tpu.dot_dimension_numbers<[1], [0], [0], [1], [0, 0, 1, 1], [], []>} : vector<16x32xbf16>, vector<32x8xbf16>, vector<16x8xf32> -> vector<16x8xf32>
      %305 = arith.addf %298, %304 : vector<16x8xf32>
      %306 = vector.extract_strided_slice %250 {offsets = [2, 2, 0], sizes = [4, 4, 32], strides = [1, 1, 1]} : vector<6x6x32xf32> to vector<4x4x32xf32>
      %307 = vector.shape_cast %306 : vector<4x4x32xf32> to vector<16x32xf32>
      %308 = arith.truncf %307 : vector<16x32xf32> to vector<16x32xbf16>
      %c17_214 = arith.constant 17 : index
      %c0_215 = arith.constant 0 : index
      %c0_216 = arith.constant 0 : index
      %309 = vector.load %arg12[%c17_214, %c0_215, %c0_216] : memref<36x32x8xbf16, #tpu.memory_space<vmem>>, vector<1x32x8xbf16>
      %310 = vector.shape_cast %309 : vector<1x32x8xbf16> to vector<32x8xbf16>
      %cst_217 = arith.constant dense<0.000000e+00> : vector<16x8xf32>
      %311 = tpu.matmul %308, %310, %cst_217 {dimension_numbers = #tpu.dot_dimension_numbers<[1], [0], [0], [1], [0, 0, 1, 1], [], []>} : vector<16x32xbf16>, vector<32x8xbf16>, vector<16x8xf32> -> vector<16x8xf32>
      %312 = arith.addf %305, %311 : vector<16x8xf32>
      %313 = vector.shape_cast %312 : vector<16x8xf32> to vector<4x4x8xf32>
      %c0_218 = arith.constant 0 : index
      %c0_219 = arith.constant 0 : index
      %c0_220 = arith.constant 0 : index
      %314 = vector.load %arg19[%c0_218, %c0_219, %c0_220] : memref<4x4x8xf32, #tpu.memory_space<vmem>>, vector<4x4x8xf32>
      tpu.vector_store %arg19[%c0_218, %c0_219, %c0_220], %313 {strides = array<i32>} : memref<4x4x8xf32, #tpu.memory_space<vmem>>, vector<4x4x8xf32>,
      %c0_221 = arith.constant 0 : index
      %c0_222 = arith.constant 0 : index
      %c0_223 = arith.constant 0 : index
      %315 = vector.load %arg16[%c0_221, %c0_222, %c0_223] : memref<10x10x32xf32, #tpu.memory_space<vmem>>, vector<10x10x32xf32>
      %316 = vector.extract_strided_slice %315 {offsets = [0, 0, 0], sizes = [8, 8, 32], strides = [1, 1, 1]} : vector<10x10x32xf32> to vector<8x8x32xf32>
      %317 = vector.shape_cast %316 : vector<8x8x32xf32> to vector<64x32xf32>
      %318 = arith.truncf %317 : vector<64x32xf32> to vector<64x32xbf16>
      %c18 = arith.constant 18 : index
      %c0_224 = arith.constant 0 : index
      %c0_225 = arith.constant 0 : index
      %319 = vector.load %arg12[%c18, %c0_224, %c0_225] : memref<36x32x8xbf16, #tpu.memory_space<vmem>>, vector<1x32x8xbf16>
      %320 = vector.shape_cast %319 : vector<1x32x8xbf16> to vector<32x8xbf16>
      %cst_226 = arith.constant dense<0.000000e+00> : vector<64x8xf32>
      %321 = tpu.matmul %318, %320, %cst_226 {dimension_numbers = #tpu.dot_dimension_numbers<[1], [0], [0], [1], [0, 0, 1, 1], [], []>} : vector<64x32xbf16>, vector<32x8xbf16>, vector<64x8xf32> -> vector<64x8xf32>
      %322 = vector.extract_strided_slice %315 {offsets = [0, 1, 0], sizes = [8, 8, 32], strides = [1, 1, 1]} : vector<10x10x32xf32> to vector<8x8x32xf32>
      %323 = vector.shape_cast %322 : vector<8x8x32xf32> to vector<64x32xf32>
      %324 = arith.truncf %323 : vector<64x32xf32> to vector<64x32xbf16>
      %c19 = arith.constant 19 : index
      %c0_227 = arith.constant 0 : index
      %c0_228 = arith.constant 0 : index
      %325 = vector.load %arg12[%c19, %c0_227, %c0_228] : memref<36x32x8xbf16, #tpu.memory_space<vmem>>, vector<1x32x8xbf16>
      %326 = vector.shape_cast %325 : vector<1x32x8xbf16> to vector<32x8xbf16>
      %cst_229 = arith.constant dense<0.000000e+00> : vector<64x8xf32>
      %327 = tpu.matmul %324, %326, %cst_229 {dimension_numbers = #tpu.dot_dimension_numbers<[1], [0], [0], [1], [0, 0, 1, 1], [], []>} : vector<64x32xbf16>, vector<32x8xbf16>, vector<64x8xf32> -> vector<64x8xf32>
      %328 = arith.addf %321, %327 : vector<64x8xf32>
      %329 = vector.extract_strided_slice %315 {offsets = [0, 2, 0], sizes = [8, 8, 32], strides = [1, 1, 1]} : vector<10x10x32xf32> to vector<8x8x32xf32>
      %330 = vector.shape_cast %329 : vector<8x8x32xf32> to vector<64x32xf32>
      %331 = arith.truncf %330 : vector<64x32xf32> to vector<64x32xbf16>
      %c20 = arith.constant 20 : index
      %c0_230 = arith.constant 0 : index
      %c0_231 = arith.constant 0 : index
      %332 = vector.load %arg12[%c20, %c0_230, %c0_231] : memref<36x32x8xbf16, #tpu.memory_space<vmem>>, vector<1x32x8xbf16>
      %333 = vector.shape_cast %332 : vector<1x32x8xbf16> to vector<32x8xbf16>
      %cst_232 = arith.constant dense<0.000000e+00> : vector<64x8xf32>
      %334 = tpu.matmul %331, %333, %cst_232 {dimension_numbers = #tpu.dot_dimension_numbers<[1], [0], [0], [1], [0, 0, 1, 1], [], []>} : vector<64x32xbf16>, vector<32x8xbf16>, vector<64x8xf32> -> vector<64x8xf32>
      %335 = arith.addf %328, %334 : vector<64x8xf32>
      %336 = vector.extract_strided_slice %315 {offsets = [1, 0, 0], sizes = [8, 8, 32], strides = [1, 1, 1]} : vector<10x10x32xf32> to vector<8x8x32xf32>
      %337 = vector.shape_cast %336 : vector<8x8x32xf32> to vector<64x32xf32>
      %338 = arith.truncf %337 : vector<64x32xf32> to vector<64x32xbf16>
      %c21 = arith.constant 21 : index
      %c0_233 = arith.constant 0 : index
      %c0_234 = arith.constant 0 : index
      %339 = vector.load %arg12[%c21, %c0_233, %c0_234] : memref<36x32x8xbf16, #tpu.memory_space<vmem>>, vector<1x32x8xbf16>
      %340 = vector.shape_cast %339 : vector<1x32x8xbf16> to vector<32x8xbf16>
      %cst_235 = arith.constant dense<0.000000e+00> : vector<64x8xf32>
      %341 = tpu.matmul %338, %340, %cst_235 {dimension_numbers = #tpu.dot_dimension_numbers<[1], [0], [0], [1], [0, 0, 1, 1], [], []>} : vector<64x32xbf16>, vector<32x8xbf16>, vector<64x8xf32> -> vector<64x8xf32>
      %342 = arith.addf %335, %341 : vector<64x8xf32>
      %343 = vector.extract_strided_slice %315 {offsets = [1, 1, 0], sizes = [8, 8, 32], strides = [1, 1, 1]} : vector<10x10x32xf32> to vector<8x8x32xf32>
      %344 = vector.shape_cast %343 : vector<8x8x32xf32> to vector<64x32xf32>
      %345 = arith.truncf %344 : vector<64x32xf32> to vector<64x32xbf16>
      %c22 = arith.constant 22 : index
      %c0_236 = arith.constant 0 : index
      %c0_237 = arith.constant 0 : index
      %346 = vector.load %arg12[%c22, %c0_236, %c0_237] : memref<36x32x8xbf16, #tpu.memory_space<vmem>>, vector<1x32x8xbf16>
      %347 = vector.shape_cast %346 : vector<1x32x8xbf16> to vector<32x8xbf16>
      %cst_238 = arith.constant dense<0.000000e+00> : vector<64x8xf32>
      %348 = tpu.matmul %345, %347, %cst_238 {dimension_numbers = #tpu.dot_dimension_numbers<[1], [0], [0], [1], [0, 0, 1, 1], [], []>} : vector<64x32xbf16>, vector<32x8xbf16>, vector<64x8xf32> -> vector<64x8xf32>
      %349 = arith.addf %342, %348 : vector<64x8xf32>
      %350 = vector.extract_strided_slice %315 {offsets = [1, 2, 0], sizes = [8, 8, 32], strides = [1, 1, 1]} : vector<10x10x32xf32> to vector<8x8x32xf32>
      %351 = vector.shape_cast %350 : vector<8x8x32xf32> to vector<64x32xf32>
      %352 = arith.truncf %351 : vector<64x32xf32> to vector<64x32xbf16>
      %c23 = arith.constant 23 : index
      %c0_239 = arith.constant 0 : index
      %c0_240 = arith.constant 0 : index
      %353 = vector.load %arg12[%c23, %c0_239, %c0_240] : memref<36x32x8xbf16, #tpu.memory_space<vmem>>, vector<1x32x8xbf16>
      %354 = vector.shape_cast %353 : vector<1x32x8xbf16> to vector<32x8xbf16>
      %cst_241 = arith.constant dense<0.000000e+00> : vector<64x8xf32>
      %355 = tpu.matmul %352, %354, %cst_241 {dimension_numbers = #tpu.dot_dimension_numbers<[1], [0], [0], [1], [0, 0, 1, 1], [], []>} : vector<64x32xbf16>, vector<32x8xbf16>, vector<64x8xf32> -> vector<64x8xf32>
      %356 = arith.addf %349, %355 : vector<64x8xf32>
      %357 = vector.extract_strided_slice %315 {offsets = [2, 0, 0], sizes = [8, 8, 32], strides = [1, 1, 1]} : vector<10x10x32xf32> to vector<8x8x32xf32>
      %358 = vector.shape_cast %357 : vector<8x8x32xf32> to vector<64x32xf32>
      %359 = arith.truncf %358 : vector<64x32xf32> to vector<64x32xbf16>
      %c24 = arith.constant 24 : index
      %c0_242 = arith.constant 0 : index
      %c0_243 = arith.constant 0 : index
      %360 = vector.load %arg12[%c24, %c0_242, %c0_243] : memref<36x32x8xbf16, #tpu.memory_space<vmem>>, vector<1x32x8xbf16>
      %361 = vector.shape_cast %360 : vector<1x32x8xbf16> to vector<32x8xbf16>
      %cst_244 = arith.constant dense<0.000000e+00> : vector<64x8xf32>
      %362 = tpu.matmul %359, %361, %cst_244 {dimension_numbers = #tpu.dot_dimension_numbers<[1], [0], [0], [1], [0, 0, 1, 1], [], []>} : vector<64x32xbf16>, vector<32x8xbf16>, vector<64x8xf32> -> vector<64x8xf32>
      %363 = arith.addf %356, %362 : vector<64x8xf32>
      %364 = vector.extract_strided_slice %315 {offsets = [2, 1, 0], sizes = [8, 8, 32], strides = [1, 1, 1]} : vector<10x10x32xf32> to vector<8x8x32xf32>
      %365 = vector.shape_cast %364 : vector<8x8x32xf32> to vector<64x32xf32>
      %366 = arith.truncf %365 : vector<64x32xf32> to vector<64x32xbf16>
      %c25 = arith.constant 25 : index
      %c0_245 = arith.constant 0 : index
      %c0_246 = arith.constant 0 : index
      %367 = vector.load %arg12[%c25, %c0_245, %c0_246] : memref<36x32x8xbf16, #tpu.memory_space<vmem>>, vector<1x32x8xbf16>
      %368 = vector.shape_cast %367 : vector<1x32x8xbf16> to vector<32x8xbf16>
      %cst_247 = arith.constant dense<0.000000e+00> : vector<64x8xf32>
      %369 = tpu.matmul %366, %368, %cst_247 {dimension_numbers = #tpu.dot_dimension_numbers<[1], [0], [0], [1], [0, 0, 1, 1], [], []>} : vector<64x32xbf16>, vector<32x8xbf16>, vector<64x8xf32> -> vector<64x8xf32>
      %370 = arith.addf %363, %369 : vector<64x8xf32>
      %371 = vector.extract_strided_slice %315 {offsets = [2, 2, 0], sizes = [8, 8, 32], strides = [1, 1, 1]} : vector<10x10x32xf32> to vector<8x8x32xf32>
      %372 = vector.shape_cast %371 : vector<8x8x32xf32> to vector<64x32xf32>
      %373 = arith.truncf %372 : vector<64x32xf32> to vector<64x32xbf16>
      %c26 = arith.constant 26 : index
      %c0_248 = arith.constant 0 : index
      %c0_249 = arith.constant 0 : index
      %374 = vector.load %arg12[%c26, %c0_248, %c0_249] : memref<36x32x8xbf16, #tpu.memory_space<vmem>>, vector<1x32x8xbf16>
      %375 = vector.shape_cast %374 : vector<1x32x8xbf16> to vector<32x8xbf16>
      %cst_250 = arith.constant dense<0.000000e+00> : vector<64x8xf32>
      %376 = tpu.matmul %373, %375, %cst_250 {dimension_numbers = #tpu.dot_dimension_numbers<[1], [0], [0], [1], [0, 0, 1, 1], [], []>} : vector<64x32xbf16>, vector<32x8xbf16>, vector<64x8xf32> -> vector<64x8xf32>
      %377 = arith.addf %370, %376 : vector<64x8xf32>
      %378 = vector.shape_cast %377 : vector<64x8xf32> to vector<8x8x8xf32>
      %c0_251 = arith.constant 0 : index
      %c0_252 = arith.constant 0 : index
      %c0_253 = arith.constant 0 : index
      %379 = vector.load %arg20[%c0_251, %c0_252, %c0_253] : memref<8x8x8xf32, #tpu.memory_space<vmem>>, vector<8x8x8xf32>
      tpu.vector_store %arg20[%c0_251, %c0_252, %c0_253], %378 {strides = array<i32>} : memref<8x8x8xf32, #tpu.memory_space<vmem>>, vector<8x8x8xf32>,
    } else {
    }
    %c4_i32 = arith.constant 4 : i32
    %3 = arith.muli %arg1, %c4_i32 : i32
    %4 = tpu.assume_multiple %3, 4 : i32
    %c2_i32 = arith.constant 2 : i32
    %5 = arith.muli %arg1, %c2_i32 : i32
    %6 = tpu.assume_multiple %5, 2 : i32
    %c1_i32 = arith.constant 1 : i32
    %7 = arith.muli %arg1, %c1_i32 : i32
    %8 = tpu.assume_multiple %7, 1 : i32
    %c0 = arith.constant 0 : index
    %c0_1 = arith.constant 0 : index
    %c0_2 = arith.constant 0 : index
    %c0_3 = arith.constant 0 : index
    %9 = vector.load %arg2[%c0, %c0_1, %c0_2, %c0_3] : memref<1x8x16x4xbf16, #tpu.memory_space<vmem>>, vector<1x8x16x4xbf16>
    %10 = vector.shape_cast %9 : vector<1x8x16x4xbf16> to vector<8x16x4xbf16>
    %11 = vector.shape_cast %10 : vector<8x16x4xbf16> to vector<128x4xbf16>
    %c0_4 = arith.constant 0 : index
    %c0_5 = arith.constant 0 : index
    %12 = vector.load %arg8[%c0_4, %c0_5] : memref<4x32xbf16, #tpu.memory_space<vmem>>, vector<4x32xbf16>
    %cst = arith.constant dense<0.000000e+00> : vector<128x32xf32>
    %13 = tpu.matmul %11, %12, %cst {dimension_numbers = #tpu.dot_dimension_numbers<[1], [0], [0], [1], [0, 0, 1, 1], [], []>} : vector<128x4xbf16>, vector<4x32xbf16>, vector<128x32xf32> -> vector<128x32xf32>
    %14 = vector.shape_cast %13 : vector<128x32xf32> to vector<8x16x32xf32>
    %c1_i32_6 = arith.constant 1 : i32
    %15 = arith.addi %c1_i32_6, %4 : i32
    %16 = arith.index_cast %15 : i32 to index
    %c1 = arith.constant 1 : index
    %c0_7 = arith.constant 0 : index
    %17 = vector.load %arg16[%16, %c1, %c0_7] : memref<10x10x32xf32, #tpu.memory_space<vmem>>, vector<4x8x32xf32>
    %18 = vector.shape_cast %14 : vector<8x16x32xf32> to vector<4x2x8x2x32xf32>
    %19 = vector.shape_cast %17 : vector<4x8x32xf32> to vector<4x1x8x1x32xf32>
    %20 = vector.broadcast %19 : vector<4x1x8x1x32xf32> to vector<4x2x8x2x32xf32>
    %21 = arith.addf %18, %20 : vector<4x2x8x2x32xf32>
    %22 = vector.shape_cast %21 : vector<4x2x8x2x32xf32> to vector<8x16x32xf32>
    %c1_8 = arith.constant 1 : index
    %c1_9 = arith.constant 1 : index
    %c0_10 = arith.constant 0 : index
    %23 = vector.load %arg17[%c1_8, %c1_9, %c0_10] : memref<10x18x32xf32, #tpu.memory_space<vmem>>, vector<8x16x32xf32>
    tpu.vector_store %arg17[%c1_8, %c1_9, %c0_10], %22 {strides = array<i32>} : memref<10x18x32xf32, #tpu.memory_space<vmem>>, vector<8x16x32xf32>,
    %c0_i32_11 = arith.constant 0 : i32
    %24 = arith.cmpi sgt, %arg1, %c0_i32_11 : i32
    %25 = arith.extui %24 : i1 to i32
    %c0_i32_12 = arith.constant 0 : i32
    %26 = arith.cmpi ne, %25, %c0_i32_12 : i32
    scf.if %26 {
      %c0_59 = arith.constant 0 : index
      %c0_60 = arith.constant 0 : index
      %c0_61 = arith.constant 0 : index
      %c0_62 = arith.constant 0 : index
      %122 = vector.load %arg3[%c0_59, %c0_60, %c0_61, %c0_62] : memref<1x1x16x4xbf16, #tpu.memory_space<vmem>>, vector<1x1x16x4xbf16>
      %123 = vector.shape_cast %122 : vector<1x1x16x4xbf16> to vector<1x16x4xbf16>
      %124 = vector.shape_cast %123 : vector<1x16x4xbf16> to vector<16x4xbf16>
      %c0_63 = arith.constant 0 : index
      %c0_64 = arith.constant 0 : index
      %125 = vector.load %arg8[%c0_63, %c0_64] : memref<4x32xbf16, #tpu.memory_space<vmem>>, vector<4x32xbf16>
      %cst_65 = arith.constant dense<0.000000e+00> : vector<16x32xf32>
      %126 = tpu.matmul %124, %125, %cst_65 {dimension_numbers = #tpu.dot_dimension_numbers<[1], [0], [0], [1], [0, 0, 1, 1], [], []>} : vector<16x4xbf16>, vector<4x32xbf16>, vector<16x32xf32> -> vector<16x32xf32>
      %127 = vector.shape_cast %126 : vector<16x32xf32> to vector<1x16x32xf32>
      %128 = arith.index_cast %4 : i32 to index
      %c1_66 = arith.constant 1 : index
      %c0_67 = arith.constant 0 : index
      %129 = vector.load %arg16[%128, %c1_66, %c0_67] : memref<10x10x32xf32, #tpu.memory_space<vmem>>, vector<1x8x32xf32>
      %130 = vector.shape_cast %127 : vector<1x16x32xf32> to vector<1x8x2x32xf32>
      %131 = vector.shape_cast %129 : vector<1x8x32xf32> to vector<1x8x1x32xf32>
      %132 = vector.broadcast %131 : vector<1x8x1x32xf32> to vector<1x8x2x32xf32>
      %133 = arith.addf %130, %132 : vector<1x8x2x32xf32>
      %134 = vector.shape_cast %133 : vector<1x8x2x32xf32> to vector<1x16x32xf32>
      %c0_68 = arith.constant 0 : index
      %c1_69 = arith.constant 1 : index
      %c0_70 = arith.constant 0 : index
      %135 = vector.load %arg17[%c0_68, %c1_69, %c0_70] : memref<10x18x32xf32, #tpu.memory_space<vmem>>, vector<1x16x32xf32>
      tpu.vector_store %arg17[%c0_68, %c1_69, %c0_70], %134 {strides = array<i32>} : memref<10x18x32xf32, #tpu.memory_space<vmem>>, vector<1x16x32xf32>,
    } else {
    }
    %c0_i32_13 = arith.constant 0 : i32
    %27 = arith.cmpi eq, %arg1, %c0_i32_13 : i32
    %28 = arith.extui %27 : i1 to i32
    %c0_i32_14 = arith.constant 0 : i32
    %29 = arith.cmpi ne, %28, %c0_i32_14 : i32
    scf.if %29 {
      %cst_59 = arith.constant 0.000000e+00 : f32
      %122 = vector.broadcast %cst_59 : f32 to vector<1x16x32xf32>
      %c0_60 = arith.constant 0 : index
      %c1_61 = arith.constant 1 : index
      %c0_62 = arith.constant 0 : index
      %123 = vector.load %arg17[%c0_60, %c1_61, %c0_62] : memref<10x18x32xf32, #tpu.memory_space<vmem>>, vector<1x16x32xf32>
      tpu.vector_store %arg17[%c0_60, %c1_61, %c0_62], %122 {strides = array<i32>} : memref<10x18x32xf32, #tpu.memory_space<vmem>>, vector<1x16x32xf32>,
    } else {
    }
    %c1_i32_15 = arith.constant 1 : i32
    %30 = arith.cmpi slt, %arg1, %c1_i32_15 : i32
    %31 = arith.extui %30 : i1 to i32
    %c0_i32_16 = arith.constant 0 : i32
    %32 = arith.cmpi ne, %31, %c0_i32_16 : i32
    scf.if %32 {
      %c0_59 = arith.constant 0 : index
      %c0_60 = arith.constant 0 : index
      %c0_61 = arith.constant 0 : index
      %c0_62 = arith.constant 0 : index
      %122 = vector.load %arg4[%c0_59, %c0_60, %c0_61, %c0_62] : memref<1x1x16x4xbf16, #tpu.memory_space<vmem>>, vector<1x1x16x4xbf16>
      %123 = vector.shape_cast %122 : vector<1x1x16x4xbf16> to vector<1x16x4xbf16>
      %124 = vector.shape_cast %123 : vector<1x16x4xbf16> to vector<16x4xbf16>
      %c0_63 = arith.constant 0 : index
      %c0_64 = arith.constant 0 : index
      %125 = vector.load %arg8[%c0_63, %c0_64] : memref<4x32xbf16, #tpu.memory_space<vmem>>, vector<4x32xbf16>
      %cst_65 = arith.constant dense<0.000000e+00> : vector<16x32xf32>
      %126 = tpu.matmul %124, %125, %cst_65 {dimension_numbers = #tpu.dot_dimension_numbers<[1], [0], [0], [1], [0, 0, 1, 1], [], []>} : vector<16x4xbf16>, vector<4x32xbf16>, vector<16x32xf32> -> vector<16x32xf32>
      %127 = vector.shape_cast %126 : vector<16x32xf32> to vector<1x16x32xf32>
      %c1_i32_66 = arith.constant 1 : i32
      %128 = arith.addi %c1_i32_66, %4 : i32
      %c4_i32_67 = arith.constant 4 : i32
      %129 = arith.addi %128, %c4_i32_67 : i32
      %130 = arith.index_cast %129 : i32 to index
      %c1_68 = arith.constant 1 : index
      %c0_69 = arith.constant 0 : index
      %131 = vector.load %arg16[%130, %c1_68, %c0_69] : memref<10x10x32xf32, #tpu.memory_space<vmem>>, vector<1x8x32xf32>
      %132 = vector.shape_cast %127 : vector<1x16x32xf32> to vector<1x8x2x32xf32>
      %133 = vector.shape_cast %131 : vector<1x8x32xf32> to vector<1x8x1x32xf32>
      %134 = vector.broadcast %133 : vector<1x8x1x32xf32> to vector<1x8x2x32xf32>
      %135 = arith.addf %132, %134 : vector<1x8x2x32xf32>
      %136 = vector.shape_cast %135 : vector<1x8x2x32xf32> to vector<1x16x32xf32>
      %c9 = arith.constant 9 : index
      %c1_70 = arith.constant 1 : index
      %c0_71 = arith.constant 0 : index
      %137 = vector.load %arg17[%c9, %c1_70, %c0_71] : memref<10x18x32xf32, #tpu.memory_space<vmem>>, vector<1x16x32xf32>
      tpu.vector_store %arg17[%c9, %c1_70, %c0_71], %136 {strides = array<i32>} : memref<10x18x32xf32, #tpu.memory_space<vmem>>, vector<1x16x32xf32>,
    } else {
    }
    %c1_i32_17 = arith.constant 1 : i32
    %33 = arith.cmpi eq, %arg1, %c1_i32_17 : i32
    %34 = arith.extui %33 : i1 to i32
    %c0_i32_18 = arith.constant 0 : i32
    %35 = arith.cmpi ne, %34, %c0_i32_18 : i32
    scf.if %35 {
      %cst_59 = arith.constant 0.000000e+00 : f32
      %122 = vector.broadcast %cst_59 : f32 to vector<1x16x32xf32>
      %c9 = arith.constant 9 : index
      %c1_60 = arith.constant 1 : index
      %c0_61 = arith.constant 0 : index
      %123 = vector.load %arg17[%c9, %c1_60, %c0_61] : memref<10x18x32xf32, #tpu.memory_space<vmem>>, vector<1x16x32xf32>
      tpu.vector_store %arg17[%c9, %c1_60, %c0_61], %122 {strides = array<i32>} : memref<10x18x32xf32, #tpu.memory_space<vmem>>, vector<1x16x32xf32>,
    } else {
    }
    %c0_19 = arith.constant 0 : index
    %c0_20 = arith.constant 0 : index
    %c0_21 = arith.constant 0 : index
    %36 = vector.load %arg17[%c0_19, %c0_20, %c0_21] : memref<10x18x32xf32, #tpu.memory_space<vmem>>, vector<10x18x32xf32>
    %37 = vector.extract_strided_slice %36 {offsets = [0, 0, 0], sizes = [8, 16, 32], strides = [1, 1, 1]} : vector<10x18x32xf32> to vector<8x16x32xf32>
    %38 = vector.shape_cast %37 : vector<8x16x32xf32> to vector<128x32xf32>
    %39 = arith.truncf %38 : vector<128x32xf32> to vector<128x32xbf16>
    %c27 = arith.constant 27 : index
    %c0_22 = arith.constant 0 : index
    %c0_23 = arith.constant 0 : index
    %40 = vector.load %arg12[%c27, %c0_22, %c0_23] : memref<36x32x8xbf16, #tpu.memory_space<vmem>>, vector<1x32x8xbf16>
    %41 = vector.shape_cast %40 : vector<1x32x8xbf16> to vector<32x8xbf16>
    %cst_24 = arith.constant dense<0.000000e+00> : vector<128x8xf32>
    %42 = tpu.matmul %39, %41, %cst_24 {dimension_numbers = #tpu.dot_dimension_numbers<[1], [0], [0], [1], [0, 0, 1, 1], [], []>} : vector<128x32xbf16>, vector<32x8xbf16>, vector<128x8xf32> -> vector<128x8xf32>
    %43 = vector.extract_strided_slice %36 {offsets = [0, 1, 0], sizes = [8, 16, 32], strides = [1, 1, 1]} : vector<10x18x32xf32> to vector<8x16x32xf32>
    %44 = vector.shape_cast %43 : vector<8x16x32xf32> to vector<128x32xf32>
    %45 = arith.truncf %44 : vector<128x32xf32> to vector<128x32xbf16>
    %c28 = arith.constant 28 : index
    %c0_25 = arith.constant 0 : index
    %c0_26 = arith.constant 0 : index
    %46 = vector.load %arg12[%c28, %c0_25, %c0_26] : memref<36x32x8xbf16, #tpu.memory_space<vmem>>, vector<1x32x8xbf16>
    %47 = vector.shape_cast %46 : vector<1x32x8xbf16> to vector<32x8xbf16>
    %cst_27 = arith.constant dense<0.000000e+00> : vector<128x8xf32>
    %48 = tpu.matmul %45, %47, %cst_27 {dimension_numbers = #tpu.dot_dimension_numbers<[1], [0], [0], [1], [0, 0, 1, 1], [], []>} : vector<128x32xbf16>, vector<32x8xbf16>, vector<128x8xf32> -> vector<128x8xf32>
    %49 = arith.addf %42, %48 : vector<128x8xf32>
    %50 = vector.extract_strided_slice %36 {offsets = [0, 2, 0], sizes = [8, 16, 32], strides = [1, 1, 1]} : vector<10x18x32xf32> to vector<8x16x32xf32>
    %51 = vector.shape_cast %50 : vector<8x16x32xf32> to vector<128x32xf32>
    %52 = arith.truncf %51 : vector<128x32xf32> to vector<128x32xbf16>
    %c29 = arith.constant 29 : index
    %c0_28 = arith.constant 0 : index
    %c0_29 = arith.constant 0 : index
    %53 = vector.load %arg12[%c29, %c0_28, %c0_29] : memref<36x32x8xbf16, #tpu.memory_space<vmem>>, vector<1x32x8xbf16>
    %54 = vector.shape_cast %53 : vector<1x32x8xbf16> to vector<32x8xbf16>
    %cst_30 = arith.constant dense<0.000000e+00> : vector<128x8xf32>
    %55 = tpu.matmul %52, %54, %cst_30 {dimension_numbers = #tpu.dot_dimension_numbers<[1], [0], [0], [1], [0, 0, 1, 1], [], []>} : vector<128x32xbf16>, vector<32x8xbf16>, vector<128x8xf32> -> vector<128x8xf32>
    %56 = arith.addf %49, %55 : vector<128x8xf32>
    %57 = vector.extract_strided_slice %36 {offsets = [1, 0, 0], sizes = [8, 16, 32], strides = [1, 1, 1]} : vector<10x18x32xf32> to vector<8x16x32xf32>
    %58 = vector.shape_cast %57 : vector<8x16x32xf32> to vector<128x32xf32>
    %59 = arith.truncf %58 : vector<128x32xf32> to vector<128x32xbf16>
    %c30 = arith.constant 30 : index
    %c0_31 = arith.constant 0 : index
    %c0_32 = arith.constant 0 : index
    %60 = vector.load %arg12[%c30, %c0_31, %c0_32] : memref<36x32x8xbf16, #tpu.memory_space<vmem>>, vector<1x32x8xbf16>
    %61 = vector.shape_cast %60 : vector<1x32x8xbf16> to vector<32x8xbf16>
    %cst_33 = arith.constant dense<0.000000e+00> : vector<128x8xf32>
    %62 = tpu.matmul %59, %61, %cst_33 {dimension_numbers = #tpu.dot_dimension_numbers<[1], [0], [0], [1], [0, 0, 1, 1], [], []>} : vector<128x32xbf16>, vector<32x8xbf16>, vector<128x8xf32> -> vector<128x8xf32>
    %63 = arith.addf %56, %62 : vector<128x8xf32>
    %64 = vector.extract_strided_slice %36 {offsets = [1, 1, 0], sizes = [8, 16, 32], strides = [1, 1, 1]} : vector<10x18x32xf32> to vector<8x16x32xf32>
    %65 = vector.shape_cast %64 : vector<8x16x32xf32> to vector<128x32xf32>
    %66 = arith.truncf %65 : vector<128x32xf32> to vector<128x32xbf16>
    %c31 = arith.constant 31 : index
    %c0_34 = arith.constant 0 : index
    %c0_35 = arith.constant 0 : index
    %67 = vector.load %arg12[%c31, %c0_34, %c0_35] : memref<36x32x8xbf16, #tpu.memory_space<vmem>>, vector<1x32x8xbf16>
    %68 = vector.shape_cast %67 : vector<1x32x8xbf16> to vector<32x8xbf16>
    %cst_36 = arith.constant dense<0.000000e+00> : vector<128x8xf32>
    %69 = tpu.matmul %66, %68, %cst_36 {dimension_numbers = #tpu.dot_dimension_numbers<[1], [0], [0], [1], [0, 0, 1, 1], [], []>} : vector<128x32xbf16>, vector<32x8xbf16>, vector<128x8xf32> -> vector<128x8xf32>
    %70 = arith.addf %63, %69 : vector<128x8xf32>
    %71 = vector.extract_strided_slice %36 {offsets = [1, 2, 0], sizes = [8, 16, 32], strides = [1, 1, 1]} : vector<10x18x32xf32> to vector<8x16x32xf32>
    %72 = vector.shape_cast %71 : vector<8x16x32xf32> to vector<128x32xf32>
    %73 = arith.truncf %72 : vector<128x32xf32> to vector<128x32xbf16>
    %c32 = arith.constant 32 : index
    %c0_37 = arith.constant 0 : index
    %c0_38 = arith.constant 0 : index
    %74 = vector.load %arg12[%c32, %c0_37, %c0_38] : memref<36x32x8xbf16, #tpu.memory_space<vmem>>, vector<1x32x8xbf16>
    %75 = vector.shape_cast %74 : vector<1x32x8xbf16> to vector<32x8xbf16>
    %cst_39 = arith.constant dense<0.000000e+00> : vector<128x8xf32>
    %76 = tpu.matmul %73, %75, %cst_39 {dimension_numbers = #tpu.dot_dimension_numbers<[1], [0], [0], [1], [0, 0, 1, 1], [], []>} : vector<128x32xbf16>, vector<32x8xbf16>, vector<128x8xf32> -> vector<128x8xf32>
    %77 = arith.addf %70, %76 : vector<128x8xf32>
    %78 = vector.extract_strided_slice %36 {offsets = [2, 0, 0], sizes = [8, 16, 32], strides = [1, 1, 1]} : vector<10x18x32xf32> to vector<8x16x32xf32>
    %79 = vector.shape_cast %78 : vector<8x16x32xf32> to vector<128x32xf32>
    %80 = arith.truncf %79 : vector<128x32xf32> to vector<128x32xbf16>
    %c33 = arith.constant 33 : index
    %c0_40 = arith.constant 0 : index
    %c0_41 = arith.constant 0 : index
    %81 = vector.load %arg12[%c33, %c0_40, %c0_41] : memref<36x32x8xbf16, #tpu.memory_space<vmem>>, vector<1x32x8xbf16>
    %82 = vector.shape_cast %81 : vector<1x32x8xbf16> to vector<32x8xbf16>
    %cst_42 = arith.constant dense<0.000000e+00> : vector<128x8xf32>
    %83 = tpu.matmul %80, %82, %cst_42 {dimension_numbers = #tpu.dot_dimension_numbers<[1], [0], [0], [1], [0, 0, 1, 1], [], []>} : vector<128x32xbf16>, vector<32x8xbf16>, vector<128x8xf32> -> vector<128x8xf32>
    %84 = arith.addf %77, %83 : vector<128x8xf32>
    %85 = vector.extract_strided_slice %36 {offsets = [2, 1, 0], sizes = [8, 16, 32], strides = [1, 1, 1]} : vector<10x18x32xf32> to vector<8x16x32xf32>
    %86 = vector.shape_cast %85 : vector<8x16x32xf32> to vector<128x32xf32>
    %87 = arith.truncf %86 : vector<128x32xf32> to vector<128x32xbf16>
    %c34 = arith.constant 34 : index
    %c0_43 = arith.constant 0 : index
    %c0_44 = arith.constant 0 : index
    %88 = vector.load %arg12[%c34, %c0_43, %c0_44] : memref<36x32x8xbf16, #tpu.memory_space<vmem>>, vector<1x32x8xbf16>
    %89 = vector.shape_cast %88 : vector<1x32x8xbf16> to vector<32x8xbf16>
    %cst_45 = arith.constant dense<0.000000e+00> : vector<128x8xf32>
    %90 = tpu.matmul %87, %89, %cst_45 {dimension_numbers = #tpu.dot_dimension_numbers<[1], [0], [0], [1], [0, 0, 1, 1], [], []>} : vector<128x32xbf16>, vector<32x8xbf16>, vector<128x8xf32> -> vector<128x8xf32>
    %91 = arith.addf %84, %90 : vector<128x8xf32>
    %92 = vector.extract_strided_slice %36 {offsets = [2, 2, 0], sizes = [8, 16, 32], strides = [1, 1, 1]} : vector<10x18x32xf32> to vector<8x16x32xf32>
    %93 = vector.shape_cast %92 : vector<8x16x32xf32> to vector<128x32xf32>
    %94 = arith.truncf %93 : vector<128x32xf32> to vector<128x32xbf16>
    %c35 = arith.constant 35 : index
    %c0_46 = arith.constant 0 : index
    %c0_47 = arith.constant 0 : index
    %95 = vector.load %arg12[%c35, %c0_46, %c0_47] : memref<36x32x8xbf16, #tpu.memory_space<vmem>>, vector<1x32x8xbf16>
    %96 = vector.shape_cast %95 : vector<1x32x8xbf16> to vector<32x8xbf16>
    %cst_48 = arith.constant dense<0.000000e+00> : vector<128x8xf32>
    %97 = tpu.matmul %94, %96, %cst_48 {dimension_numbers = #tpu.dot_dimension_numbers<[1], [0], [0], [1], [0, 0, 1, 1], [], []>} : vector<128x32xbf16>, vector<32x8xbf16>, vector<128x8xf32> -> vector<128x8xf32>
    %98 = arith.addf %91, %97 : vector<128x8xf32>
    %99 = vector.shape_cast %98 : vector<128x8xf32> to vector<8x16x8xf32>
    %100 = arith.index_cast %8 : i32 to index
    %c0_49 = arith.constant 0 : index
    %c0_50 = arith.constant 0 : index
    %101 = vector.load %arg18[%100, %c0_49, %c0_50] : memref<2x2x8xf32, #tpu.memory_space<vmem>>, vector<1x2x8xf32>
    %102 = arith.index_cast %6 : i32 to index
    %c0_51 = arith.constant 0 : index
    %c0_52 = arith.constant 0 : index
    %103 = vector.load %arg19[%102, %c0_51, %c0_52] : memref<4x4x8xf32, #tpu.memory_space<vmem>>, vector<2x4x8xf32>
    %104 = arith.index_cast %4 : i32 to index
    %c0_53 = arith.constant 0 : index
    %c0_54 = arith.constant 0 : index
    %105 = vector.load %arg20[%104, %c0_53, %c0_54] : memref<8x8x8xf32, #tpu.memory_space<vmem>>, vector<4x8x8xf32>
    %106 = vector.shape_cast %101 : vector<1x2x8xf32> to vector<1x1x2x1x8xf32>
    %107 = vector.shape_cast %106 : vector<1x1x2x1x8xf32> to vector<1x1x2x1x8xf32>
    %108 = vector.broadcast %107 : vector<1x1x2x1x8xf32> to vector<1x8x2x8x8xf32>
    %109 = vector.shape_cast %108 : vector<1x8x2x8x8xf32> to vector<8x16x8xf32>
    %110 = vector.shape_cast %103 : vector<2x4x8xf32> to vector<2x1x4x1x8xf32>
    %111 = vector.shape_cast %110 : vector<2x1x4x1x8xf32> to vector<2x1x4x1x8xf32>
    %112 = vector.broadcast %111 : vector<2x1x4x1x8xf32> to vector<2x4x4x4x8xf32>
    %113 = vector.shape_cast %112 : vector<2x4x4x4x8xf32> to vector<8x16x8xf32>
    %114 = vector.shape_cast %105 : vector<4x8x8xf32> to vector<4x1x8x1x8xf32>
    %115 = vector.shape_cast %114 : vector<4x1x8x1x8xf32> to vector<4x1x8x1x8xf32>
    %116 = vector.broadcast %115 : vector<4x1x8x1x8xf32> to vector<4x2x8x2x8xf32>
    %117 = vector.shape_cast %116 : vector<4x2x8x2x8xf32> to vector<8x16x8xf32>
    %118 = tpu.concatenate %109, %113, %117, %99 in 2 : vector<8x16x8xf32>, vector<8x16x8xf32>, vector<8x16x8xf32>, vector<8x16x8xf32> -> vector<8x16x32xf32>
    %c0_55 = arith.constant 0 : index
    %c0_56 = arith.constant 0 : index
    %c0_57 = arith.constant 0 : index
    %c0_58 = arith.constant 0 : index
    %119 = vector.load %arg13[%c0_55, %c0_56, %c0_57, %c0_58] : memref<1x8x16x32xf32, #tpu.memory_space<vmem>>, vector<1x8x16x32xf32>
    %120 = vector.shape_cast %119 : vector<1x8x16x32xf32> to vector<8x16x32xf32>
    %121 = vector.shape_cast %118 : vector<8x16x32xf32> to vector<1x8x16x32xf32>
    tpu.vector_store %arg13[%c0_55, %c0_56, %c0_57, %c0_58], %121 {strides = array<i32>} : memref<1x8x16x32xf32, #tpu.memory_space<vmem>>, vector<1x8x16x32xf32>,
    return
  }
  func.func @transform_0(%arg0: i32, %arg1: i32) -> (i32, i32, i32, i32) {
    %c0_i32 = arith.constant 0 : i32
    %c0_i32_0 = arith.constant 0 : i32
    %c0_i32_1 = arith.constant 0 : i32
    return %arg0, %arg1, %c0_i32, %c0_i32_0 : i32, i32, i32, i32
  }
  func.func @transform_1(%arg0: i32, %arg1: i32) -> (i32, i32, i32, i32) {
    %c8_i32 = arith.constant 8 : i32
    %0 = arith.muli %arg1, %c8_i32 : i32
    %c1_i32 = arith.constant 1 : i32
    %1 = arith.subi %0, %c1_i32 : i32
    %c0_i32 = arith.constant 0 : i32
    %2 = arith.maxsi %1, %c0_i32 : i32
    %c0_i32_0 = arith.constant 0 : i32
    %c0_i32_1 = arith.constant 0 : i32
    %c0_i32_2 = arith.constant 0 : i32
    return %arg0, %2, %c0_i32_0, %c0_i32_1 : i32, i32, i32, i32
  }
  func.func @transform_2(%arg0: i32, %arg1: i32) -> (i32, i32, i32, i32) {
    %c1_i32 = arith.constant 1 : i32
    %0 = arith.addi %arg1, %c1_i32 : i32
    %c8_i32 = arith.constant 8 : i32
    %1 = arith.muli %0, %c8_i32 : i32
    %c15_i32 = arith.constant 15 : i32
    %2 = arith.minsi %1, %c15_i32 : i32
    %c0_i32 = arith.constant 0 : i32
    %c0_i32_0 = arith.constant 0 : i32
    %c0_i32_1 = arith.constant 0 : i32
    return %arg0, %2, %c0_i32, %c0_i32_0 : i32, i32, i32, i32
  }
  func.func @transform_3(%arg0: i32, %arg1: i32) -> (i32, i32, i32, i32) {
    %c0_i32 = arith.constant 0 : i32
    %c0_i32_0 = arith.constant 0 : i32
    %c0_i32_1 = arith.constant 0 : i32
    %c0_i32_2 = arith.constant 0 : i32
    return %arg0, %c0_i32, %c0_i32_0, %c0_i32_1 : i32, i32, i32, i32
  }
  func.func @transform_4(%arg0: i32, %arg1: i32) -> (i32, i32, i32, i32) {
    %c0_i32 = arith.constant 0 : i32
    %c0_i32_0 = arith.constant 0 : i32
    %c0_i32_1 = arith.constant 0 : i32
    %c0_i32_2 = arith.constant 0 : i32
    return %arg0, %c0_i32, %c0_i32_0, %c0_i32_1 : i32, i32, i32, i32
  }
  func.func @transform_5(%arg0: i32, %arg1: i32) -> (i32, i32, i32, i32) {
    %c0_i32 = arith.constant 0 : i32
    %c0_i32_0 = arith.constant 0 : i32
    %c0_i32_1 = arith.constant 0 : i32
    %c0_i32_2 = arith.constant 0 : i32
    return %arg0, %c0_i32, %c0_i32_0, %c0_i32_1 : i32, i32, i32, i32
  }
  func.func @transform_6(%arg0: i32, %arg1: i32) -> (i32, i32) {
    %c0_i32 = arith.constant 0 : i32
    %c0_i32_0 = arith.constant 0 : i32
    %c0_i32_1 = arith.constant 0 : i32
    return %c0_i32, %c0_i32_0 : i32, i32
  }
  func.func @transform_7(%arg0: i32, %arg1: i32) -> (i32, i32) {
    %c0_i32 = arith.constant 0 : i32
    %c0_i32_0 = arith.constant 0 : i32
    %c0_i32_1 = arith.constant 0 : i32
    return %c0_i32, %c0_i32_0 : i32, i32
  }
  func.func @transform_8(%arg0: i32, %arg1: i32) -> (i32, i32) {
    %c0_i32 = arith.constant 0 : i32
    %c0_i32_0 = arith.constant 0 : i32
    %c0_i32_1 = arith.constant 0 : i32
    return %c0_i32, %c0_i32_0 : i32, i32
  }
  func.func @transform_9(%arg0: i32, %arg1: i32) -> (i32, i32) {
    %c0_i32 = arith.constant 0 : i32
    %c0_i32_0 = arith.constant 0 : i32
    %c0_i32_1 = arith.constant 0 : i32
    return %c0_i32, %c0_i32_0 : i32, i32
  }
  func.func @transform_10(%arg0: i32, %arg1: i32) -> (i32, i32, i32) {
    %c0_i32 = arith.constant 0 : i32
    %c0_i32_0 = arith.constant 0 : i32
    %c0_i32_1 = arith.constant 0 : i32
    %c0_i32_2 = arith.constant 0 : i32
    return %c0_i32, %c0_i32_0, %c0_i32_1 : i32, i32, i32
  }
  func.func @transform_11(%arg0: i32, %arg1: i32) -> (i32, i32, i32, i32) {
    %c0_i32 = arith.constant 0 : i32
    %c0_i32_0 = arith.constant 0 : i32
    %c0_i32_1 = arith.constant 0 : i32
    return %arg0, %arg1, %c0_i32, %c0_i32_0 : i32, i32, i32, i32
  }
}

</mosaic_0001>

<llo_original>
// kernel: db_fpn_forward.1
$region0: #{db_fpn_forward.1}
  #allocation0 [shape = 'u32[]', space=smem, size = 0x4, offset = 0x4, fixed_abs, tag = 'smem constant byte address 0x4 - core index']
  #allocation1 [shape = 'u32[144,128]{1,0:T(1,128)}', space=vmem, size = 0x12000, scoped, tag = 'internal scratch']
  #allocation2 [shape = 'f32[4,4,32]{2,1,0:T(4,128)}', space=vmem, size = 0x2000, scoped, tag = 'scratch operand']
  #allocation3 [shape = 'f32[6,6,32]{2,1,0:T(8,128)}', space=vmem, size = 0x6000, scoped, tag = 'scratch operand']
  #allocation4 [shape = 'f32[10,10,32]{2,1,0:T(8,128)}', space=vmem, size = 0x14000, scoped, tag = 'scratch operand']
  #allocation5 [shape = 'f32[10,18,32]{2,1,0:T(8,128)}', space=vmem, size = 0x1e000, scoped, tag = 'scratch operand']
  #allocation6 [shape = 'f32[2,2,8]{2,1,0:T(2,128)}', space=vmem, size = 0x800, scoped, tag = 'scratch operand']
  #allocation7 [shape = 'f32[4,4,8]{2,1,0:T(4,128)}', space=vmem, size = 0x2000, scoped, tag = 'scratch operand']
  #allocation8 [shape = 'f32[8,8,8]{2,1,0:T(8,128)}', space=vmem, size = 0x8000, scoped, tag = 'scratch operand']
  %s0 = inlined_call_operand.vmem [shape: bf16[2,16,16,4], index: 0, kind: input, shape index: {}, may-alias: {0,1,2}]
  %s1 = inlined_call_operand.vmem [shape: bf16[2,16,16,4], index: 1, kind: input, shape index: {}, may-alias: {0,1,2}]
  %s2 = inlined_call_operand.vmem [shape: bf16[2,16,16,4], index: 2, kind: input, shape index: {}, may-alias: {0,1,2}]
  %s3 = inlined_call_operand.vmem [shape: bf16[2,8,8,8], index: 3, kind: input, shape index: {}]
  %s4 = inlined_call_operand.vmem [shape: bf16[2,4,4,16], index: 4, kind: input, shape index: {}]
  %s5 = inlined_call_operand.vmem [shape: bf16[2,2,2,32], index: 5, kind: input, shape index: {}]
  %s6 = inlined_call_operand.vmem [shape: bf16[4,32], index: 6, kind: input, shape index: {}]
  %s7 = inlined_call_operand.vmem [shape: bf16[8,32], index: 7, kind: input, shape index: {}]
  %s8 = inlined_call_operand.vmem [shape: bf16[16,32], index: 8, kind: input, shape index: {}]
  %s9 = inlined_call_operand.vmem [shape: bf16[32,32], index: 9, kind: input, shape index: {}]
  %s10 = inlined_call_operand.vmem [shape: bf16[36,32,8], index: 10, kind: input, shape index: {}]
  %s11 = inlined_call_operand.hbm [shape: f32[2,16,16,32], index: 11, kind: output, shape index: {}]
  %s12 = sld [smem:[#allocation0]]
  $region97: #{db_fpn_forward.1} parent=0
    _
  %s14 = ssub.s32 1, %s12
  %s15 = scalar_select 0, %s14, %s12
  $region1: #{db_fpn_forward.1} parent=0
    #allocation9 [shape = 'u8[131072]{0}', space=vmem, size = 0x20000, scoped, tag = 'output window, operand 0']
    #allocation10 [shape = 's32[2]{0}', space=sflag, size = 0x8, scoped, tag = 'scoped memory for db_fpn_forward.1']
    %16 = vsyncpa [#allocation10], 0
    %s17 = scalar_lea.sflag [#allocation10], 1
    %18 = vsyncpa %s17, 0
    loop: start=0, step=1, limit=6
    $region2: #{db_fpn_forward.1} parent=1 // loop_pre_header
      _
    $region3: #{db_fpn_forward.1} parent=1 // loop_header
      %s20 = sphi 0, %s24
      %p21 = scmp.ge.s32.totalorder %s20, 6
      %s27 = sphi 0, %s39
      %s28 = sphi 0, %s35
      %s29 = sphi 0, %s27
      %s30 = sphi 0, %s28
      %s31 = sphi 0, %s29
      %s32 = sphi 0, %s30
      %s44 = sphi 0, %s46
      %s47 = sphi 0, %s44
      %s48 = sphi 0, %s47
      %s64 = sphi 0, %s48
      %s80 = sphi 0, %s82
      %s83 = sphi 0, %s80
      %s84 = sphi 0, %s83
      %s100 = sphi 0, %s84
      %s116 = sphi 0, %s118
      %s119 = sphi 0, %s116
      %s120 = sphi 0, %s119
      %s136 = sphi 0, %s120
      %s142 = sphi 0, %s144
      %s145 = sphi 0, %s142
      %s146 = sphi 0, %s145
      %s162 = sphi 0, %s146
      %s168 = sphi 0, %s170
      %s171 = sphi 0, %s168
      %s172 = sphi 0, %s171
      %s188 = sphi 0, %s172
      %s194 = sphi 0, %s196
      %s197 = sphi 0, %s194
      %s198 = sphi 0, %s197
      %s214 = sphi 0, %s198
      %s218 = sphi 0, %s218
      %s220 = sphi 0, %s218
      %s221 = sphi 0, %s220
      %s235 = sphi 0, %s221
      %s239 = sphi 0, %s239
      %s241 = sphi 0, %s239
      %s242 = sphi 0, %s241
      %s256 = sphi 0, %s242
      %s260 = sphi 0, %s260
      %s262 = sphi 0, %s260
      %s263 = sphi 0, %s262
      %s277 = sphi 0, %s263
      %s281 = sphi 0, %s281
      %s283 = sphi 0, %s281
      %s284 = sphi 0, %s283
      %s298 = sphi 0, %s284
      %s302 = sphi 0, %s302
      %s304 = sphi 0, %s302
      %s305 = sphi 0, %s304
      %s319 = sphi 0, %s305
      %s327 = sphi 0, %s329
      %s330 = sphi 0, %s327
      %s331 = sphi 0, %s330
      %s347 = sphi 0, %s331
    $region4: #{db_fpn_forward.1} parent=1 // loop_header_branch
      %23 = sbr.rel (%p21) target = $region8
    $region5: #{db_fpn_forward.1} parent=1 // loop_body
      %s25 = ssub.s32 %s20, 1
      %s26 = ssub.s32 %s20, 2
      %s33 = sadd.s32 1, %s28
      %p34 = scmp.ge.s32.totalorder %s33, 2
      %s35 = scalar_select %p34, 0, %s33
      %s36 = sadd.s32 1, %s27
      %s37 = scalar_select %p34, %s36, %s27
      %p38 = scmp.ge.s32.totalorder %s37, 2
      %s39 = scalar_select %p38, 0, %s37
      %s40 = ssub.s32 %s27, %s39
      %s41 = ssub.s32 %s28, %s35
      %s42 = sor.u32 %s40, %s41
      %p43 = scmp.eq.s32.totalorder %s42, 0
      %s45 = sadd.s32 %s44, 1
      %s46 = scalar_select %p43, %s44, %s45
      %p49 = pneg %p43
      %p50 = scmp.eq.s32.totalorder %s20, 3
      %p51 = por %p49, %p50
      %p52 = scmp.ne.s32.totalorder %s44, %s47
      %p53 = scmp.eq.s32.totalorder %s20, 0
      %p54 = por %p52, %p53
      %p55 = scmp.ne.s32.totalorder %s44, %s47
      %p56 = scmp.eq.s32.totalorder %s25, 3
      %p57 = por %p55, %p56
      %p58 = scmp.ne.s32.totalorder %s47, %s48
      %p59 = scmp.eq.s32.totalorder %s25, 0
      %p60 = por %p58, %p59
      %p61 = scmp.ne.s32.totalorder %s47, %s48
      %p62 = scmp.eq.s32.totalorder %s26, 3
      %p63 = por %p61, %p62
      %p65 = scmp.ne.s32.totalorder %s48, %s64
      %p66 = scmp.eq.s32.totalorder %s26, 0
      %p67 = por %p65, %p66
      %s68 = smul.u32 %s28, 8
      %s69 = ssub.s32 %s68, 1
      %p70 = scmp.gt.s32.totalorder %s69, 0
      %s71 = scalar_select %p70, %s69, 0
      %s72 = smul.u32 %s35, 8
      %s73 = ssub.s32 %s72, 1
      %p74 = scmp.gt.s32.totalorder %s73, 0
      %s75 = scalar_select %p74, %s73, 0
      %s76 = ssub.s32 %s27, %s39
      %s77 = ssub.s32 %s71, %s75
      %s78 = sor.u32 %s76, %s77
      %p79 = scmp.eq.s32.totalorder %s78, 0
      %s81 = sadd.s32 %s80, 1
      %s82 = scalar_select %p79, %s80, %s81
      %p85 = pneg %p79
      %p86 = scmp.eq.s32.totalorder %s20, 3
      %p87 = por %p85, %p86
      %p88 = scmp.ne.s32.totalorder %s80, %s83
      %p89 = scmp.eq.s32.totalorder %s20, 0
      %p90 = por %p88, %p89
      %p91 = scmp.ne.s32.totalorder %s80, %s83
      %p92 = scmp.eq.s32.totalorder %s25, 3
      %p93 = por %p91, %p92
      %p94 = scmp.ne.s32.totalorder %s83, %s84
      %p95 = scmp.eq.s32.totalorder %s25, 0
      %p96 = por %p94, %p95
      %p97 = scmp.ne.s32.totalorder %s83, %s84
      %p98 = scmp.eq.s32.totalorder %s26, 3
      %p99 = por %p97, %p98
      %p101 = scmp.ne.s32.totalorder %s84, %s100
      %p102 = scmp.eq.s32.totalorder %s26, 0
      %p103 = por %p101, %p102
      %s104 = sadd.s32 %s28, 1
      %s105 = smul.u32 %s104, 8
      %p106 = scmp.lt.s32.totalorder %s105, 15
      %s107 = scalar_select %p106, %s105, 15
      %s108 = sadd.s32 %s35, 1
      %s109 = smul.u32 %s108, 8
      %p110 = scmp.lt.s32.totalorder %s109, 15
      %s111 = scalar_select %p110, %s109, 15
      %s112 = ssub.s32 %s27, %s39
      %s113 = ssub.s32 %s107, %s111
      %s114 = sor.u32 %s112, %s113
      %p115 = scmp.eq.s32.totalorder %s114, 0
      %s117 = sadd.s32 %s116, 1
      %s118 = scalar_select %p115, %s116, %s117
      %p121 = pneg %p115
      %p122 = scmp.eq.s32.totalorder %s20, 3
      %p123 = por %p121, %p122
      %p124 = scmp.ne.s32.totalorder %s116, %s119
      %p125 = scmp.eq.s32.totalorder %s20, 0
      %p126 = por %p124, %p125
      %p127 = scmp.ne.s32.totalorder %s116, %s119
      %p128 = scmp.eq.s32.totalorder %s25, 3
      %p129 = por %p127, %p128
      %p130 = scmp.ne.s32.totalorder %s119, %s120
      %p131 = scmp.eq.s32.totalorder %s25, 0
      %p132 = por %p130, %p131
      %p133 = scmp.ne.s32.totalorder %s119, %s120
      %p134 = scmp.eq.s32.totalorder %s26, 3
      %p135 = por %p133, %p134
      %p137 = scmp.ne.s32.totalorder %s120, %s136
      %p138 = scmp.eq.s32.totalorder %s26, 0
      %p139 = por %p137, %p138
      %s140 = ssub.s32 %s27, %s39
      %p141 = scmp.eq.s32.totalorder %s140, 0
      %s143 = sadd.s32 %s142, 1
      %s144 = scalar_select %p141, %s142, %s143
      %p147 = pneg %p141
      %p148 = scmp.eq.s32.totalorder %s20, 3
      %p149 = por %p147, %p148
      %p150 = scmp.ne.s32.totalorder %s142, %s145
      %p151 = scmp.eq.s32.totalorder %s20, 0
      %p152 = por %p150, %p151
      %p153 = scmp.ne.s32.totalorder %s142, %s145
      %p154 = scmp.eq.s32.totalorder %s25, 3
      %p155 = por %p153, %p154
      %p156 = scmp.ne.s32.totalorder %s145, %s146
      %p157 = scmp.eq.s32.totalorder %s25, 0
      %p158 = por %p156, %p157
      %p159 = scmp.ne.s32.totalorder %s145, %s146
      %p160 = scmp.eq.s32.totalorder %s26, 3
      %p161 = por %p159, %p160
      %p163 = scmp.ne.s32.totalorder %s146, %s162
      %p164 = scmp.eq.s32.totalorder %s26, 0
      %p165 = por %p163, %p164
      %s166 = ssub.s32 %s27, %s39
      %p167 = scmp.eq.s32.totalorder %s166, 0
      %s169 = sadd.s32 %s168, 1
      %s170 = scalar_select %p167, %s168, %s169
      %p173 = pneg %p167
      %p174 = scmp.eq.s32.totalorder %s20, 3
      %p175 = por %p173, %p174
      %p176 = scmp.ne.s32.totalorder %s168, %s171
      %p177 = scmp.eq.s32.totalorder %s20, 0
      %p178 = por %p176, %p177
      %p179 = scmp.ne.s32.totalorder %s168, %s171
      %p180 = scmp.eq.s32.totalorder %s25, 3
      %p181 = por %p179, %p180
      %p182 = scmp.ne.s32.totalorder %s171, %s172
      %p183 = scmp.eq.s32.totalorder %s25, 0
      %p184 = por %p182, %p183
      %p185 = scmp.ne.s32.totalorder %s171, %s172
      %p186 = scmp.eq.s32.totalorder %s26, 3
      %p187 = por %p185, %p186
      %p189 = scmp.ne.s32.totalorder %s172, %s188
      %p190 = scmp.eq.s32.totalorder %s26, 0
      %p191 = por %p189, %p190
      %s192 = ssub.s32 %s27, %s39
      %p193 = scmp.eq.s32.totalorder %s192, 0
      %s195 = sadd.s32 %s194, 1
      %s196 = scalar_select %p193, %s194, %s195
      %p199 = pneg %p193
      %p200 = scmp.eq.s32.totalorder %s20, 3
      %p201 = por %p199, %p200
      %p202 = scmp.ne.s32.totalorder %s194, %s197
      %p203 = scmp.eq.s32.totalorder %s20, 0
      %p204 = por %p202, %p203
      %p205 = scmp.ne.s32.totalorder %s194, %s197
      %p206 = scmp.eq.s32.totalorder %s25, 3
      %p207 = por %p205, %p206
      %p208 = scmp.ne.s32.totalorder %s197, %s198
      %p209 = scmp.eq.s32.totalorder %s25, 0
      %p210 = por %p208, %p209
      %p211 = scmp.ne.s32.totalorder %s197, %s198
      %p212 = scmp.eq.s32.totalorder %s26, 3
      %p213 = por %p211, %p212
      %p215 = scmp.ne.s32.totalorder %s198, %s214
      %p216 = scmp.eq.s32.totalorder %s26, 0
      %p217 = por %p215, %p216
      %s219 = sadd.s32 %s218, 1
      %p222 = scmp.eq.s32.totalorder %s20, 3
      %p223 = scmp.ne.s32.totalorder %s218, %s220
      %p224 = scmp.eq.s32.totalorder %s20, 0
      %p225 = por %p223, %p224
      %p226 = scmp.ne.s32.totalorder %s218, %s220
      %p227 = scmp.eq.s32.totalorder %s25, 3
      %p228 = por %p226, %p227
      %p229 = scmp.ne.s32.totalorder %s220, %s221
      %p230 = scmp.eq.s32.totalorder %s25, 0
      %p231 = por %p229, %p230
      %p232 = scmp.ne.s32.totalorder %s220, %s221
      %p233 = scmp.eq.s32.totalorder %s26, 3
      %p234 = por %p232, %p233
      %p236 = scmp.ne.s32.totalorder %s221, %s235
      %p237 = scmp.eq.s32.totalorder %s26, 0
      %p238 = por %p236, %p237
      %s240 = sadd.s32 %s239, 1
      %p243 = scmp.eq.s32.totalorder %s20, 3
      %p244 = scmp.ne.s32.totalorder %s239, %s241
      %p245 = scmp.eq.s32.totalorder %s20, 0
      %p246 = por %p244, %p245
      %p247 = scmp.ne.s32.totalorder %s239, %s241
      %p248 = scmp.eq.s32.totalorder %s25, 3
      %p249 = por %p247, %p248
      %p250 = scmp.ne.s32.totalorder %s241, %s242
      %p251 = scmp.eq.s32.totalorder %s25, 0
      %p252 = por %p250, %p251
      %p253 = scmp.ne.s32.totalorder %s241, %s242
      %p254 = scmp.eq.s32.totalorder %s26, 3
      %p255 = por %p253, %p254
      %p257 = scmp.ne.s32.totalorder %s242, %s256
      %p258 = scmp.eq.s32.totalorder %s26, 0
      %p259 = por %p257, %p258
      %s261 = sadd.s32 %s260, 1
      %p264 = scmp.eq.s32.totalorder %s20, 3
      %p265 = scmp.ne.s32.totalorder %s260, %s262
      %p266 = scmp.eq.s32.totalorder %s20, 0
      %p267 = por %p265, %p266
      %p268 = scmp.ne.s32.totalorder %s260, %s262
      %p269 = scmp.eq.s32.totalorder %s25, 3
      %p270 = por %p268, %p269
      %p271 = scmp.ne.s32.totalorder %s262, %s263
      %p272 = scmp.eq.s32.totalorder %s25, 0
      %p273 = por %p271, %p272
      %p274 = scmp.ne.s32.totalorder %s262, %s263
      %p275 = scmp.eq.s32.totalorder %s26, 3
      %p276 = por %p274, %p275
      %p278 = scmp.ne.s32.totalorder %s263, %s277
      %p279 = scmp.eq.s32.totalorder %s26, 0
      %p280 = por %p278, %p279
      %s282 = sadd.s32 %s281, 1
      %p285 = scmp.eq.s32.totalorder %s20, 3
      %p286 = scmp.ne.s32.totalorder %s281, %s283
      %p287 = scmp.eq.s32.totalorder %s20, 0
      %p288 = por %p286, %p287
      %p289 = scmp.ne.s32.totalorder %s281, %s283
      %p290 = scmp.eq.s32.totalorder %s25, 3
      %p291 = por %p289, %p290
      %p292 = scmp.ne.s32.totalorder %s283, %s284
      %p293 = scmp.eq.s32.totalorder %s25, 0
      %p294 = por %p292, %p293
      %p295 = scmp.ne.s32.totalorder %s283, %s284
      %p296 = scmp.eq.s32.totalorder %s26, 3
      %p297 = por %p295, %p296
      %p299 = scmp.ne.s32.totalorder %s284, %s298
      %p300 = scmp.eq.s32.totalorder %s26, 0
      %p301 = por %p299, %p300
      %s303 = sadd.s32 %s302, 1
      %p306 = scmp.eq.s32.totalorder %s20, 3
      %p307 = scmp.ne.s32.totalorder %s302, %s304
      %p308 = scmp.eq.s32.totalorder %s20, 0
      %p309 = por %p307, %p308
      %p310 = scmp.ne.s32.totalorder %s302, %s304
      %p311 = scmp.eq.s32.totalorder %s25, 3
      %p312 = por %p310, %p311
      %p313 = scmp.ne.s32.totalorder %s304, %s305
      %p314 = scmp.eq.s32.totalorder %s25, 0
      %p315 = por %p313, %p314
      %p316 = scmp.ne.s32.totalorder %s304, %s305
      %p317 = scmp.eq.s32.totalorder %s26, 3
      %p318 = por %p316, %p317
      %p320 = scmp.ne.s32.totalorder %s305, %s319
      %p321 = scmp.eq.s32.totalorder %s26, 0
      %p322 = por %p320, %p321
      %s323 = ssub.s32 %s27, %s39
      %s324 = ssub.s32 %s28, %s35
      %s325 = sor.u32 %s323, %s324
      %p326 = scmp.eq.s32.totalorder %s325, 0
      %s328 = sadd.s32 %s327, 1
      %s329 = scalar_select %p326, %s327, %s328
      %p332 = pneg %p326
      %p333 = scmp.eq.s32.totalorder %s20, 3
      %p334 = por %p332, %p333
      %p335 = scmp.ne.s32.totalorder %s327, %s330
      %p336 = scmp.eq.s32.totalorder %s20, 0
      %p337 = por %p335, %p336
      %p338 = scmp.ne.s32.totalorder %s327, %s330
      %p339 = scmp.eq.s32.totalorder %s25, 3
      %p340 = por %p338, %p339
      %p341 = scmp.ne.s32.totalorder %s330, %s331
      %p342 = scmp.eq.s32.totalorder %s25, 0
      %p343 = por %p341, %p342
      %p344 = scmp.ne.s32.totalorder %s330, %s331
      %p345 = scmp.eq.s32.totalorder %s26, 3
      %p346 = por %p344, %p345
      %p348 = scmp.ne.s32.totalorder %s331, %s347
      %p349 = scmp.eq.s32.totalorder %s26, 0
      %p350 = por %p348, %p349
      %p351 = scmp.le.s32.totalorder 1, %s20
      %p352 = scmp.lt.s32.totalorder %s20, 5
      %p353 = pnand %p351, %p352
      %p354 = pneg %p353
      // Predicated region
      $region9: #{db_fpn_forward.1} parent=5 // pred_check
        _
      $region10: #{db_fpn_forward.1} parent=5 // pred_check_branch
        %356 = sbr.rel (%p353) target = $region12
      $region11: #{db_fpn_forward.1} parent=5 // pred_region
        %s357 = ssub.s32 %s20, 1
        // Predicated region
        $region13: #{db_fpn_forward.1} parent=11 // pred_check
          %p358 = pneg %p231
        $region14: #{db_fpn_forward.1} parent=11 // pred_check_branch
          %360 = sbr.rel (%p358) target = $region16
        $region15: #{db_fpn_forward.1} parent=11 // pred_region
          _
        $region16: #{db_fpn_forward.1} parent=11 // pred_fallthru
          _
        // Predicated region
        $region17: #{db_fpn_forward.1} parent=11 // pred_check
          %p361 = pneg %p252
        $region18: #{db_fpn_forward.1} parent=11 // pred_check_branch
          %363 = sbr.rel (%p361) target = $region20
        $region19: #{db_fpn_forward.1} parent=11 // pred_region
          _
        $region20: #{db_fpn_forward.1} parent=11 // pred_fallthru
          _
        // Predicated region
        $region21: #{db_fpn_forward.1} parent=11 // pred_check
          %p364 = pneg %p273
        $region22: #{db_fpn_forward.1} parent=11 // pred_check_branch
          %366 = sbr.rel (%p364) target = $region24
        $region23: #{db_fpn_forward.1} parent=11 // pred_region
          _
        $region24: #{db_fpn_forward.1} parent=11 // pred_fallthru
          _
        // Predicated region
        $region25: #{db_fpn_forward.1} parent=11 // pred_check
          %p367 = pneg %p294
        $region26: #{db_fpn_forward.1} parent=11 // pred_check_branch
          %369 = sbr.rel (%p367) target = $region28
        $region27: #{db_fpn_forward.1} parent=11 // pred_region
          _
        $region28: #{db_fpn_forward.1} parent=11 // pred_fallthru
          _
        // Predicated region
        $region29: #{db_fpn_forward.1} parent=11 // pred_check
          %p370 = pneg %p315
        $region30: #{db_fpn_forward.1} parent=11 // pred_check_branch
          %372 = sbr.rel (%p370) target = $region32
        $region31: #{db_fpn_forward.1} parent=11 // pred_region
          _
        $region32: #{db_fpn_forward.1} parent=11 // pred_fallthru
          _
      $region12: #{db_fpn_forward.1} parent=5 // pred_fallthru
        _
      %p373 = scmp.lt.s32.totalorder %s20, 4
      // Predicated region
      $region33: #{db_fpn_forward.1} parent=5 // pred_check
        %p374 = pneg %p373
      $region34: #{db_fpn_forward.1} parent=5 // pred_check_branch
        %376 = sbr.rel (%p374) target = $region36
      $region35: #{db_fpn_forward.1} parent=5 // pred_region
        // Predicated region
        $region37: #{db_fpn_forward.1} parent=35 // pred_check
          %p377 = pneg %p54
        $region38: #{db_fpn_forward.1} parent=35 // pred_check_branch
          %379 = sbr.rel (%p377) target = $region40
        $region39: #{db_fpn_forward.1} parent=35 // pred_region
          %s380 = smul.u32 8, %s28
          %p381 = scmp.lt.s32.totalorder %s27, 1
          %s382 = scalar_select %p381, %s27, 1
          %p383 = scmp.lt.s32.totalorder %s380, 15
          %s384 = scalar_select %p383, %s380, 15
          %s385 = smul.addr %s384, 2
          %s386 = smul.addr %s382, 32
          %s387 = sadd.s32 %s385, %s386
          %s388 = smul.addr %s387, 4
          %s389 = scalar_lea.vmem %s0, %s388
          %s390 = smul.u32 8, %s28
        $region40: #{db_fpn_forward.1} parent=35 // pred_fallthru
          _
        // Predicated region
        $region41: #{db_fpn_forward.1} parent=35 // pred_check
          %p391 = pneg %p90
        $region42: #{db_fpn_forward.1} parent=35 // pred_check_branch
          %393 = sbr.rel (%p391) target = $region44
        $region43: #{db_fpn_forward.1} parent=35 // pred_region
          %s394 = smul.u32 %s28, 8
          %s395 = ssub.s32 %s394, 1
          %p396 = scmp.gt.s32.totalorder %s395, 0
          %s397 = scalar_select %p396, %s395, 0
          %p398 = scmp.lt.s32.totalorder %s27, 1
          %s399 = scalar_select %p398, %s27, 1
          %p400 = scmp.lt.s32.totalorder %s397, 15
          %s401 = scalar_select %p400, %s397, 15
          %s402 = smul.addr %s401, 2
          %s403 = smul.addr %s399, 32
          %s404 = sadd.s32 %s402, %s403
          %s405 = smul.addr %s404, 4
          %s406 = scalar_lea.vmem %s1, %s405
          %s407 = smul.u32 %s28, 8
          %s408 = ssub.s32 %s407, 1
          %p409 = scmp.gt.s32.totalorder %s408, 0
          %s410 = scalar_select %p409, %s408, 0
        $region44: #{db_fpn_forward.1} parent=35 // pred_fallthru
          _
        // Predicated region
        $region45: #{db_fpn_forward.1} parent=35 // pred_check
          %p411 = pneg %p126
        $region46: #{db_fpn_forward.1} parent=35 // pred_check_branch
          %413 = sbr.rel (%p411) target = $region48
        $region47: #{db_fpn_forward.1} parent=35 // pred_region
          %s414 = sadd.s32 %s28, 1
          %s415 = smul.u32 %s414, 8
          %p416 = scmp.lt.s32.totalorder %s415, 15
          %s417 = scalar_select %p416, %s415, 15
          %p418 = scmp.lt.s32.totalorder %s27, 1
          %s419 = scalar_select %p418, %s27, 1
          %p420 = scmp.lt.s32.totalorder %s417, 15
          %s421 = scalar_select %p420, %s417, 15
          %s422 = smul.addr %s421, 2
          %s423 = smul.addr %s419, 32
          %s424 = sadd.s32 %s422, %s423
          %s425 = smul.addr %s424, 4
          %s426 = scalar_lea.vmem %s2, %s425
          %s427 = sadd.s32 %s28, 1
          %s428 = smul.u32 %s427, 8
          %p429 = scmp.lt.s32.totalorder %s428, 15
          %s430 = scalar_select %p429, %s428, 15
        $region48: #{db_fpn_forward.1} parent=35 // pred_fallthru
          _
        // Predicated region
        $region49: #{db_fpn_forward.1} parent=35 // pred_check
          %p431 = pneg %p152
        $region50: #{db_fpn_forward.1} parent=35 // pred_check_branch
          %433 = sbr.rel (%p431) target = $region52
        $region51: #{db_fpn_forward.1} parent=35 // pred_region
          %p434 = scmp.lt.s32.totalorder %s27, 1
          %s435 = scalar_select %p434, %s27, 1
          %s436 = smul.addr %s435, 8
          %s437 = smul.addr %s436, 4
          %s438 = scalar_lea.vmem %s3, %s437
        $region52: #{db_fpn_forward.1} parent=35 // pred_fallthru
          _
        // Predicated region
        $region53: #{db_fpn_forward.1} parent=35 // pred_check
          %p439 = pneg %p178
        $region54: #{db_fpn_forward.1} parent=35 // pred_check_branch
          %441 = sbr.rel (%p439) target = $region56
        $region55: #{db_fpn_forward.1} parent=35 // pred_region
          %p442 = scmp.lt.s32.totalorder %s27, 1
          %s443 = scalar_select %p442, %s27, 1
          %s444 = smul.addr %s443, 4
          %s445 = smul.addr %s444, 2
          %s446 = scalar_lea.vmem %s4, %s445
        $region56: #{db_fpn_forward.1} parent=35 // pred_fallthru
          _
        // Predicated region
        $region57: #{db_fpn_forward.1} parent=35 // pred_check
          %p447 = pneg %p204
        $region58: #{db_fpn_forward.1} parent=35 // pred_check_branch
          %449 = sbr.rel (%p447) target = $region60
        $region59: #{db_fpn_forward.1} parent=35 // pred_region
          %p450 = scmp.lt.s32.totalorder %s27, 1
          %s451 = scalar_select %p450, %s27, 1
          %s452 = smul.addr %s451, 2
          %s453 = scalar_lea.vmem %s5, %s452
        $region60: #{db_fpn_forward.1} parent=35 // pred_fallthru
          _
      $region36: #{db_fpn_forward.1} parent=5 // pred_fallthru
        _
      %p454 = scmp.le.s32.totalorder 1, %s20
      %p455 = scmp.lt.s32.totalorder %s20, 5
      %p456 = pnand %p454, %p455
      %p457 = pneg %p456
      // Predicated region
      $region61: #{db_fpn_forward.1} parent=5 // pred_check
        _
      $region62: #{db_fpn_forward.1} parent=5 // pred_check_branch
        %459 = sbr.rel (%p456) target = $region64
      $region63: #{db_fpn_forward.1} parent=5 // pred_region
        %s460 = ssub.s32 %s20, 1
        %s461 = smul.u32 8, %s30
        %p462 = scmp.lt.s32.totalorder %s29, 1
        %s463 = scalar_select %p462, %s29, 1
        %p464 = scmp.lt.s32.totalorder %s461, 15
        %s465 = scalar_select %p464, %s461, 15
        %s466 = smul.addr %s465, 2
        %s467 = smul.addr %s463, 32
        %s468 = sadd.s32 %s466, %s467
        %s469 = smul.addr %s468, 4
        %s470 = scalar_lea.vmem %s0, %s469
        %p471 = pneg %p60
        %p472 = pneg %p57
        %s473 = smul.u32 %s30, 8
        %s474 = ssub.s32 %s473, 1
        %p475 = scmp.gt.s32.totalorder %s474, 0
        %s476 = scalar_select %p475, %s474, 0
        %p477 = scmp.lt.s32.totalorder %s29, 1
        %s478 = scalar_select %p477, %s29, 1
        %p479 = scmp.lt.s32.totalorder %s476, 15
        %s480 = scalar_select %p479, %s476, 15
        %s481 = smul.addr %s480, 2
        %s482 = smul.addr %s478, 32
        %s483 = sadd.s32 %s481, %s482
        %s484 = smul.addr %s483, 4
        %s485 = scalar_lea.vmem %s1, %s484
        %p486 = pneg %p96
        %p487 = pneg %p93
        %s488 = sadd.s32 %s30, 1
        %s489 = smul.u32 %s488, 8
        %p490 = scmp.lt.s32.totalorder %s489, 15
        %s491 = scalar_select %p490, %s489, 15
        %p492 = scmp.lt.s32.totalorder %s29, 1
        %s493 = scalar_select %p492, %s29, 1
        %p494 = scmp.lt.s32.totalorder %s491, 15
        %s495 = scalar_select %p494, %s491, 15
        %s496 = smul.addr %s495, 2
        %s497 = smul.addr %s493, 32
        %s498 = sadd.s32 %s496, %s497
        %s499 = smul.addr %s498, 4
        %s500 = scalar_lea.vmem %s2, %s499
        %p501 = pneg %p132
        %p502 = pneg %p129
        %p503 = scmp.lt.s32.totalorder %s29, 1
        %s504 = scalar_select %p503, %s29, 1
        %s505 = smul.addr %s504, 8
        %s506 = smul.addr %s505, 4
        %s507 = scalar_lea.vmem %s3, %s506
        %p508 = pneg %p158
        %p509 = pneg %p155
        %p510 = scmp.lt.s32.totalorder %s29, 1
        %s511 = scalar_select %p510, %s29, 1
        %s512 = smul.addr %s511, 4
        %s513 = smul.addr %s512, 2
        %s514 = scalar_lea.vmem %s4, %s513
        %p515 = pneg %p184
        %p516 = pneg %p181
        %p517 = scmp.lt.s32.totalorder %s29, 1
        %s518 = scalar_select %p517, %s29, 1
        %s519 = smul.addr %s518, 2
        %s520 = scalar_lea.vmem %s5, %s519
        %p521 = pneg %p210
        %p522 = pneg %p207
        %p523 = pneg %p231
        %p524 = pneg %p228
        %p525 = pneg %p252
        %p526 = pneg %p249
        %p527 = pneg %p273
        %p528 = pneg %p270
        %p529 = pneg %p294
        %p530 = pneg %p291
        %p531 = pneg %p315
        %p532 = pneg %p312
        %p533 = pneg %p343
        %p534 = pneg %p340
        %s535 = sand.u32 %s330, 1
        %s536 = scalar_lea.sflag [#allocation10], %s535
        %s537 = sand.u32 %s330, 1
        %s538 = smul.addr %s537, 128
        %s539 = scalar_lea.vmem [#allocation9], %s538
        %s540 = smul.u32 8, %s30
        %p541 = scmp.lt.s32.totalorder %s29, 1
        %s542 = scalar_select %p541, %s29, 1
        %p543 = scmp.lt.s32.totalorder %s540, 15
        %s544 = scalar_select %p543, %s540, 15
        %s545 = smul.addr %s544, 2
        %s546 = smul.addr %s542, 32
        %s547 = sadd.s32 %s545, %s546
        %s548 = smul.addr %s547, 4
        %s549 = scalar_lea.vmem %s0, %s548
        %s550 = smul.u32 8, %s30
        %s551 = smul.u32 %s30, 8
        %s552 = ssub.s32 %s551, 1
        %p553 = scmp.gt.s32.totalorder %s552, 0
        %s554 = scalar_select %p553, %s552, 0
        %p555 = scmp.lt.s32.totalorder %s29, 1
        %s556 = scalar_select %p555, %s29, 1
        %p557 = scmp.lt.s32.totalorder %s554, 15
        %s558 = scalar_select %p557, %s554, 15
        %s559 = smul.addr %s558, 2
        %s560 = smul.addr %s556, 32
        %s561 = sadd.s32 %s559, %s560
        %s562 = smul.addr %s561, 4
        %s563 = scalar_lea.vmem %s1, %s562
        %s564 = smul.u32 %s30, 8
        %s565 = ssub.s32 %s564, 1
        %p566 = scmp.gt.s32.totalorder %s565, 0
        %s567 = scalar_select %p566, %s565, 0
        %s568 = sadd.s32 %s30, 1
        %s569 = smul.u32 %s568, 8
        %p570 = scmp.lt.s32.totalorder %s569, 15
        %s571 = scalar_select %p570, %s569, 15
        %p572 = scmp.lt.s32.totalorder %s29, 1
        %s573 = scalar_select %p572, %s29, 1
        %p574 = scmp.lt.s32.totalorder %s571, 15
        %s575 = scalar_select %p574, %s571, 15
        %s576 = smul.addr %s575, 2
        %s577 = smul.addr %s573, 32
        %s578 = sadd.s32 %s576, %s577
        %s579 = smul.addr %s578, 4
        %s580 = scalar_lea.vmem %s2, %s579
        %s581 = sadd.s32 %s30, 1
        %s582 = smul.u32 %s581, 8
        %p583 = scmp.lt.s32.totalorder %s582, 15
        %s584 = scalar_select %p583, %s582, 15
        %p585 = scmp.lt.s32.totalorder %s29, 1
        %s586 = scalar_select %p585, %s29, 1
        %s587 = smul.addr %s586, 8
        %s588 = smul.addr %s587, 4
        %s589 = scalar_lea.vmem %s3, %s588
        %p590 = scmp.lt.s32.totalorder %s29, 1
        %s591 = scalar_select %p590, %s29, 1
        %s592 = smul.addr %s591, 4
        %s593 = smul.addr %s592, 2
        %s594 = scalar_lea.vmem %s4, %s593
        %p595 = scmp.lt.s32.totalorder %s29, 1
        %s596 = scalar_select %p595, %s29, 1
        %s597 = smul.addr %s596, 2
        %s598 = scalar_lea.vmem %s5, %s597
        %s599 = smul.u32 8, %s30
        %p601 = scmp.eq.s32.totalorder %s30, 0
        // Predicated region
        $region65: #{db_fpn_forward.1} parent=63 // pred_check
          %p602 = pneg %p601
        $region66: #{db_fpn_forward.1} parent=63 // pred_check_branch
          %604 = sbr.rel (%p602) target = $region68
        $region67: #{db_fpn_forward.1} parent=63 // pred_region
          %vm605 = vcmask 257024
          %606 = vst.msk [vmem:[#allocation2] sm:$0xf] %vm605, 0.0
          %s607 = scalar_lea.vmem [#allocation2], 12
          %608 = vst.msk [vmem:[%s607] sm:$0xf] %vm605, 0.0
          %vm609 = vcmask 253952
          %610 = vst.msk [vmem:[#allocation2] sm:$0x1] %vm609, 0.0
          %611 = vst.msk [vmem:[#allocation2 + $0x4] sm:$0x1] %vm609, 0.0
          %612 = vst.msk [vmem:[#allocation2 + $0x8] sm:$0x1] %vm609, 0.0
          %613 = vst.msk [vmem:[#allocation2 + $0xc] sm:$0x1] %vm609, 0.0
          %614 = vst.msk [vmem:[#allocation2 + $0x3] sm:$0x1] %vm609, 0.0
          %615 = vst.msk [vmem:[#allocation2 + $0x7] sm:$0x1] %vm609, 0.0
          %616 = vst.msk [vmem:[#allocation2 + $0xb] sm:$0x1] %vm609, 0.0
          %617 = vst.msk [vmem:[#allocation2 + $0xf] sm:$0x1] %vm609, 0.0
          %vm618 = vcmask 259072
          %619 = vst.msk [vmem:[#allocation3] sm:$0x3f] %vm618, 0.0
          %s620 = scalar_lea.vmem [#allocation3], 40
          %621 = vst.msk [vmem:[%s620] sm:$0x3f] %vm618, 0.0
          %622 = vst.msk [vmem:[#allocation3] sm:$0x1] %vm609, 0.0
          %623 = vst.msk [vmem:[#allocation3 + $0x8] sm:$0x1] %vm609, 0.0
          %624 = vst.msk [vmem:[#allocation3 + $0x10] sm:$0x1] %vm609, 0.0
          %625 = vst.msk [vmem:[#allocation3 + $0x18] sm:$0x1] %vm609, 0.0
          %626 = vst.msk [vmem:[#allocation3 + $0x20] sm:$0x1] %vm609, 0.0
          %627 = vst.msk [vmem:[#allocation3 + $0x28] sm:$0x1] %vm609, 0.0
          %628 = vst.msk [vmem:[#allocation3 + $0x5] sm:$0x1] %vm609, 0.0
          %629 = vst.msk [vmem:[#allocation3 + $0xd] sm:$0x1] %vm609, 0.0
          %630 = vst.msk [vmem:[#allocation3 + $0x15] sm:$0x1] %vm609, 0.0
          %631 = vst.msk [vmem:[#allocation3 + $0x1d] sm:$0x1] %vm609, 0.0
          %632 = vst.msk [vmem:[#allocation3 + $0x25] sm:$0x1] %vm609, 0.0
          %633 = vst.msk [vmem:[#allocation3 + $0x2d] sm:$0x1] %vm609, 0.0
          %vm634 = vcmask 261120
          %635 = vst.msk [vmem:[#allocation4] sm:$0xff] %vm634, 0.0
          %vm636 = vcmask 254976
          %637 = vst.msk [vmem:[#allocation4 + $0x8] sm:$0x3] %vm636, 0.0
          %s638 = scalar_lea.vmem [#allocation4], 144
          %639 = vst.msk [vmem:[%s638] sm:$0xff] %vm634, 0.0
          %640 = vst.msk [vmem:[%s638 + $0x8] sm:$0x3] %vm636, 0.0
          %641 = vst.msk [vmem:[#allocation4] sm:$0x1] %vm609, 0.0
          %642 = vst.msk [vmem:[#allocation4 + $0x10] sm:$0x1] %vm609, 0.0
          %643 = vst.msk [vmem:[#allocation4 + $0x20] sm:$0x1] %vm609, 0.0
          %644 = vst.msk [vmem:[#allocation4 + $0x30] sm:$0x1] %vm609, 0.0
          %645 = vst.msk [vmem:[#allocation4 + $0x40] sm:$0x1] %vm609, 0.0
          %646 = vst.msk [vmem:[#allocation4 + $0x50] sm:$0x1] %vm609, 0.0
          %647 = vst.msk [vmem:[#allocation4 + $0x60] sm:$0x1] %vm609, 0.0
          %648 = vst.msk [vmem:[#allocation4 + $0x70] sm:$0x1] %vm609, 0.0
          %649 = vst.msk [vmem:[#allocation4 + $0x80] sm:$0x1] %vm609, 0.0
          %650 = vst.msk [vmem:[#allocation4 + $0x90] sm:$0x1] %vm609, 0.0
          %651 = vst.msk [vmem:[#allocation4 + $0x9] sm:$0x1] %vm609, 0.0
          %652 = vst.msk [vmem:[#allocation4 + $0x19] sm:$0x1] %vm609, 0.0
          %653 = vst.msk [vmem:[#allocation4 + $0x29] sm:$0x1] %vm609, 0.0
          %654 = vst.msk [vmem:[#allocation4 + $0x39] sm:$0x1] %vm609, 0.0
          %655 = vst.msk [vmem:[#allocation4 + $0x49] sm:$0x1] %vm609, 0.0
          %656 = vst.msk [vmem:[#allocation4 + $0x59] sm:$0x1] %vm609, 0.0
          %657 = vst.msk [vmem:[#allocation4 + $0x69] sm:$0x1] %vm609, 0.0
          %658 = vst.msk [vmem:[#allocation4 + $0x79] sm:$0x1] %vm609, 0.0
          %659 = vst.msk [vmem:[#allocation4 + $0x89] sm:$0x1] %vm609, 0.0
          %660 = vst.msk [vmem:[#allocation4 + $0x99] sm:$0x1] %vm609, 0.0
          %661 = vst.msk [vmem:[#allocation5] sm:$0xff] %vm634, 0.0
          %662 = vst.msk [vmem:[#allocation5 + $0x8] sm:$0xff] %vm634, 0.0
          %663 = vst.msk [vmem:[#allocation5 + $0x10] sm:$0x3] %vm636, 0.0
          %s664 = scalar_lea.vmem [#allocation5], 216
          %665 = vst.msk [vmem:[%s664] sm:$0xff] %vm634, 0.0
          %666 = vst.msk [vmem:[%s664 + $0x8] sm:$0xff] %vm634, 0.0
          %667 = vst.msk [vmem:[%s664 + $0x10] sm:$0x3] %vm636, 0.0
          %668 = vst.msk [vmem:[#allocation5] sm:$0x1] %vm609, 0.0
          %669 = vst.msk [vmem:[#allocation5 + $0x18] sm:$0x1] %vm609, 0.0
          %670 = vst.msk [vmem:[#allocation5 + $0x30] sm:$0x1] %vm609, 0.0
          %671 = vst.msk [vmem:[#allocation5 + $0x48] sm:$0x1] %vm609, 0.0
          %672 = vst.msk [vmem:[#allocation5 + $0x60] sm:$0x1] %vm609, 0.0
          %673 = vst.msk [vmem:[#allocation5 + $0x78] sm:$0x1] %vm609, 0.0
          %674 = vst.msk [vmem:[#allocation5 + $0x90] sm:$0x1] %vm609, 0.0
          %675 = vst.msk [vmem:[#allocation5 + $0xa8] sm:$0x1] %vm609, 0.0
          %676 = vst.msk [vmem:[#allocation5 + $0xc0] sm:$0x1] %vm609, 0.0
          %677 = vst.msk [vmem:[#allocation5 + $0xd8] sm:$0x1] %vm609, 0.0
          %678 = vst.msk [vmem:[#allocation5 + $0x11] sm:$0x1] %vm609, 0.0
          %679 = vst.msk [vmem:[#allocation5 + $0x29] sm:$0x1] %vm609, 0.0
          %680 = vst.msk [vmem:[#allocation5 + $0x41] sm:$0x1] %vm609, 0.0
          %681 = vst.msk [vmem:[#allocation5 + $0x59] sm:$0x1] %vm609, 0.0
          %682 = vst.msk [vmem:[#allocation5 + $0x71] sm:$0x1] %vm609, 0.0
          %683 = vst.msk [vmem:[#allocation5 + $0x89] sm:$0x1] %vm609, 0.0
          %684 = vst.msk [vmem:[#allocation5 + $0xa1] sm:$0x1] %vm609, 0.0
          %685 = vst.msk [vmem:[#allocation5 + $0xb9] sm:$0x1] %vm609, 0.0
          %686 = vst.msk [vmem:[#allocation5 + $0xd1] sm:$0x1] %vm609, 0.0
          %687 = vst.msk [vmem:[#allocation5 + $0xe9] sm:$0x1] %vm609, 0.0
          %v688 = vld [vmem:[%s598] sm:$0x1]
          %v689 = vld [vmem:[%s598 + $0x1] sm:$0x1]
          %v690 = vld [vmem:[%s9] sm:$0xf]
          %v691 = vld [vmem:[%s9 + $0x4] sm:$0xf]
          %v692 = vld [vmem:[%s9 + $0x8] sm:$0xf]
          %v693 = vld [vmem:[%s9 + $0xc] sm:$0xf]
          %v696 = vcombine.low %v688, %v689
          %v698 = vunpack.c.l.s4 1966171168
          %v699 = vunpack.c.0.s8 %v698
          %v700 = vlaneseq
          %v701 = vshrl.u32 %v700, 7
          %v702 = vsub.s32 %v699, %v701
          %v703 = vrot.slane %v696, %v702
          %v705 = vunpack.c.l.s4 1966171168
          %v706 = vunpack.c.0.s8 %v705
          %v707 = vlaneseq
          %v708 = vshrl.u32 %v707, 7
          %v709 = vsub.s32 %v706, %v708
          %v710 = vrot.slane %v703, %v709
          %v715 = vunpack.c.l.b16 %v690
          %v716 = vunpack.c.l.b16 %v691
          %v717 = vunpack.c.l.b16 %v692
          %v718 = vunpack.c.l.b16 %v693
          %v719 = vpack.c.b16 %v716, %v715
          %v720 = vpack.c.b16 %v718, %v717
          %v724 = vsel %vm634, %v710, 0
          %726 = vmatprep.subr.bf16.mxu0 0
          %727 = vmatpush1.bf16.msra.mxu0 %v719
          %728 = vmatprep.subr.bf16.mxu0 0
          %729 = vmatpush1.bf16.msra.mxu0 %v720
          %730 = vmatprep.subr.bf16.mxu0 0
          %731 = vmatpush1.bf16.msra.mxu0 0
          %732 = vmatprep.subr.bf16.mxu0 0
          %733 = vmatpush1.bf16.msra.mxu0 0
          %734 = vmatprep.subr.bf16.mxu0 0
          %735 = vmatpush1.bf16.msra.mxu0 0
          %736 = vmatprep.subr.bf16.mxu0 0
          %737 = vmatpush1.bf16.msra.mxu0 0
          %738 = vmatprep.subr.bf16.mxu0 0
          %739 = vmatpush1.bf16.msra.mxu0 0
          %740 = vmatprep.subr.bf16.mxu0 0
          %741 = vmatpush1.bf16.msra.mxu0 0
          %742 = vmatprep.subr.bf16.mxu0 0
          %743 = vmatpush1.bf16.msra.mxu0 0
          %744 = vmatprep.subr.bf16.mxu0 0
          %745 = vmatpush1.bf16.msra.mxu0 0
          %746 = vmatprep.subr.bf16.mxu0 0
          %747 = vmatpush1.bf16.msra.mxu0 0
          %748 = vmatprep.subr.bf16.mxu0 0
          %749 = vmatpush1.bf16.msra.mxu0 0
          %750 = vmatprep.subr.bf16.mxu0 0
          %751 = vmatpush1.bf16.msra.mxu0 0
          %752 = vmatprep.subr.bf16.mxu0 0
          %753 = vmatpush1.bf16.msra.mxu0 0
          %754 = vmatprep.subr.bf16.mxu0 0
          %755 = vmatpush1.bf16.msra.mxu0 0
          %756 = vmatprep.subr.bf16.mxu0 0
          %757 = vmatpush1.bf16.msra.mxu0 0
          %758 = vmatprep.mubr.bf16.mxu0 0
          %759 = vmatmul.mubr.bf16.gmra.mrb[0].mxu0 %v724
          %v760 = vpop.f32.mrb[0].mxu0
          %v761 = vadd.f32 0.0, %v760
          %v762 = vpop.f32.mrb[0].mxu0
          %v763 = vpop.f32.mrb[0].mxu0
          %v764 = vpop.f32.mrb[0].mxu0
          %765 = vdwg.mxu0
          %v768 = vunpack.c.l.s4 1983009808
          %v769 = vunpack.c.0.s8 %v768
          %v770 = vlaneseq
          %v771 = vshrl.u32 %v770, 7
          %v772 = vsub.s32 %v769, %v771
          %v773 = vrot.slane %v761, %v772
          %v774 = vcombine.high %v773, %v773
          %s777 = scalar_lea.vmem [#allocation2], 4
          %778 = vst.msk [vmem:[%s777 + $0x1] sm:$0x3] %vm636, %v773
          %779 = vst.msk [vmem:[%s777 + $0x5] sm:$0x3] %vm636, %v774
          %v780 = vld [vmem:[%s594] sm:$0x3]
          %v781 = vld [vmem:[%s594 + $0x2] sm:$0x3]
          %v782 = vld [vmem:[%s594 + $0x4] sm:$0x3]
          %v783 = vld [vmem:[%s594 + $0x6] sm:$0x3]
          %v784 = vld [vmem:[%s8] sm:$0xf]
          %v785 = vld [vmem:[%s8 + $0x4] sm:$0xf]
          %v790 = vcombine.low %v780, %v781
          %v791 = vcombine.low %v782, %v783
          %v793 = vunpack.c.l.s4 1983009808
          %v794 = vunpack.c.0.s8 %v793
          %v795 = vlaneseq
          %v796 = vshrl.u32 %v795, 7
          %v797 = vsub.s32 %v794, %v796
          %v798 = vrot.slane %v790, %v797
          %v800 = vunpack.c.l.s4 1983009808
          %v801 = vunpack.c.0.s8 %v800
          %v802 = vlaneseq
          %v803 = vshrl.u32 %v802, 7
          %v804 = vsub.s32 %v801, %v803
          %v805 = vrot.slane %v791, %v804
          %v806 = vcombine.low %v798, %v805
          %v809 = vunpack.c.l.b16 %v784
          %v810 = vunpack.c.l.b16 %v785
          %v811 = vpack.c.b16 %v810, %v809
          %vm813 = vcmask 130048
          %v815 = vsel %vm813, %v806, 0
          %817 = vmatprep.subr.bf16.mxu0 0
          %818 = vmatpush1.bf16.msra.mxu0 %v811
          %819 = vmatprep.subr.bf16.mxu0 0
          %820 = vmatpush1.bf16.msra.mxu0 0
          %821 = vmatprep.subr.bf16.mxu0 0
          %822 = vmatpush1.bf16.msra.mxu0 0
          %823 = vmatprep.subr.bf16.mxu0 0
          %824 = vmatpush1.bf16.msra.mxu0 0
          %825 = vmatprep.subr.bf16.mxu0 0
          %826 = vmatpush1.bf16.msra.mxu0 0
          %827 = vmatprep.subr.bf16.mxu0 0
          %828 = vmatpush1.bf16.msra.mxu0 0
          %829 = vmatprep.subr.bf16.mxu0 0
          %830 = vmatpush1.bf16.msra.mxu0 0
          %831 = vmatprep.subr.bf16.mxu0 0
          %832 = vmatpush1.bf16.msra.mxu0 0
          %833 = vmatprep.subr.bf16.mxu0 0
          %834 = vmatpush1.bf16.msra.mxu0 0
          %835 = vmatprep.subr.bf16.mxu0 0
          %836 = vmatpush1.bf16.msra.mxu0 0
          %837 = vmatprep.subr.bf16.mxu0 0
          %838 = vmatpush1.bf16.msra.mxu0 0
          %839 = vmatprep.subr.bf16.mxu0 0
          %840 = vmatpush1.bf16.msra.mxu0 0
          %841 = vmatprep.subr.bf16.mxu0 0
          %842 = vmatpush1.bf16.msra.mxu0 0
          %843 = vmatprep.subr.bf16.mxu0 0
          %844 = vmatpush1.bf16.msra.mxu0 0
          %845 = vmatprep.subr.bf16.mxu0 0
          %846 = vmatpush1.bf16.msra.mxu0 0
          %847 = vmatprep.subr.bf16.mxu0 0
          %848 = vmatpush1.bf16.msra.mxu0 0
          %849 = vmatprep.mubr.bf16.mxu0 0
          %850 = vmatmul.mubr.bf16.gmra.mrb[0].mxu0 %v815
          %v851 = vpop.f32.mrb[0].mxu0
          %v852 = vadd.f32 0.0, %v851
          %v853 = vpop.f32.mrb[0].mxu0
          %v854 = vpop.f32.mrb[0].mxu0
          %v855 = vadd.f32 0.0, %v854
          %v856 = vpop.f32.mrb[0].mxu0
          %857 = vdwg.mxu0
          %v860 = vcombine.high %v852, %v852
          %v862 = vunpack.c.l.s4 1983009808
          %v863 = vunpack.c.0.s8 %v862
          %v864 = vlaneseq
          %v865 = vshrl.u32 %v864, 7
          %v866 = vsub.s32 %v863, %v865
          %v867 = vrot.slane %v852, %v866
          %v869 = vunpack.c.l.s4 1983009808
          %v870 = vunpack.c.0.s8 %v869
          %v871 = vlaneseq
          %v872 = vshrl.u32 %v871, 7
          %v873 = vsub.s32 %v870, %v872
          %v874 = vrot.slane %v860, %v873
          %v875 = vcombine.high %v867, %v867
          %v876 = vcombine.high %v874, %v874
          %v877 = vcombine.high %v855, %v855
          %v879 = vunpack.c.l.s4 1983009808
          %v880 = vunpack.c.0.s8 %v879
          %v881 = vlaneseq
          %v882 = vshrl.u32 %v881, 7
          %v883 = vsub.s32 %v880, %v882
          %v884 = vrot.slane %v855, %v883
          %v886 = vunpack.c.l.s4 1983009808
          %v887 = vunpack.c.0.s8 %v886
          %v888 = vlaneseq
          %v889 = vshrl.u32 %v888, 7
          %v890 = vsub.s32 %v887, %v889
          %v891 = vrot.slane %v877, %v890
          %v892 = vcombine.high %v884, %v884
          %v893 = vcombine.high %v891, %v891
          %v903 = vunpack.c.l.s4 1966171168
          %v904 = vunpack.c.0.s8 %v903
          %v905 = vlaneseq
          %v906 = vshrl.u32 %v905, 7
          %v907 = vsub.s32 %v904, %v906
          %v908 = vrot.slane %v761, %v907
          %v909 = vcombine.high %v908, %v908
          %v911 = vunpack.c.l.s4 1966171168
          %v912 = vunpack.c.0.s8 %v911
          %v913 = vlaneseq
          %v914 = vshrl.u32 %v913, 7
          %v915 = vsub.s32 %v912, %v914
          %v916 = vrot.slane %v908, %v915
          %v918 = vunpack.c.l.s4 1966171168
          %v919 = vunpack.c.0.s8 %v918
          %v920 = vlaneseq
          %v921 = vshrl.u32 %v920, 7
          %v922 = vsub.s32 %v919, %v921
          %v923 = vrot.slane %v909, %v922
          %v924 = vcombine.high %v916, %v916
          %v925 = vcombine.high %v923, %v923
          %v926 = vlaneseq
          %v927 = vshrl.u32 %v926, 7
          %v928 = vsub.s32 0, %v927
          %v929 = vrot.slane %v916, %v928
          %v930 = vlaneseq
          %v931 = vshrl.u32 %v930, 7
          %v932 = vsub.s32 0, %v931
          %v933 = vrot.slane %v923, %v932
          %v934 = vlaneseq
          %v935 = vshrl.u32 %v934, 7
          %v936 = vsub.s32 0, %v935
          %v937 = vrot.slane %v924, %v936
          %v938 = vlaneseq
          %v939 = vshrl.u32 %v938, 7
          %v940 = vsub.s32 0, %v939
          %v941 = vrot.slane %v925, %v940
          %v946 = vadd.f32 %v867, %v929
          %v947 = vadd.f32 %v875, %v933
          %v948 = vadd.f32 %v874, %v929
          %v949 = vadd.f32 %v876, %v933
          %v950 = vadd.f32 %v884, %v937
          %v951 = vadd.f32 %v892, %v941
          %v952 = vadd.f32 %v891, %v937
          %v953 = vadd.f32 %v893, %v941
          %v962 = vcombine.low %v946, %v947
          %v964 = vunpack.c.l.s4 1983009808
          %v965 = vunpack.c.0.s8 %v964
          %v966 = vlaneseq
          %v967 = vshrl.u32 %v966, 7
          %v968 = vsub.s32 %v965, %v967
          %v969 = vrot.slane %v962, %v968
          %v970 = vcombine.low %v948, %v949
          %v972 = vunpack.c.l.s4 1983009808
          %v973 = vunpack.c.0.s8 %v972
          %v974 = vlaneseq
          %v975 = vshrl.u32 %v974, 7
          %v976 = vsub.s32 %v973, %v975
          %v977 = vrot.slane %v970, %v976
          %v978 = vcombine.low %v950, %v951
          %v980 = vunpack.c.l.s4 1983009808
          %v981 = vunpack.c.0.s8 %v980
          %v982 = vlaneseq
          %v983 = vshrl.u32 %v982, 7
          %v984 = vsub.s32 %v981, %v983
          %v985 = vrot.slane %v978, %v984
          %v986 = vcombine.low %v952, %v953
          %v988 = vunpack.c.l.s4 1983009808
          %v989 = vunpack.c.0.s8 %v988
          %v990 = vlaneseq
          %v991 = vshrl.u32 %v990, 7
          %v992 = vsub.s32 %v989, %v991
          %v993 = vrot.slane %v986, %v992
          %s998 = scalar_lea.vmem [#allocation3], 8
          %999 = vst.msk [vmem:[%s998 + $0x1] sm:$0xf] %vm605, %v969
          %1000 = vst.msk [vmem:[%s998 + $0x9] sm:$0xf] %vm605, %v977
          %1001 = vst.msk [vmem:[%s998 + $0x11] sm:$0xf] %vm605, %v985
          %1002 = vst.msk [vmem:[%s998 + $0x19] sm:$0xf] %vm605, %v993
          %v1003 = vld [vmem:[%s589] sm:$0xf]
          %v1004 = vld [vmem:[%s589 + $0x4] sm:$0xf]
          %v1005 = vld [vmem:[%s589 + $0x8] sm:$0xf]
          %v1006 = vld [vmem:[%s589 + $0xc] sm:$0xf]
          %v1007 = vld [vmem:[%s589 + $0x10] sm:$0xf]
          %v1008 = vld [vmem:[%s589 + $0x14] sm:$0xf]
          %v1009 = vld [vmem:[%s589 + $0x18] sm:$0xf]
          %v1010 = vld [vmem:[%s589 + $0x1c] sm:$0xf]
          %v1011 = vld [vmem:[%s7] sm:$0xf]
          %v1020 = vunpack.c.l.b16 %v1003
          %v1021 = vunpack.c.l.b16 %v1004
          %v1022 = vunpack.c.l.b16 %v1005
          %v1023 = vunpack.c.l.b16 %v1006
          %v1024 = vunpack.c.l.b16 %v1007
          %v1025 = vunpack.c.l.b16 %v1008
          %v1026 = vunpack.c.l.b16 %v1009
          %v1027 = vunpack.c.l.b16 %v1010
          %v1028 = vpack.c.b16 %v1021, %v1020
          %v1029 = vpack.c.b16 %v1023, %v1022
          %v1030 = vpack.c.b16 %v1025, %v1024
          %v1031 = vpack.c.b16 %v1027, %v1026
          %vm1032 = vcmask 64512
          %v1034 = vsel %vm1032, %v1028, 0
          %v1037 = vsel %vm1032, %v1029, 0
          %v1040 = vsel %vm1032, %v1030, 0
          %v1043 = vsel %vm1032, %v1031, 0
          %vm1045 = vcmask 1043456
          %v1047 = vsel %vm1045, %v1011, 0
          %1049 = vmatprep.subr.bf16.mxu0 0
          %1050 = vmatpush1.bf16.msra.mxu0 %v1047
          %1051 = vmatprep.subr.bf16.mxu0 0
          %1052 = vmatpush1.bf16.msra.mxu0 0
          %1053 = vmatprep.subr.bf16.mxu0 0
          %1054 = vmatpush1.bf16.msra.mxu0 0
          %1055 = vmatprep.subr.bf16.mxu0 0
          %1056 = vmatpush1.bf16.msra.mxu0 0
          %1057 = vmatprep.subr.bf16.mxu0 0
          %1058 = vmatpush1.bf16.msra.mxu0 0
          %1059 = vmatprep.subr.bf16.mxu0 0
          %1060 = vmatpush1.bf16.msra.mxu0 0
          %1061 = vmatprep.subr.bf16.mxu0 0
          %1062 = vmatpush1.bf16.msra.mxu0 0
          %1063 = vmatprep.subr.bf16.mxu0 0
          %1064 = vmatpush1.bf16.msra.mxu0 0
          %1065 = vmatprep.subr.bf16.mxu0 0
          %1066 = vmatpush1.bf16.msra.mxu0 0
          %1067 = vmatprep.subr.bf16.mxu0 0
          %1068 = vmatpush1.bf16.msra.mxu0 0
          %1069 = vmatprep.subr.bf16.mxu0 0
          %1070 = vmatpush1.bf16.msra.mxu0 0
          %1071 = vmatprep.subr.bf16.mxu0 0
          %1072 = vmatpush1.bf16.msra.mxu0 0
          %1073 = vmatprep.subr.bf16.mxu0 0
          %1074 = vmatpush1.bf16.msra.mxu0 0
          %1075 = vmatprep.subr.bf16.mxu0 0
          %1076 = vmatpush1.bf16.msra.mxu0 0
          %1077 = vmatprep.subr.bf16.mxu0 0
          %1078 = vmatpush1.bf16.msra.mxu0 0
          %1079 = vmatprep.subr.bf16.mxu0 0
          %1080 = vmatpush1.bf16.msra.mxu0 0
          %1081 = vmatprep.mubr.bf16.mxu0 0
          %1082 = vmatmul.mubr.bf16.gmra.mrb[0].mxu0 %v1034
          %v1083 = vpop.f32.mrb[0].mxu0
          %v1084 = vadd.f32 0.0, %v1083
          %v1085 = vpop.f32.mrb[0].mxu0
          %v1086 = vpop.f32.mrb[0].mxu0
          %v1087 = vadd.f32 0.0, %v1086
          %v1088 = vpop.f32.mrb[0].mxu0
          %1089 = vmatprep.mubr.bf16.mxu0 0
          %1090 = vmatmul.mubr.bf16.gmra.mrb[0].mxu0 %v1037
          %v1091 = vpop.f32.mrb[0].mxu0
          %v1092 = vadd.f32 0.0, %v1091
          %v1093 = vpop.f32.mrb[0].mxu0
          %v1094 = vpop.f32.mrb[0].mxu0
          %v1095 = vadd.f32 0.0, %v1094
          %v1096 = vpop.f32.mrb[0].mxu0
          %1097 = vmatprep.mubr.bf16.mxu0 0
          %1098 = vmatmul.mubr.bf16.gmra.mrb[0].mxu0 %v1040
          %v1099 = vpop.f32.mrb[0].mxu0
          %v1100 = vadd.f32 0.0, %v1099
          %v1101 = vpop.f32.mrb[0].mxu0
          %v1102 = vpop.f32.mrb[0].mxu0
          %v1103 = vadd.f32 0.0, %v1102
          %v1104 = vpop.f32.mrb[0].mxu0
          %1105 = vmatprep.mubr.bf16.mxu0 0
          %1106 = vmatmul.mubr.bf16.gmra.mrb[0].mxu0 %v1043
          %v1107 = vpop.f32.mrb[0].mxu0
          %v1108 = vadd.f32 0.0, %v1107
          %v1109 = vpop.f32.mrb[0].mxu0
          %v1110 = vpop.f32.mrb[0].mxu0
          %v1111 = vadd.f32 0.0, %v1110
          %v1112 = vpop.f32.mrb[0].mxu0
          %1113 = vdwg.mxu0
          %v1122 = vcombine.high %v1084, %v1084
          %v1124 = vunpack.c.l.s4 1983009808
          %v1125 = vunpack.c.0.s8 %v1124
          %v1126 = vlaneseq
          %v1127 = vshrl.u32 %v1126, 7
          %v1128 = vsub.s32 %v1125, %v1127
          %v1129 = vrot.slane %v1084, %v1128
          %v1131 = vunpack.c.l.s4 1983009808
          %v1132 = vunpack.c.0.s8 %v1131
          %v1133 = vlaneseq
          %v1134 = vshrl.u32 %v1133, 7
          %v1135 = vsub.s32 %v1132, %v1134
          %v1136 = vrot.slane %v1122, %v1135
          %v1137 = vcombine.high %v1129, %v1129
          %v1138 = vcombine.high %v1136, %v1136
          %v1139 = vcombine.high %v1087, %v1087
          %v1141 = vunpack.c.l.s4 1983009808
          %v1142 = vunpack.c.0.s8 %v1141
          %v1143 = vlaneseq
          %v1144 = vshrl.u32 %v1143, 7
          %v1145 = vsub.s32 %v1142, %v1144
          %v1146 = vrot.slane %v1087, %v1145
          %v1148 = vunpack.c.l.s4 1983009808
          %v1149 = vunpack.c.0.s8 %v1148
          %v1150 = vlaneseq
          %v1151 = vshrl.u32 %v1150, 7
          %v1152 = vsub.s32 %v1149, %v1151
          %v1153 = vrot.slane %v1139, %v1152
          %v1154 = vcombine.high %v1146, %v1146
          %v1155 = vcombine.high %v1153, %v1153
          %v1156 = vcombine.high %v1092, %v1092
          %v1158 = vunpack.c.l.s4 1983009808
          %v1159 = vunpack.c.0.s8 %v1158
          %v1160 = vlaneseq
          %v1161 = vshrl.u32 %v1160, 7
          %v1162 = vsub.s32 %v1159, %v1161
          %v1163 = vrot.slane %v1092, %v1162
          %v1165 = vunpack.c.l.s4 1983009808
          %v1166 = vunpack.c.0.s8 %v1165
          %v1167 = vlaneseq
          %v1168 = vshrl.u32 %v1167, 7
          %v1169 = vsub.s32 %v1166, %v1168
          %v1170 = vrot.slane %v1156, %v1169
          %v1171 = vcombine.high %v1163, %v1163
          %v1172 = vcombine.high %v1170, %v1170
          %v1173 = vcombine.high %v1095, %v1095
          %v1175 = vunpack.c.l.s4 1983009808
          %v1176 = vunpack.c.0.s8 %v1175
          %v1177 = vlaneseq
          %v1178 = vshrl.u32 %v1177, 7
          %v1179 = vsub.s32 %v1176, %v1178
          %v1180 = vrot.slane %v1095, %v1179
          %v1182 = vunpack.c.l.s4 1983009808
          %v1183 = vunpack.c.0.s8 %v1182
          %v1184 = vlaneseq
          %v1185 = vshrl.u32 %v1184, 7
          %v1186 = vsub.s32 %v1183, %v1185
          %v1187 = vrot.slane %v1173, %v1186
          %v1188 = vcombine.high %v1180, %v1180
          %v1189 = vcombine.high %v1187, %v1187
          %v1190 = vcombine.high %v1100, %v1100
          %v1192 = vunpack.c.l.s4 1983009808
          %v1193 = vunpack.c.0.s8 %v1192
          %v1194 = vlaneseq
          %v1195 = vshrl.u32 %v1194, 7
          %v1196 = vsub.s32 %v1193, %v1195
          %v1197 = vrot.slane %v1100, %v1196
          %v1199 = vunpack.c.l.s4 1983009808
          %v1200 = vunpack.c.0.s8 %v1199
          %v1201 = vlaneseq
          %v1202 = vshrl.u32 %v1201, 7
          %v1203 = vsub.s32 %v1200, %v1202
          %v1204 = vrot.slane %v1190, %v1203
          %v1205 = vcombine.high %v1197, %v1197
          %v1206 = vcombine.high %v1204, %v1204
          %v1207 = vcombine.high %v1103, %v1103
          %v1209 = vunpack.c.l.s4 1983009808
          %v1210 = vunpack.c.0.s8 %v1209
          %v1211 = vlaneseq
          %v1212 = vshrl.u32 %v1211, 7
          %v1213 = vsub.s32 %v1210, %v1212
          %v1214 = vrot.slane %v1103, %v1213
          %v1216 = vunpack.c.l.s4 1983009808
          %v1217 = vunpack.c.0.s8 %v1216
          %v1218 = vlaneseq
          %v1219 = vshrl.u32 %v1218, 7
          %v1220 = vsub.s32 %v1217, %v1219
          %v1221 = vrot.slane %v1207, %v1220
          %v1222 = vcombine.high %v1214, %v1214
          %v1223 = vcombine.high %v1221, %v1221
          %v1224 = vcombine.high %v1108, %v1108
          %v1226 = vunpack.c.l.s4 1983009808
          %v1227 = vunpack.c.0.s8 %v1226
          %v1228 = vlaneseq
          %v1229 = vshrl.u32 %v1228, 7
          %v1230 = vsub.s32 %v1227, %v1229
          %v1231 = vrot.slane %v1108, %v1230
          %v1233 = vunpack.c.l.s4 1983009808
          %v1234 = vunpack.c.0.s8 %v1233
          %v1235 = vlaneseq
          %v1236 = vshrl.u32 %v1235, 7
          %v1237 = vsub.s32 %v1234, %v1236
          %v1238 = vrot.slane %v1224, %v1237
          %v1239 = vcombine.high %v1231, %v1231
          %v1240 = vcombine.high %v1238, %v1238
          %v1241 = vcombine.high %v1111, %v1111
          %v1243 = vunpack.c.l.s4 1983009808
          %v1244 = vunpack.c.0.s8 %v1243
          %v1245 = vlaneseq
          %v1246 = vshrl.u32 %v1245, 7
          %v1247 = vsub.s32 %v1244, %v1246
          %v1248 = vrot.slane %v1111, %v1247
          %v1250 = vunpack.c.l.s4 1983009808
          %v1251 = vunpack.c.0.s8 %v1250
          %v1252 = vlaneseq
          %v1253 = vshrl.u32 %v1252, 7
          %v1254 = vsub.s32 %v1251, %v1253
          %v1255 = vrot.slane %v1241, %v1254
          %v1256 = vcombine.high %v1248, %v1248
          %v1257 = vcombine.high %v1255, %v1255
          %v1291 = vunpack.c.l.s4 1966171168
          %v1292 = vunpack.c.0.s8 %v1291
          %v1293 = vlaneseq
          %v1294 = vshrl.u32 %v1293, 7
          %v1295 = vsub.s32 %v1292, %v1294
          %v1296 = vrot.slane %v946, %v1295
          %v1297 = vcombine.high %v1296, %v1296
          %v1299 = vunpack.c.l.s4 1966171168
          %v1300 = vunpack.c.0.s8 %v1299
          %v1301 = vlaneseq
          %v1302 = vshrl.u32 %v1301, 7
          %v1303 = vsub.s32 %v1300, %v1302
          %v1304 = vrot.slane %v947, %v1303
          %v1305 = vcombine.high %v1304, %v1304
          %v1307 = vunpack.c.l.s4 1966171168
          %v1308 = vunpack.c.0.s8 %v1307
          %v1309 = vlaneseq
          %v1310 = vshrl.u32 %v1309, 7
          %v1311 = vsub.s32 %v1308, %v1310
          %v1312 = vrot.slane %v948, %v1311
          %v1313 = vcombine.high %v1312, %v1312
          %v1315 = vunpack.c.l.s4 1966171168
          %v1316 = vunpack.c.0.s8 %v1315
          %v1317 = vlaneseq
          %v1318 = vshrl.u32 %v1317, 7
          %v1319 = vsub.s32 %v1316, %v1318
          %v1320 = vrot.slane %v949, %v1319
          %v1321 = vcombine.high %v1320, %v1320
          %v1323 = vunpack.c.l.s4 1966171168
          %v1324 = vunpack.c.0.s8 %v1323
          %v1325 = vlaneseq
          %v1326 = vshrl.u32 %v1325, 7
          %v1327 = vsub.s32 %v1324, %v1326
          %v1328 = vrot.slane %v950, %v1327
          %v1329 = vcombine.high %v1328, %v1328
          %v1331 = vunpack.c.l.s4 1966171168
          %v1332 = vunpack.c.0.s8 %v1331
          %v1333 = vlaneseq
          %v1334 = vshrl.u32 %v1333, 7
          %v1335 = vsub.s32 %v1332, %v1334
          %v1336 = vrot.slane %v951, %v1335
          %v1337 = vcombine.high %v1336, %v1336
          %v1339 = vunpack.c.l.s4 1966171168
          %v1340 = vunpack.c.0.s8 %v1339
          %v1341 = vlaneseq
          %v1342 = vshrl.u32 %v1341, 7
          %v1343 = vsub.s32 %v1340, %v1342
          %v1344 = vrot.slane %v952, %v1343
          %v1345 = vcombine.high %v1344, %v1344
          %v1347 = vunpack.c.l.s4 1966171168
          %v1348 = vunpack.c.0.s8 %v1347
          %v1349 = vlaneseq
          %v1350 = vshrl.u32 %v1349, 7
          %v1351 = vsub.s32 %v1348, %v1350
          %v1352 = vrot.slane %v953, %v1351
          %v1353 = vcombine.high %v1352, %v1352
          %v1354 = vlaneseq
          %v1355 = vshrl.u32 %v1354, 7
          %v1356 = vsub.s32 0, %v1355
          %v1357 = vrot.slane %v1296, %v1356
          %v1358 = vlaneseq
          %v1359 = vshrl.u32 %v1358, 7
          %v1360 = vsub.s32 0, %v1359
          %v1361 = vrot.slane %v1297, %v1360
          %v1362 = vlaneseq
          %v1363 = vshrl.u32 %v1362, 7
          %v1364 = vsub.s32 0, %v1363
          %v1365 = vrot.slane %v1304, %v1364
          %v1366 = vlaneseq
          %v1367 = vshrl.u32 %v1366, 7
          %v1368 = vsub.s32 0, %v1367
          %v1369 = vrot.slane %v1305, %v1368
          %v1370 = vlaneseq
          %v1371 = vshrl.u32 %v1370, 7
          %v1372 = vsub.s32 0, %v1371
          %v1373 = vrot.slane %v1312, %v1372
          %v1374 = vlaneseq
          %v1375 = vshrl.u32 %v1374, 7
          %v1376 = vsub.s32 0, %v1375
          %v1377 = vrot.slane %v1313, %v1376
          %v1378 = vlaneseq
          %v1379 = vshrl.u32 %v1378, 7
          %v1380 = vsub.s32 0, %v1379
          %v1381 = vrot.slane %v1320, %v1380
          %v1382 = vlaneseq
          %v1383 = vshrl.u32 %v1382, 7
          %v1384 = vsub.s32 0, %v1383
          %v1385 = vrot.slane %v1321, %v1384
          %v1386 = vlaneseq
          %v1387 = vshrl.u32 %v1386, 7
          %v1388 = vsub.s32 0, %v1387
          %v1389 = vrot.slane %v1328, %v1388
          %v1390 = vlaneseq
          %v1391 = vshrl.u32 %v1390, 7
          %v1392 = vsub.s32 0, %v1391
          %v1393 = vrot.slane %v1329, %v1392
          %v1394 = vlaneseq
          %v1395 = vshrl.u32 %v1394, 7
          %v1396 = vsub.s32 0, %v1395
          %v1397 = vrot.slane %v1336, %v1396
          %v1398 = vlaneseq
          %v1399 = vshrl.u32 %v1398, 7
          %v1400 = vsub.s32 0, %v1399
          %v1401 = vrot.slane %v1337, %v1400
          %v1402 = vlaneseq
          %v1403 = vshrl.u32 %v1402, 7
          %v1404 = vsub.s32 0, %v1403
          %v1405 = vrot.slane %v1344, %v1404
          %v1406 = vlaneseq
          %v1407 = vshrl.u32 %v1406, 7
          %v1408 = vsub.s32 0, %v1407
          %v1409 = vrot.slane %v1345, %v1408
          %v1410 = vlaneseq
          %v1411 = vshrl.u32 %v1410, 7
          %v1412 = vsub.s32 0, %v1411
          %v1413 = vrot.slane %v1352, %v1412
          %v1414 = vlaneseq
          %v1415 = vshrl.u32 %v1414, 7
          %v1416 = vsub.s32 0, %v1415
          %v1417 = vrot.slane %v1353, %v1416
          %v1434 = vadd.f32 %v1129, %v1357
          %v1435 = vadd.f32 %v1137, %v1361
          %v1436 = vadd.f32 %v1136, %v1365
          %v1437 = vadd.f32 %v1138, %v1369
          %v1438 = vadd.f32 %v1146, %v1357
          %v1439 = vadd.f32 %v1154, %v1361
          %v1440 = vadd.f32 %v1153, %v1365
          %v1441 = vadd.f32 %v1155, %v1369
          %v1442 = vadd.f32 %v1163, %v1373
          %v1443 = vadd.f32 %v1171, %v1377
          %v1444 = vadd.f32 %v1170, %v1381
          %v1445 = vadd.f32 %v1172, %v1385
          %v1446 = vadd.f32 %v1180, %v1373
          %v1447 = vadd.f32 %v1188, %v1377
          %v1448 = vadd.f32 %v1187, %v1381
          %v1449 = vadd.f32 %v1189, %v1385
          %v1450 = vadd.f32 %v1197, %v1389
          %v1451 = vadd.f32 %v1205, %v1393
          %v1452 = vadd.f32 %v1204, %v1397
          %v1453 = vadd.f32 %v1206, %v1401
          %v1454 = vadd.f32 %v1214, %v1389
          %v1455 = vadd.f32 %v1222, %v1393
          %v1456 = vadd.f32 %v1221, %v1397
          %v1457 = vadd.f32 %v1223, %v1401
          %v1458 = vadd.f32 %v1231, %v1405
          %v1459 = vadd.f32 %v1239, %v1409
          %v1460 = vadd.f32 %v1238, %v1413
          %v1461 = vadd.f32 %v1240, %v1417
          %v1462 = vadd.f32 %v1248, %v1405
          %v1463 = vadd.f32 %v1256, %v1409
          %v1464 = vadd.f32 %v1255, %v1413
          %v1465 = vadd.f32 %v1257, %v1417
          %v1498 = vcombine.low %v1434, %v1435
          %v1499 = vcombine.low %v1436, %v1437
          %v1501 = vunpack.c.l.s4 1983009808
          %v1502 = vunpack.c.0.s8 %v1501
          %v1503 = vlaneseq
          %v1504 = vshrl.u32 %v1503, 7
          %v1505 = vsub.s32 %v1502, %v1504
          %v1506 = vrot.slane %v1498, %v1505
          %v1508 = vunpack.c.l.s4 1983009808
          %v1509 = vunpack.c.0.s8 %v1508
          %v1510 = vlaneseq
          %v1511 = vshrl.u32 %v1510, 7
          %v1512 = vsub.s32 %v1509, %v1511
          %v1513 = vrot.slane %v1499, %v1512
          %v1514 = vcombine.low %v1506, %v1513
          %v1515 = vcombine.low %v1438, %v1439
          %v1516 = vcombine.low %v1440, %v1441
          %v1518 = vunpack.c.l.s4 1983009808
          %v1519 = vunpack.c.0.s8 %v1518
          %v1520 = vlaneseq
          %v1521 = vshrl.u32 %v1520, 7
          %v1522 = vsub.s32 %v1519, %v1521
          %v1523 = vrot.slane %v1515, %v1522
          %v1525 = vunpack.c.l.s4 1983009808
          %v1526 = vunpack.c.0.s8 %v1525
          %v1527 = vlaneseq
          %v1528 = vshrl.u32 %v1527, 7
          %v1529 = vsub.s32 %v1526, %v1528
          %v1530 = vrot.slane %v1516, %v1529
          %v1531 = vcombine.low %v1523, %v1530
          %v1532 = vcombine.low %v1442, %v1443
          %v1533 = vcombine.low %v1444, %v1445
          %v1535 = vunpack.c.l.s4 1983009808
          %v1536 = vunpack.c.0.s8 %v1535
          %v1537 = vlaneseq
          %v1538 = vshrl.u32 %v1537, 7
          %v1539 = vsub.s32 %v1536, %v1538
          %v1540 = vrot.slane %v1532, %v1539
          %v1542 = vunpack.c.l.s4 1983009808
          %v1543 = vunpack.c.0.s8 %v1542
          %v1544 = vlaneseq
          %v1545 = vshrl.u32 %v1544, 7
          %v1546 = vsub.s32 %v1543, %v1545
          %v1547 = vrot.slane %v1533, %v1546
          %v1548 = vcombine.low %v1540, %v1547
          %v1549 = vcombine.low %v1446, %v1447
          %v1550 = vcombine.low %v1448, %v1449
          %v1552 = vunpack.c.l.s4 1983009808
          %v1553 = vunpack.c.0.s8 %v1552
          %v1554 = vlaneseq
          %v1555 = vshrl.u32 %v1554, 7
          %v1556 = vsub.s32 %v1553, %v1555
          %v1557 = vrot.slane %v1549, %v1556
          %v1559 = vunpack.c.l.s4 1983009808
          %v1560 = vunpack.c.0.s8 %v1559
          %v1561 = vlaneseq
          %v1562 = vshrl.u32 %v1561, 7
          %v1563 = vsub.s32 %v1560, %v1562
          %v1564 = vrot.slane %v1550, %v1563
          %v1565 = vcombine.low %v1557, %v1564
          %v1566 = vcombine.low %v1450, %v1451
          %v1567 = vcombine.low %v1452, %v1453
          %v1569 = vunpack.c.l.s4 1983009808
          %v1570 = vunpack.c.0.s8 %v1569
          %v1571 = vlaneseq
          %v1572 = vshrl.u32 %v1571, 7
          %v1573 = vsub.s32 %v1570, %v1572
          %v1574 = vrot.slane %v1566, %v1573
          %v1576 = vunpack.c.l.s4 1983009808
          %v1577 = vunpack.c.0.s8 %v1576
          %v1578 = vlaneseq
          %v1579 = vshrl.u32 %v1578, 7
          %v1580 = vsub.s32 %v1577, %v1579
          %v1581 = vrot.slane %v1567, %v1580
          %v1582 = vcombine.low %v1574, %v1581
          %v1583 = vcombine.low %v1454, %v1455
          %v1584 = vcombine.low %v1456, %v1457
          %v1586 = vunpack.c.l.s4 1983009808
          %v1587 = vunpack.c.0.s8 %v1586
          %v1588 = vlaneseq
          %v1589 = vshrl.u32 %v1588, 7
          %v1590 = vsub.s32 %v1587, %v1589
          %v1591 = vrot.slane %v1583, %v1590
          %v1593 = vunpack.c.l.s4 1983009808
          %v1594 = vunpack.c.0.s8 %v1593
          %v1595 = vlaneseq
          %v1596 = vshrl.u32 %v1595, 7
          %v1597 = vsub.s32 %v1594, %v1596
          %v1598 = vrot.slane %v1584, %v1597
          %v1599 = vcombine.low %v1591, %v1598
          %v1600 = vcombine.low %v1458, %v1459
          %v1601 = vcombine.low %v1460, %v1461
          %v1603 = vunpack.c.l.s4 1983009808
          %v1604 = vunpack.c.0.s8 %v1603
          %v1605 = vlaneseq
          %v1606 = vshrl.u32 %v1605, 7
          %v1607 = vsub.s32 %v1604, %v1606
          %v1608 = vrot.slane %v1600, %v1607
          %v1610 = vunpack.c.l.s4 1983009808
          %v1611 = vunpack.c.0.s8 %v1610
          %v1612 = vlaneseq
          %v1613 = vshrl.u32 %v1612, 7
          %v1614 = vsub.s32 %v1611, %v1613
          %v1615 = vrot.slane %v1601, %v1614
          %v1616 = vcombine.low %v1608, %v1615
          %v1617 = vcombine.low %v1462, %v1463
          %v1618 = vcombine.low %v1464, %v1465
          %v1620 = vunpack.c.l.s4 1983009808
          %v1621 = vunpack.c.0.s8 %v1620
          %v1622 = vlaneseq
          %v1623 = vshrl.u32 %v1622, 7
          %v1624 = vsub.s32 %v1621, %v1623
          %v1625 = vrot.slane %v1617, %v1624
          %v1627 = vunpack.c.l.s4 1983009808
          %v1628 = vunpack.c.0.s8 %v1627
          %v1629 = vlaneseq
          %v1630 = vshrl.u32 %v1629, 7
          %v1631 = vsub.s32 %v1628, %v1630
          %v1632 = vrot.slane %v1618, %v1631
          %v1633 = vcombine.low %v1625, %v1632
          %s1642 = scalar_lea.vmem [#allocation4], 16
          %1643 = vst.msk [vmem:[%s1642 + $0x1] sm:$0xff] %vm634, %v1514
          %1644 = vst.msk [vmem:[%s1642 + $0x11] sm:$0xff] %vm634, %v1531
          %1645 = vst.msk [vmem:[%s1642 + $0x21] sm:$0xff] %vm634, %v1548
          %1646 = vst.msk [vmem:[%s1642 + $0x31] sm:$0xff] %vm634, %v1565
          %1647 = vst.msk [vmem:[%s1642 + $0x41] sm:$0xff] %vm634, %v1582
          %1648 = vst.msk [vmem:[%s1642 + $0x51] sm:$0xff] %vm634, %v1599
          %1649 = vst.msk [vmem:[%s1642 + $0x61] sm:$0xff] %vm634, %v1616
          %1650 = vst.msk [vmem:[%s1642 + $0x71] sm:$0xff] %vm634, %v1633
          %v1651 = vld [vmem:[#allocation2] sm:$0xf]
          %v1652 = vld [vmem:[#allocation2 + $0x4] sm:$0xf]
          %v1653 = vld [vmem:[#allocation2 + $0x8] sm:$0xf]
          %v1654 = vld [vmem:[#allocation2 + $0xc] sm:$0xf]
          %v1657 = vcombine.low %v1651, %v1652
          %v1659 = vunpack.c.l.s4 1983009808
          %v1660 = vunpack.c.0.s8 %v1659
          %v1661 = vlaneseq
          %v1662 = vshrl.u32 %v1661, 7
          %v1663 = vsub.s32 %v1660, %v1662
          %v1664 = vrot.slane %v1657, %v1663
          %v1666 = vpack.c.bf16 %v1664, %v1664
          %v1667 = vld [vmem:[%s10] sm:$0xf]
          %v1668 = vld [vmem:[%s10 + $0x4] sm:$0xf]
          %v1669 = vld [vmem:[%s10 + $0x8] sm:$0xf]
          %v1670 = vld [vmem:[%s10 + $0xc] sm:$0xf]
          %v1672 = vunpack.c.l.s4 1983009808
          %v1673 = vunpack.c.0.s8 %v1672
          %v1674 = vlaneseq
          %v1675 = vshrl.u32 %v1674, 7
          %v1676 = vsub.s32 %v1673, %v1675
          %v1677 = vrot.slane %v1651, %v1676
          %v1678 = vcombine.high %v1677, %v1677
          %v1680 = vunpack.c.l.s4 1983009808
          %v1681 = vunpack.c.0.s8 %v1680
          %v1682 = vlaneseq
          %v1683 = vshrl.u32 %v1682, 7
          %v1684 = vsub.s32 %v1681, %v1683
          %v1685 = vrot.slane %v1652, %v1684
          %v1686 = vcombine.high %v1685, %v1685
          %vm1687 = vcmask 1040384
          %vm1688 = vcmask 1042434
          %vm1689 = vmor %vm1687, %vm1688
          %vm1690 = vcmask 1044484
          %vm1691 = vmor %vm1689, %vm1690
          %vm1692 = vcmask 1046534
          %vm1693 = vmor %vm1691, %vm1692
          %v1694 = vrot.slane %v1677, 7
          %v1695 = vrot.slane %v1694, 2
          %v1696 = vrot.slane %v1678, 7
          %v1697 = vsel %vm1693, %v1695, %v1696
          %v1698 = vrot.slane %v1685, 7
          %v1699 = vrot.slane %v1698, 2
          %v1700 = vrot.slane %v1686, 7
          %v1701 = vsel %vm1693, %v1699, %v1700
          %v1702 = vcombine.low %v1697, %v1701
          %v1704 = vunpack.c.l.s4 1983009808
          %v1705 = vunpack.c.0.s8 %v1704
          %v1706 = vlaneseq
          %v1707 = vshrl.u32 %v1706, 7
          %v1708 = vsub.s32 %v1705, %v1707
          %v1709 = vrot.slane %v1702, %v1708
          %v1711 = vpack.c.bf16 %v1709, %v1709
          %s1712 = scalar_lea.vmem %s10, 16
          %v1713 = vld [vmem:[%s1712] sm:$0xf]
          %v1714 = vld [vmem:[%s1712 + $0x4] sm:$0xf]
          %v1715 = vld [vmem:[%s1712 + $0x8] sm:$0xf]
          %v1716 = vld [vmem:[%s1712 + $0xc] sm:$0xf]
          %v1721 = vunpack.c.l.b16 %v1713
          %v1722 = vunpack.c.l.b16 %v1714
          %v1723 = vunpack.c.l.b16 %v1715
          %v1724 = vunpack.c.l.b16 %v1716
          %v1725 = vpack.c.b16 %v1722, %v1721
          %v1726 = vpack.c.b16 %v1724, %v1723
          %v1730 = vsel %vm634, %v1711, 0
          %1732 = vmatprep.subr.bf16.mxu0 0
          %1733 = vmatpush1.bf16.msra.mxu0 %v1725
          %1734 = vmatprep.subr.bf16.mxu0 0
          %1735 = vmatpush1.bf16.msra.mxu0 %v1726
          %1736 = vmatprep.subr.bf16.mxu0 0
          %1737 = vmatpush1.bf16.msra.mxu0 0
          %1738 = vmatprep.subr.bf16.mxu0 0
          %1739 = vmatpush1.bf16.msra.mxu0 0
          %1740 = vmatprep.subr.bf16.mxu0 0
          %1741 = vmatpush1.bf16.msra.mxu0 0
          %1742 = vmatprep.subr.bf16.mxu0 0
          %1743 = vmatpush1.bf16.msra.mxu0 0
          %1744 = vmatprep.subr.bf16.mxu0 0
          %1745 = vmatpush1.bf16.msra.mxu0 0
          %1746 = vmatprep.subr.bf16.mxu0 0
          %1747 = vmatpush1.bf16.msra.mxu0 0
          %1748 = vmatprep.subr.bf16.mxu0 0
          %1749 = vmatpush1.bf16.msra.mxu0 0
          %1750 = vmatprep.subr.bf16.mxu0 0
          %1751 = vmatpush1.bf16.msra.mxu0 0
          %1752 = vmatprep.subr.bf16.mxu0 0
          %1753 = vmatpush1.bf16.msra.mxu0 0
          %1754 = vmatprep.subr.bf16.mxu0 0
          %1755 = vmatpush1.bf16.msra.mxu0 0
          %1756 = vmatprep.subr.bf16.mxu0 0
          %1757 = vmatpush1.bf16.msra.mxu0 0
          %1758 = vmatprep.subr.bf16.mxu0 0
          %1759 = vmatpush1.bf16.msra.mxu0 0
          %1760 = vmatprep.subr.bf16.mxu0 0
          %1761 = vmatpush1.bf16.msra.mxu0 0
          %1762 = vmatprep.subr.bf16.mxu0 0
          %1763 = vmatpush1.bf16.msra.mxu0 0
          %1764 = vmatprep.mubr.bf16.mxu0 0
          %1765 = vmatmul.mubr.bf16.gmra.mrb[0].mxu0 %v1730
          %v1766 = vpop.f32.mrb[0].mxu0
          %v1767 = vadd.f32 0.0, %v1766
          %v1768 = vpop.f32.mrb[0].mxu0
          %v1769 = vpop.f32.mrb[0].mxu0
          %v1770 = vpop.f32.mrb[0].mxu0
          %1771 = vdwg.mxu0
          %v1776 = vunpack.c.l.b16 %v1667
          %v1777 = vunpack.c.l.b16 %v1668
          %v1778 = vunpack.c.l.b16 %v1669
          %v1779 = vunpack.c.l.b16 %v1670
          %v1780 = vpack.c.b16 %v1777, %v1776
          %v1781 = vpack.c.b16 %v1779, %v1778
          %v1785 = vsel %vm634, %v1666, 0
          %1787 = vmatprep.subr.bf16.mxu0 0
          %1788 = vmatpush1.bf16.msra.mxu0 %v1780
          %1789 = vmatprep.subr.bf16.mxu0 0
          %1790 = vmatpush1.bf16.msra.mxu0 %v1781
          %1791 = vmatprep.subr.bf16.mxu0 0
          %1792 = vmatpush1.bf16.msra.mxu0 0
          %1793 = vmatprep.subr.bf16.mxu0 0
          %1794 = vmatpush1.bf16.msra.mxu0 0
          %1795 = vmatprep.subr.bf16.mxu0 0
          %1796 = vmatpush1.bf16.msra.mxu0 0
          %1797 = vmatprep.subr.bf16.mxu0 0
          %1798 = vmatpush1.bf16.msra.mxu0 0
          %1799 = vmatprep.subr.bf16.mxu0 0
          %1800 = vmatpush1.bf16.msra.mxu0 0
          %1801 = vmatprep.subr.bf16.mxu0 0
          %1802 = vmatpush1.bf16.msra.mxu0 0
          %1803 = vmatprep.subr.bf16.mxu0 0
          %1804 = vmatpush1.bf16.msra.mxu0 0
          %1805 = vmatprep.subr.bf16.mxu0 0
          %1806 = vmatpush1.bf16.msra.mxu0 0
          %1807 = vmatprep.subr.bf16.mxu0 0
          %1808 = vmatpush1.bf16.msra.mxu0 0
          %1809 = vmatprep.subr.bf16.mxu0 0
          %1810 = vmatpush1.bf16.msra.mxu0 0
          %1811 = vmatprep.subr.bf16.mxu0 0
          %1812 = vmatpush1.bf16.msra.mxu0 0
          %1813 = vmatprep.subr.bf16.mxu0 0
          %1814 = vmatpush1.bf16.msra.mxu0 0
          %1815 = vmatprep.subr.bf16.mxu0 0
          %1816 = vmatpush1.bf16.msra.mxu0 0
          %1817 = vmatprep.subr.bf16.mxu0 0
          %1818 = vmatpush1.bf16.msra.mxu0 0
          %1819 = vmatprep.mubr.bf16.mxu0 0
          %1820 = vmatmul.mubr.bf16.gmra.mrb[0].mxu0 %v1785
          %v1821 = vpop.f32.mrb[0].mxu0
          %v1822 = vadd.f32 %v1767, %v1821
          %v1823 = vpop.f32.mrb[0].mxu0
          %v1824 = vpop.f32.mrb[0].mxu0
          %v1825 = vpop.f32.mrb[0].mxu0
          %1826 = vdwg.mxu0
          %v1827 = vcombine.low %v1678, %v1686
          %v1829 = vunpack.c.l.s4 1983009808
          %v1830 = vunpack.c.0.s8 %v1829
          %v1831 = vlaneseq
          %v1832 = vshrl.u32 %v1831, 7
          %v1833 = vsub.s32 %v1830, %v1832
          %v1834 = vrot.slane %v1827, %v1833
          %v1836 = vpack.c.bf16 %v1834, %v1834
          %s1837 = scalar_lea.vmem %s10, 32
          %v1838 = vld [vmem:[%s1837] sm:$0xf]
          %v1839 = vld [vmem:[%s1837 + $0x4] sm:$0xf]
          %v1840 = vld [vmem:[%s1837 + $0x8] sm:$0xf]
          %v1841 = vld [vmem:[%s1837 + $0xc] sm:$0xf]
          %v1846 = vunpack.c.l.b16 %v1838
          %v1847 = vunpack.c.l.b16 %v1839
          %v1848 = vunpack.c.l.b16 %v1840
          %v1849 = vunpack.c.l.b16 %v1841
          %v1850 = vpack.c.b16 %v1847, %v1846
          %v1851 = vpack.c.b16 %v1849, %v1848
          %v1855 = vsel %vm634, %v1836, 0
          %1857 = vmatprep.subr.bf16.mxu0 0
          %1858 = vmatpush1.bf16.msra.mxu0 %v1850
          %1859 = vmatprep.subr.bf16.mxu0 0
          %1860 = vmatpush1.bf16.msra.mxu0 %v1851
          %1861 = vmatprep.subr.bf16.mxu0 0
          %1862 = vmatpush1.bf16.msra.mxu0 0
          %1863 = vmatprep.subr.bf16.mxu0 0
          %1864 = vmatpush1.bf16.msra.mxu0 0
          %1865 = vmatprep.subr.bf16.mxu0 0
          %1866 = vmatpush1.bf16.msra.mxu0 0
          %1867 = vmatprep.subr.bf16.mxu0 0
          %1868 = vmatpush1.bf16.msra.mxu0 0
          %1869 = vmatprep.subr.bf16.mxu0 0
          %1870 = vmatpush1.bf16.msra.mxu0 0
          %1871 = vmatprep.subr.bf16.mxu0 0
          %1872 = vmatpush1.bf16.msra.mxu0 0
          %1873 = vmatprep.subr.bf16.mxu0 0
          %1874 = vmatpush1.bf16.msra.mxu0 0
          %1875 = vmatprep.subr.bf16.mxu0 0
          %1876 = vmatpush1.bf16.msra.mxu0 0
          %1877 = vmatprep.subr.bf16.mxu0 0
          %1878 = vmatpush1.bf16.msra.mxu0 0
          %1879 = vmatprep.subr.bf16.mxu0 0
          %1880 = vmatpush1.bf16.msra.mxu0 0
          %1881 = vmatprep.subr.bf16.mxu0 0
          %1882 = vmatpush1.bf16.msra.mxu0 0
          %1883 = vmatprep.subr.bf16.mxu0 0
          %1884 = vmatpush1.bf16.msra.mxu0 0
          %1885 = vmatprep.subr.bf16.mxu0 0
          %1886 = vmatpush1.bf16.msra.mxu0 0
          %1887 = vmatprep.subr.bf16.mxu0 0
          %1888 = vmatpush1.bf16.msra.mxu0 0
          %1889 = vmatprep.mubr.bf16.mxu0 0
          %1890 = vmatmul.mubr.bf16.gmra.mrb[0].mxu0 %v1855
          %v1891 = vpop.f32.mrb[0].mxu0
          %v1892 = vadd.f32 0.0, %v1891
          %v1893 = vpop.f32.mrb[0].mxu0
          %v1894 = vpop.f32.mrb[0].mxu0
          %v1895 = vpop.f32.mrb[0].mxu0
          %1896 = vdwg.mxu0
          %v1897 = vadd.f32 %v1822, %v1892
          %v1899 = vcombine.low %v1652, %v1653
          %v1901 = vunpack.c.l.s4 1983009808
          %v1902 = vunpack.c.0.s8 %v1901
          %v1903 = vlaneseq
          %v1904 = vshrl.u32 %v1903, 7
          %v1905 = vsub.s32 %v1902, %v1904
          %v1906 = vrot.slane %v1899, %v1905
          %v1908 = vpack.c.bf16 %v1906, %v1906
          %s1909 = scalar_lea.vmem %s10, 48
          %v1910 = vld [vmem:[%s1909] sm:$0xf]
          %v1911 = vld [vmem:[%s1909 + $0x4] sm:$0xf]
          %v1912 = vld [vmem:[%s1909 + $0x8] sm:$0xf]
          %v1913 = vld [vmem:[%s1909 + $0xc] sm:$0xf]
          %v1918 = vunpack.c.l.b16 %v1910
          %v1919 = vunpack.c.l.b16 %v1911
          %v1920 = vunpack.c.l.b16 %v1912
          %v1921 = vunpack.c.l.b16 %v1913
          %v1922 = vpack.c.b16 %v1919, %v1918
          %v1923 = vpack.c.b16 %v1921, %v1920
          %v1927 = vsel %vm634, %v1908, 0
          %1929 = vmatprep.subr.bf16.mxu0 0
          %1930 = vmatpush1.bf16.msra.mxu0 %v1922
          %1931 = vmatprep.subr.bf16.mxu0 0
          %1932 = vmatpush1.bf16.msra.mxu0 %v1923
          %1933 = vmatprep.subr.bf16.mxu0 0
          %1934 = vmatpush1.bf16.msra.mxu0 0
          %1935 = vmatprep.subr.bf16.mxu0 0
          %1936 = vmatpush1.bf16.msra.mxu0 0
          %1937 = vmatprep.subr.bf16.mxu0 0
          %1938 = vmatpush1.bf16.msra.mxu0 0
          %1939 = vmatprep.subr.bf16.mxu0 0
          %1940 = vmatpush1.bf16.msra.mxu0 0
          %1941 = vmatprep.subr.bf16.mxu0 0
          %1942 = vmatpush1.bf16.msra.mxu0 0
          %1943 = vmatprep.subr.bf16.mxu0 0
          %1944 = vmatpush1.bf16.msra.mxu0 0
          %1945 = vmatprep.subr.bf16.mxu0 0
          %1946 = vmatpush1.bf16.msra.mxu0 0
          %1947 = vmatprep.subr.bf16.mxu0 0
          %1948 = vmatpush1.bf16.msra.mxu0 0
          %1949 = vmatprep.subr.bf16.mxu0 0
          %1950 = vmatpush1.bf16.msra.mxu0 0
          %1951 = vmatprep.subr.bf16.mxu0 0
          %1952 = vmatpush1.bf16.msra.mxu0 0
          %1953 = vmatprep.subr.bf16.mxu0 0
          %1954 = vmatpush1.bf16.msra.mxu0 0
          %1955 = vmatprep.subr.bf16.mxu0 0
          %1956 = vmatpush1.bf16.msra.mxu0 0
          %1957 = vmatprep.subr.bf16.mxu0 0
          %1958 = vmatpush1.bf16.msra.mxu0 0
          %1959 = vmatprep.subr.bf16.mxu0 0
          %1960 = vmatpush1.bf16.msra.mxu0 0
          %1961 = vmatprep.mubr.bf16.mxu0 0
          %1962 = vmatmul.mubr.bf16.gmra.mrb[0].mxu0 %v1927
          %v1963 = vpop.f32.mrb[0].mxu0
          %v1964 = vadd.f32 0.0, %v1963
          %v1965 = vpop.f32.mrb[0].mxu0
          %v1966 = vpop.f32.mrb[0].mxu0
          %v1967 = vpop.f32.mrb[0].mxu0
          %1968 = vdwg.mxu0
          %v1969 = vadd.f32 %v1897, %v1964
          %v1971 = vunpack.c.l.s4 1983009808
          %v1972 = vunpack.c.0.s8 %v1971
          %v1973 = vlaneseq
          %v1974 = vshrl.u32 %v1973, 7
          %v1975 = vsub.s32 %v1972, %v1974
          %v1976 = vrot.slane %v1653, %v1975
          %v1977 = vcombine.high %v1976, %v1976
          %v1978 = vrot.slane %v1976, 7
          %v1979 = vrot.slane %v1978, 2
          %v1980 = vrot.slane %v1977, 7
          %v1981 = vsel %vm1693, %v1979, %v1980
          %v1982 = vcombine.low %v1701, %v1981
          %v1984 = vunpack.c.l.s4 1983009808
          %v1985 = vunpack.c.0.s8 %v1984
          %v1986 = vlaneseq
          %v1987 = vshrl.u32 %v1986, 7
          %v1988 = vsub.s32 %v1985, %v1987
          %v1989 = vrot.slane %v1982, %v1988
          %v1991 = vpack.c.bf16 %v1989, %v1989
          %s1992 = scalar_lea.vmem %s10, 64
          %v1993 = vld [vmem:[%s1992] sm:$0xf]
          %v1994 = vld [vmem:[%s1992 + $0x4] sm:$0xf]
          %v1995 = vld [vmem:[%s1992 + $0x8] sm:$0xf]
          %v1996 = vld [vmem:[%s1992 + $0xc] sm:$0xf]
          %v2001 = vunpack.c.l.b16 %v1993
          %v2002 = vunpack.c.l.b16 %v1994
          %v2003 = vunpack.c.l.b16 %v1995
          %v2004 = vunpack.c.l.b16 %v1996
          %v2005 = vpack.c.b16 %v2002, %v2001
          %v2006 = vpack.c.b16 %v2004, %v2003
          %v2010 = vsel %vm634, %v1991, 0
          %2012 = vmatprep.subr.bf16.mxu0 0
          %2013 = vmatpush1.bf16.msra.mxu0 %v2005
          %2014 = vmatprep.subr.bf16.mxu0 0
          %2015 = vmatpush1.bf16.msra.mxu0 %v2006
          %2016 = vmatprep.subr.bf16.mxu0 0
          %2017 = vmatpush1.bf16.msra.mxu0 0
          %2018 = vmatprep.subr.bf16.mxu0 0
          %2019 = vmatpush1.bf16.msra.mxu0 0
          %2020 = vmatprep.subr.bf16.mxu0 0
          %2021 = vmatpush1.bf16.msra.mxu0 0
          %2022 = vmatprep.subr.bf16.mxu0 0
          %2023 = vmatpush1.bf16.msra.mxu0 0
          %2024 = vmatprep.subr.bf16.mxu0 0
          %2025 = vmatpush1.bf16.msra.mxu0 0
          %2026 = vmatprep.subr.bf16.mxu0 0
          %2027 = vmatpush1.bf16.msra.mxu0 0
          %2028 = vmatprep.subr.bf16.mxu0 0
          %2029 = vmatpush1.bf16.msra.mxu0 0
          %2030 = vmatprep.subr.bf16.mxu0 0
          %2031 = vmatpush1.bf16.msra.mxu0 0
          %2032 = vmatprep.subr.bf16.mxu0 0
          %2033 = vmatpush1.bf16.msra.mxu0 0
          %2034 = vmatprep.subr.bf16.mxu0 0
          %2035 = vmatpush1.bf16.msra.mxu0 0
          %2036 = vmatprep.subr.bf16.mxu0 0
          %2037 = vmatpush1.bf16.msra.mxu0 0
          %2038 = vmatprep.subr.bf16.mxu0 0
          %2039 = vmatpush1.bf16.msra.mxu0 0
          %2040 = vmatprep.subr.bf16.mxu0 0
          %2041 = vmatpush1.bf16.msra.mxu0 0
          %2042 = vmatprep.subr.bf16.mxu0 0
          %2043 = vmatpush1.bf16.msra.mxu0 0
          %2044 = vmatprep.mubr.bf16.mxu0 0
          %2045 = vmatmul.mubr.bf16.gmra.mrb[0].mxu0 %v2010
          %v2046 = vpop.f32.mrb[0].mxu0
          %v2047 = vadd.f32 0.0, %v2046
          %v2048 = vpop.f32.mrb[0].mxu0
          %v2049 = vpop.f32.mrb[0].mxu0
          %v2050 = vpop.f32.mrb[0].mxu0
          %2051 = vdwg.mxu0
          %v2052 = vadd.f32 %v1969, %v2047
          %v2053 = vcombine.low %v1686, %v1977
          %v2055 = vunpack.c.l.s4 1983009808
          %v2056 = vunpack.c.0.s8 %v2055
          %v2057 = vlaneseq
          %v2058 = vshrl.u32 %v2057, 7
          %v2059 = vsub.s32 %v2056, %v2058
          %v2060 = vrot.slane %v2053, %v2059
          %v2062 = vpack.c.bf16 %v2060, %v2060
          %s2063 = scalar_lea.vmem %s10, 80
          %v2064 = vld [vmem:[%s2063] sm:$0xf]
          %v2065 = vld [vmem:[%s2063 + $0x4] sm:$0xf]
          %v2066 = vld [vmem:[%s2063 + $0x8] sm:$0xf]
          %v2067 = vld [vmem:[%s2063 + $0xc] sm:$0xf]
          %v2072 = vunpack.c.l.b16 %v2064
          %v2073 = vunpack.c.l.b16 %v2065
          %v2074 = vunpack.c.l.b16 %v2066
          %v2075 = vunpack.c.l.b16 %v2067
          %v2076 = vpack.c.b16 %v2073, %v2072
          %v2077 = vpack.c.b16 %v2075, %v2074
          %v2081 = vsel %vm634, %v2062, 0
          %2083 = vmatprep.subr.bf16.mxu0 0
          %2084 = vmatpush1.bf16.msra.mxu0 %v2076
          %2085 = vmatprep.subr.bf16.mxu0 0
          %2086 = vmatpush1.bf16.msra.mxu0 %v2077
          %2087 = vmatprep.subr.bf16.mxu0 0
          %2088 = vmatpush1.bf16.msra.mxu0 0
          %2089 = vmatprep.subr.bf16.mxu0 0
          %2090 = vmatpush1.bf16.msra.mxu0 0
          %2091 = vmatprep.subr.bf16.mxu0 0
          %2092 = vmatpush1.bf16.msra.mxu0 0
          %2093 = vmatprep.subr.bf16.mxu0 0
          %2094 = vmatpush1.bf16.msra.mxu0 0
          %2095 = vmatprep.subr.bf16.mxu0 0
          %2096 = vmatpush1.bf16.msra.mxu0 0
          %2097 = vmatprep.subr.bf16.mxu0 0
          %2098 = vmatpush1.bf16.msra.mxu0 0
          %2099 = vmatprep.subr.bf16.mxu0 0
          %2100 = vmatpush1.bf16.msra.mxu0 0
          %2101 = vmatprep.subr.bf16.mxu0 0
          %2102 = vmatpush1.bf16.msra.mxu0 0
          %2103 = vmatprep.subr.bf16.mxu0 0
          %2104 = vmatpush1.bf16.msra.mxu0 0
          %2105 = vmatprep.subr.bf16.mxu0 0
          %2106 = vmatpush1.bf16.msra.mxu0 0
          %2107 = vmatprep.subr.bf16.mxu0 0
          %2108 = vmatpush1.bf16.msra.mxu0 0
          %2109 = vmatprep.subr.bf16.mxu0 0
          %2110 = vmatpush1.bf16.msra.mxu0 0
          %2111 = vmatprep.subr.bf16.mxu0 0
          %2112 = vmatpush1.bf16.msra.mxu0 0
          %2113 = vmatprep.subr.bf16.mxu0 0
          %2114 = vmatpush1.bf16.msra.mxu0 0
          %2115 = vmatprep.mubr.bf16.mxu0 0
          %2116 = vmatmul.mubr.bf16.gmra.mrb[0].mxu0 %v2081
          %v2117 = vpop.f32.mrb[0].mxu0
          %v2118 = vadd.f32 0.0, %v2117
          %v2119 = vpop.f32.mrb[0].mxu0
          %v2120 = vpop.f32.mrb[0].mxu0
          %v2121 = vpop.f32.mrb[0].mxu0
          %2122 = vdwg.mxu0
          %v2123 = vadd.f32 %v2052, %v2118
          %v2125 = vcombine.low %v1653, %v1654
          %v2127 = vunpack.c.l.s4 1983009808
          %v2128 = vunpack.c.0.s8 %v2127
          %v2129 = vlaneseq
          %v2130 = vshrl.u32 %v2129, 7
          %v2131 = vsub.s32 %v2128, %v2130
          %v2132 = vrot.slane %v2125, %v2131
          %v2134 = vpack.c.bf16 %v2132, %v2132
          %s2135 = scalar_lea.vmem %s10, 96
          %v2136 = vld [vmem:[%s2135] sm:$0xf]
          %v2137 = vld [vmem:[%s2135 + $0x4] sm:$0xf]
          %v2138 = vld [vmem:[%s2135 + $0x8] sm:$0xf]
          %v2139 = vld [vmem:[%s2135 + $0xc] sm:$0xf]
          %v2144 = vunpack.c.l.b16 %v2136
          %v2145 = vunpack.c.l.b16 %v2137
          %v2146 = vunpack.c.l.b16 %v2138
          %v2147 = vunpack.c.l.b16 %v2139
          %v2148 = vpack.c.b16 %v2145, %v2144
          %v2149 = vpack.c.b16 %v2147, %v2146
          %v2153 = vsel %vm634, %v2134, 0
          %2155 = vmatprep.subr.bf16.mxu0 0
          %2156 = vmatpush1.bf16.msra.mxu0 %v2148
          %2157 = vmatprep.subr.bf16.mxu0 0
          %2158 = vmatpush1.bf16.msra.mxu0 %v2149
          %2159 = vmatprep.subr.bf16.mxu0 0
          %2160 = vmatpush1.bf16.msra.mxu0 0
          %2161 = vmatprep.subr.bf16.mxu0 0
          %2162 = vmatpush1.bf16.msra.mxu0 0
          %2163 = vmatprep.subr.bf16.mxu0 0
          %2164 = vmatpush1.bf16.msra.mxu0 0
          %2165 = vmatprep.subr.bf16.mxu0 0
          %2166 = vmatpush1.bf16.msra.mxu0 0
          %2167 = vmatprep.subr.bf16.mxu0 0
          %2168 = vmatpush1.bf16.msra.mxu0 0
          %2169 = vmatprep.subr.bf16.mxu0 0
          %2170 = vmatpush1.bf16.msra.mxu0 0
          %2171 = vmatprep.subr.bf16.mxu0 0
          %2172 = vmatpush1.bf16.msra.mxu0 0
          %2173 = vmatprep.subr.bf16.mxu0 0
          %2174 = vmatpush1.bf16.msra.mxu0 0
          %2175 = vmatprep.subr.bf16.mxu0 0
          %2176 = vmatpush1.bf16.msra.mxu0 0
          %2177 = vmatprep.subr.bf16.mxu0 0
          %2178 = vmatpush1.bf16.msra.mxu0 0
          %2179 = vmatprep.subr.bf16.mxu0 0
          %2180 = vmatpush1.bf16.msra.mxu0 0
          %2181 = vmatprep.subr.bf16.mxu0 0
          %2182 = vmatpush1.bf16.msra.mxu0 0
          %2183 = vmatprep.subr.bf16.mxu0 0
          %2184 = vmatpush1.bf16.msra.mxu0 0
          %2185 = vmatprep.subr.bf16.mxu0 0
          %2186 = vmatpush1.bf16.msra.mxu0 0
          %2187 = vmatprep.mubr.bf16.mxu0 0
          %2188 = vmatmul.mubr.bf16.gmra.mrb[0].mxu0 %v2153
          %v2189 = vpop.f32.mrb[0].mxu0
          %v2190 = vadd.f32 0.0, %v2189
          %v2191 = vpop.f32.mrb[0].mxu0
          %v2192 = vpop.f32.mrb[0].mxu0
          %v2193 = vpop.f32.mrb[0].mxu0
          %2194 = vdwg.mxu0
          %v2195 = vadd.f32 %v2123, %v2190
          %v2197 = vunpack.c.l.s4 1983009808
          %v2198 = vunpack.c.0.s8 %v2197
          %v2199 = vlaneseq
          %v2200 = vshrl.u32 %v2199, 7
          %v2201 = vsub.s32 %v2198, %v2200
          %v2202 = vrot.slane %v1654, %v2201
          %v2203 = vcombine.high %v2202, %v2202
          %v2204 = vrot.slane %v2202, 7
          %v2205 = vrot.slane %v2204, 2
          %v2206 = vrot.slane %v2203, 7
          %v2207 = vsel %vm1693, %v2205, %v2206
          %v2208 = vcombine.low %v1981, %v2207
          %v2210 = vunpack.c.l.s4 1983009808
          %v2211 = vunpack.c.0.s8 %v2210
          %v2212 = vlaneseq
          %v2213 = vshrl.u32 %v2212, 7
          %v2214 = vsub.s32 %v2211, %v2213
          %v2215 = vrot.slane %v2208, %v2214
          %v2217 = vpack.c.bf16 %v2215, %v2215
          %s2218 = scalar_lea.vmem %s10, 112
          %v2219 = vld [vmem:[%s2218] sm:$0xf]
          %v2220 = vld [vmem:[%s2218 + $0x4] sm:$0xf]
          %v2221 = vld [vmem:[%s2218 + $0x8] sm:$0xf]
          %v2222 = vld [vmem:[%s2218 + $0xc] sm:$0xf]
          %v2227 = vunpack.c.l.b16 %v2219
          %v2228 = vunpack.c.l.b16 %v2220
          %v2229 = vunpack.c.l.b16 %v2221
          %v2230 = vunpack.c.l.b16 %v2222
          %v2231 = vpack.c.b16 %v2228, %v2227
          %v2232 = vpack.c.b16 %v2230, %v2229
          %v2236 = vsel %vm634, %v2217, 0
          %2238 = vmatprep.subr.bf16.mxu0 0
          %2239 = vmatpush1.bf16.msra.mxu0 %v2231
          %2240 = vmatprep.subr.bf16.mxu0 0
          %2241 = vmatpush1.bf16.msra.mxu0 %v2232
          %2242 = vmatprep.subr.bf16.mxu0 0
          %2243 = vmatpush1.bf16.msra.mxu0 0
          %2244 = vmatprep.subr.bf16.mxu0 0
          %2245 = vmatpush1.bf16.msra.mxu0 0
          %2246 = vmatprep.subr.bf16.mxu0 0
          %2247 = vmatpush1.bf16.msra.mxu0 0
          %2248 = vmatprep.subr.bf16.mxu0 0
          %2249 = vmatpush1.bf16.msra.mxu0 0
          %2250 = vmatprep.subr.bf16.mxu0 0
          %2251 = vmatpush1.bf16.msra.mxu0 0
          %2252 = vmatprep.subr.bf16.mxu0 0
          %2253 = vmatpush1.bf16.msra.mxu0 0
          %2254 = vmatprep.subr.bf16.mxu0 0
          %2255 = vmatpush1.bf16.msra.mxu0 0
          %2256 = vmatprep.subr.bf16.mxu0 0
          %2257 = vmatpush1.bf16.msra.mxu0 0
          %2258 = vmatprep.subr.bf16.mxu0 0
          %2259 = vmatpush1.bf16.msra.mxu0 0
          %2260 = vmatprep.subr.bf16.mxu0 0
          %2261 = vmatpush1.bf16.msra.mxu0 0
          %2262 = vmatprep.subr.bf16.mxu0 0
          %2263 = vmatpush1.bf16.msra.mxu0 0
          %2264 = vmatprep.subr.bf16.mxu0 0
          %2265 = vmatpush1.bf16.msra.mxu0 0
          %2266 = vmatprep.subr.bf16.mxu0 0
          %2267 = vmatpush1.bf16.msra.mxu0 0
          %2268 = vmatprep.subr.bf16.mxu0 0
          %2269 = vmatpush1.bf16.msra.mxu0 0
          %2270 = vmatprep.mubr.bf16.mxu0 0
          %2271 = vmatmul.mubr.bf16.gmra.mrb[0].mxu0 %v2236
          %v2272 = vpop.f32.mrb[0].mxu0
          %v2273 = vadd.f32 0.0, %v2272
          %v2274 = vpop.f32.mrb[0].mxu0
          %v2275 = vpop.f32.mrb[0].mxu0
          %v2276 = vpop.f32.mrb[0].mxu0
          %2277 = vdwg.mxu0
          %v2278 = vadd.f32 %v2195, %v2273
          %v2279 = vcombine.low %v1977, %v2203
          %v2281 = vunpack.c.l.s4 1983009808
          %v2282 = vunpack.c.0.s8 %v2281
          %v2283 = vlaneseq
          %v2284 = vshrl.u32 %v2283, 7
          %v2285 = vsub.s32 %v2282, %v2284
          %v2286 = vrot.slane %v2279, %v2285
          %v2288 = vpack.c.bf16 %v2286, %v2286
          %s2289 = scalar_lea.vmem %s10, 128
          %v2290 = vld [vmem:[%s2289] sm:$0xf]
          %v2291 = vld [vmem:[%s2289 + $0x4] sm:$0xf]
          %v2292 = vld [vmem:[%s2289 + $0x8] sm:$0xf]
          %v2293 = vld [vmem:[%s2289 + $0xc] sm:$0xf]
          %v2298 = vunpack.c.l.b16 %v2290
          %v2299 = vunpack.c.l.b16 %v2291
          %v2300 = vunpack.c.l.b16 %v2292
          %v2301 = vunpack.c.l.b16 %v2293
          %v2302 = vpack.c.b16 %v2299, %v2298
          %v2303 = vpack.c.b16 %v2301, %v2300
          %v2307 = vsel %vm634, %v2288, 0
          %2309 = vmatprep.subr.bf16.mxu0 0
          %2310 = vmatpush1.bf16.msra.mxu0 %v2302
          %2311 = vmatprep.subr.bf16.mxu0 0
          %2312 = vmatpush1.bf16.msra.mxu0 %v2303
          %2313 = vmatprep.subr.bf16.mxu0 0
          %2314 = vmatpush1.bf16.msra.mxu0 0
          %2315 = vmatprep.subr.bf16.mxu0 0
          %2316 = vmatpush1.bf16.msra.mxu0 0
          %2317 = vmatprep.subr.bf16.mxu0 0
          %2318 = vmatpush1.bf16.msra.mxu0 0
          %2319 = vmatprep.subr.bf16.mxu0 0
          %2320 = vmatpush1.bf16.msra.mxu0 0
          %2321 = vmatprep.subr.bf16.mxu0 0
          %2322 = vmatpush1.bf16.msra.mxu0 0
          %2323 = vmatprep.subr.bf16.mxu0 0
          %2324 = vmatpush1.bf16.msra.mxu0 0
          %2325 = vmatprep.subr.bf16.mxu0 0
          %2326 = vmatpush1.bf16.msra.mxu0 0
          %2327 = vmatprep.subr.bf16.mxu0 0
          %2328 = vmatpush1.bf16.msra.mxu0 0
          %2329 = vmatprep.subr.bf16.mxu0 0
          %2330 = vmatpush1.bf16.msra.mxu0 0
          %2331 = vmatprep.subr.bf16.mxu0 0
          %2332 = vmatpush1.bf16.msra.mxu0 0
          %2333 = vmatprep.subr.bf16.mxu0 0
          %2334 = vmatpush1.bf16.msra.mxu0 0
          %2335 = vmatprep.subr.bf16.mxu0 0
          %2336 = vmatpush1.bf16.msra.mxu0 0
          %2337 = vmatprep.subr.bf16.mxu0 0
          %2338 = vmatpush1.bf16.msra.mxu0 0
          %2339 = vmatprep.subr.bf16.mxu0 0
          %2340 = vmatpush1.bf16.msra.mxu0 0
          %2341 = vmatprep.mubr.bf16.mxu0 0
          %2342 = vmatmul.mubr.bf16.gmra.mrb[0].mxu0 %v2307
          %v2343 = vpop.f32.mrb[0].mxu0
          %v2344 = vadd.f32 0.0, %v2343
          %v2345 = vpop.f32.mrb[0].mxu0
          %v2346 = vpop.f32.mrb[0].mxu0
          %v2347 = vpop.f32.mrb[0].mxu0
          %2348 = vdwg.mxu0
          %v2349 = vadd.f32 %v2278, %v2344
          %v2352 = vunpack.c.l.s4 1983009808
          %v2353 = vunpack.c.0.s8 %v2352
          %v2354 = vlaneseq
          %v2355 = vshrl.u32 %v2354, 7
          %v2356 = vsub.s32 %v2353, %v2355
          %v2357 = vrot.slane %v2349, %v2356
          %v2358 = vcombine.high %v2357, %v2357
          %vm2361 = vcmask 58368
          %2362 = vst.msk [vmem:[#allocation6] sm:$0x3] %vm2361, %v2357
          %2363 = vst.msk [vmem:[#allocation6 + $0x2] sm:$0x3] %vm2361, %v2358
          %v2364 = vld [vmem:[#allocation3] sm:$0x3f]
          %v2365 = vld [vmem:[#allocation3 + $0x8] sm:$0x3f]
          %v2366 = vld [vmem:[#allocation3 + $0x10] sm:$0x3f]
          %v2367 = vld [vmem:[#allocation3 + $0x18] sm:$0x3f]
          %v2368 = vld [vmem:[#allocation3 + $0x20] sm:$0x3f]
          %v2369 = vld [vmem:[#allocation3 + $0x28] sm:$0x3f]
          %v2374 = vcombine.low %v2364, %v2365
          %v2375 = vcombine.low %v2366, %v2367
          %v2378 = vpack.c.bf16 %v2375, %v2374
          %s2379 = scalar_lea.vmem %s10, 144
          %v2380 = vld [vmem:[%s2379] sm:$0xf]
          %v2381 = vld [vmem:[%s2379 + $0x4] sm:$0xf]
          %v2382 = vld [vmem:[%s2379 + $0x8] sm:$0xf]
          %v2383 = vld [vmem:[%s2379 + $0xc] sm:$0xf]
          %v2384 = vcombine.high %v2364, %v2364
          %v2385 = vcombine.high %v2365, %v2365
          %v2386 = vcombine.high %v2366, %v2366
          %v2387 = vcombine.high %v2367, %v2367
          %vm2388 = vcmask 1042432
          %vm2389 = vcmask 1046532
          %vm2390 = vmor %vm2388, %vm2389
          %v2391 = vrot.slane %v2364, 5
          %v2392 = vrot.slane %v2391, 4
          %v2393 = vrot.slane %v2384, 5
          %v2394 = vsel %vm2390, %v2392, %v2393
          %v2395 = vrot.slane %v2365, 5
          %v2396 = vrot.slane %v2395, 4
          %v2397 = vrot.slane %v2385, 5
          %v2398 = vsel %vm2390, %v2396, %v2397
          %v2399 = vrot.slane %v2366, 5
          %v2400 = vrot.slane %v2399, 4
          %v2401 = vrot.slane %v2386, 5
          %v2402 = vsel %vm2390, %v2400, %v2401
          %v2403 = vrot.slane %v2367, 5
          %v2404 = vrot.slane %v2403, 4
          %v2405 = vrot.slane %v2387, 5
          %v2406 = vsel %vm2390, %v2404, %v2405
          %v2407 = vcombine.low %v2394, %v2398
          %v2408 = vcombine.low %v2402, %v2406
          %v2411 = vpack.c.bf16 %v2408, %v2407
          %s2412 = scalar_lea.vmem %s10, 160
          %v2413 = vld [vmem:[%s2412] sm:$0xf]
          %v2414 = vld [vmem:[%s2412 + $0x4] sm:$0xf]
          %v2415 = vld [vmem:[%s2412 + $0x8] sm:$0xf]
          %v2416 = vld [vmem:[%s2412 + $0xc] sm:$0xf]
          %v2421 = vunpack.c.l.b16 %v2413
          %v2422 = vunpack.c.l.b16 %v2414
          %v2423 = vunpack.c.l.b16 %v2415
          %v2424 = vunpack.c.l.b16 %v2416
          %v2425 = vpack.c.b16 %v2422, %v2421
          %v2426 = vpack.c.b16 %v2424, %v2423
          %v2430 = vsel %vm634, %v2411, 0
          %2432 = vmatprep.subr.bf16.mxu0 0
          %2433 = vmatpush1.bf16.msra.mxu0 %v2425
          %2434 = vmatprep.subr.bf16.mxu0 0
          %2435 = vmatpush1.bf16.msra.mxu0 %v2426
          %2436 = vmatprep.subr.bf16.mxu0 0
          %2437 = vmatpush1.bf16.msra.mxu0 0
          %2438 = vmatprep.subr.bf16.mxu0 0
          %2439 = vmatpush1.bf16.msra.mxu0 0
          %2440 = vmatprep.subr.bf16.mxu0 0
          %2441 = vmatpush1.bf16.msra.mxu0 0
          %2442 = vmatprep.subr.bf16.mxu0 0
          %2443 = vmatpush1.bf16.msra.mxu0 0
          %2444 = vmatprep.subr.bf16.mxu0 0
          %2445 = vmatpush1.bf16.msra.mxu0 0
          %2446 = vmatprep.subr.bf16.mxu0 0
          %2447 = vmatpush1.bf16.msra.mxu0 0
          %2448 = vmatprep.subr.bf16.mxu0 0
          %2449 = vmatpush1.bf16.msra.mxu0 0
          %2450 = vmatprep.subr.bf16.mxu0 0
          %2451 = vmatpush1.bf16.msra.mxu0 0
          %2452 = vmatprep.subr.bf16.mxu0 0
          %2453 = vmatpush1.bf16.msra.mxu0 0
          %2454 = vmatprep.subr.bf16.mxu0 0
          %2455 = vmatpush1.bf16.msra.mxu0 0
          %2456 = vmatprep.subr.bf16.mxu0 0
          %2457 = vmatpush1.bf16.msra.mxu0 0
          %2458 = vmatprep.subr.bf16.mxu0 0
          %2459 = vmatpush1.bf16.msra.mxu0 0
          %2460 = vmatprep.subr.bf16.mxu0 0
          %2461 = vmatpush1.bf16.msra.mxu0 0
          %2462 = vmatprep.subr.bf16.mxu0 0
          %2463 = vmatpush1.bf16.msra.mxu0 0
          %2464 = vmatprep.mubr.bf16.mxu0 0
          %2465 = vmatmul.mubr.bf16.gmra.mrb[0].mxu0 %v2430
          %v2466 = vpop.f32.mrb[0].mxu0
          %v2467 = vadd.f32 0.0, %v2466
          %v2468 = vpop.f32.mrb[0].mxu0
          %v2469 = vpop.f32.mrb[0].mxu0
          %v2470 = vadd.f32 0.0, %v2469
          %v2471 = vpop.f32.mrb[0].mxu0
          %2472 = vdwg.mxu0
          %v2477 = vunpack.c.l.b16 %v2380
          %v2478 = vunpack.c.l.b16 %v2381
          %v2479 = vunpack.c.l.b16 %v2382
          %v2480 = vunpack.c.l.b16 %v2383
          %v2481 = vpack.c.b16 %v2478, %v2477
          %v2482 = vpack.c.b16 %v2480, %v2479
          %v2486 = vsel %vm634, %v2378, 0
          %2488 = vmatprep.subr.bf16.mxu0 0
          %2489 = vmatpush1.bf16.msra.mxu0 %v2481
          %2490 = vmatprep.subr.bf16.mxu0 0
          %2491 = vmatpush1.bf16.msra.mxu0 %v2482
          %2492 = vmatprep.subr.bf16.mxu0 0
          %2493 = vmatpush1.bf16.msra.mxu0 0
          %2494 = vmatprep.subr.bf16.mxu0 0
          %2495 = vmatpush1.bf16.msra.mxu0 0
          %2496 = vmatprep.subr.bf16.mxu0 0
          %2497 = vmatpush1.bf16.msra.mxu0 0
          %2498 = vmatprep.subr.bf16.mxu0 0
          %2499 = vmatpush1.bf16.msra.mxu0 0
          %2500 = vmatprep.subr.bf16.mxu0 0
          %2501 = vmatpush1.bf16.msra.mxu0 0
          %2502 = vmatprep.subr.bf16.mxu0 0
          %2503 = vmatpush1.bf16.msra.mxu0 0
          %2504 = vmatprep.subr.bf16.mxu0 0
          %2505 = vmatpush1.bf16.msra.mxu0 0
          %2506 = vmatprep.subr.bf16.mxu0 0
          %2507 = vmatpush1.bf16.msra.mxu0 0
          %2508 = vmatprep.subr.bf16.mxu0 0
          %2509 = vmatpush1.bf16.msra.mxu0 0
          %2510 = vmatprep.subr.bf16.mxu0 0
          %2511 = vmatpush1.bf16.msra.mxu0 0
          %2512 = vmatprep.subr.bf16.mxu0 0
          %2513 = vmatpush1.bf16.msra.mxu0 0
          %2514 = vmatprep.subr.bf16.mxu0 0
          %2515 = vmatpush1.bf16.msra.mxu0 0
          %2516 = vmatprep.subr.bf16.mxu0 0
          %2517 = vmatpush1.bf16.msra.mxu0 0
          %2518 = vmatprep.subr.bf16.mxu0 0
          %2519 = vmatpush1.bf16.msra.mxu0 0
          %2520 = vmatprep.mubr.bf16.mxu0 0
          %2521 = vmatmul.mubr.bf16.gmra.mrb[0].mxu0 %v2486
          %v2522 = vpop.f32.mrb[0].mxu0
          %v2523 = vadd.f32 %v2467, %v2522
          %v2524 = vpop.f32.mrb[0].mxu0
          %v2525 = vpop.f32.mrb[0].mxu0
          %v2526 = vadd.f32 %v2470, %v2525
          %v2527 = vpop.f32.mrb[0].mxu0
          %2528 = vdwg.mxu0
          %vm2529 = vcmask 1041408
          %vm2530 = vcmask 1045508
          %vm2531 = vmor %vm2529, %vm2530
          %v2532 = vrot.slane %v2364, 6
          %v2533 = vrot.slane %v2532, 4
          %v2534 = vrot.slane %v2384, 6
          %v2535 = vsel %vm2531, %v2533, %v2534
          %v2536 = vrot.slane %v2365, 6
          %v2537 = vrot.slane %v2536, 4
          %v2538 = vrot.slane %v2385, 6
          %v2539 = vsel %vm2531, %v2537, %v2538
          %v2540 = vrot.slane %v2366, 6
          %v2541 = vrot.slane %v2540, 4
          %v2542 = vrot.slane %v2386, 6
          %v2543 = vsel %vm2531, %v2541, %v2542
          %v2544 = vrot.slane %v2367, 6
          %v2545 = vrot.slane %v2544, 4
          %v2546 = vrot.slane %v2387, 6
          %v2547 = vsel %vm2531, %v2545, %v2546
          %v2548 = vcombine.low %v2535, %v2539
          %v2549 = vcombine.low %v2543, %v2547
          %v2552 = vpack.c.bf16 %v2549, %v2548
          %s2553 = scalar_lea.vmem %s10, 176
          %v2554 = vld [vmem:[%s2553] sm:$0xf]
          %v2555 = vld [vmem:[%s2553 + $0x4] sm:$0xf]
          %v2556 = vld [vmem:[%s2553 + $0x8] sm:$0xf]
          %v2557 = vld [vmem:[%s2553 + $0xc] sm:$0xf]
          %v2562 = vunpack.c.l.b16 %v2554
          %v2563 = vunpack.c.l.b16 %v2555
          %v2564 = vunpack.c.l.b16 %v2556
          %v2565 = vunpack.c.l.b16 %v2557
          %v2566 = vpack.c.b16 %v2563, %v2562
          %v2567 = vpack.c.b16 %v2565, %v2564
          %v2571 = vsel %vm634, %v2552, 0
          %2573 = vmatprep.subr.bf16.mxu0 0
          %2574 = vmatpush1.bf16.msra.mxu0 %v2566
          %2575 = vmatprep.subr.bf16.mxu0 0
          %2576 = vmatpush1.bf16.msra.mxu0 %v2567
          %2577 = vmatprep.subr.bf16.mxu0 0
          %2578 = vmatpush1.bf16.msra.mxu0 0
          %2579 = vmatprep.subr.bf16.mxu0 0
          %2580 = vmatpush1.bf16.msra.mxu0 0
          %2581 = vmatprep.subr.bf16.mxu0 0
          %2582 = vmatpush1.bf16.msra.mxu0 0
          %2583 = vmatprep.subr.bf16.mxu0 0
          %2584 = vmatpush1.bf16.msra.mxu0 0
          %2585 = vmatprep.subr.bf16.mxu0 0
          %2586 = vmatpush1.bf16.msra.mxu0 0
          %2587 = vmatprep.subr.bf16.mxu0 0
          %2588 = vmatpush1.bf16.msra.mxu0 0
          %2589 = vmatprep.subr.bf16.mxu0 0
          %2590 = vmatpush1.bf16.msra.mxu0 0
          %2591 = vmatprep.subr.bf16.mxu0 0
          %2592 = vmatpush1.bf16.msra.mxu0 0
          %2593 = vmatprep.subr.bf16.mxu0 0
          %2594 = vmatpush1.bf16.msra.mxu0 0
          %2595 = vmatprep.subr.bf16.mxu0 0
          %2596 = vmatpush1.bf16.msra.mxu0 0
          %2597 = vmatprep.subr.bf16.mxu0 0
          %2598 = vmatpush1.bf16.msra.mxu0 0
          %2599 = vmatprep.subr.bf16.mxu0 0
          %2600 = vmatpush1.bf16.msra.mxu0 0
          %2601 = vmatprep.subr.bf16.mxu0 0
          %2602 = vmatpush1.bf16.msra.mxu0 0
          %2603 = vmatprep.subr.bf16.mxu0 0
          %2604 = vmatpush1.bf16.msra.mxu0 0
          %2605 = vmatprep.mubr.bf16.mxu0 0
          %2606 = vmatmul.mubr.bf16.gmra.mrb[0].mxu0 %v2571
          %v2607 = vpop.f32.mrb[0].mxu0
          %v2608 = vadd.f32 0.0, %v2607
          %v2609 = vpop.f32.mrb[0].mxu0
          %v2610 = vpop.f32.mrb[0].mxu0
          %v2611 = vadd.f32 0.0, %v2610
          %v2612 = vpop.f32.mrb[0].mxu0
          %2613 = vdwg.mxu0
          %v2614 = vadd.f32 %v2523, %v2608
          %v2615 = vadd.f32 %v2526, %v2611
          %v2617 = vcombine.low %v2365, %v2366
          %v2618 = vcombine.low %v2367, %v2368
          %v2621 = vpack.c.bf16 %v2618, %v2617
          %s2622 = scalar_lea.vmem %s10, 192
          %v2623 = vld [vmem:[%s2622] sm:$0xf]
          %v2624 = vld [vmem:[%s2622 + $0x4] sm:$0xf]
          %v2625 = vld [vmem:[%s2622 + $0x8] sm:$0xf]
          %v2626 = vld [vmem:[%s2622 + $0xc] sm:$0xf]
          %v2631 = vunpack.c.l.b16 %v2623
          %v2632 = vunpack.c.l.b16 %v2624
          %v2633 = vunpack.c.l.b16 %v2625
          %v2634 = vunpack.c.l.b16 %v2626
          %v2635 = vpack.c.b16 %v2632, %v2631
          %v2636 = vpack.c.b16 %v2634, %v2633
          %v2640 = vsel %vm634, %v2621, 0
          %2642 = vmatprep.subr.bf16.mxu0 0
          %2643 = vmatpush1.bf16.msra.mxu0 %v2635
          %2644 = vmatprep.subr.bf16.mxu0 0
          %2645 = vmatpush1.bf16.msra.mxu0 %v2636
          %2646 = vmatprep.subr.bf16.mxu0 0
          %2647 = vmatpush1.bf16.msra.mxu0 0
          %2648 = vmatprep.subr.bf16.mxu0 0
          %2649 = vmatpush1.bf16.msra.mxu0 0
          %2650 = vmatprep.subr.bf16.mxu0 0
          %2651 = vmatpush1.bf16.msra.mxu0 0
          %2652 = vmatprep.subr.bf16.mxu0 0
          %2653 = vmatpush1.bf16.msra.mxu0 0
          %2654 = vmatprep.subr.bf16.mxu0 0
          %2655 = vmatpush1.bf16.msra.mxu0 0
          %2656 = vmatprep.subr.bf16.mxu0 0
          %2657 = vmatpush1.bf16.msra.mxu0 0
          %2658 = vmatprep.subr.bf16.mxu0 0
          %2659 = vmatpush1.bf16.msra.mxu0 0
          %2660 = vmatprep.subr.bf16.mxu0 0
          %2661 = vmatpush1.bf16.msra.mxu0 0
          %2662 = vmatprep.subr.bf16.mxu0 0
          %2663 = vmatpush1.bf16.msra.mxu0 0
          %2664 = vmatprep.subr.bf16.mxu0 0
          %2665 = vmatpush1.bf16.msra.mxu0 0
          %2666 = vmatprep.subr.bf16.mxu0 0
          %2667 = vmatpush1.bf16.msra.mxu0 0
          %2668 = vmatprep.subr.bf16.mxu0 0
          %2669 = vmatpush1.bf16.msra.mxu0 0
          %2670 = vmatprep.subr.bf16.mxu0 0
          %2671 = vmatpush1.bf16.msra.mxu0 0
          %2672 = vmatprep.subr.bf16.mxu0 0
          %2673 = vmatpush1.bf16.msra.mxu0 0
          %2674 = vmatprep.mubr.bf16.mxu0 0
          %2675 = vmatmul.mubr.bf16.gmra.mrb[0].mxu0 %v2640
          %v2676 = vpop.f32.mrb[0].mxu0
          %v2677 = vadd.f32 0.0, %v2676
          %v2678 = vpop.f32.mrb[0].mxu0
          %v2679 = vpop.f32.mrb[0].mxu0
          %v2680 = vadd.f32 0.0, %v2679
          %v2681 = vpop.f32.mrb[0].mxu0
          %2682 = vdwg.mxu0
          %v2683 = vadd.f32 %v2614, %v2677
          %v2684 = vadd.f32 %v2615, %v2680
          %v2685 = vcombine.high %v2368, %v2368
          %v2686 = vrot.slane %v2368, 5
          %v2687 = vrot.slane %v2686, 4
          %v2688 = vrot.slane %v2685, 5
          %v2689 = vsel %vm2390, %v2687, %v2688
          %v2690 = vcombine.low %v2398, %v2402
          %v2691 = vcombine.low %v2406, %v2689
          %v2694 = vpack.c.bf16 %v2691, %v2690
          %s2695 = scalar_lea.vmem %s10, 208
          %v2696 = vld [vmem:[%s2695] sm:$0xf]
          %v2697 = vld [vmem:[%s2695 + $0x4] sm:$0xf]
          %v2698 = vld [vmem:[%s2695 + $0x8] sm:$0xf]
          %v2699 = vld [vmem:[%s2695 + $0xc] sm:$0xf]
          %v2704 = vunpack.c.l.b16 %v2696
          %v2705 = vunpack.c.l.b16 %v2697
          %v2706 = vunpack.c.l.b16 %v2698
          %v2707 = vunpack.c.l.b16 %v2699
          %v2708 = vpack.c.b16 %v2705, %v2704
          %v2709 = vpack.c.b16 %v2707, %v2706
          %v2713 = vsel %vm634, %v2694, 0
          %2715 = vmatprep.subr.bf16.mxu0 0
          %2716 = vmatpush1.bf16.msra.mxu0 %v2708
          %2717 = vmatprep.subr.bf16.mxu0 0
          %2718 = vmatpush1.bf16.msra.mxu0 %v2709
          %2719 = vmatprep.subr.bf16.mxu0 0
          %2720 = vmatpush1.bf16.msra.mxu0 0
          %2721 = vmatprep.subr.bf16.mxu0 0
          %2722 = vmatpush1.bf16.msra.mxu0 0
          %2723 = vmatprep.subr.bf16.mxu0 0
          %2724 = vmatpush1.bf16.msra.mxu0 0
          %2725 = vmatprep.subr.bf16.mxu0 0
          %2726 = vmatpush1.bf16.msra.mxu0 0
          %2727 = vmatprep.subr.bf16.mxu0 0
          %2728 = vmatpush1.bf16.msra.mxu0 0
          %2729 = vmatprep.subr.bf16.mxu0 0
          %2730 = vmatpush1.bf16.msra.mxu0 0
          %2731 = vmatprep.subr.bf16.mxu0 0
          %2732 = vmatpush1.bf16.msra.mxu0 0
          %2733 = vmatprep.subr.bf16.mxu0 0
          %2734 = vmatpush1.bf16.msra.mxu0 0
          %2735 = vmatprep.subr.bf16.mxu0 0
          %2736 = vmatpush1.bf16.msra.mxu0 0
          %2737 = vmatprep.subr.bf16.mxu0 0
          %2738 = vmatpush1.bf16.msra.mxu0 0
          %2739 = vmatprep.subr.bf16.mxu0 0
          %2740 = vmatpush1.bf16.msra.mxu0 0
          %2741 = vmatprep.subr.bf16.mxu0 0
          %2742 = vmatpush1.bf16.msra.mxu0 0
          %2743 = vmatprep.subr.bf16.mxu0 0
          %2744 = vmatpush1.bf16.msra.mxu0 0
          %2745 = vmatprep.subr.bf16.mxu0 0
          %2746 = vmatpush1.bf16.msra.mxu0 0
          %2747 = vmatprep.mubr.bf16.mxu0 0
          %2748 = vmatmul.mubr.bf16.gmra.mrb[0].mxu0 %v2713
          %v2749 = vpop.f32.mrb[0].mxu0
          %v2750 = vadd.f32 0.0, %v2749
          %v2751 = vpop.f32.mrb[0].mxu0
          %v2752 = vpop.f32.mrb[0].mxu0
          %v2753 = vadd.f32 0.0, %v2752
          %v2754 = vpop.f32.mrb[0].mxu0
          %2755 = vdwg.mxu0
          %v2756 = vadd.f32 %v2683, %v2750
          %v2757 = vadd.f32 %v2684, %v2753
          %v2758 = vrot.slane %v2368, 6
          %v2759 = vrot.slane %v2758, 4
          %v2760 = vrot.slane %v2685, 6
          %v2761 = vsel %vm2531, %v2759, %v2760
          %v2762 = vcombine.low %v2539, %v2543
          %v2763 = vcombine.low %v2547, %v2761
          %v2766 = vpack.c.bf16 %v2763, %v2762
          %s2767 = scalar_lea.vmem %s10, 224
          %v2768 = vld [vmem:[%s2767] sm:$0xf]
          %v2769 = vld [vmem:[%s2767 + $0x4] sm:$0xf]
          %v2770 = vld [vmem:[%s2767 + $0x8] sm:$0xf]
          %v2771 = vld [vmem:[%s2767 + $0xc] sm:$0xf]
          %v2776 = vunpack.c.l.b16 %v2768
          %v2777 = vunpack.c.l.b16 %v2769
          %v2778 = vunpack.c.l.b16 %v2770
          %v2779 = vunpack.c.l.b16 %v2771
          %v2780 = vpack.c.b16 %v2777, %v2776
          %v2781 = vpack.c.b16 %v2779, %v2778
          %v2785 = vsel %vm634, %v2766, 0
          %2787 = vmatprep.subr.bf16.mxu0 0
          %2788 = vmatpush1.bf16.msra.mxu0 %v2780
          %2789 = vmatprep.subr.bf16.mxu0 0
          %2790 = vmatpush1.bf16.msra.mxu0 %v2781
          %2791 = vmatprep.subr.bf16.mxu0 0
          %2792 = vmatpush1.bf16.msra.mxu0 0
          %2793 = vmatprep.subr.bf16.mxu0 0
          %2794 = vmatpush1.bf16.msra.mxu0 0
          %2795 = vmatprep.subr.bf16.mxu0 0
          %2796 = vmatpush1.bf16.msra.mxu0 0
          %2797 = vmatprep.subr.bf16.mxu0 0
          %2798 = vmatpush1.bf16.msra.mxu0 0
          %2799 = vmatprep.subr.bf16.mxu0 0
          %2800 = vmatpush1.bf16.msra.mxu0 0
          %2801 = vmatprep.subr.bf16.mxu0 0
          %2802 = vmatpush1.bf16.msra.mxu0 0
          %2803 = vmatprep.subr.bf16.mxu0 0
          %2804 = vmatpush1.bf16.msra.mxu0 0
          %2805 = vmatprep.subr.bf16.mxu0 0
          %2806 = vmatpush1.bf16.msra.mxu0 0
          %2807 = vmatprep.subr.bf16.mxu0 0
          %2808 = vmatpush1.bf16.msra.mxu0 0
          %2809 = vmatprep.subr.bf16.mxu0 0
          %2810 = vmatpush1.bf16.msra.mxu0 0
          %2811 = vmatprep.subr.bf16.mxu0 0
          %2812 = vmatpush1.bf16.msra.mxu0 0
          %2813 = vmatprep.subr.bf16.mxu0 0
          %2814 = vmatpush1.bf16.msra.mxu0 0
          %2815 = vmatprep.subr.bf16.mxu0 0
          %2816 = vmatpush1.bf16.msra.mxu0 0
          %2817 = vmatprep.subr.bf16.mxu0 0
          %2818 = vmatpush1.bf16.msra.mxu0 0
          %2819 = vmatprep.mubr.bf16.mxu0 0
          %2820 = vmatmul.mubr.bf16.gmra.mrb[0].mxu0 %v2785
          %v2821 = vpop.f32.mrb[0].mxu0
          %v2822 = vadd.f32 0.0, %v2821
          %v2823 = vpop.f32.mrb[0].mxu0
          %v2824 = vpop.f32.mrb[0].mxu0
          %v2825 = vadd.f32 0.0, %v2824
          %v2826 = vpop.f32.mrb[0].mxu0
          %2827 = vdwg.mxu0
          %v2828 = vadd.f32 %v2756, %v2822
          %v2829 = vadd.f32 %v2757, %v2825
          %v2831 = vcombine.low %v2368, %v2369
          %v2833 = vpack.c.bf16 %v2831, %v2375
          %s2834 = scalar_lea.vmem %s10, 240
          %v2835 = vld [vmem:[%s2834] sm:$0xf]
          %v2836 = vld [vmem:[%s2834 + $0x4] sm:$0xf]
          %v2837 = vld [vmem:[%s2834 + $0x8] sm:$0xf]
          %v2838 = vld [vmem:[%s2834 + $0xc] sm:$0xf]
          %v2843 = vunpack.c.l.b16 %v2835
          %v2844 = vunpack.c.l.b16 %v2836
          %v2845 = vunpack.c.l.b16 %v2837
          %v2846 = vunpack.c.l.b16 %v2838
          %v2847 = vpack.c.b16 %v2844, %v2843
          %v2848 = vpack.c.b16 %v2846, %v2845
          %v2852 = vsel %vm634, %v2833, 0
          %2854 = vmatprep.subr.bf16.mxu0 0
          %2855 = vmatpush1.bf16.msra.mxu0 %v2847
          %2856 = vmatprep.subr.bf16.mxu0 0
          %2857 = vmatpush1.bf16.msra.mxu0 %v2848
          %2858 = vmatprep.subr.bf16.mxu0 0
          %2859 = vmatpush1.bf16.msra.mxu0 0
          %2860 = vmatprep.subr.bf16.mxu0 0
          %2861 = vmatpush1.bf16.msra.mxu0 0
          %2862 = vmatprep.subr.bf16.mxu0 0
          %2863 = vmatpush1.bf16.msra.mxu0 0
          %2864 = vmatprep.subr.bf16.mxu0 0
          %2865 = vmatpush1.bf16.msra.mxu0 0
          %2866 = vmatprep.subr.bf16.mxu0 0
          %2867 = vmatpush1.bf16.msra.mxu0 0
          %2868 = vmatprep.subr.bf16.mxu0 0
          %2869 = vmatpush1.bf16.msra.mxu0 0
          %2870 = vmatprep.subr.bf16.mxu0 0
          %2871 = vmatpush1.bf16.msra.mxu0 0
          %2872 = vmatprep.subr.bf16.mxu0 0
          %2873 = vmatpush1.bf16.msra.mxu0 0
          %2874 = vmatprep.subr.bf16.mxu0 0
          %2875 = vmatpush1.bf16.msra.mxu0 0
          %2876 = vmatprep.subr.bf16.mxu0 0
          %2877 = vmatpush1.bf16.msra.mxu0 0
          %2878 = vmatprep.subr.bf16.mxu0 0
          %2879 = vmatpush1.bf16.msra.mxu0 0
          %2880 = vmatprep.subr.bf16.mxu0 0
          %2881 = vmatpush1.bf16.msra.mxu0 0
          %2882 = vmatprep.subr.bf16.mxu0 0
          %2883 = vmatpush1.bf16.msra.mxu0 0
          %2884 = vmatprep.subr.bf16.mxu0 0
          %2885 = vmatpush1.bf16.msra.mxu0 0
          %2886 = vmatprep.mubr.bf16.mxu0 0
          %2887 = vmatmul.mubr.bf16.gmra.mrb[0].mxu0 %v2852
          %v2888 = vpop.f32.mrb[0].mxu0
          %v2889 = vadd.f32 0.0, %v2888
          %v2890 = vpop.f32.mrb[0].mxu0
          %v2891 = vpop.f32.mrb[0].mxu0
          %v2892 = vadd.f32 0.0, %v2891
          %v2893 = vpop.f32.mrb[0].mxu0
          %2894 = vdwg.mxu0
          %v2895 = vadd.f32 %v2828, %v2889
          %v2896 = vadd.f32 %v2829, %v2892
          %v2897 = vcombine.high %v2369, %v2369
          %v2898 = vrot.slane %v2369, 5
          %v2899 = vrot.slane %v2898, 4
          %v2900 = vrot.slane %v2897, 5
          %v2901 = vsel %vm2390, %v2899, %v2900
          %v2902 = vcombine.low %v2689, %v2901
          %v2904 = vpack.c.bf16 %v2902, %v2408
          %s2905 = scalar_lea.vmem %s10, 256
          %v2906 = vld [vmem:[%s2905] sm:$0xf]
          %v2907 = vld [vmem:[%s2905 + $0x4] sm:$0xf]
          %v2908 = vld [vmem:[%s2905 + $0x8] sm:$0xf]
          %v2909 = vld [vmem:[%s2905 + $0xc] sm:$0xf]
          %v2914 = vunpack.c.l.b16 %v2906
          %v2915 = vunpack.c.l.b16 %v2907
          %v2916 = vunpack.c.l.b16 %v2908
          %v2917 = vunpack.c.l.b16 %v2909
          %v2918 = vpack.c.b16 %v2915, %v2914
          %v2919 = vpack.c.b16 %v2917, %v2916
          %v2923 = vsel %vm634, %v2904, 0
          %2925 = vmatprep.subr.bf16.mxu0 0
          %2926 = vmatpush1.bf16.msra.mxu0 %v2918
          %2927 = vmatprep.subr.bf16.mxu0 0
          %2928 = vmatpush1.bf16.msra.mxu0 %v2919
          %2929 = vmatprep.subr.bf16.mxu0 0
          %2930 = vmatpush1.bf16.msra.mxu0 0
          %2931 = vmatprep.subr.bf16.mxu0 0
          %2932 = vmatpush1.bf16.msra.mxu0 0
          %2933 = vmatprep.subr.bf16.mxu0 0
          %2934 = vmatpush1.bf16.msra.mxu0 0
          %2935 = vmatprep.subr.bf16.mxu0 0
          %2936 = vmatpush1.bf16.msra.mxu0 0
          %2937 = vmatprep.subr.bf16.mxu0 0
          %2938 = vmatpush1.bf16.msra.mxu0 0
          %2939 = vmatprep.subr.bf16.mxu0 0
          %2940 = vmatpush1.bf16.msra.mxu0 0
          %2941 = vmatprep.subr.bf16.mxu0 0
          %2942 = vmatpush1.bf16.msra.mxu0 0
          %2943 = vmatprep.subr.bf16.mxu0 0
          %2944 = vmatpush1.bf16.msra.mxu0 0
          %2945 = vmatprep.subr.bf16.mxu0 0
          %2946 = vmatpush1.bf16.msra.mxu0 0
          %2947 = vmatprep.subr.bf16.mxu0 0
          %2948 = vmatpush1.bf16.msra.mxu0 0
          %2949 = vmatprep.subr.bf16.mxu0 0
          %2950 = vmatpush1.bf16.msra.mxu0 0
          %2951 = vmatprep.subr.bf16.mxu0 0
          %2952 = vmatpush1.bf16.msra.mxu0 0
          %2953 = vmatprep.subr.bf16.mxu0 0
          %2954 = vmatpush1.bf16.msra.mxu0 0
          %2955 = vmatprep.subr.bf16.mxu0 0
          %2956 = vmatpush1.bf16.msra.mxu0 0
          %2957 = vmatprep.mubr.bf16.mxu0 0
          %2958 = vmatmul.mubr.bf16.gmra.mrb[0].mxu0 %v2923
          %v2959 = vpop.f32.mrb[0].mxu0
          %v2960 = vadd.f32 0.0, %v2959
          %v2961 = vpop.f32.mrb[0].mxu0
          %v2962 = vpop.f32.mrb[0].mxu0
          %v2963 = vadd.f32 0.0, %v2962
          %v2964 = vpop.f32.mrb[0].mxu0
          %2965 = vdwg.mxu0
          %v2966 = vadd.f32 %v2895, %v2960
          %v2967 = vadd.f32 %v2896, %v2963
          %v2968 = vrot.slane %v2369, 6
          %v2969 = vrot.slane %v2968, 4
          %v2970 = vrot.slane %v2897, 6
          %v2971 = vsel %vm2531, %v2969, %v2970
          %v2972 = vcombine.low %v2761, %v2971
          %v2974 = vpack.c.bf16 %v2972, %v2549
          %s2975 = scalar_lea.vmem %s10, 272
          %v2976 = vld [vmem:[%s2975] sm:$0xf]
          %v2977 = vld [vmem:[%s2975 + $0x4] sm:$0xf]
          %v2978 = vld [vmem:[%s2975 + $0x8] sm:$0xf]
          %v2979 = vld [vmem:[%s2975 + $0xc] sm:$0xf]
          %v2984 = vunpack.c.l.b16 %v2976
          %v2985 = vunpack.c.l.b16 %v2977
          %v2986 = vunpack.c.l.b16 %v2978
          %v2987 = vunpack.c.l.b16 %v2979
          %v2988 = vpack.c.b16 %v2985, %v2984
          %v2989 = vpack.c.b16 %v2987, %v2986
          %v2993 = vsel %vm634, %v2974, 0
          %2995 = vmatprep.subr.bf16.mxu0 0
          %2996 = vmatpush1.bf16.msra.mxu0 %v2988
          %2997 = vmatprep.subr.bf16.mxu0 0
          %2998 = vmatpush1.bf16.msra.mxu0 %v2989
          %2999 = vmatprep.subr.bf16.mxu0 0
          %3000 = vmatpush1.bf16.msra.mxu0 0
          %3001 = vmatprep.subr.bf16.mxu0 0
          %3002 = vmatpush1.bf16.msra.mxu0 0
          %3003 = vmatprep.subr.bf16.mxu0 0
          %3004 = vmatpush1.bf16.msra.mxu0 0
          %3005 = vmatprep.subr.bf16.mxu0 0
          %3006 = vmatpush1.bf16.msra.mxu0 0
          %3007 = vmatprep.subr.bf16.mxu0 0
          %3008 = vmatpush1.bf16.msra.mxu0 0
          %3009 = vmatprep.subr.bf16.mxu0 0
          %3010 = vmatpush1.bf16.msra.mxu0 0
          %3011 = vmatprep.subr.bf16.mxu0 0
          %3012 = vmatpush1.bf16.msra.mxu0 0
          %3013 = vmatprep.subr.bf16.mxu0 0
          %3014 = vmatpush1.bf16.msra.mxu0 0
          %3015 = vmatprep.subr.bf16.mxu0 0
          %3016 = vmatpush1.bf16.msra.mxu0 0
          %3017 = vmatprep.subr.bf16.mxu0 0
          %3018 = vmatpush1.bf16.msra.mxu0 0
          %3019 = vmatprep.subr.bf16.mxu0 0
          %3020 = vmatpush1.bf16.msra.mxu0 0
          %3021 = vmatprep.subr.bf16.mxu0 0
          %3022 = vmatpush1.bf16.msra.mxu0 0
          %3023 = vmatprep.subr.bf16.mxu0 0
          %3024 = vmatpush1.bf16.msra.mxu0 0
          %3025 = vmatprep.subr.bf16.mxu0 0
          %3026 = vmatpush1.bf16.msra.mxu0 0
          %3027 = vmatprep.mubr.bf16.mxu0 0
          %3028 = vmatmul.mubr.bf16.gmra.mrb[0].mxu0 %v2993
          %v3029 = vpop.f32.mrb[0].mxu0
          %v3030 = vadd.f32 0.0, %v3029
          %v3031 = vpop.f32.mrb[0].mxu0
          %v3032 = vpop.f32.mrb[0].mxu0
          %v3033 = vadd.f32 0.0, %v3032
          %v3034 = vpop.f32.mrb[0].mxu0
          %3035 = vdwg.mxu0
          %v3036 = vadd.f32 %v2966, %v3030
          %v3037 = vadd.f32 %v2967, %v3033
          %v3040 = vcombine.high %v3036, %v3036
          %v3041 = vcombine.high %v3037, %v3037
          %vm3044 = vcmask 60416
          %3045 = vst.msk [vmem:[#allocation7] sm:$0xf] %vm3044, %v3036
          %3046 = vst.msk [vmem:[#allocation7 + $0x4] sm:$0xf] %vm3044, %v3040
          %3047 = vst.msk [vmem:[#allocation7 + $0x8] sm:$0xf] %vm3044, %v3037
          %3048 = vst.msk [vmem:[#allocation7 + $0xc] sm:$0xf] %vm3044, %v3041
          %v3049 = vld [vmem:[#allocation4] sm:$0xff]
          %v3050 = vld [vmem:[#allocation4 + $0x8] sm:$0x3]
          %v3051 = vld [vmem:[#allocation4 + $0x10] sm:$0xff]
          %v3052 = vld [vmem:[#allocation4 + $0x18] sm:$0x3]
          %v3053 = vld [vmem:[#allocation4 + $0x20] sm:$0xff]
          %v3054 = vld [vmem:[#allocation4 + $0x28] sm:$0x3]
          %v3055 = vld [vmem:[#allocation4 + $0x30] sm:$0xff]
          %v3056 = vld [vmem:[#allocation4 + $0x38] sm:$0x3]
          %v3057 = vld [vmem:[#allocation4 + $0x40] sm:$0xff]
          %v3058 = vld [vmem:[#allocation4 + $0x48] sm:$0x3]
          %v3059 = vld [vmem:[#allocation4 + $0x50] sm:$0xff]
          %v3060 = vld [vmem:[#allocation4 + $0x58] sm:$0x3]
          %v3061 = vld [vmem:[#allocation4 + $0x60] sm:$0xff]
          %v3062 = vld [vmem:[#allocation4 + $0x68] sm:$0x3]
          %v3063 = vld [vmem:[#allocation4 + $0x70] sm:$0xff]
          %v3064 = vld [vmem:[#allocation4 + $0x78] sm:$0x3]
          %v3065 = vld [vmem:[#allocation4 + $0x80] sm:$0xff]
          %v3066 = vld [vmem:[#allocation4 + $0x88] sm:$0x3]
          %v3067 = vld [vmem:[#allocation4 + $0x90] sm:$0xff]
          %v3068 = vld [vmem:[#allocation4 + $0x98] sm:$0x3]
          %v3069 = vpack.c.bf16 %v3051, %v3049
          %v3070 = vpack.c.bf16 %v3055, %v3053
          %v3071 = vpack.c.bf16 %v3059, %v3057
          %v3072 = vpack.c.bf16 %v3063, %v3061
          %s3073 = scalar_lea.vmem %s10, 288
          %v3074 = vld [vmem:[%s3073] sm:$0xf]
          %v3075 = vld [vmem:[%s3073 + $0x4] sm:$0xf]
          %v3076 = vld [vmem:[%s3073 + $0x8] sm:$0xf]
          %v3077 = vld [vmem:[%s3073 + $0xc] sm:$0xf]
          %vm3094 = vcmask 1046528
          %v3095 = vrot.slane %v3049, 1
          %v3096 = vrot.slane %v3050, 1
          %v3097 = vsel %vm3094, %v3095, %v3096
          %v3098 = vrot.slane %v3051, 1
          %v3099 = vrot.slane %v3052, 1
          %v3100 = vsel %vm3094, %v3098, %v3099
          %v3101 = vrot.slane %v3053, 1
          %v3102 = vrot.slane %v3054, 1
          %v3103 = vsel %vm3094, %v3101, %v3102
          %v3104 = vrot.slane %v3055, 1
          %v3105 = vrot.slane %v3056, 1
          %v3106 = vsel %vm3094, %v3104, %v3105
          %v3107 = vrot.slane %v3057, 1
          %v3108 = vrot.slane %v3058, 1
          %v3109 = vsel %vm3094, %v3107, %v3108
          %v3110 = vrot.slane %v3059, 1
          %v3111 = vrot.slane %v3060, 1
          %v3112 = vsel %vm3094, %v3110, %v3111
          %v3113 = vrot.slane %v3061, 1
          %v3114 = vrot.slane %v3062, 1
          %v3115 = vsel %vm3094, %v3113, %v3114
          %v3116 = vrot.slane %v3063, 1
          %v3117 = vrot.slane %v3064, 1
          %v3118 = vsel %vm3094, %v3116, %v3117
          %v3127 = vpack.c.bf16 %v3100, %v3097
          %v3128 = vpack.c.bf16 %v3106, %v3103
          %v3129 = vpack.c.bf16 %v3112, %v3109
          %v3130 = vpack.c.bf16 %v3118, %v3115
          %s3131 = scalar_lea.vmem %s10, 304
          %v3132 = vld [vmem:[%s3131] sm:$0xf]
          %v3133 = vld [vmem:[%s3131 + $0x4] sm:$0xf]
          %v3134 = vld [vmem:[%s3131 + $0x8] sm:$0xf]
          %v3135 = vld [vmem:[%s3131 + $0xc] sm:$0xf]
          %v3140 = vunpack.c.l.b16 %v3132
          %v3141 = vunpack.c.l.b16 %v3133
          %v3142 = vunpack.c.l.b16 %v3134
          %v3143 = vunpack.c.l.b16 %v3135
          %v3144 = vpack.c.b16 %v3141, %v3140
          %v3145 = vpack.c.b16 %v3143, %v3142
          %v3149 = vsel %vm634, %v3127, 0
          %v3152 = vsel %vm634, %v3128, 0
          %v3155 = vsel %vm634, %v3129, 0
          %v3158 = vsel %vm634, %v3130, 0
          %3160 = vmatprep.subr.bf16.mxu0 0
          %3161 = vmatpush1.bf16.msra.mxu0 %v3144
          %3162 = vmatprep.subr.bf16.mxu0 0
          %3163 = vmatpush1.bf16.msra.mxu0 %v3145
          %3164 = vmatprep.subr.bf16.mxu0 0
          %3165 = vmatpush1.bf16.msra.mxu0 0
          %3166 = vmatprep.subr.bf16.mxu0 0
          %3167 = vmatpush1.bf16.msra.mxu0 0
          %3168 = vmatprep.subr.bf16.mxu0 0
          %3169 = vmatpush1.bf16.msra.mxu0 0
          %3170 = vmatprep.subr.bf16.mxu0 0
          %3171 = vmatpush1.bf16.msra.mxu0 0
          %3172 = vmatprep.subr.bf16.mxu0 0
          %3173 = vmatpush1.bf16.msra.mxu0 0
          %3174 = vmatprep.subr.bf16.mxu0 0
          %3175 = vmatpush1.bf16.msra.mxu0 0
          %3176 = vmatprep.subr.bf16.mxu0 0
          %3177 = vmatpush1.bf16.msra.mxu0 0
          %3178 = vmatprep.subr.bf16.mxu0 0
          %3179 = vmatpush1.bf16.msra.mxu0 0
          %3180 = vmatprep.subr.bf16.mxu0 0
          %3181 = vmatpush1.bf16.msra.mxu0 0
          %3182 = vmatprep.subr.bf16.mxu0 0
          %3183 = vmatpush1.bf16.msra.mxu0 0
          %3184 = vmatprep.subr.bf16.mxu0 0
          %3185 = vmatpush1.bf16.msra.mxu0 0
          %3186 = vmatprep.subr.bf16.mxu0 0
          %3187 = vmatpush1.bf16.msra.mxu0 0
          %3188 = vmatprep.subr.bf16.mxu0 0
          %3189 = vmatpush1.bf16.msra.mxu0 0
          %3190 = vmatprep.subr.bf16.mxu0 0
          %3191 = vmatpush1.bf16.msra.mxu0 0
          %3192 = vmatprep.mubr.bf16.mxu0 0
          %3193 = vmatmul.mubr.bf16.gmra.mrb[0].mxu0 %v3149
          %v3194 = vpop.f32.mrb[0].mxu0
          %v3195 = vadd.f32 0.0, %v3194
          %v3196 = vpop.f32.mrb[0].mxu0
          %v3197 = vpop.f32.mrb[0].mxu0
          %v3198 = vadd.f32 0.0, %v3197
          %v3199 = vpop.f32.mrb[0].mxu0
          %3200 = vmatprep.mubr.bf16.mxu0 0
          %3201 = vmatmul.mubr.bf16.gmra.mrb[0].mxu0 %v3152
          %v3202 = vpop.f32.mrb[0].mxu0
          %v3203 = vadd.f32 0.0, %v3202
          %v3204 = vpop.f32.mrb[0].mxu0
          %v3205 = vpop.f32.mrb[0].mxu0
          %v3206 = vadd.f32 0.0, %v3205
          %v3207 = vpop.f32.mrb[0].mxu0
          %3208 = vmatprep.mubr.bf16.mxu0 0
          %3209 = vmatmul.mubr.bf16.gmra.mrb[0].mxu0 %v3155
          %v3210 = vpop.f32.mrb[0].mxu0
          %v3211 = vadd.f32 0.0, %v3210
          %v3212 = vpop.f32.mrb[0].mxu0
          %v3213 = vpop.f32.mrb[0].mxu0
          %v3214 = vadd.f32 0.0, %v3213
          %v3215 = vpop.f32.mrb[0].mxu0
          %3216 = vmatprep.mubr.bf16.mxu0 0
          %3217 = vmatmul.mubr.bf16.gmra.mrb[0].mxu0 %v3158
          %v3218 = vpop.f32.mrb[0].mxu0
          %v3219 = vadd.f32 0.0, %v3218
          %v3220 = vpop.f32.mrb[0].mxu0
          %v3221 = vpop.f32.mrb[0].mxu0
          %v3222 = vadd.f32 0.0, %v3221
          %v3223 = vpop.f32.mrb[0].mxu0
          %3224 = vdwg.mxu0
          %v3229 = vunpack.c.l.b16 %v3074
          %v3230 = vunpack.c.l.b16 %v3075
          %v3231 = vunpack.c.l.b16 %v3076
          %v3232 = vunpack.c.l.b16 %v3077
          %v3233 = vpack.c.b16 %v3230, %v3229
          %v3234 = vpack.c.b16 %v3232, %v3231
          %v3238 = vsel %vm634, %v3069, 0
          %v3241 = vsel %vm634, %v3070, 0
          %v3244 = vsel %vm634, %v3071, 0
          %v3247 = vsel %vm634, %v3072, 0
          %3249 = vmatprep.subr.bf16.mxu0 0
          %3250 = vmatpush1.bf16.msra.mxu0 %v3233
          %3251 = vmatprep.subr.bf16.mxu0 0
          %3252 = vmatpush1.bf16.msra.mxu0 %v3234
          %3253 = vmatprep.subr.bf16.mxu0 0
          %3254 = vmatpush1.bf16.msra.mxu0 0
          %3255 = vmatprep.subr.bf16.mxu0 0
          %3256 = vmatpush1.bf16.msra.mxu0 0
          %3257 = vmatprep.subr.bf16.mxu0 0
          %3258 = vmatpush1.bf16.msra.mxu0 0
          %3259 = vmatprep.subr.bf16.mxu0 0
          %3260 = vmatpush1.bf16.msra.mxu0 0
          %3261 = vmatprep.subr.bf16.mxu0 0
          %3262 = vmatpush1.bf16.msra.mxu0 0
          %3263 = vmatprep.subr.bf16.mxu0 0
          %3264 = vmatpush1.bf16.msra.mxu0 0
          %3265 = vmatprep.subr.bf16.mxu0 0
          %3266 = vmatpush1.bf16.msra.mxu0 0
          %3267 = vmatprep.subr.bf16.mxu0 0
          %3268 = vmatpush1.bf16.msra.mxu0 0
          %3269 = vmatprep.subr.bf16.mxu0 0
          %3270 = vmatpush1.bf16.msra.mxu0 0
          %3271 = vmatprep.subr.bf16.mxu0 0
          %3272 = vmatpush1.bf16.msra.mxu0 0
          %3273 = vmatprep.subr.bf16.mxu0 0
          %3274 = vmatpush1.bf16.msra.mxu0 0
          %3275 = vmatprep.subr.bf16.mxu0 0
          %3276 = vmatpush1.bf16.msra.mxu0 0
          %3277 = vmatprep.subr.bf16.mxu0 0
          %3278 = vmatpush1.bf16.msra.mxu0 0
          %3279 = vmatprep.subr.bf16.mxu0 0
          %3280 = vmatpush1.bf16.msra.mxu0 0
          %3281 = vmatprep.mubr.bf16.mxu0 0
          %3282 = vmatmul.mubr.bf16.gmra.mrb[0].mxu0 %v3238
          %v3283 = vpop.f32.mrb[0].mxu0
          %v3284 = vadd.f32 %v3195, %v3283
          %v3285 = vpop.f32.mrb[0].mxu0
          %v3286 = vpop.f32.mrb[0].mxu0
          %v3287 = vadd.f32 %v3198, %v3286
          %v3288 = vpop.f32.mrb[0].mxu0
          %3289 = vmatprep.mubr.bf16.mxu0 0
          %3290 = vmatmul.mubr.bf16.gmra.mrb[0].mxu0 %v3241
          %v3291 = vpop.f32.mrb[0].mxu0
          %v3292 = vadd.f32 %v3203, %v3291
          %v3293 = vpop.f32.mrb[0].mxu0
          %v3294 = vpop.f32.mrb[0].mxu0
          %v3295 = vadd.f32 %v3206, %v3294
          %v3296 = vpop.f32.mrb[0].mxu0
          %3297 = vmatprep.mubr.bf16.mxu0 0
          %3298 = vmatmul.mubr.bf16.gmra.mrb[0].mxu0 %v3244
          %v3299 = vpop.f32.mrb[0].mxu0
          %v3300 = vadd.f32 %v3211, %v3299
          %v3301 = vpop.f32.mrb[0].mxu0
          %v3302 = vpop.f32.mrb[0].mxu0
          %v3303 = vadd.f32 %v3214, %v3302
          %v3304 = vpop.f32.mrb[0].mxu0
          %3305 = vmatprep.mubr.bf16.mxu0 0
          %3306 = vmatmul.mubr.bf16.gmra.mrb[0].mxu0 %v3247
          %v3307 = vpop.f32.mrb[0].mxu0
          %v3308 = vadd.f32 %v3219, %v3307
          %v3309 = vpop.f32.mrb[0].mxu0
          %v3310 = vpop.f32.mrb[0].mxu0
          %v3311 = vadd.f32 %v3222, %v3310
          %v3312 = vpop.f32.mrb[0].mxu0
          %3313 = vdwg.mxu0
          %vm3314 = vcmask 1045504
          %v3315 = vrot.slane %v3049, 2
          %v3316 = vrot.slane %v3050, 2
          %v3317 = vsel %vm3314, %v3315, %v3316
          %v3318 = vrot.slane %v3051, 2
          %v3319 = vrot.slane %v3052, 2
          %v3320 = vsel %vm3314, %v3318, %v3319
          %v3321 = vrot.slane %v3053, 2
          %v3322 = vrot.slane %v3054, 2
          %v3323 = vsel %vm3314, %v3321, %v3322
          %v3324 = vrot.slane %v3055, 2
          %v3325 = vrot.slane %v3056, 2
          %v3326 = vsel %vm3314, %v3324, %v3325
          %v3327 = vrot.slane %v3057, 2
          %v3328 = vrot.slane %v3058, 2
          %v3329 = vsel %vm3314, %v3327, %v3328
          %v3330 = vrot.slane %v3059, 2
          %v3331 = vrot.slane %v3060, 2
          %v3332 = vsel %vm3314, %v3330, %v3331
          %v3333 = vrot.slane %v3061, 2
          %v3334 = vrot.slane %v3062, 2
          %v3335 = vsel %vm3314, %v3333, %v3334
          %v3336 = vrot.slane %v3063, 2
          %v3337 = vrot.slane %v3064, 2
          %v3338 = vsel %vm3314, %v3336, %v3337
          %v3347 = vpack.c.bf16 %v3320, %v3317
          %v3348 = vpack.c.bf16 %v3326, %v3323
          %v3349 = vpack.c.bf16 %v3332, %v3329
          %v3350 = vpack.c.bf16 %v3338, %v3335
          %s3351 = scalar_lea.vmem %s10, 320
          %v3352 = vld [vmem:[%s3351] sm:$0xf]
          %v3353 = vld [vmem:[%s3351 + $0x4] sm:$0xf]
          %v3354 = vld [vmem:[%s3351 + $0x8] sm:$0xf]
          %v3355 = vld [vmem:[%s3351 + $0xc] sm:$0xf]
          %v3360 = vunpack.c.l.b16 %v3352
          %v3361 = vunpack.c.l.b16 %v3353
          %v3362 = vunpack.c.l.b16 %v3354
          %v3363 = vunpack.c.l.b16 %v3355
          %v3364 = vpack.c.b16 %v3361, %v3360
          %v3365 = vpack.c.b16 %v3363, %v3362
          %v3369 = vsel %vm634, %v3347, 0
          %v3372 = vsel %vm634, %v3348, 0
          %v3375 = vsel %vm634, %v3349, 0
          %v3378 = vsel %vm634, %v3350, 0
          %3380 = vmatprep.subr.bf16.mxu0 0
          %3381 = vmatpush1.bf16.msra.mxu0 %v3364
          %3382 = vmatprep.subr.bf16.mxu0 0
          %3383 = vmatpush1.bf16.msra.mxu0 %v3365
          %3384 = vmatprep.subr.bf16.mxu0 0
          %3385 = vmatpush1.bf16.msra.mxu0 0
          %3386 = vmatprep.subr.bf16.mxu0 0
          %3387 = vmatpush1.bf16.msra.mxu0 0
          %3388 = vmatprep.subr.bf16.mxu0 0
          %3389 = vmatpush1.bf16.msra.mxu0 0
          %3390 = vmatprep.subr.bf16.mxu0 0
          %3391 = vmatpush1.bf16.msra.mxu0 0
          %3392 = vmatprep.subr.bf16.mxu0 0
          %3393 = vmatpush1.bf16.msra.mxu0 0
          %3394 = vmatprep.subr.bf16.mxu0 0
          %3395 = vmatpush1.bf16.msra.mxu0 0
          %3396 = vmatprep.subr.bf16.mxu0 0
          %3397 = vmatpush1.bf16.msra.mxu0 0
          %3398 = vmatprep.subr.bf16.mxu0 0
          %3399 = vmatpush1.bf16.msra.mxu0 0
          %3400 = vmatprep.subr.bf16.mxu0 0
          %3401 = vmatpush1.bf16.msra.mxu0 0
          %3402 = vmatprep.subr.bf16.mxu0 0
          %3403 = vmatpush1.bf16.msra.mxu0 0
          %3404 = vmatprep.subr.bf16.mxu0 0
          %3405 = vmatpush1.bf16.msra.mxu0 0
          %3406 = vmatprep.subr.bf16.mxu0 0
          %3407 = vmatpush1.bf16.msra.mxu0 0
          %3408 = vmatprep.subr.bf16.mxu0 0
          %3409 = vmatpush1.bf16.msra.mxu0 0
          %3410 = vmatprep.subr.bf16.mxu0 0
          %3411 = vmatpush1.bf16.msra.mxu0 0
          %3412 = vmatprep.mubr.bf16.mxu0 0
          %3413 = vmatmul.mubr.bf16.gmra.mrb[0].mxu0 %v3369
          %v3414 = vpop.f32.mrb[0].mxu0
          %v3415 = vadd.f32 0.0, %v3414
          %v3416 = vpop.f32.mrb[0].mxu0
          %v3417 = vpop.f32.mrb[0].mxu0
          %v3418 = vadd.f32 0.0, %v3417
          %v3419 = vpop.f32.mrb[0].mxu0
          %3420 = vmatprep.mubr.bf16.mxu0 0
          %3421 = vmatmul.mubr.bf16.gmra.mrb[0].mxu0 %v3372
          %v3422 = vpop.f32.mrb[0].mxu0
          %v3423 = vadd.f32 0.0, %v3422
          %v3424 = vpop.f32.mrb[0].mxu0
          %v3425 = vpop.f32.mrb[0].mxu0
          %v3426 = vadd.f32 0.0, %v3425
          %v3427 = vpop.f32.mrb[0].mxu0
          %3428 = vmatprep.mubr.bf16.mxu0 0
          %3429 = vmatmul.mubr.bf16.gmra.mrb[0].mxu0 %v3375
          %v3430 = vpop.f32.mrb[0].mxu0
          %v3431 = vadd.f32 0.0, %v3430
          %v3432 = vpop.f32.mrb[0].mxu0
          %v3433 = vpop.f32.mrb[0].mxu0
          %v3434 = vadd.f32 0.0, %v3433
          %v3435 = vpop.f32.mrb[0].mxu0
          %3436 = vmatprep.mubr.bf16.mxu0 0
          %3437 = vmatmul.mubr.bf16.gmra.mrb[0].mxu0 %v3378
          %v3438 = vpop.f32.mrb[0].mxu0
          %v3439 = vadd.f32 0.0, %v3438
          %v3440 = vpop.f32.mrb[0].mxu0
          %v3441 = vpop.f32.mrb[0].mxu0
          %v3442 = vadd.f32 0.0, %v3441
          %v3443 = vpop.f32.mrb[0].mxu0
          %3444 = vdwg.mxu0
          %v3445 = vadd.f32 %v3284, %v3415
          %v3446 = vadd.f32 %v3287, %v3418
          %v3447 = vadd.f32 %v3292, %v3423
          %v3448 = vadd.f32 %v3295, %v3426
          %v3449 = vadd.f32 %v3300, %v3431
          %v3450 = vadd.f32 %v3303, %v3434
          %v3451 = vadd.f32 %v3308, %v3439
          %v3452 = vadd.f32 %v3311, %v3442
          %v3453 = vpack.c.bf16 %v3053, %v3051
          %v3454 = vpack.c.bf16 %v3057, %v3055
          %v3455 = vpack.c.bf16 %v3061, %v3059
          %v3456 = vpack.c.bf16 %v3065, %v3063
          %s3457 = scalar_lea.vmem %s10, 336
          %v3458 = vld [vmem:[%s3457] sm:$0xf]
          %v3459 = vld [vmem:[%s3457 + $0x4] sm:$0xf]
          %v3460 = vld [vmem:[%s3457 + $0x8] sm:$0xf]
          %v3461 = vld [vmem:[%s3457 + $0xc] sm:$0xf]
          %v3466 = vunpack.c.l.b16 %v3458
          %v3467 = vunpack.c.l.b16 %v3459
          %v3468 = vunpack.c.l.b16 %v3460
          %v3469 = vunpack.c.l.b16 %v3461
          %v3470 = vpack.c.b16 %v3467, %v3466
          %v3471 = vpack.c.b16 %v3469, %v3468
          %v3475 = vsel %vm634, %v3453, 0
          %v3478 = vsel %vm634, %v3454, 0
          %v3481 = vsel %vm634, %v3455, 0
          %v3484 = vsel %vm634, %v3456, 0
          %3486 = vmatprep.subr.bf16.mxu0 0
          %3487 = vmatpush1.bf16.msra.mxu0 %v3470
          %3488 = vmatprep.subr.bf16.mxu0 0
          %3489 = vmatpush1.bf16.msra.mxu0 %v3471
          %3490 = vmatprep.subr.bf16.mxu0 0
          %3491 = vmatpush1.bf16.msra.mxu0 0
          %3492 = vmatprep.subr.bf16.mxu0 0
          %3493 = vmatpush1.bf16.msra.mxu0 0
          %3494 = vmatprep.subr.bf16.mxu0 0
          %3495 = vmatpush1.bf16.msra.mxu0 0
          %3496 = vmatprep.subr.bf16.mxu0 0
          %3497 = vmatpush1.bf16.msra.mxu0 0
          %3498 = vmatprep.subr.bf16.mxu0 0
          %3499 = vmatpush1.bf16.msra.mxu0 0
          %3500 = vmatprep.subr.bf16.mxu0 0
          %3501 = vmatpush1.bf16.msra.mxu0 0
          %3502 = vmatprep.subr.bf16.mxu0 0
          %3503 = vmatpush1.bf16.msra.mxu0 0
          %3504 = vmatprep.subr.bf16.mxu0 0
          %3505 = vmatpush1.bf16.msra.mxu0 0
          %3506 = vmatprep.subr.bf16.mxu0 0
          %3507 = vmatpush1.bf16.msra.mxu0 0
          %3508 = vmatprep.subr.bf16.mxu0 0
          %3509 = vmatpush1.bf16.msra.mxu0 0
          %3510 = vmatprep.subr.bf16.mxu0 0
          %3511 = vmatpush1.bf16.msra.mxu0 0
          %3512 = vmatprep.subr.bf16.mxu0 0
          %3513 = vmatpush1.bf16.msra.mxu0 0
          %3514 = vmatprep.subr.bf16.mxu0 0
          %3515 = vmatpush1.bf16.msra.mxu0 0
          %3516 = vmatprep.subr.bf16.mxu0 0
          %3517 = vmatpush1.bf16.msra.mxu0 0
          %3518 = vmatprep.mubr.bf16.mxu0 0
          %3519 = vmatmul.mubr.bf16.gmra.mrb[0].mxu0 %v3475
          %v3520 = vpop.f32.mrb[0].mxu0
          %v3521 = vadd.f32 0.0, %v3520
          %v3522 = vpop.f32.mrb[0].mxu0
          %v3523 = vpop.f32.mrb[0].mxu0
          %v3524 = vadd.f32 0.0, %v3523
          %v3525 = vpop.f32.mrb[0].mxu0
          %3526 = vmatprep.mubr.bf16.mxu0 0
          %3527 = vmatmul.mubr.bf16.gmra.mrb[0].mxu0 %v3478
          %v3528 = vpop.f32.mrb[0].mxu0
          %v3529 = vadd.f32 0.0, %v3528
          %v3530 = vpop.f32.mrb[0].mxu0
          %v3531 = vpop.f32.mrb[0].mxu0
          %v3532 = vadd.f32 0.0, %v3531
          %v3533 = vpop.f32.mrb[0].mxu0
          %3534 = vmatprep.mubr.bf16.mxu0 0
          %3535 = vmatmul.mubr.bf16.gmra.mrb[0].mxu0 %v3481
          %v3536 = vpop.f32.mrb[0].mxu0
          %v3537 = vadd.f32 0.0, %v3536
          %v3538 = vpop.f32.mrb[0].mxu0
          %v3539 = vpop.f32.mrb[0].mxu0
          %v3540 = vadd.f32 0.0, %v3539
          %v3541 = vpop.f32.mrb[0].mxu0
          %3542 = vmatprep.mubr.bf16.mxu0 0
          %3543 = vmatmul.mubr.bf16.gmra.mrb[0].mxu0 %v3484
          %v3544 = vpop.f32.mrb[0].mxu0
          %v3545 = vadd.f32 0.0, %v3544
          %v3546 = vpop.f32.mrb[0].mxu0
          %v3547 = vpop.f32.mrb[0].mxu0
          %v3548 = vadd.f32 0.0, %v3547
          %v3549 = vpop.f32.mrb[0].mxu0
          %3550 = vdwg.mxu0
          %v3551 = vadd.f32 %v3445, %v3521
          %v3552 = vadd.f32 %v3446, %v3524
          %v3553 = vadd.f32 %v3447, %v3529
          %v3554 = vadd.f32 %v3448, %v3532
          %v3555 = vadd.f32 %v3449, %v3537
          %v3556 = vadd.f32 %v3450, %v3540
          %v3557 = vadd.f32 %v3451, %v3545
          %v3558 = vadd.f32 %v3452, %v3548
          %v3561 = vrot.slane %v3065, 1
          %v3562 = vrot.slane %v3066, 1
          %v3563 = vsel %vm3094, %v3561, %v3562
          %v3565 = vpack.c.bf16 %v3103, %v3100
          %v3566 = vpack.c.bf16 %v3109, %v3106
          %v3567 = vpack.c.bf16 %v3115, %v3112
          %v3568 = vpack.c.bf16 %v3563, %v3118
          %s3569 = scalar_lea.vmem %s10, 352
          %v3570 = vld [vmem:[%s3569] sm:$0xf]
          %v3571 = vld [vmem:[%s3569 + $0x4] sm:$0xf]
          %v3572 = vld [vmem:[%s3569 + $0x8] sm:$0xf]
          %v3573 = vld [vmem:[%s3569 + $0xc] sm:$0xf]
          %v3578 = vunpack.c.l.b16 %v3570
          %v3579 = vunpack.c.l.b16 %v3571
          %v3580 = vunpack.c.l.b16 %v3572
          %v3581 = vunpack.c.l.b16 %v3573
          %v3582 = vpack.c.b16 %v3579, %v3578
          %v3583 = vpack.c.b16 %v3581, %v3580
          %v3587 = vsel %vm634, %v3565, 0
          %v3590 = vsel %vm634, %v3566, 0
          %v3593 = vsel %vm634, %v3567, 0
          %v3596 = vsel %vm634, %v3568, 0
          %3598 = vmatprep.subr.bf16.mxu0 0
          %3599 = vmatpush1.bf16.msra.mxu0 %v3582
          %3600 = vmatprep.subr.bf16.mxu0 0
          %3601 = vmatpush1.bf16.msra.mxu0 %v3583
          %3602 = vmatprep.subr.bf16.mxu0 0
          %3603 = vmatpush1.bf16.msra.mxu0 0
          %3604 = vmatprep.subr.bf16.mxu0 0
          %3605 = vmatpush1.bf16.msra.mxu0 0
          %3606 = vmatprep.subr.bf16.mxu0 0
          %3607 = vmatpush1.bf16.msra.mxu0 0
          %3608 = vmatprep.subr.bf16.mxu0 0
          %3609 = vmatpush1.bf16.msra.mxu0 0
          %3610 = vmatprep.subr.bf16.mxu0 0
          %3611 = vmatpush1.bf16.msra.mxu0 0
          %3612 = vmatprep.subr.bf16.mxu0 0
          %3613 = vmatpush1.bf16.msra.mxu0 0
          %3614 = vmatprep.subr.bf16.mxu0 0
          %3615 = vmatpush1.bf16.msra.mxu0 0
          %3616 = vmatprep.subr.bf16.mxu0 0
          %3617 = vmatpush1.bf16.msra.mxu0 0
          %3618 = vmatprep.subr.bf16.mxu0 0
          %3619 = vmatpush1.bf16.msra.mxu0 0
          %3620 = vmatprep.subr.bf16.mxu0 0
          %3621 = vmatpush1.bf16.msra.mxu0 0
          %3622 = vmatprep.subr.bf16.mxu0 0
          %3623 = vmatpush1.bf16.msra.mxu0 0
          %3624 = vmatprep.subr.bf16.mxu0 0
          %3625 = vmatpush1.bf16.msra.mxu0 0
          %3626 = vmatprep.subr.bf16.mxu0 0
          %3627 = vmatpush1.bf16.msra.mxu0 0
          %3628 = vmatprep.subr.bf16.mxu0 0
          %3629 = vmatpush1.bf16.msra.mxu0 0
          %3630 = vmatprep.mubr.bf16.mxu0 0
          %3631 = vmatmul.mubr.bf16.gmra.mrb[0].mxu0 %v3587
          %v3632 = vpop.f32.mrb[0].mxu0
          %v3633 = vadd.f32 0.0, %v3632
          %v3634 = vpop.f32.mrb[0].mxu0
          %v3635 = vpop.f32.mrb[0].mxu0
          %v3636 = vadd.f32 0.0, %v3635
          %v3637 = vpop.f32.mrb[0].mxu0
          %3638 = vmatprep.mubr.bf16.mxu0 0
          %3639 = vmatmul.mubr.bf16.gmra.mrb[0].mxu0 %v3590
          %v3640 = vpop.f32.mrb[0].mxu0
          %v3641 = vadd.f32 0.0, %v3640
          %v3642 = vpop.f32.mrb[0].mxu0
          %v3643 = vpop.f32.mrb[0].mxu0
          %v3644 = vadd.f32 0.0, %v3643
          %v3645 = vpop.f32.mrb[0].mxu0
          %3646 = vmatprep.mubr.bf16.mxu0 0
          %3647 = vmatmul.mubr.bf16.gmra.mrb[0].mxu0 %v3593
          %v3648 = vpop.f32.mrb[0].mxu0
          %v3649 = vadd.f32 0.0, %v3648
          %v3650 = vpop.f32.mrb[0].mxu0
          %v3651 = vpop.f32.mrb[0].mxu0
          %v3652 = vadd.f32 0.0, %v3651
          %v3653 = vpop.f32.mrb[0].mxu0
          %3654 = vmatprep.mubr.bf16.mxu0 0
          %3655 = vmatmul.mubr.bf16.gmra.mrb[0].mxu0 %v3596
          %v3656 = vpop.f32.mrb[0].mxu0
          %v3657 = vadd.f32 0.0, %v3656
          %v3658 = vpop.f32.mrb[0].mxu0
          %v3659 = vpop.f32.mrb[0].mxu0
          %v3660 = vadd.f32 0.0, %v3659
          %v3661 = vpop.f32.mrb[0].mxu0
          %3662 = vdwg.mxu0
          %v3663 = vadd.f32 %v3551, %v3633
          %v3664 = vadd.f32 %v3552, %v3636
          %v3665 = vadd.f32 %v3553, %v3641
          %v3666 = vadd.f32 %v3554, %v3644
          %v3667 = vadd.f32 %v3555, %v3649
          %v3668 = vadd.f32 %v3556, %v3652
          %v3669 = vadd.f32 %v3557, %v3657
          %v3670 = vadd.f32 %v3558, %v3660
          %v3671 = vrot.slane %v3065, 2
          %v3672 = vrot.slane %v3066, 2
          %v3673 = vsel %vm3314, %v3671, %v3672
          %v3675 = vpack.c.bf16 %v3323, %v3320
          %v3676 = vpack.c.bf16 %v3329, %v3326
          %v3677 = vpack.c.bf16 %v3335, %v3332
          %v3678 = vpack.c.bf16 %v3673, %v3338
          %s3679 = scalar_lea.vmem %s10, 368
          %v3680 = vld [vmem:[%s3679] sm:$0xf]
          %v3681 = vld [vmem:[%s3679 + $0x4] sm:$0xf]
          %v3682 = vld [vmem:[%s3679 + $0x8] sm:$0xf]
          %v3683 = vld [vmem:[%s3679 + $0xc] sm:$0xf]
          %v3688 = vunpack.c.l.b16 %v3680
          %v3689 = vunpack.c.l.b16 %v3681
          %v3690 = vunpack.c.l.b16 %v3682
          %v3691 = vunpack.c.l.b16 %v3683
          %v3692 = vpack.c.b16 %v3689, %v3688
          %v3693 = vpack.c.b16 %v3691, %v3690
          %v3697 = vsel %vm634, %v3675, 0
          %v3700 = vsel %vm634, %v3676, 0
          %v3703 = vsel %vm634, %v3677, 0
          %v3706 = vsel %vm634, %v3678, 0
          %3708 = vmatprep.subr.bf16.mxu0 0
          %3709 = vmatpush1.bf16.msra.mxu0 %v3692
          %3710 = vmatprep.subr.bf16.mxu0 0
          %3711 = vmatpush1.bf16.msra.mxu0 %v3693
          %3712 = vmatprep.subr.bf16.mxu0 0
          %3713 = vmatpush1.bf16.msra.mxu0 0
          %3714 = vmatprep.subr.bf16.mxu0 0
          %3715 = vmatpush1.bf16.msra.mxu0 0
          %3716 = vmatprep.subr.bf16.mxu0 0
          %3717 = vmatpush1.bf16.msra.mxu0 0
          %3718 = vmatprep.subr.bf16.mxu0 0
          %3719 = vmatpush1.bf16.msra.mxu0 0
          %3720 = vmatprep.subr.bf16.mxu0 0
          %3721 = vmatpush1.bf16.msra.mxu0 0
          %3722 = vmatprep.subr.bf16.mxu0 0
          %3723 = vmatpush1.bf16.msra.mxu0 0
          %3724 = vmatprep.subr.bf16.mxu0 0
          %3725 = vmatpush1.bf16.msra.mxu0 0
          %3726 = vmatprep.subr.bf16.mxu0 0
          %3727 = vmatpush1.bf16.msra.mxu0 0
          %3728 = vmatprep.subr.bf16.mxu0 0
          %3729 = vmatpush1.bf16.msra.mxu0 0
          %3730 = vmatprep.subr.bf16.mxu0 0
          %3731 = vmatpush1.bf16.msra.mxu0 0
          %3732 = vmatprep.subr.bf16.mxu0 0
          %3733 = vmatpush1.bf16.msra.mxu0 0
          %3734 = vmatprep.subr.bf16.mxu0 0
          %3735 = vmatpush1.bf16.msra.mxu0 0
          %3736 = vmatprep.subr.bf16.mxu0 0
          %3737 = vmatpush1.bf16.msra.mxu0 0
          %3738 = vmatprep.subr.bf16.mxu0 0
          %3739 = vmatpush1.bf16.msra.mxu0 0
          %3740 = vmatprep.mubr.bf16.mxu0 0
          %3741 = vmatmul.mubr.bf16.gmra.mrb[0].mxu0 %v3697
          %v3742 = vpop.f32.mrb[0].mxu0
          %v3743 = vadd.f32 0.0, %v3742
          %v3744 = vpop.f32.mrb[0].mxu0
          %v3745 = vpop.f32.mrb[0].mxu0
          %v3746 = vadd.f32 0.0, %v3745
          %v3747 = vpop.f32.mrb[0].mxu0
          %3748 = vmatprep.mubr.bf16.mxu0 0
          %3749 = vmatmul.mubr.bf16.gmra.mrb[0].mxu0 %v3700
          %v3750 = vpop.f32.mrb[0].mxu0
          %v3751 = vadd.f32 0.0, %v3750
          %v3752 = vpop.f32.mrb[0].mxu0
          %v3753 = vpop.f32.mrb[0].mxu0
          %v3754 = vadd.f32 0.0, %v3753
          %v3755 = vpop.f32.mrb[0].mxu0
          %3756 = vmatprep.mubr.bf16.mxu0 0
          %3757 = vmatmul.mubr.bf16.gmra.mrb[0].mxu0 %v3703
          %v3758 = vpop.f32.mrb[0].mxu0
          %v3759 = vadd.f32 0.0, %v3758
          %v3760 = vpop.f32.mrb[0].mxu0
          %v3761 = vpop.f32.mrb[0].mxu0
          %v3762 = vadd.f32 0.0, %v3761
          %v3763 = vpop.f32.mrb[0].mxu0
          %3764 = vmatprep.mubr.bf16.mxu0 0
          %3765 = vmatmul.mubr.bf16.gmra.mrb[0].mxu0 %v3706
          %v3766 = vpop.f32.mrb[0].mxu0
          %v3767 = vadd.f32 0.0, %v3766
          %v3768 = vpop.f32.mrb[0].mxu0
          %v3769 = vpop.f32.mrb[0].mxu0
          %v3770 = vadd.f32 0.0, %v3769
          %v3771 = vpop.f32.mrb[0].mxu0
          %3772 = vdwg.mxu0
          %v3773 = vadd.f32 %v3663, %v3743
          %v3774 = vadd.f32 %v3664, %v3746
          %v3775 = vadd.f32 %v3665, %v3751
          %v3776 = vadd.f32 %v3666, %v3754
          %v3777 = vadd.f32 %v3667, %v3759
          %v3778 = vadd.f32 %v3668, %v3762
          %v3779 = vadd.f32 %v3669, %v3767
          %v3780 = vadd.f32 %v3670, %v3770
          %v3781 = vpack.c.bf16 %v3067, %v3065
          %s3782 = scalar_lea.vmem %s10, 384
          %v3783 = vld [vmem:[%s3782] sm:$0xf]
          %v3784 = vld [vmem:[%s3782 + $0x4] sm:$0xf]
          %v3785 = vld [vmem:[%s3782 + $0x8] sm:$0xf]
          %v3786 = vld [vmem:[%s3782 + $0xc] sm:$0xf]
          %v3791 = vunpack.c.l.b16 %v3783
          %v3792 = vunpack.c.l.b16 %v3784
          %v3793 = vunpack.c.l.b16 %v3785
          %v3794 = vunpack.c.l.b16 %v3786
          %v3795 = vpack.c.b16 %v3792, %v3791
          %v3796 = vpack.c.b16 %v3794, %v3793
          %v3800 = vsel %vm634, %v3781, 0
          %3802 = vmatprep.subr.bf16.mxu0 0
          %3803 = vmatpush1.bf16.msra.mxu0 %v3795
          %3804 = vmatprep.subr.bf16.mxu0 0
          %3805 = vmatpush1.bf16.msra.mxu0 %v3796
          %3806 = vmatprep.subr.bf16.mxu0 0
          %3807 = vmatpush1.bf16.msra.mxu0 0
          %3808 = vmatprep.subr.bf16.mxu0 0
          %3809 = vmatpush1.bf16.msra.mxu0 0
          %3810 = vmatprep.subr.bf16.mxu0 0
          %3811 = vmatpush1.bf16.msra.mxu0 0
          %3812 = vmatprep.subr.bf16.mxu0 0
          %3813 = vmatpush1.bf16.msra.mxu0 0
          %3814 = vmatprep.subr.bf16.mxu0 0
          %3815 = vmatpush1.bf16.msra.mxu0 0
          %3816 = vmatprep.subr.bf16.mxu0 0
          %3817 = vmatpush1.bf16.msra.mxu0 0
          %3818 = vmatprep.subr.bf16.mxu0 0
          %3819 = vmatpush1.bf16.msra.mxu0 0
          %3820 = vmatprep.subr.bf16.mxu0 0
          %3821 = vmatpush1.bf16.msra.mxu0 0
          %3822 = vmatprep.subr.bf16.mxu0 0
          %3823 = vmatpush1.bf16.msra.mxu0 0
          %3824 = vmatprep.subr.bf16.mxu0 0
          %3825 = vmatpush1.bf16.msra.mxu0 0
          %3826 = vmatprep.subr.bf16.mxu0 0
          %3827 = vmatpush1.bf16.msra.mxu0 0
          %3828 = vmatprep.subr.bf16.mxu0 0
          %3829 = vmatpush1.bf16.msra.mxu0 0
          %3830 = vmatprep.subr.bf16.mxu0 0
          %3831 = vmatpush1.bf16.msra.mxu0 0
          %3832 = vmatprep.subr.bf16.mxu0 0
          %3833 = vmatpush1.bf16.msra.mxu0 0
          %3834 = vmatprep.mubr.bf16.mxu0 0
          %3835 = vmatmul.mubr.bf16.gmra.mrb[0].mxu0 %v3241
          %v3836 = vpop.f32.mrb[0].mxu0
          %v3837 = vadd.f32 0.0, %v3836
          %v3838 = vpop.f32.mrb[0].mxu0
          %v3839 = vpop.f32.mrb[0].mxu0
          %v3840 = vadd.f32 0.0, %v3839
          %v3841 = vpop.f32.mrb[0].mxu0
          %3842 = vmatprep.mubr.bf16.mxu0 0
          %3843 = vmatmul.mubr.bf16.gmra.mrb[0].mxu0 %v3244
          %v3844 = vpop.f32.mrb[0].mxu0
          %v3845 = vadd.f32 0.0, %v3844
          %v3846 = vpop.f32.mrb[0].mxu0
          %v3847 = vpop.f32.mrb[0].mxu0
          %v3848 = vadd.f32 0.0, %v3847
          %v3849 = vpop.f32.mrb[0].mxu0
          %3850 = vmatprep.mubr.bf16.mxu0 0
          %3851 = vmatmul.mubr.bf16.gmra.mrb[0].mxu0 %v3247
          %v3852 = vpop.f32.mrb[0].mxu0
          %v3853 = vadd.f32 0.0, %v3852
          %v3854 = vpop.f32.mrb[0].mxu0
          %v3855 = vpop.f32.mrb[0].mxu0
          %v3856 = vadd.f32 0.0, %v3855
          %v3857 = vpop.f32.mrb[0].mxu0
          %3858 = vmatprep.mubr.bf16.mxu0 0
          %3859 = vmatmul.mubr.bf16.gmra.mrb[0].mxu0 %v3800
          %v3860 = vpop.f32.mrb[0].mxu0
          %v3861 = vadd.f32 0.0, %v3860
          %v3862 = vpop.f32.mrb[0].mxu0
          %v3863 = vpop.f32.mrb[0].mxu0
          %v3864 = vadd.f32 0.0, %v3863
          %v3865 = vpop.f32.mrb[0].mxu0
          %3866 = vdwg.mxu0
          %v3867 = vadd.f32 %v3773, %v3837
          %v3868 = vadd.f32 %v3774, %v3840
          %v3869 = vadd.f32 %v3775, %v3845
          %v3870 = vadd.f32 %v3776, %v3848
          %v3871 = vadd.f32 %v3777, %v3853
          %v3872 = vadd.f32 %v3778, %v3856
          %v3873 = vadd.f32 %v3779, %v3861
          %v3874 = vadd.f32 %v3780, %v3864
          %v3877 = vrot.slane %v3067, 1
          %v3878 = vrot.slane %v3068, 1
          %v3879 = vsel %vm3094, %v3877, %v3878
          %v3881 = vpack.c.bf16 %v3879, %v3563
          %s3882 = scalar_lea.vmem %s10, 400
          %v3883 = vld [vmem:[%s3882] sm:$0xf]
          %v3884 = vld [vmem:[%s3882 + $0x4] sm:$0xf]
          %v3885 = vld [vmem:[%s3882 + $0x8] sm:$0xf]
          %v3886 = vld [vmem:[%s3882 + $0xc] sm:$0xf]
          %v3891 = vunpack.c.l.b16 %v3883
          %v3892 = vunpack.c.l.b16 %v3884
          %v3893 = vunpack.c.l.b16 %v3885
          %v3894 = vunpack.c.l.b16 %v3886
          %v3895 = vpack.c.b16 %v3892, %v3891
          %v3896 = vpack.c.b16 %v3894, %v3893
          %v3900 = vsel %vm634, %v3881, 0
          %3902 = vmatprep.subr.bf16.mxu0 0
          %3903 = vmatpush1.bf16.msra.mxu0 %v3895
          %3904 = vmatprep.subr.bf16.mxu0 0
          %3905 = vmatpush1.bf16.msra.mxu0 %v3896
          %3906 = vmatprep.subr.bf16.mxu0 0
          %3907 = vmatpush1.bf16.msra.mxu0 0
          %3908 = vmatprep.subr.bf16.mxu0 0
          %3909 = vmatpush1.bf16.msra.mxu0 0
          %3910 = vmatprep.subr.bf16.mxu0 0
          %3911 = vmatpush1.bf16.msra.mxu0 0
          %3912 = vmatprep.subr.bf16.mxu0 0
          %3913 = vmatpush1.bf16.msra.mxu0 0
          %3914 = vmatprep.subr.bf16.mxu0 0
          %3915 = vmatpush1.bf16.msra.mxu0 0
          %3916 = vmatprep.subr.bf16.mxu0 0
          %3917 = vmatpush1.bf16.msra.mxu0 0
          %3918 = vmatprep.subr.bf16.mxu0 0
          %3919 = vmatpush1.bf16.msra.mxu0 0
          %3920 = vmatprep.subr.bf16.mxu0 0
          %3921 = vmatpush1.bf16.msra.mxu0 0
          %3922 = vmatprep.subr.bf16.mxu0 0
          %3923 = vmatpush1.bf16.msra.mxu0 0
          %3924 = vmatprep.subr.bf16.mxu0 0
          %3925 = vmatpush1.bf16.msra.mxu0 0
          %3926 = vmatprep.subr.bf16.mxu0 0
          %3927 = vmatpush1.bf16.msra.mxu0 0
          %3928 = vmatprep.subr.bf16.mxu0 0
          %3929 = vmatpush1.bf16.msra.mxu0 0
          %3930 = vmatprep.subr.bf16.mxu0 0
          %3931 = vmatpush1.bf16.msra.mxu0 0
          %3932 = vmatprep.subr.bf16.mxu0 0
          %3933 = vmatpush1.bf16.msra.mxu0 0
          %3934 = vmatprep.mubr.bf16.mxu0 0
          %3935 = vmatmul.mubr.bf16.gmra.mrb[0].mxu0 %v3152
          %v3936 = vpop.f32.mrb[0].mxu0
          %v3937 = vadd.f32 0.0, %v3936
          %v3938 = vpop.f32.mrb[0].mxu0
          %v3939 = vpop.f32.mrb[0].mxu0
          %v3940 = vadd.f32 0.0, %v3939
          %v3941 = vpop.f32.mrb[0].mxu0
          %3942 = vmatprep.mubr.bf16.mxu0 0
          %3943 = vmatmul.mubr.bf16.gmra.mrb[0].mxu0 %v3155
          %v3944 = vpop.f32.mrb[0].mxu0
          %v3945 = vadd.f32 0.0, %v3944
          %v3946 = vpop.f32.mrb[0].mxu0
          %v3947 = vpop.f32.mrb[0].mxu0
          %v3948 = vadd.f32 0.0, %v3947
          %v3949 = vpop.f32.mrb[0].mxu0
          %3950 = vmatprep.mubr.bf16.mxu0 0
          %3951 = vmatmul.mubr.bf16.gmra.mrb[0].mxu0 %v3158
          %v3952 = vpop.f32.mrb[0].mxu0
          %v3953 = vadd.f32 0.0, %v3952
          %v3954 = vpop.f32.mrb[0].mxu0
          %v3955 = vpop.f32.mrb[0].mxu0
          %v3956 = vadd.f32 0.0, %v3955
          %v3957 = vpop.f32.mrb[0].mxu0
          %3958 = vmatprep.mubr.bf16.mxu0 0
          %3959 = vmatmul.mubr.bf16.gmra.mrb[0].mxu0 %v3900
          %v3960 = vpop.f32.mrb[0].mxu0
          %v3961 = vadd.f32 0.0, %v3960
          %v3962 = vpop.f32.mrb[0].mxu0
          %v3963 = vpop.f32.mrb[0].mxu0
          %v3964 = vadd.f32 0.0, %v3963
          %v3965 = vpop.f32.mrb[0].mxu0
          %3966 = vdwg.mxu0
          %v3967 = vadd.f32 %v3867, %v3937
          %v3968 = vadd.f32 %v3868, %v3940
          %v3969 = vadd.f32 %v3869, %v3945
          %v3970 = vadd.f32 %v3870, %v3948
          %v3971 = vadd.f32 %v3871, %v3953
          %v3972 = vadd.f32 %v3872, %v3956
          %v3973 = vadd.f32 %v3873, %v3961
          %v3974 = vadd.f32 %v3874, %v3964
          %v3975 = vrot.slane %v3067, 2
          %v3976 = vrot.slane %v3068, 2
          %v3977 = vsel %vm3314, %v3975, %v3976
          %v3979 = vpack.c.bf16 %v3977, %v3673
          %s3980 = scalar_lea.vmem %s10, 416
          %v3981 = vld [vmem:[%s3980] sm:$0xf]
          %v3982 = vld [vmem:[%s3980 + $0x4] sm:$0xf]
          %v3983 = vld [vmem:[%s3980 + $0x8] sm:$0xf]
          %v3984 = vld [vmem:[%s3980 + $0xc] sm:$0xf]
          %v3989 = vunpack.c.l.b16 %v3981
          %v3990 = vunpack.c.l.b16 %v3982
          %v3991 = vunpack.c.l.b16 %v3983
          %v3992 = vunpack.c.l.b16 %v3984
          %v3993 = vpack.c.b16 %v3990, %v3989
          %v3994 = vpack.c.b16 %v3992, %v3991
          %v3998 = vsel %vm634, %v3979, 0
          %4000 = vmatprep.subr.bf16.mxu0 0
          %4001 = vmatpush1.bf16.msra.mxu0 %v3993
          %4002 = vmatprep.subr.bf16.mxu0 0
          %4003 = vmatpush1.bf16.msra.mxu0 %v3994
          %4004 = vmatprep.subr.bf16.mxu0 0
          %4005 = vmatpush1.bf16.msra.mxu0 0
          %4006 = vmatprep.subr.bf16.mxu0 0
          %4007 = vmatpush1.bf16.msra.mxu0 0
          %4008 = vmatprep.subr.bf16.mxu0 0
          %4009 = vmatpush1.bf16.msra.mxu0 0
          %4010 = vmatprep.subr.bf16.mxu0 0
          %4011 = vmatpush1.bf16.msra.mxu0 0
          %4012 = vmatprep.subr.bf16.mxu0 0
          %4013 = vmatpush1.bf16.msra.mxu0 0
          %4014 = vmatprep.subr.bf16.mxu0 0
          %4015 = vmatpush1.bf16.msra.mxu0 0
          %4016 = vmatprep.subr.bf16.mxu0 0
          %4017 = vmatpush1.bf16.msra.mxu0 0
          %4018 = vmatprep.subr.bf16.mxu0 0
          %4019 = vmatpush1.bf16.msra.mxu0 0
          %4020 = vmatprep.subr.bf16.mxu0 0
          %4021 = vmatpush1.bf16.msra.mxu0 0
          %4022 = vmatprep.subr.bf16.mxu0 0
          %4023 = vmatpush1.bf16.msra.mxu0 0
          %4024 = vmatprep.subr.bf16.mxu0 0
          %4025 = vmatpush1.bf16.msra.mxu0 0
          %4026 = vmatprep.subr.bf16.mxu0 0
          %4027 = vmatpush1.bf16.msra.mxu0 0
          %4028 = vmatprep.subr.bf16.mxu0 0
          %4029 = vmatpush1.bf16.msra.mxu0 0
          %4030 = vmatprep.subr.bf16.mxu0 0
          %4031 = vmatpush1.bf16.msra.mxu0 0
          %4032 = vmatprep.mubr.bf16.mxu0 0
          %4033 = vmatmul.mubr.bf16.gmra.mrb[0].mxu0 %v3372
          %v4034 = vpop.f32.mrb[0].mxu0
          %v4035 = vadd.f32 0.0, %v4034
          %v4036 = vpop.f32.mrb[0].mxu0
          %v4037 = vpop.f32.mrb[0].mxu0
          %v4038 = vadd.f32 0.0, %v4037
          %v4039 = vpop.f32.mrb[0].mxu0
          %4040 = vmatprep.mubr.bf16.mxu0 0
          %4041 = vmatmul.mubr.bf16.gmra.mrb[0].mxu0 %v3375
          %v4042 = vpop.f32.mrb[0].mxu0
          %v4043 = vadd.f32 0.0, %v4042
          %v4044 = vpop.f32.mrb[0].mxu0
          %v4045 = vpop.f32.mrb[0].mxu0
          %v4046 = vadd.f32 0.0, %v4045
          %v4047 = vpop.f32.mrb[0].mxu0
          %4048 = vmatprep.mubr.bf16.mxu0 0
          %4049 = vmatmul.mubr.bf16.gmra.mrb[0].mxu0 %v3378
          %v4050 = vpop.f32.mrb[0].mxu0
          %v4051 = vadd.f32 0.0, %v4050
          %v4052 = vpop.f32.mrb[0].mxu0
          %v4053 = vpop.f32.mrb[0].mxu0
          %v4054 = vadd.f32 0.0, %v4053
          %v4055 = vpop.f32.mrb[0].mxu0
          %4056 = vmatprep.mubr.bf16.mxu0 0
          %4057 = vmatmul.mubr.bf16.gmra.mrb[0].mxu0 %v3998
          %v4058 = vpop.f32.mrb[0].mxu0
          %v4059 = vadd.f32 0.0, %v4058
          %v4060 = vpop.f32.mrb[0].mxu0
          %v4061 = vpop.f32.mrb[0].mxu0
          %v4062 = vadd.f32 0.0, %v4061
          %v4063 = vpop.f32.mrb[0].mxu0
          %4064 = vdwg.mxu0
          %v4065 = vadd.f32 %v3967, %v4035
          %v4066 = vadd.f32 %v3968, %v4038
          %v4067 = vadd.f32 %v3969, %v4043
          %v4068 = vadd.f32 %v3970, %v4046
          %v4069 = vadd.f32 %v3971, %v4051
          %v4070 = vadd.f32 %v3972, %v4054
          %v4071 = vadd.f32 %v3973, %v4059
          %v4072 = vadd.f32 %v3974, %v4062
          %4073 = vst.msk [vmem:[#allocation8] sm:$0xff] %vm1032, %v4065
          %4074 = vst.msk [vmem:[#allocation8 + $0x8] sm:$0xff] %vm1032, %v4066
          %4075 = vst.msk [vmem:[#allocation8 + $0x10] sm:$0xff] %vm1032, %v4067
          %4076 = vst.msk [vmem:[#allocation8 + $0x18] sm:$0xff] %vm1032, %v4068
          %4077 = vst.msk [vmem:[#allocation8 + $0x20] sm:$0xff] %vm1032, %v4069
          %4078 = vst.msk [vmem:[#allocation8 + $0x28] sm:$0xff] %vm1032, %v4070
          %4079 = vst.msk [vmem:[#allocation8 + $0x30] sm:$0xff] %vm1032, %v4071
          %4080 = vst.msk [vmem:[#allocation8 + $0x38] sm:$0xff] %vm1032, %v4072
        $region68: #{db_fpn_forward.1} parent=63 // pred_fallthru
          _
        %s4081 = smul.u32 %s30, 4
        %s4082 = smul.u32 %s30, 2
        %v4083 = vld [vmem:[%s549] sm:$0xf]
        %v4084 = vld [vmem:[%s549 + $0x4] sm:$0xf]
        %v4085 = vld [vmem:[%s549 + $0x8] sm:$0xf]
        %v4086 = vld [vmem:[%s549 + $0xc] sm:$0xf]
        %v4087 = vld [vmem:[%s549 + $0x10] sm:$0xf]
        %v4088 = vld [vmem:[%s549 + $0x14] sm:$0xf]
        %v4089 = vld [vmem:[%s549 + $0x18] sm:$0xf]
        %v4090 = vld [vmem:[%s549 + $0x1c] sm:$0xf]
        %v4091 = vld [vmem:[%s549 + $0x20] sm:$0xf]
        %v4092 = vld [vmem:[%s549 + $0x24] sm:$0xf]
        %v4093 = vld [vmem:[%s549 + $0x28] sm:$0xf]
        %v4094 = vld [vmem:[%s549 + $0x2c] sm:$0xf]
        %v4095 = vld [vmem:[%s549 + $0x30] sm:$0xf]
        %v4096 = vld [vmem:[%s549 + $0x34] sm:$0xf]
        %v4097 = vld [vmem:[%s549 + $0x38] sm:$0xf]
        %v4098 = vld [vmem:[%s549 + $0x3c] sm:$0xf]
        %v4099 = vld [vmem:[%s6] sm:$0x3]
        %v4116 = vunpack.c.l.b16 %v4083
        %v4117 = vunpack.c.l.b16 %v4084
        %v4118 = vunpack.c.l.b16 %v4085
        %v4119 = vunpack.c.l.b16 %v4086
        %v4120 = vunpack.c.l.b16 %v4087
        %v4121 = vunpack.c.l.b16 %v4088
        %v4122 = vunpack.c.l.b16 %v4089
        %v4123 = vunpack.c.l.b16 %v4090
        %v4124 = vunpack.c.l.b16 %v4091
        %v4125 = vunpack.c.l.b16 %v4092
        %v4126 = vunpack.c.l.b16 %v4093
        %v4127 = vunpack.c.l.b16 %v4094
        %v4128 = vunpack.c.l.b16 %v4095
        %v4129 = vunpack.c.l.b16 %v4096
        %v4130 = vunpack.c.l.b16 %v4097
        %v4131 = vunpack.c.l.b16 %v4098
        %v4132 = vpack.c.b16 %v4117, %v4116
        %v4133 = vpack.c.b16 %v4119, %v4118
        %v4134 = vpack.c.b16 %v4121, %v4120
        %v4135 = vpack.c.b16 %v4123, %v4122
        %v4136 = vpack.c.b16 %v4125, %v4124
        %v4137 = vpack.c.b16 %v4127, %v4126
        %v4138 = vpack.c.b16 %v4129, %v4128
        %v4139 = vpack.c.b16 %v4131, %v4130
        %vm4140 = vcmask 31744
        %v4142 = vsel %vm4140, %v4132, 0
        %v4145 = vsel %vm4140, %v4133, 0
        %v4148 = vsel %vm4140, %v4134, 0
        %v4151 = vsel %vm4140, %v4135, 0
        %v4154 = vsel %vm4140, %v4136, 0
        %v4157 = vsel %vm4140, %v4137, 0
        %v4160 = vsel %vm4140, %v4138, 0
        %v4163 = vsel %vm4140, %v4139, 0
        %vm4165 = vcmask 1041408
        %v4167 = vsel %vm4165, %v4099, 0
        %4169 = vmatprep.subr.bf16.mxu0 0
        %4170 = vmatpush1.bf16.msra.mxu0 %v4167
        %4171 = vmatprep.subr.bf16.mxu0 0
        %4172 = vmatpush1.bf16.msra.mxu0 0
        %4173 = vmatprep.subr.bf16.mxu0 0
        %4174 = vmatpush1.bf16.msra.mxu0 0
        %4175 = vmatprep.subr.bf16.mxu0 0
        %4176 = vmatpush1.bf16.msra.mxu0 0
        %4177 = vmatprep.subr.bf16.mxu0 0
        %4178 = vmatpush1.bf16.msra.mxu0 0
        %4179 = vmatprep.subr.bf16.mxu0 0
        %4180 = vmatpush1.bf16.msra.mxu0 0
        %4181 = vmatprep.subr.bf16.mxu0 0
        %4182 = vmatpush1.bf16.msra.mxu0 0
        %4183 = vmatprep.subr.bf16.mxu0 0
        %4184 = vmatpush1.bf16.msra.mxu0 0
        %4185 = vmatprep.subr.bf16.mxu0 0
        %4186 = vmatpush1.bf16.msra.mxu0 0
        %4187 = vmatprep.subr.bf16.mxu0 0
        %4188 = vmatpush1.bf16.msra.mxu0 0
        %4189 = vmatprep.subr.bf16.mxu0 0
        %4190 = vmatpush1.bf16.msra.mxu0 0
        %4191 = vmatprep.subr.bf16.mxu0 0
        %4192 = vmatpush1.bf16.msra.mxu0 0
        %4193 = vmatprep.subr.bf16.mxu0 0
        %4194 = vmatpush1.bf16.msra.mxu0 0
        %4195 = vmatprep.subr.bf16.mxu0 0
        %4196 = vmatpush1.bf16.msra.mxu0 0
        %4197 = vmatprep.subr.bf16.mxu0 0
        %4198 = vmatpush1.bf16.msra.mxu0 0
        %4199 = vmatprep.subr.bf16.mxu0 0
        %4200 = vmatpush1.bf16.msra.mxu0 0
        %4201 = vmatprep.mubr.bf16.mxu0 0
        %4202 = vmatmul.mubr.bf16.gmra.mrb[0].mxu0 %v4142
        %v4203 = vpop.f32.mrb[0].mxu0
        %v4204 = vadd.f32 0.0, %v4203
        %v4205 = vpop.f32.mrb[0].mxu0
        %v4206 = vpop.f32.mrb[0].mxu0
        %v4207 = vadd.f32 0.0, %v4206
        %v4208 = vpop.f32.mrb[0].mxu0
        %4209 = vmatprep.mubr.bf16.mxu0 0
        %4210 = vmatmul.mubr.bf16.gmra.mrb[0].mxu0 %v4145
        %v4211 = vpop.f32.mrb[0].mxu0
        %v4212 = vadd.f32 0.0, %v4211
        %v4213 = vpop.f32.mrb[0].mxu0
        %v4214 = vpop.f32.mrb[0].mxu0
        %v4215 = vadd.f32 0.0, %v4214
        %v4216 = vpop.f32.mrb[0].mxu0
        %4217 = vmatprep.mubr.bf16.mxu0 0
        %4218 = vmatmul.mubr.bf16.gmra.mrb[0].mxu0 %v4148
        %v4219 = vpop.f32.mrb[0].mxu0
        %v4220 = vadd.f32 0.0, %v4219
        %v4221 = vpop.f32.mrb[0].mxu0
        %v4222 = vpop.f32.mrb[0].mxu0
        %v4223 = vadd.f32 0.0, %v4222
        %v4224 = vpop.f32.mrb[0].mxu0
        %4225 = vmatprep.mubr.bf16.mxu0 0
        %4226 = vmatmul.mubr.bf16.gmra.mrb[0].mxu0 %v4151
        %v4227 = vpop.f32.mrb[0].mxu0
        %v4228 = vadd.f32 0.0, %v4227
        %v4229 = vpop.f32.mrb[0].mxu0
        %v4230 = vpop.f32.mrb[0].mxu0
        %v4231 = vadd.f32 0.0, %v4230
        %v4232 = vpop.f32.mrb[0].mxu0
        %4233 = vmatprep.mubr.bf16.mxu0 0
        %4234 = vmatmul.mubr.bf16.gmra.mrb[0].mxu0 %v4154
        %v4235 = vpop.f32.mrb[0].mxu0
        %v4236 = vadd.f32 0.0, %v4235
        %v4237 = vpop.f32.mrb[0].mxu0
        %v4238 = vpop.f32.mrb[0].mxu0
        %v4239 = vadd.f32 0.0, %v4238
        %v4240 = vpop.f32.mrb[0].mxu0
        %4241 = vmatprep.mubr.bf16.mxu0 0
        %4242 = vmatmul.mubr.bf16.gmra.mrb[0].mxu0 %v4157
        %v4243 = vpop.f32.mrb[0].mxu0
        %v4244 = vadd.f32 0.0, %v4243
        %v4245 = vpop.f32.mrb[0].mxu0
        %v4246 = vpop.f32.mrb[0].mxu0
        %v4247 = vadd.f32 0.0, %v4246
        %v4248 = vpop.f32.mrb[0].mxu0
        %4249 = vmatprep.mubr.bf16.mxu0 0
        %4250 = vmatmul.mubr.bf16.gmra.mrb[0].mxu0 %v4160
        %v4251 = vpop.f32.mrb[0].mxu0
        %v4252 = vadd.f32 0.0, %v4251
        %v4253 = vpop.f32.mrb[0].mxu0
        %v4254 = vpop.f32.mrb[0].mxu0
        %v4255 = vadd.f32 0.0, %v4254
        %v4256 = vpop.f32.mrb[0].mxu0
        %4257 = vmatprep.mubr.bf16.mxu0 0
        %4258 = vmatmul.mubr.bf16.gmra.mrb[0].mxu0 %v4163
        %v4259 = vpop.f32.mrb[0].mxu0
        %v4260 = vadd.f32 0.0, %v4259
        %v4261 = vpop.f32.mrb[0].mxu0
        %v4262 = vpop.f32.mrb[0].mxu0
        %v4263 = vadd.f32 0.0, %v4262
        %v4264 = vpop.f32.mrb[0].mxu0
        %4265 = vdwg.mxu0
        %s4266 = sadd.s32 %s4081, 1
        %s4267 = smul.u32 %s4266, 16
        %s4268 = scalar_lea.vmem [#allocation4], %s4267
        %v4269 = vld [vmem:[%s4268 + $0x1] sm:$0xff]
        %v4270 = vld [vmem:[%s4268 + $0x11] sm:$0xff]
        %v4271 = vld [vmem:[%s4268 + $0x21] sm:$0xff]
        %v4272 = vld [vmem:[%s4268 + $0x31] sm:$0xff]
        %v4289 = vcombine.high %v4204, %v4204
        %v4291 = vunpack.c.l.s4 1983009808
        %v4292 = vunpack.c.0.s8 %v4291
        %v4293 = vlaneseq
        %v4294 = vshrl.u32 %v4293, 7
        %v4295 = vsub.s32 %v4292, %v4294
        %v4296 = vrot.slane %v4204, %v4295
        %v4298 = vunpack.c.l.s4 1983009808
        %v4299 = vunpack.c.0.s8 %v4298
        %v4300 = vlaneseq
        %v4301 = vshrl.u32 %v4300, 7
        %v4302 = vsub.s32 %v4299, %v4301
        %v4303 = vrot.slane %v4289, %v4302
        %v4304 = vcombine.high %v4296, %v4296
        %v4305 = vcombine.high %v4303, %v4303
        %v4306 = vcombine.high %v4207, %v4207
        %v4308 = vunpack.c.l.s4 1983009808
        %v4309 = vunpack.c.0.s8 %v4308
        %v4310 = vlaneseq
        %v4311 = vshrl.u32 %v4310, 7
        %v4312 = vsub.s32 %v4309, %v4311
        %v4313 = vrot.slane %v4207, %v4312
        %v4315 = vunpack.c.l.s4 1983009808
        %v4316 = vunpack.c.0.s8 %v4315
        %v4317 = vlaneseq
        %v4318 = vshrl.u32 %v4317, 7
        %v4319 = vsub.s32 %v4316, %v4318
        %v4320 = vrot.slane %v4306, %v4319
        %v4321 = vcombine.high %v4313, %v4313
        %v4322 = vcombine.high %v4320, %v4320
        %v4323 = vcombine.high %v4212, %v4212
        %v4325 = vunpack.c.l.s4 1983009808
        %v4326 = vunpack.c.0.s8 %v4325
        %v4327 = vlaneseq
        %v4328 = vshrl.u32 %v4327, 7
        %v4329 = vsub.s32 %v4326, %v4328
        %v4330 = vrot.slane %v4212, %v4329
        %v4332 = vunpack.c.l.s4 1983009808
        %v4333 = vunpack.c.0.s8 %v4332
        %v4334 = vlaneseq
        %v4335 = vshrl.u32 %v4334, 7
        %v4336 = vsub.s32 %v4333, %v4335
        %v4337 = vrot.slane %v4323, %v4336
        %v4338 = vcombine.high %v4330, %v4330
        %v4339 = vcombine.high %v4337, %v4337
        %v4340 = vcombine.high %v4215, %v4215
        %v4342 = vunpack.c.l.s4 1983009808
        %v4343 = vunpack.c.0.s8 %v4342
        %v4344 = vlaneseq
        %v4345 = vshrl.u32 %v4344, 7
        %v4346 = vsub.s32 %v4343, %v4345
        %v4347 = vrot.slane %v4215, %v4346
        %v4349 = vunpack.c.l.s4 1983009808
        %v4350 = vunpack.c.0.s8 %v4349
        %v4351 = vlaneseq
        %v4352 = vshrl.u32 %v4351, 7
        %v4353 = vsub.s32 %v4350, %v4352
        %v4354 = vrot.slane %v4340, %v4353
        %v4355 = vcombine.high %v4347, %v4347
        %v4356 = vcombine.high %v4354, %v4354
        %v4357 = vcombine.high %v4220, %v4220
        %v4359 = vunpack.c.l.s4 1983009808
        %v4360 = vunpack.c.0.s8 %v4359
        %v4361 = vlaneseq
        %v4362 = vshrl.u32 %v4361, 7
        %v4363 = vsub.s32 %v4360, %v4362
        %v4364 = vrot.slane %v4220, %v4363
        %v4366 = vunpack.c.l.s4 1983009808
        %v4367 = vunpack.c.0.s8 %v4366
        %v4368 = vlaneseq
        %v4369 = vshrl.u32 %v4368, 7
        %v4370 = vsub.s32 %v4367, %v4369
        %v4371 = vrot.slane %v4357, %v4370
        %v4372 = vcombine.high %v4364, %v4364
        %v4373 = vcombine.high %v4371, %v4371
        %v4374 = vcombine.high %v4223, %v4223
        %v4376 = vunpack.c.l.s4 1983009808
        %v4377 = vunpack.c.0.s8 %v4376
        %v4378 = vlaneseq
        %v4379 = vshrl.u32 %v4378, 7
        %v4380 = vsub.s32 %v4377, %v4379
        %v4381 = vrot.slane %v4223, %v4380
        %v4383 = vunpack.c.l.s4 1983009808
        %v4384 = vunpack.c.0.s8 %v4383
        %v4385 = vlaneseq
        %v4386 = vshrl.u32 %v4385, 7
        %v4387 = vsub.s32 %v4384, %v4386
        %v4388 = vrot.slane %v4374, %v4387
        %v4389 = vcombine.high %v4381, %v4381
        %v4390 = vcombine.high %v4388, %v4388
        %v4391 = vcombine.high %v4228, %v4228
        %v4393 = vunpack.c.l.s4 1983009808
        %v4394 = vunpack.c.0.s8 %v4393
        %v4395 = vlaneseq
        %v4396 = vshrl.u32 %v4395, 7
        %v4397 = vsub.s32 %v4394, %v4396
        %v4398 = vrot.slane %v4228, %v4397
        %v4400 = vunpack.c.l.s4 1983009808
        %v4401 = vunpack.c.0.s8 %v4400
        %v4402 = vlaneseq
        %v4403 = vshrl.u32 %v4402, 7
        %v4404 = vsub.s32 %v4401, %v4403
        %v4405 = vrot.slane %v4391, %v4404
        %v4406 = vcombine.high %v4398, %v4398
        %v4407 = vcombine.high %v4405, %v4405
        %v4408 = vcombine.high %v4231, %v4231
        %v4410 = vunpack.c.l.s4 1983009808
        %v4411 = vunpack.c.0.s8 %v4410
        %v4412 = vlaneseq
        %v4413 = vshrl.u32 %v4412, 7
        %v4414 = vsub.s32 %v4411, %v4413
        %v4415 = vrot.slane %v4231, %v4414
        %v4417 = vunpack.c.l.s4 1983009808
        %v4418 = vunpack.c.0.s8 %v4417
        %v4419 = vlaneseq
        %v4420 = vshrl.u32 %v4419, 7
        %v4421 = vsub.s32 %v4418, %v4420
        %v4422 = vrot.slane %v4408, %v4421
        %v4423 = vcombine.high %v4415, %v4415
        %v4424 = vcombine.high %v4422, %v4422
        %v4425 = vcombine.high %v4236, %v4236
        %v4427 = vunpack.c.l.s4 1983009808
        %v4428 = vunpack.c.0.s8 %v4427
        %v4429 = vlaneseq
        %v4430 = vshrl.u32 %v4429, 7
        %v4431 = vsub.s32 %v4428, %v4430
        %v4432 = vrot.slane %v4236, %v4431
        %v4434 = vunpack.c.l.s4 1983009808
        %v4435 = vunpack.c.0.s8 %v4434
        %v4436 = vlaneseq
        %v4437 = vshrl.u32 %v4436, 7
        %v4438 = vsub.s32 %v4435, %v4437
        %v4439 = vrot.slane %v4425, %v4438
        %v4440 = vcombine.high %v4432, %v4432
        %v4441 = vcombine.high %v4439, %v4439
        %v4442 = vcombine.high %v4239, %v4239
        %v4444 = vunpack.c.l.s4 1983009808
        %v4445 = vunpack.c.0.s8 %v4444
        %v4446 = vlaneseq
        %v4447 = vshrl.u32 %v4446, 7
        %v4448 = vsub.s32 %v4445, %v4447
        %v4449 = vrot.slane %v4239, %v4448
        %v4451 = vunpack.c.l.s4 1983009808
        %v4452 = vunpack.c.0.s8 %v4451
        %v4453 = vlaneseq
        %v4454 = vshrl.u32 %v4453, 7
        %v4455 = vsub.s32 %v4452, %v4454
        %v4456 = vrot.slane %v4442, %v4455
        %v4457 = vcombine.high %v4449, %v4449
        %v4458 = vcombine.high %v4456, %v4456
        %v4459 = vcombine.high %v4244, %v4244
        %v4461 = vunpack.c.l.s4 1983009808
        %v4462 = vunpack.c.0.s8 %v4461
        %v4463 = vlaneseq
        %v4464 = vshrl.u32 %v4463, 7
        %v4465 = vsub.s32 %v4462, %v4464
        %v4466 = vrot.slane %v4244, %v4465
        %v4468 = vunpack.c.l.s4 1983009808
        %v4469 = vunpack.c.0.s8 %v4468
        %v4470 = vlaneseq
        %v4471 = vshrl.u32 %v4470, 7
        %v4472 = vsub.s32 %v4469, %v4471
        %v4473 = vrot.slane %v4459, %v4472
        %v4474 = vcombine.high %v4466, %v4466
        %v4475 = vcombine.high %v4473, %v4473
        %v4476 = vcombine.high %v4247, %v4247
        %v4478 = vunpack.c.l.s4 1983009808
        %v4479 = vunpack.c.0.s8 %v4478
        %v4480 = vlaneseq
        %v4481 = vshrl.u32 %v4480, 7
        %v4482 = vsub.s32 %v4479, %v4481
        %v4483 = vrot.slane %v4247, %v4482
        %v4485 = vunpack.c.l.s4 1983009808
        %v4486 = vunpack.c.0.s8 %v4485
        %v4487 = vlaneseq
        %v4488 = vshrl.u32 %v4487, 7
        %v4489 = vsub.s32 %v4486, %v4488
        %v4490 = vrot.slane %v4476, %v4489
        %v4491 = vcombine.high %v4483, %v4483
        %v4492 = vcombine.high %v4490, %v4490
        %v4493 = vcombine.high %v4252, %v4252
        %v4495 = vunpack.c.l.s4 1983009808
        %v4496 = vunpack.c.0.s8 %v4495
        %v4497 = vlaneseq
        %v4498 = vshrl.u32 %v4497, 7
        %v4499 = vsub.s32 %v4496, %v4498
        %v4500 = vrot.slane %v4252, %v4499
        %v4502 = vunpack.c.l.s4 1983009808
        %v4503 = vunpack.c.0.s8 %v4502
        %v4504 = vlaneseq
        %v4505 = vshrl.u32 %v4504, 7
        %v4506 = vsub.s32 %v4503, %v4505
        %v4507 = vrot.slane %v4493, %v4506
        %v4508 = vcombine.high %v4500, %v4500
        %v4509 = vcombine.high %v4507, %v4507
        %v4510 = vcombine.high %v4255, %v4255
        %v4512 = vunpack.c.l.s4 1983009808
        %v4513 = vunpack.c.0.s8 %v4512
        %v4514 = vlaneseq
        %v4515 = vshrl.u32 %v4514, 7
        %v4516 = vsub.s32 %v4513, %v4515
        %v4517 = vrot.slane %v4255, %v4516
        %v4519 = vunpack.c.l.s4 1983009808
        %v4520 = vunpack.c.0.s8 %v4519
        %v4521 = vlaneseq
        %v4522 = vshrl.u32 %v4521, 7
        %v4523 = vsub.s32 %v4520, %v4522
        %v4524 = vrot.slane %v4510, %v4523
        %v4525 = vcombine.high %v4517, %v4517
        %v4526 = vcombine.high %v4524, %v4524
        %v4527 = vcombine.high %v4260, %v4260
        %v4529 = vunpack.c.l.s4 1983009808
        %v4530 = vunpack.c.0.s8 %v4529
        %v4531 = vlaneseq
        %v4532 = vshrl.u32 %v4531, 7
        %v4533 = vsub.s32 %v4530, %v4532
        %v4534 = vrot.slane %v4260, %v4533
        %v4536 = vunpack.c.l.s4 1983009808
        %v4537 = vunpack.c.0.s8 %v4536
        %v4538 = vlaneseq
        %v4539 = vshrl.u32 %v4538, 7
        %v4540 = vsub.s32 %v4537, %v4539
        %v4541 = vrot.slane %v4527, %v4540
        %v4542 = vcombine.high %v4534, %v4534
        %v4543 = vcombine.high %v4541, %v4541
        %v4544 = vcombine.high %v4263, %v4263
        %v4546 = vunpack.c.l.s4 1983009808
        %v4547 = vunpack.c.0.s8 %v4546
        %v4548 = vlaneseq
        %v4549 = vshrl.u32 %v4548, 7
        %v4550 = vsub.s32 %v4547, %v4549
        %v4551 = vrot.slane %v4263, %v4550
        %v4553 = vunpack.c.l.s4 1983009808
        %v4554 = vunpack.c.0.s8 %v4553
        %v4555 = vlaneseq
        %v4556 = vshrl.u32 %v4555, 7
        %v4557 = vsub.s32 %v4554, %v4556
        %v4558 = vrot.slane %v4544, %v4557
        %v4559 = vcombine.high %v4551, %v4551
        %v4560 = vcombine.high %v4558, %v4558
        %v4629 = vcombine.high %v4269, %v4269
        %v4631 = vunpack.c.l.s4 1966171168
        %v4632 = vunpack.c.0.s8 %v4631
        %v4633 = vlaneseq
        %v4634 = vshrl.u32 %v4633, 7
        %v4635 = vsub.s32 %v4632, %v4634
        %v4636 = vrot.slane %v4269, %v4635
        %v4638 = vunpack.c.l.s4 1966171168
        %v4639 = vunpack.c.0.s8 %v4638
        %v4640 = vlaneseq
        %v4641 = vshrl.u32 %v4640, 7
        %v4642 = vsub.s32 %v4639, %v4641
        %v4643 = vrot.slane %v4629, %v4642
        %v4644 = vcombine.high %v4636, %v4636
        %v4645 = vcombine.high %v4643, %v4643
        %v4647 = vunpack.c.l.s4 1966171168
        %v4648 = vunpack.c.0.s8 %v4647
        %v4649 = vlaneseq
        %v4650 = vshrl.u32 %v4649, 7
        %v4651 = vsub.s32 %v4648, %v4650
        %v4652 = vrot.slane %v4636, %v4651
        %v4654 = vunpack.c.l.s4 1966171168
        %v4655 = vunpack.c.0.s8 %v4654
        %v4656 = vlaneseq
        %v4657 = vshrl.u32 %v4656, 7
        %v4658 = vsub.s32 %v4655, %v4657
        %v4659 = vrot.slane %v4643, %v4658
        %v4661 = vunpack.c.l.s4 1966171168
        %v4662 = vunpack.c.0.s8 %v4661
        %v4663 = vlaneseq
        %v4664 = vshrl.u32 %v4663, 7
        %v4665 = vsub.s32 %v4662, %v4664
        %v4666 = vrot.slane %v4644, %v4665
        %v4668 = vunpack.c.l.s4 1966171168
        %v4669 = vunpack.c.0.s8 %v4668
        %v4670 = vlaneseq
        %v4671 = vshrl.u32 %v4670, 7
        %v4672 = vsub.s32 %v4669, %v4671
        %v4673 = vrot.slane %v4645, %v4672
        %v4674 = vcombine.high %v4652, %v4652
        %v4675 = vcombine.high %v4659, %v4659
        %v4676 = vcombine.high %v4666, %v4666
        %v4677 = vcombine.high %v4673, %v4673
        %v4678 = vcombine.high %v4270, %v4270
        %v4680 = vunpack.c.l.s4 1966171168
        %v4681 = vunpack.c.0.s8 %v4680
        %v4682 = vlaneseq
        %v4683 = vshrl.u32 %v4682, 7
        %v4684 = vsub.s32 %v4681, %v4683
        %v4685 = vrot.slane %v4270, %v4684
        %v4687 = vunpack.c.l.s4 1966171168
        %v4688 = vunpack.c.0.s8 %v4687
        %v4689 = vlaneseq
        %v4690 = vshrl.u32 %v4689, 7
        %v4691 = vsub.s32 %v4688, %v4690
        %v4692 = vrot.slane %v4678, %v4691
        %v4693 = vcombine.high %v4685, %v4685
        %v4694 = vcombine.high %v4692, %v4692
        %v4696 = vunpack.c.l.s4 1966171168
        %v4697 = vunpack.c.0.s8 %v4696
        %v4698 = vlaneseq
        %v4699 = vshrl.u32 %v4698, 7
        %v4700 = vsub.s32 %v4697, %v4699
        %v4701 = vrot.slane %v4685, %v4700
        %v4703 = vunpack.c.l.s4 1966171168
        %v4704 = vunpack.c.0.s8 %v4703
        %v4705 = vlaneseq
        %v4706 = vshrl.u32 %v4705, 7
        %v4707 = vsub.s32 %v4704, %v4706
        %v4708 = vrot.slane %v4692, %v4707
        %v4710 = vunpack.c.l.s4 1966171168
        %v4711 = vunpack.c.0.s8 %v4710
        %v4712 = vlaneseq
        %v4713 = vshrl.u32 %v4712, 7
        %v4714 = vsub.s32 %v4711, %v4713
        %v4715 = vrot.slane %v4693, %v4714
        %v4717 = vunpack.c.l.s4 1966171168
        %v4718 = vunpack.c.0.s8 %v4717
        %v4719 = vlaneseq
        %v4720 = vshrl.u32 %v4719, 7
        %v4721 = vsub.s32 %v4718, %v4720
        %v4722 = vrot.slane %v4694, %v4721
        %v4723 = vcombine.high %v4701, %v4701
        %v4724 = vcombine.high %v4708, %v4708
        %v4725 = vcombine.high %v4715, %v4715
        %v4726 = vcombine.high %v4722, %v4722
        %v4727 = vcombine.high %v4271, %v4271
        %v4729 = vunpack.c.l.s4 1966171168
        %v4730 = vunpack.c.0.s8 %v4729
        %v4731 = vlaneseq
        %v4732 = vshrl.u32 %v4731, 7
        %v4733 = vsub.s32 %v4730, %v4732
        %v4734 = vrot.slane %v4271, %v4733
        %v4736 = vunpack.c.l.s4 1966171168
        %v4737 = vunpack.c.0.s8 %v4736
        %v4738 = vlaneseq
        %v4739 = vshrl.u32 %v4738, 7
        %v4740 = vsub.s32 %v4737, %v4739
        %v4741 = vrot.slane %v4727, %v4740
        %v4742 = vcombine.high %v4734, %v4734
        %v4743 = vcombine.high %v4741, %v4741
        %v4745 = vunpack.c.l.s4 1966171168
        %v4746 = vunpack.c.0.s8 %v4745
        %v4747 = vlaneseq
        %v4748 = vshrl.u32 %v4747, 7
        %v4749 = vsub.s32 %v4746, %v4748
        %v4750 = vrot.slane %v4734, %v4749
        %v4752 = vunpack.c.l.s4 1966171168
        %v4753 = vunpack.c.0.s8 %v4752
        %v4754 = vlaneseq
        %v4755 = vshrl.u32 %v4754, 7
        %v4756 = vsub.s32 %v4753, %v4755
        %v4757 = vrot.slane %v4741, %v4756
        %v4759 = vunpack.c.l.s4 1966171168
        %v4760 = vunpack.c.0.s8 %v4759
        %v4761 = vlaneseq
        %v4762 = vshrl.u32 %v4761, 7
        %v4763 = vsub.s32 %v4760, %v4762
        %v4764 = vrot.slane %v4742, %v4763
        %v4766 = vunpack.c.l.s4 1966171168
        %v4767 = vunpack.c.0.s8 %v4766
        %v4768 = vlaneseq
        %v4769 = vshrl.u32 %v4768, 7
        %v4770 = vsub.s32 %v4767, %v4769
        %v4771 = vrot.slane %v4743, %v4770
        %v4772 = vcombine.high %v4750, %v4750
        %v4773 = vcombine.high %v4757, %v4757
        %v4774 = vcombine.high %v4764, %v4764
        %v4775 = vcombine.high %v4771, %v4771
        %v4776 = vcombine.high %v4272, %v4272
        %v4778 = vunpack.c.l.s4 1966171168
        %v4779 = vunpack.c.0.s8 %v4778
        %v4780 = vlaneseq
        %v4781 = vshrl.u32 %v4780, 7
        %v4782 = vsub.s32 %v4779, %v4781
        %v4783 = vrot.slane %v4272, %v4782
        %v4785 = vunpack.c.l.s4 1966171168
        %v4786 = vunpack.c.0.s8 %v4785
        %v4787 = vlaneseq
        %v4788 = vshrl.u32 %v4787, 7
        %v4789 = vsub.s32 %v4786, %v4788
        %v4790 = vrot.slane %v4776, %v4789
        %v4791 = vcombine.high %v4783, %v4783
        %v4792 = vcombine.high %v4790, %v4790
        %v4794 = vunpack.c.l.s4 1966171168
        %v4795 = vunpack.c.0.s8 %v4794
        %v4796 = vlaneseq
        %v4797 = vshrl.u32 %v4796, 7
        %v4798 = vsub.s32 %v4795, %v4797
        %v4799 = vrot.slane %v4783, %v4798
        %v4801 = vunpack.c.l.s4 1966171168
        %v4802 = vunpack.c.0.s8 %v4801
        %v4803 = vlaneseq
        %v4804 = vshrl.u32 %v4803, 7
        %v4805 = vsub.s32 %v4802, %v4804
        %v4806 = vrot.slane %v4790, %v4805
        %v4808 = vunpack.c.l.s4 1966171168
        %v4809 = vunpack.c.0.s8 %v4808
        %v4810 = vlaneseq
        %v4811 = vshrl.u32 %v4810, 7
        %v4812 = vsub.s32 %v4809, %v4811
        %v4813 = vrot.slane %v4791, %v4812
        %v4815 = vunpack.c.l.s4 1966171168
        %v4816 = vunpack.c.0.s8 %v4815
        %v4817 = vlaneseq
        %v4818 = vshrl.u32 %v4817, 7
        %v4819 = vsub.s32 %v4816, %v4818
        %v4820 = vrot.slane %v4792, %v4819
        %v4821 = vcombine.high %v4799, %v4799
        %v4822 = vcombine.high %v4806, %v4806
        %v4823 = vcombine.high %v4813, %v4813
        %v4824 = vcombine.high %v4820, %v4820
        %v4825 = vlaneseq
        %v4826 = vshrl.u32 %v4825, 7
        %v4827 = vsub.s32 0, %v4826
        %v4828 = vrot.slane %v4652, %v4827
        %v4829 = vlaneseq
        %v4830 = vshrl.u32 %v4829, 7
        %v4831 = vsub.s32 0, %v4830
        %v4832 = vrot.slane %v4666, %v4831
        %v4833 = vlaneseq
        %v4834 = vshrl.u32 %v4833, 7
        %v4835 = vsub.s32 0, %v4834
        %v4836 = vrot.slane %v4674, %v4835
        %v4837 = vlaneseq
        %v4838 = vshrl.u32 %v4837, 7
        %v4839 = vsub.s32 0, %v4838
        %v4840 = vrot.slane %v4676, %v4839
        %v4841 = vlaneseq
        %v4842 = vshrl.u32 %v4841, 7
        %v4843 = vsub.s32 0, %v4842
        %v4844 = vrot.slane %v4659, %v4843
        %v4845 = vlaneseq
        %v4846 = vshrl.u32 %v4845, 7
        %v4847 = vsub.s32 0, %v4846
        %v4848 = vrot.slane %v4673, %v4847
        %v4849 = vlaneseq
        %v4850 = vshrl.u32 %v4849, 7
        %v4851 = vsub.s32 0, %v4850
        %v4852 = vrot.slane %v4675, %v4851
        %v4853 = vlaneseq
        %v4854 = vshrl.u32 %v4853, 7
        %v4855 = vsub.s32 0, %v4854
        %v4856 = vrot.slane %v4677, %v4855
        %v4857 = vlaneseq
        %v4858 = vshrl.u32 %v4857, 7
        %v4859 = vsub.s32 0, %v4858
        %v4860 = vrot.slane %v4701, %v4859
        %v4861 = vlaneseq
        %v4862 = vshrl.u32 %v4861, 7
        %v4863 = vsub.s32 0, %v4862
        %v4864 = vrot.slane %v4715, %v4863
        %v4865 = vlaneseq
        %v4866 = vshrl.u32 %v4865, 7
        %v4867 = vsub.s32 0, %v4866
        %v4868 = vrot.slane %v4723, %v4867
        %v4869 = vlaneseq
        %v4870 = vshrl.u32 %v4869, 7
        %v4871 = vsub.s32 0, %v4870
        %v4872 = vrot.slane %v4725, %v4871
        %v4873 = vlaneseq
        %v4874 = vshrl.u32 %v4873, 7
        %v4875 = vsub.s32 0, %v4874
        %v4876 = vrot.slane %v4708, %v4875
        %v4877 = vlaneseq
        %v4878 = vshrl.u32 %v4877, 7
        %v4879 = vsub.s32 0, %v4878
        %v4880 = vrot.slane %v4722, %v4879
        %v4881 = vlaneseq
        %v4882 = vshrl.u32 %v4881, 7
        %v4883 = vsub.s32 0, %v4882
        %v4884 = vrot.slane %v4724, %v4883
        %v4885 = vlaneseq
        %v4886 = vshrl.u32 %v4885, 7
        %v4887 = vsub.s32 0, %v4886
        %v4888 = vrot.slane %v4726, %v4887
        %v4889 = vlaneseq
        %v4890 = vshrl.u32 %v4889, 7
        %v4891 = vsub.s32 0, %v4890
        %v4892 = vrot.slane %v4750, %v4891
        %v4893 = vlaneseq
        %v4894 = vshrl.u32 %v4893, 7
        %v4895 = vsub.s32 0, %v4894
        %v4896 = vrot.slane %v4764, %v4895
        %v4897 = vlaneseq
        %v4898 = vshrl.u32 %v4897, 7
        %v4899 = vsub.s32 0, %v4898
        %v4900 = vrot.slane %v4772, %v4899
        %v4901 = vlaneseq
        %v4902 = vshrl.u32 %v4901, 7
        %v4903 = vsub.s32 0, %v4902
        %v4904 = vrot.slane %v4774, %v4903
        %v4905 = vlaneseq
        %v4906 = vshrl.u32 %v4905, 7
        %v4907 = vsub.s32 0, %v4906
        %v4908 = vrot.slane %v4757, %v4907
        %v4909 = vlaneseq
        %v4910 = vshrl.u32 %v4909, 7
        %v4911 = vsub.s32 0, %v4910
        %v4912 = vrot.slane %v4771, %v4911
        %v4913 = vlaneseq
        %v4914 = vshrl.u32 %v4913, 7
        %v4915 = vsub.s32 0, %v4914
        %v4916 = vrot.slane %v4773, %v4915
        %v4917 = vlaneseq
        %v4918 = vshrl.u32 %v4917, 7
        %v4919 = vsub.s32 0, %v4918
        %v4920 = vrot.slane %v4775, %v4919
        %v4921 = vlaneseq
        %v4922 = vshrl.u32 %v4921, 7
        %v4923 = vsub.s32 0, %v4922
        %v4924 = vrot.slane %v4799, %v4923
        %v4925 = vlaneseq
        %v4926 = vshrl.u32 %v4925, 7
        %v4927 = vsub.s32 0, %v4926
        %v4928 = vrot.slane %v4813, %v4927
        %v4929 = vlaneseq
        %v4930 = vshrl.u32 %v4929, 7
        %v4931 = vsub.s32 0, %v4930
        %v4932 = vrot.slane %v4821, %v4931
        %v4933 = vlaneseq
        %v4934 = vshrl.u32 %v4933, 7
        %v4935 = vsub.s32 0, %v4934
        %v4936 = vrot.slane %v4823, %v4935
        %v4937 = vlaneseq
        %v4938 = vshrl.u32 %v4937, 7
        %v4939 = vsub.s32 0, %v4938
        %v4940 = vrot.slane %v4806, %v4939
        %v4941 = vlaneseq
        %v4942 = vshrl.u32 %v4941, 7
        %v4943 = vsub.s32 0, %v4942
        %v4944 = vrot.slane %v4820, %v4943
        %v4945 = vlaneseq
        %v4946 = vshrl.u32 %v4945, 7
        %v4947 = vsub.s32 0, %v4946
        %v4948 = vrot.slane %v4822, %v4947
        %v4949 = vlaneseq
        %v4950 = vshrl.u32 %v4949, 7
        %v4951 = vsub.s32 0, %v4950
        %v4952 = vrot.slane %v4824, %v4951
        %v4985 = vadd.f32 %v4296, %v4828
        %v4986 = vadd.f32 %v4304, %v4832
        %v4987 = vadd.f32 %v4303, %v4836
        %v4988 = vadd.f32 %v4305, %v4840
        %v4989 = vadd.f32 %v4313, %v4844
        %v4990 = vadd.f32 %v4321, %v4848
        %v4991 = vadd.f32 %v4320, %v4852
        %v4992 = vadd.f32 %v4322, %v4856
        %v4993 = vadd.f32 %v4330, %v4828
        %v4994 = vadd.f32 %v4338, %v4832
        %v4995 = vadd.f32 %v4337, %v4836
        %v4996 = vadd.f32 %v4339, %v4840
        %v4997 = vadd.f32 %v4347, %v4844
        %v4998 = vadd.f32 %v4355, %v4848
        %v4999 = vadd.f32 %v4354, %v4852
        %v5000 = vadd.f32 %v4356, %v4856
        %v5001 = vadd.f32 %v4364, %v4860
        %v5002 = vadd.f32 %v4372, %v4864
        %v5003 = vadd.f32 %v4371, %v4868
        %v5004 = vadd.f32 %v4373, %v4872
        %v5005 = vadd.f32 %v4381, %v4876
        %v5006 = vadd.f32 %v4389, %v4880
        %v5007 = vadd.f32 %v4388, %v4884
        %v5008 = vadd.f32 %v4390, %v4888
        %v5009 = vadd.f32 %v4398, %v4860
        %v5010 = vadd.f32 %v4406, %v4864
        %v5011 = vadd.f32 %v4405, %v4868
        %v5012 = vadd.f32 %v4407, %v4872
        %v5013 = vadd.f32 %v4415, %v4876
        %v5014 = vadd.f32 %v4423, %v4880
        %v5015 = vadd.f32 %v4422, %v4884
        %v5016 = vadd.f32 %v4424, %v4888
        %v5017 = vadd.f32 %v4432, %v4892
        %v5018 = vadd.f32 %v4440, %v4896
        %v5019 = vadd.f32 %v4439, %v4900
        %v5020 = vadd.f32 %v4441, %v4904
        %v5021 = vadd.f32 %v4449, %v4908
        %v5022 = vadd.f32 %v4457, %v4912
        %v5023 = vadd.f32 %v4456, %v4916
        %v5024 = vadd.f32 %v4458, %v4920
        %v5025 = vadd.f32 %v4466, %v4892
        %v5026 = vadd.f32 %v4474, %v4896
        %v5027 = vadd.f32 %v4473, %v4900
        %v5028 = vadd.f32 %v4475, %v4904
        %v5029 = vadd.f32 %v4483, %v4908
        %v5030 = vadd.f32 %v4491, %v4912
        %v5031 = vadd.f32 %v4490, %v4916
        %v5032 = vadd.f32 %v4492, %v4920
        %v5033 = vadd.f32 %v4500, %v4924
        %v5034 = vadd.f32 %v4508, %v4928
        %v5035 = vadd.f32 %v4507, %v4932
        %v5036 = vadd.f32 %v4509, %v4936
        %v5037 = vadd.f32 %v4517, %v4940
        %v5038 = vadd.f32 %v4525, %v4944
        %v5039 = vadd.f32 %v4524, %v4948
        %v5040 = vadd.f32 %v4526, %v4952
        %v5041 = vadd.f32 %v4534, %v4924
        %v5042 = vadd.f32 %v4542, %v4928
        %v5043 = vadd.f32 %v4541, %v4932
        %v5044 = vadd.f32 %v4543, %v4936
        %v5045 = vadd.f32 %v4551, %v4940
        %v5046 = vadd.f32 %v4559, %v4944
        %v5047 = vadd.f32 %v4558, %v4948
        %v5048 = vadd.f32 %v4560, %v4952
        %v5113 = vcombine.low %v4985, %v4986
        %v5114 = vcombine.low %v4987, %v4988
        %v5116 = vunpack.c.l.s4 1983009808
        %v5117 = vunpack.c.0.s8 %v5116
        %v5118 = vlaneseq
        %v5119 = vshrl.u32 %v5118, 7
        %v5120 = vsub.s32 %v5117, %v5119
        %v5121 = vrot.slane %v5113, %v5120
        %v5123 = vunpack.c.l.s4 1983009808
        %v5124 = vunpack.c.0.s8 %v5123
        %v5125 = vlaneseq
        %v5126 = vshrl.u32 %v5125, 7
        %v5127 = vsub.s32 %v5124, %v5126
        %v5128 = vrot.slane %v5114, %v5127
        %v5129 = vcombine.low %v5121, %v5128
        %v5130 = vcombine.low %v4989, %v4990
        %v5131 = vcombine.low %v4991, %v4992
        %v5133 = vunpack.c.l.s4 1983009808
        %v5134 = vunpack.c.0.s8 %v5133
        %v5135 = vlaneseq
        %v5136 = vshrl.u32 %v5135, 7
        %v5137 = vsub.s32 %v5134, %v5136
        %v5138 = vrot.slane %v5130, %v5137
        %v5140 = vunpack.c.l.s4 1983009808
        %v5141 = vunpack.c.0.s8 %v5140
        %v5142 = vlaneseq
        %v5143 = vshrl.u32 %v5142, 7
        %v5144 = vsub.s32 %v5141, %v5143
        %v5145 = vrot.slane %v5131, %v5144
        %v5146 = vcombine.low %v5138, %v5145
        %v5147 = vcombine.low %v4993, %v4994
        %v5148 = vcombine.low %v4995, %v4996
        %v5150 = vunpack.c.l.s4 1983009808
        %v5151 = vunpack.c.0.s8 %v5150
        %v5152 = vlaneseq
        %v5153 = vshrl.u32 %v5152, 7
        %v5154 = vsub.s32 %v5151, %v5153
        %v5155 = vrot.slane %v5147, %v5154
        %v5157 = vunpack.c.l.s4 1983009808
        %v5158 = vunpack.c.0.s8 %v5157
        %v5159 = vlaneseq
        %v5160 = vshrl.u32 %v5159, 7
        %v5161 = vsub.s32 %v5158, %v5160
        %v5162 = vrot.slane %v5148, %v5161
        %v5163 = vcombine.low %v5155, %v5162
        %v5164 = vcombine.low %v4997, %v4998
        %v5165 = vcombine.low %v4999, %v5000
        %v5167 = vunpack.c.l.s4 1983009808
        %v5168 = vunpack.c.0.s8 %v5167
        %v5169 = vlaneseq
        %v5170 = vshrl.u32 %v5169, 7
        %v5171 = vsub.s32 %v5168, %v5170
        %v5172 = vrot.slane %v5164, %v5171
        %v5174 = vunpack.c.l.s4 1983009808
        %v5175 = vunpack.c.0.s8 %v5174
        %v5176 = vlaneseq
        %v5177 = vshrl.u32 %v5176, 7
        %v5178 = vsub.s32 %v5175, %v5177
        %v5179 = vrot.slane %v5165, %v5178
        %v5180 = vcombine.low %v5172, %v5179
        %v5181 = vcombine.low %v5001, %v5002
        %v5182 = vcombine.low %v5003, %v5004
        %v5184 = vunpack.c.l.s4 1983009808
        %v5185 = vunpack.c.0.s8 %v5184
        %v5186 = vlaneseq
        %v5187 = vshrl.u32 %v5186, 7
        %v5188 = vsub.s32 %v5185, %v5187
        %v5189 = vrot.slane %v5181, %v5188
        %v5191 = vunpack.c.l.s4 1983009808
        %v5192 = vunpack.c.0.s8 %v5191
        %v5193 = vlaneseq
        %v5194 = vshrl.u32 %v5193, 7
        %v5195 = vsub.s32 %v5192, %v5194
        %v5196 = vrot.slane %v5182, %v5195
        %v5197 = vcombine.low %v5189, %v5196
        %v5198 = vcombine.low %v5005, %v5006
        %v5199 = vcombine.low %v5007, %v5008
        %v5201 = vunpack.c.l.s4 1983009808
        %v5202 = vunpack.c.0.s8 %v5201
        %v5203 = vlaneseq
        %v5204 = vshrl.u32 %v5203, 7
        %v5205 = vsub.s32 %v5202, %v5204
        %v5206 = vrot.slane %v5198, %v5205
        %v5208 = vunpack.c.l.s4 1983009808
        %v5209 = vunpack.c.0.s8 %v5208
        %v5210 = vlaneseq
        %v5211 = vshrl.u32 %v5210, 7
        %v5212 = vsub.s32 %v5209, %v5211
        %v5213 = vrot.slane %v5199, %v5212
        %v5214 = vcombine.low %v5206, %v5213
        %v5215 = vcombine.low %v5009, %v5010
        %v5216 = vcombine.low %v5011, %v5012
        %v5218 = vunpack.c.l.s4 1983009808
        %v5219 = vunpack.c.0.s8 %v5218
        %v5220 = vlaneseq
        %v5221 = vshrl.u32 %v5220, 7
        %v5222 = vsub.s32 %v5219, %v5221
        %v5223 = vrot.slane %v5215, %v5222
        %v5225 = vunpack.c.l.s4 1983009808
        %v5226 = vunpack.c.0.s8 %v5225
        %v5227 = vlaneseq
        %v5228 = vshrl.u32 %v5227, 7
        %v5229 = vsub.s32 %v5226, %v5228
        %v5230 = vrot.slane %v5216, %v5229
        %v5231 = vcombine.low %v5223, %v5230
        %v5232 = vcombine.low %v5013, %v5014
        %v5233 = vcombine.low %v5015, %v5016
        %v5235 = vunpack.c.l.s4 1983009808
        %v5236 = vunpack.c.0.s8 %v5235
        %v5237 = vlaneseq
        %v5238 = vshrl.u32 %v5237, 7
        %v5239 = vsub.s32 %v5236, %v5238
        %v5240 = vrot.slane %v5232, %v5239
        %v5242 = vunpack.c.l.s4 1983009808
        %v5243 = vunpack.c.0.s8 %v5242
        %v5244 = vlaneseq
        %v5245 = vshrl.u32 %v5244, 7
        %v5246 = vsub.s32 %v5243, %v5245
        %v5247 = vrot.slane %v5233, %v5246
        %v5248 = vcombine.low %v5240, %v5247
        %v5249 = vcombine.low %v5017, %v5018
        %v5250 = vcombine.low %v5019, %v5020
        %v5252 = vunpack.c.l.s4 1983009808
        %v5253 = vunpack.c.0.s8 %v5252
        %v5254 = vlaneseq
        %v5255 = vshrl.u32 %v5254, 7
        %v5256 = vsub.s32 %v5253, %v5255
        %v5257 = vrot.slane %v5249, %v5256
        %v5259 = vunpack.c.l.s4 1983009808
        %v5260 = vunpack.c.0.s8 %v5259
        %v5261 = vlaneseq
        %v5262 = vshrl.u32 %v5261, 7
        %v5263 = vsub.s32 %v5260, %v5262
        %v5264 = vrot.slane %v5250, %v5263
        %v5265 = vcombine.low %v5257, %v5264
        %v5266 = vcombine.low %v5021, %v5022
        %v5267 = vcombine.low %v5023, %v5024
        %v5269 = vunpack.c.l.s4 1983009808
        %v5270 = vunpack.c.0.s8 %v5269
        %v5271 = vlaneseq
        %v5272 = vshrl.u32 %v5271, 7
        %v5273 = vsub.s32 %v5270, %v5272
        %v5274 = vrot.slane %v5266, %v5273
        %v5276 = vunpack.c.l.s4 1983009808
        %v5277 = vunpack.c.0.s8 %v5276
        %v5278 = vlaneseq
        %v5279 = vshrl.u32 %v5278, 7
        %v5280 = vsub.s32 %v5277, %v5279
        %v5281 = vrot.slane %v5267, %v5280
        %v5282 = vcombine.low %v5274, %v5281
        %v5283 = vcombine.low %v5025, %v5026
        %v5284 = vcombine.low %v5027, %v5028
        %v5286 = vunpack.c.l.s4 1983009808
        %v5287 = vunpack.c.0.s8 %v5286
        %v5288 = vlaneseq
        %v5289 = vshrl.u32 %v5288, 7
        %v5290 = vsub.s32 %v5287, %v5289
        %v5291 = vrot.slane %v5283, %v5290
        %v5293 = vunpack.c.l.s4 1983009808
        %v5294 = vunpack.c.0.s8 %v5293
        %v5295 = vlaneseq
        %v5296 = vshrl.u32 %v5295, 7
        %v5297 = vsub.s32 %v5294, %v5296
        %v5298 = vrot.slane %v5284, %v5297
        %v5299 = vcombine.low %v5291, %v5298
        %v5300 = vcombine.low %v5029, %v5030
        %v5301 = vcombine.low %v5031, %v5032
        %v5303 = vunpack.c.l.s4 1983009808
        %v5304 = vunpack.c.0.s8 %v5303
        %v5305 = vlaneseq
        %v5306 = vshrl.u32 %v5305, 7
        %v5307 = vsub.s32 %v5304, %v5306
        %v5308 = vrot.slane %v5300, %v5307
        %v5310 = vunpack.c.l.s4 1983009808
        %v5311 = vunpack.c.0.s8 %v5310
        %v5312 = vlaneseq
        %v5313 = vshrl.u32 %v5312, 7
        %v5314 = vsub.s32 %v5311, %v5313
        %v5315 = vrot.slane %v5301, %v5314
        %v5316 = vcombine.low %v5308, %v5315
        %v5317 = vcombine.low %v5033, %v5034
        %v5318 = vcombine.low %v5035, %v5036
        %v5320 = vunpack.c.l.s4 1983009808
        %v5321 = vunpack.c.0.s8 %v5320
        %v5322 = vlaneseq
        %v5323 = vshrl.u32 %v5322, 7
        %v5324 = vsub.s32 %v5321, %v5323
        %v5325 = vrot.slane %v5317, %v5324
        %v5327 = vunpack.c.l.s4 1983009808
        %v5328 = vunpack.c.0.s8 %v5327
        %v5329 = vlaneseq
        %v5330 = vshrl.u32 %v5329, 7
        %v5331 = vsub.s32 %v5328, %v5330
        %v5332 = vrot.slane %v5318, %v5331
        %v5333 = vcombine.low %v5325, %v5332
        %v5334 = vcombine.low %v5037, %v5038
        %v5335 = vcombine.low %v5039, %v5040
        %v5337 = vunpack.c.l.s4 1983009808
        %v5338 = vunpack.c.0.s8 %v5337
        %v5339 = vlaneseq
        %v5340 = vshrl.u32 %v5339, 7
        %v5341 = vsub.s32 %v5338, %v5340
        %v5342 = vrot.slane %v5334, %v5341
        %v5344 = vunpack.c.l.s4 1983009808
        %v5345 = vunpack.c.0.s8 %v5344
        %v5346 = vlaneseq
        %v5347 = vshrl.u32 %v5346, 7
        %v5348 = vsub.s32 %v5345, %v5347
        %v5349 = vrot.slane %v5335, %v5348
        %v5350 = vcombine.low %v5342, %v5349
        %v5351 = vcombine.low %v5041, %v5042
        %v5352 = vcombine.low %v5043, %v5044
        %v5354 = vunpack.c.l.s4 1983009808
        %v5355 = vunpack.c.0.s8 %v5354
        %v5356 = vlaneseq
        %v5357 = vshrl.u32 %v5356, 7
        %v5358 = vsub.s32 %v5355, %v5357
        %v5359 = vrot.slane %v5351, %v5358
        %v5361 = vunpack.c.l.s4 1983009808
        %v5362 = vunpack.c.0.s8 %v5361
        %v5363 = vlaneseq
        %v5364 = vshrl.u32 %v5363, 7
        %v5365 = vsub.s32 %v5362, %v5364
        %v5366 = vrot.slane %v5352, %v5365
        %v5367 = vcombine.low %v5359, %v5366
        %v5368 = vcombine.low %v5045, %v5046
        %v5369 = vcombine.low %v5047, %v5048
        %v5371 = vunpack.c.l.s4 1983009808
        %v5372 = vunpack.c.0.s8 %v5371
        %v5373 = vlaneseq
        %v5374 = vshrl.u32 %v5373, 7
        %v5375 = vsub.s32 %v5372, %v5374
        %v5376 = vrot.slane %v5368, %v5375
        %v5378 = vunpack.c.l.s4 1983009808
        %v5379 = vunpack.c.0.s8 %v5378
        %v5380 = vlaneseq
        %v5381 = vshrl.u32 %v5380, 7
        %v5382 = vsub.s32 %v5379, %v5381
        %v5383 = vrot.slane %v5369, %v5382
        %v5384 = vcombine.low %v5376, %v5383
        %s5401 = scalar_lea.vmem [#allocation5], 24
        %vm5402 = vcmask 261120
        %5403 = vst.msk [vmem:[%s5401 + $0x1] sm:$0xff] %vm5402, %v5129
        %5404 = vst.msk [vmem:[%s5401 + $0x9] sm:$0xff] %vm5402, %v5146
        %5405 = vst.msk [vmem:[%s5401 + $0x19] sm:$0xff] %vm5402, %v5163
        %5406 = vst.msk [vmem:[%s5401 + $0x21] sm:$0xff] %vm5402, %v5180
        %5407 = vst.msk [vmem:[%s5401 + $0x31] sm:$0xff] %vm5402, %v5197
        %5408 = vst.msk [vmem:[%s5401 + $0x39] sm:$0xff] %vm5402, %v5214
        %5409 = vst.msk [vmem:[%s5401 + $0x49] sm:$0xff] %vm5402, %v5231
        %5410 = vst.msk [vmem:[%s5401 + $0x51] sm:$0xff] %vm5402, %v5248
        %5411 = vst.msk [vmem:[%s5401 + $0x61] sm:$0xff] %vm5402, %v5265
        %5412 = vst.msk [vmem:[%s5401 + $0x69] sm:$0xff] %vm5402, %v5282
        %5413 = vst.msk [vmem:[%s5401 + $0x79] sm:$0xff] %vm5402, %v5299
        %5414 = vst.msk [vmem:[%s5401 + $0x81] sm:$0xff] %vm5402, %v5316
        %5415 = vst.msk [vmem:[%s5401 + $0x91] sm:$0xff] %vm5402, %v5333
        %5416 = vst.msk [vmem:[%s5401 + $0x99] sm:$0xff] %vm5402, %v5350
        %5417 = vst.msk [vmem:[%s5401 + $0xa9] sm:$0xff] %vm5402, %v5367
        %5418 = vst.msk [vmem:[%s5401 + $0xb1] sm:$0xff] %vm5402, %v5384
        %p5419 = scmp.gt.s32.totalorder %s30, 0
        // Predicated region
        $region69: #{db_fpn_forward.1} parent=63 // pred_check
          %p5420 = pneg %p5419
        $region70: #{db_fpn_forward.1} parent=63 // pred_check_branch
          %5422 = sbr.rel (%p5420) target = $region72
        $region71: #{db_fpn_forward.1} parent=63 // pred_region
          %v5423 = vld [vmem:[%s563] sm:$0xf]
          %v5424 = vld [vmem:[%s563 + $0x4] sm:$0xf]
          %v5425 = vld [vmem:[%s6] sm:$0x3]
          %v5428 = vunpack.c.l.b16 %v5423
          %v5429 = vunpack.c.l.b16 %v5424
          %v5430 = vpack.c.b16 %v5429, %v5428
          %v5432 = vsel %vm4140, %v5430, 0
          %v5435 = vsel %vm4165, %v5425, 0
          %5437 = vmatprep.subr.bf16.mxu0 0
          %5438 = vmatpush1.bf16.msra.mxu0 %v5435
          %5439 = vmatprep.subr.bf16.mxu0 0
          %5440 = vmatpush1.bf16.msra.mxu0 0
          %5441 = vmatprep.subr.bf16.mxu0 0
          %5442 = vmatpush1.bf16.msra.mxu0 0
          %5443 = vmatprep.subr.bf16.mxu0 0
          %5444 = vmatpush1.bf16.msra.mxu0 0
          %5445 = vmatprep.subr.bf16.mxu0 0
          %5446 = vmatpush1.bf16.msra.mxu0 0
          %5447 = vmatprep.subr.bf16.mxu0 0
          %5448 = vmatpush1.bf16.msra.mxu0 0
          %5449 = vmatprep.subr.bf16.mxu0 0
          %5450 = vmatpush1.bf16.msra.mxu0 0
          %5451 = vmatprep.subr.bf16.mxu0 0
          %5452 = vmatpush1.bf16.msra.mxu0 0
          %5453 = vmatprep.subr.bf16.mxu0 0
          %5454 = vmatpush1.bf16.msra.mxu0 0
          %5455 = vmatprep.subr.bf16.mxu0 0
          %5456 = vmatpush1.bf16.msra.mxu0 0
          %5457 = vmatprep.subr.bf16.mxu0 0
          %5458 = vmatpush1.bf16.msra.mxu0 0
          %5459 = vmatprep.subr.bf16.mxu0 0
          %5460 = vmatpush1.bf16.msra.mxu0 0
          %5461 = vmatprep.subr.bf16.mxu0 0
          %5462 = vmatpush1.bf16.msra.mxu0 0
          %5463 = vmatprep.subr.bf16.mxu0 0
          %5464 = vmatpush1.bf16.msra.mxu0 0
          %5465 = vmatprep.subr.bf16.mxu0 0
          %5466 = vmatpush1.bf16.msra.mxu0 0
          %5467 = vmatprep.subr.bf16.mxu0 0
          %5468 = vmatpush1.bf16.msra.mxu0 0
          %5469 = vmatprep.mubr.bf16.mxu0 0
          %5470 = vmatmul.mubr.bf16.gmra.mrb[0].mxu0 %v5432
          %v5471 = vpop.f32.mrb[0].mxu0
          %v5472 = vadd.f32 0.0, %v5471
          %v5473 = vpop.f32.mrb[0].mxu0
          %v5474 = vpop.f32.mrb[0].mxu0
          %v5475 = vadd.f32 0.0, %v5474
          %v5476 = vpop.f32.mrb[0].mxu0
          %5477 = vdwg.mxu0
          %s5478 = smul.u32 %s4081, 16
          %s5479 = scalar_lea.vmem [#allocation4], %s5478
          %v5480 = vld [vmem:[%s5479 + $0x1] sm:$0xff]
          %v5483 = vcombine.high %v5472, %v5472
          %v5485 = vunpack.c.l.s4 1983009808
          %v5486 = vunpack.c.0.s8 %v5485
          %v5487 = vlaneseq
          %v5488 = vshrl.u32 %v5487, 7
          %v5489 = vsub.s32 %v5486, %v5488
          %v5490 = vrot.slane %v5472, %v5489
          %v5492 = vunpack.c.l.s4 1983009808
          %v5493 = vunpack.c.0.s8 %v5492
          %v5494 = vlaneseq
          %v5495 = vshrl.u32 %v5494, 7
          %v5496 = vsub.s32 %v5493, %v5495
          %v5497 = vrot.slane %v5483, %v5496
          %v5498 = vcombine.high %v5490, %v5490
          %v5499 = vcombine.high %v5497, %v5497
          %v5500 = vcombine.high %v5475, %v5475
          %v5502 = vunpack.c.l.s4 1983009808
          %v5503 = vunpack.c.0.s8 %v5502
          %v5504 = vlaneseq
          %v5505 = vshrl.u32 %v5504, 7
          %v5506 = vsub.s32 %v5503, %v5505
          %v5507 = vrot.slane %v5475, %v5506
          %v5509 = vunpack.c.l.s4 1983009808
          %v5510 = vunpack.c.0.s8 %v5509
          %v5511 = vlaneseq
          %v5512 = vshrl.u32 %v5511, 7
          %v5513 = vsub.s32 %v5510, %v5512
          %v5514 = vrot.slane %v5500, %v5513
          %v5515 = vcombine.high %v5507, %v5507
          %v5516 = vcombine.high %v5514, %v5514
          %v5526 = vcombine.high %v5480, %v5480
          %v5528 = vunpack.c.l.s4 1966171168
          %v5529 = vunpack.c.0.s8 %v5528
          %v5530 = vlaneseq
          %v5531 = vshrl.u32 %v5530, 7
          %v5532 = vsub.s32 %v5529, %v5531
          %v5533 = vrot.slane %v5480, %v5532
          %v5535 = vunpack.c.l.s4 1966171168
          %v5536 = vunpack.c.0.s8 %v5535
          %v5537 = vlaneseq
          %v5538 = vshrl.u32 %v5537, 7
          %v5539 = vsub.s32 %v5536, %v5538
          %v5540 = vrot.slane %v5526, %v5539
          %v5541 = vcombine.high %v5533, %v5533
          %v5542 = vcombine.high %v5540, %v5540
          %v5544 = vunpack.c.l.s4 1966171168
          %v5545 = vunpack.c.0.s8 %v5544
          %v5546 = vlaneseq
          %v5547 = vshrl.u32 %v5546, 7
          %v5548 = vsub.s32 %v5545, %v5547
          %v5549 = vrot.slane %v5533, %v5548
          %v5551 = vunpack.c.l.s4 1966171168
          %v5552 = vunpack.c.0.s8 %v5551
          %v5553 = vlaneseq
          %v5554 = vshrl.u32 %v5553, 7
          %v5555 = vsub.s32 %v5552, %v5554
          %v5556 = vrot.slane %v5540, %v5555
          %v5558 = vunpack.c.l.s4 1966171168
          %v5559 = vunpack.c.0.s8 %v5558
          %v5560 = vlaneseq
          %v5561 = vshrl.u32 %v5560, 7
          %v5562 = vsub.s32 %v5559, %v5561
          %v5563 = vrot.slane %v5541, %v5562
          %v5565 = vunpack.c.l.s4 1966171168
          %v5566 = vunpack.c.0.s8 %v5565
          %v5567 = vlaneseq
          %v5568 = vshrl.u32 %v5567, 7
          %v5569 = vsub.s32 %v5566, %v5568
          %v5570 = vrot.slane %v5542, %v5569
          %v5571 = vcombine.high %v5549, %v5549
          %v5572 = vcombine.high %v5556, %v5556
          %v5573 = vcombine.high %v5563, %v5563
          %v5574 = vcombine.high %v5570, %v5570
          %v5575 = vlaneseq
          %v5576 = vshrl.u32 %v5575, 7
          %v5577 = vsub.s32 0, %v5576
          %v5578 = vrot.slane %v5549, %v5577
          %v5579 = vlaneseq
          %v5580 = vshrl.u32 %v5579, 7
          %v5581 = vsub.s32 0, %v5580
          %v5582 = vrot.slane %v5563, %v5581
          %v5583 = vlaneseq
          %v5584 = vshrl.u32 %v5583, 7
          %v5585 = vsub.s32 0, %v5584
          %v5586 = vrot.slane %v5571, %v5585
          %v5587 = vlaneseq
          %v5588 = vshrl.u32 %v5587, 7
          %v5589 = vsub.s32 0, %v5588
          %v5590 = vrot.slane %v5573, %v5589
          %v5591 = vlaneseq
          %v5592 = vshrl.u32 %v5591, 7
          %v5593 = vsub.s32 0, %v5592
          %v5594 = vrot.slane %v5556, %v5593
          %v5595 = vlaneseq
          %v5596 = vshrl.u32 %v5595, 7
          %v5597 = vsub.s32 0, %v5596
          %v5598 = vrot.slane %v5570, %v5597
          %v5599 = vlaneseq
          %v5600 = vshrl.u32 %v5599, 7
          %v5601 = vsub.s32 0, %v5600
          %v5602 = vrot.slane %v5572, %v5601
          %v5603 = vlaneseq
          %v5604 = vshrl.u32 %v5603, 7
          %v5605 = vsub.s32 0, %v5604
          %v5606 = vrot.slane %v5574, %v5605
          %v5615 = vadd.f32 %v5490, %v5578
          %v5616 = vadd.f32 %v5498, %v5582
          %v5617 = vadd.f32 %v5497, %v5586
          %v5618 = vadd.f32 %v5499, %v5590
          %v5619 = vadd.f32 %v5507, %v5594
          %v5620 = vadd.f32 %v5515, %v5598
          %v5621 = vadd.f32 %v5514, %v5602
          %v5622 = vadd.f32 %v5516, %v5606
          %v5631 = vcombine.low %v5615, %v5616
          %v5632 = vcombine.low %v5617, %v5618
          %v5634 = vunpack.c.l.s4 1983009808
          %v5635 = vunpack.c.0.s8 %v5634
          %v5636 = vlaneseq
          %v5637 = vshrl.u32 %v5636, 7
          %v5638 = vsub.s32 %v5635, %v5637
          %v5639 = vrot.slane %v5631, %v5638
          %v5641 = vunpack.c.l.s4 1983009808
          %v5642 = vunpack.c.0.s8 %v5641
          %v5643 = vlaneseq
          %v5644 = vshrl.u32 %v5643, 7
          %v5645 = vsub.s32 %v5642, %v5644
          %v5646 = vrot.slane %v5632, %v5645
          %v5647 = vcombine.low %v5639, %v5646
          %v5648 = vcombine.low %v5619, %v5620
          %v5649 = vcombine.low %v5621, %v5622
          %v5651 = vunpack.c.l.s4 1983009808
          %v5652 = vunpack.c.0.s8 %v5651
          %v5653 = vlaneseq
          %v5654 = vshrl.u32 %v5653, 7
          %v5655 = vsub.s32 %v5652, %v5654
          %v5656 = vrot.slane %v5648, %v5655
          %v5658 = vunpack.c.l.s4 1983009808
          %v5659 = vunpack.c.0.s8 %v5658
          %v5660 = vlaneseq
          %v5661 = vshrl.u32 %v5660, 7
          %v5662 = vsub.s32 %v5659, %v5661
          %v5663 = vrot.slane %v5649, %v5662
          %v5664 = vcombine.low %v5656, %v5663
          %5667 = vst.msk [vmem:[#allocation5 + $0x1] sm:$0xff] %vm5402, %v5647
          %5668 = vst.msk [vmem:[#allocation5 + $0x9] sm:$0xff] %vm5402, %v5664
        $region72: #{db_fpn_forward.1} parent=63 // pred_fallthru
          _
        // Predicated region
        $region73: #{db_fpn_forward.1} parent=63 // pred_check
          %p5669 = pneg %p601
        $region74: #{db_fpn_forward.1} parent=63 // pred_check_branch
          %5671 = sbr.rel (%p5669) target = $region76
        $region75: #{db_fpn_forward.1} parent=63 // pred_region
          %5672 = vst.msk [vmem:[#allocation5 + $0x1] sm:$0xff] %vm5402, 0.0
          %5673 = vst.msk [vmem:[#allocation5 + $0x9] sm:$0xff] %vm5402, 0.0
        $region76: #{db_fpn_forward.1} parent=63 // pred_fallthru
          _
        %p5674 = scmp.lt.s32.totalorder %s30, 1
        // Predicated region
        $region77: #{db_fpn_forward.1} parent=63 // pred_check
          %p5675 = pneg %p5674
        $region78: #{db_fpn_forward.1} parent=63 // pred_check_branch
          %5677 = sbr.rel (%p5675) target = $region80
        $region79: #{db_fpn_forward.1} parent=63 // pred_region
          %v5678 = vld [vmem:[%s580] sm:$0xf]
          %v5679 = vld [vmem:[%s580 + $0x4] sm:$0xf]
          %v5680 = vld [vmem:[%s6] sm:$0x3]
          %v5683 = vunpack.c.l.b16 %v5678
          %v5684 = vunpack.c.l.b16 %v5679
          %v5685 = vpack.c.b16 %v5684, %v5683
          %v5687 = vsel %vm4140, %v5685, 0
          %v5690 = vsel %vm4165, %v5680, 0
          %5692 = vmatprep.subr.bf16.mxu0 0
          %5693 = vmatpush1.bf16.msra.mxu0 %v5690
          %5694 = vmatprep.subr.bf16.mxu0 0
          %5695 = vmatpush1.bf16.msra.mxu0 0
          %5696 = vmatprep.subr.bf16.mxu0 0
          %5697 = vmatpush1.bf16.msra.mxu0 0
          %5698 = vmatprep.subr.bf16.mxu0 0
          %5699 = vmatpush1.bf16.msra.mxu0 0
          %5700 = vmatprep.subr.bf16.mxu0 0
          %5701 = vmatpush1.bf16.msra.mxu0 0
          %5702 = vmatprep.subr.bf16.mxu0 0
          %5703 = vmatpush1.bf16.msra.mxu0 0
          %5704 = vmatprep.subr.bf16.mxu0 0
          %5705 = vmatpush1.bf16.msra.mxu0 0
          %5706 = vmatprep.subr.bf16.mxu0 0
          %5707 = vmatpush1.bf16.msra.mxu0 0
          %5708 = vmatprep.subr.bf16.mxu0 0
          %5709 = vmatpush1.bf16.msra.mxu0 0
          %5710 = vmatprep.subr.bf16.mxu0 0
          %5711 = vmatpush1.bf16.msra.mxu0 0
          %5712 = vmatprep.subr.bf16.mxu0 0
          %5713 = vmatpush1.bf16.msra.mxu0 0
          %5714 = vmatprep.subr.bf16.mxu0 0
          %5715 = vmatpush1.bf16.msra.mxu0 0
          %5716 = vmatprep.subr.bf16.mxu0 0
          %5717 = vmatpush1.bf16.msra.mxu0 0
          %5718 = vmatprep.subr.bf16.mxu0 0
          %5719 = vmatpush1.bf16.msra.mxu0 0
          %5720 = vmatprep.subr.bf16.mxu0 0
          %5721 = vmatpush1.bf16.msra.mxu0 0
          %5722 = vmatprep.subr.bf16.mxu0 0
          %5723 = vmatpush1.bf16.msra.mxu0 0
          %5724 = vmatprep.mubr.bf16.mxu0 0
          %5725 = vmatmul.mubr.bf16.gmra.mrb[0].mxu0 %v5687
          %v5726 = vpop.f32.mrb[0].mxu0
          %v5727 = vadd.f32 0.0, %v5726
          %v5728 = vpop.f32.mrb[0].mxu0
          %v5729 = vpop.f32.mrb[0].mxu0
          %v5730 = vadd.f32 0.0, %v5729
          %v5731 = vpop.f32.mrb[0].mxu0
          %5732 = vdwg.mxu0
          %s5733 = sadd.s32 %s4081, 5
          %s5734 = smul.u32 %s5733, 16
          %s5735 = scalar_lea.vmem [#allocation4], %s5734
          %v5736 = vld [vmem:[%s5735 + $0x1] sm:$0xff]
          %v5739 = vcombine.high %v5727, %v5727
          %v5741 = vunpack.c.l.s4 1983009808
          %v5742 = vunpack.c.0.s8 %v5741
          %v5743 = vlaneseq
          %v5744 = vshrl.u32 %v5743, 7
          %v5745 = vsub.s32 %v5742, %v5744
          %v5746 = vrot.slane %v5727, %v5745
          %v5748 = vunpack.c.l.s4 1983009808
          %v5749 = vunpack.c.0.s8 %v5748
          %v5750 = vlaneseq
          %v5751 = vshrl.u32 %v5750, 7
          %v5752 = vsub.s32 %v5749, %v5751
          %v5753 = vrot.slane %v5739, %v5752
          %v5754 = vcombine.high %v5746, %v5746
          %v5755 = vcombine.high %v5753, %v5753
          %v5756 = vcombine.high %v5730, %v5730
          %v5758 = vunpack.c.l.s4 1983009808
          %v5759 = vunpack.c.0.s8 %v5758
          %v5760 = vlaneseq
          %v5761 = vshrl.u32 %v5760, 7
          %v5762 = vsub.s32 %v5759, %v5761
          %v5763 = vrot.slane %v5730, %v5762
          %v5765 = vunpack.c.l.s4 1983009808
          %v5766 = vunpack.c.0.s8 %v5765
          %v5767 = vlaneseq
          %v5768 = vshrl.u32 %v5767, 7
          %v5769 = vsub.s32 %v5766, %v5768
          %v5770 = vrot.slane %v5756, %v5769
          %v5771 = vcombine.high %v5763, %v5763
          %v5772 = vcombine.high %v5770, %v5770
          %v5782 = vcombine.high %v5736, %v5736
          %v5784 = vunpack.c.l.s4 1966171168
          %v5785 = vunpack.c.0.s8 %v5784
          %v5786 = vlaneseq
          %v5787 = vshrl.u32 %v5786, 7
          %v5788 = vsub.s32 %v5785, %v5787
          %v5789 = vrot.slane %v5736, %v5788
          %v5791 = vunpack.c.l.s4 1966171168
          %v5792 = vunpack.c.0.s8 %v5791
          %v5793 = vlaneseq
          %v5794 = vshrl.u32 %v5793, 7
          %v5795 = vsub.s32 %v5792, %v5794
          %v5796 = vrot.slane %v5782, %v5795
          %v5797 = vcombine.high %v5789, %v5789
          %v5798 = vcombine.high %v5796, %v5796
          %v5800 = vunpack.c.l.s4 1966171168
          %v5801 = vunpack.c.0.s8 %v5800
          %v5802 = vlaneseq
          %v5803 = vshrl.u32 %v5802, 7
          %v5804 = vsub.s32 %v5801, %v5803
          %v5805 = vrot.slane %v5789, %v5804
          %v5807 = vunpack.c.l.s4 1966171168
          %v5808 = vunpack.c.0.s8 %v5807
          %v5809 = vlaneseq
          %v5810 = vshrl.u32 %v5809, 7
          %v5811 = vsub.s32 %v5808, %v5810
          %v5812 = vrot.slane %v5796, %v5811
          %v5814 = vunpack.c.l.s4 1966171168
          %v5815 = vunpack.c.0.s8 %v5814
          %v5816 = vlaneseq
          %v5817 = vshrl.u32 %v5816, 7
          %v5818 = vsub.s32 %v5815, %v5817
          %v5819 = vrot.slane %v5797, %v5818
          %v5821 = vunpack.c.l.s4 1966171168
          %v5822 = vunpack.c.0.s8 %v5821
          %v5823 = vlaneseq
          %v5824 = vshrl.u32 %v5823, 7
          %v5825 = vsub.s32 %v5822, %v5824
          %v5826 = vrot.slane %v5798, %v5825
          %v5827 = vcombine.high %v5805, %v5805
          %v5828 = vcombine.high %v5812, %v5812
          %v5829 = vcombine.high %v5819, %v5819
          %v5830 = vcombine.high %v5826, %v5826
          %v5831 = vlaneseq
          %v5832 = vshrl.u32 %v5831, 7
          %v5833 = vsub.s32 0, %v5832
          %v5834 = vrot.slane %v5805, %v5833
          %v5835 = vlaneseq
          %v5836 = vshrl.u32 %v5835, 7
          %v5837 = vsub.s32 0, %v5836
          %v5838 = vrot.slane %v5819, %v5837
          %v5839 = vlaneseq
          %v5840 = vshrl.u32 %v5839, 7
          %v5841 = vsub.s32 0, %v5840
          %v5842 = vrot.slane %v5827, %v5841
          %v5843 = vlaneseq
          %v5844 = vshrl.u32 %v5843, 7
          %v5845 = vsub.s32 0, %v5844
          %v5846 = vrot.slane %v5829, %v5845
          %v5847 = vlaneseq
          %v5848 = vshrl.u32 %v5847, 7
          %v5849 = vsub.s32 0, %v5848
          %v5850 = vrot.slane %v5812, %v5849
          %v5851 = vlaneseq
          %v5852 = vshrl.u32 %v5851, 7
          %v5853 = vsub.s32 0, %v5852
          %v5854 = vrot.slane %v5826, %v5853
          %v5855 = vlaneseq
          %v5856 = vshrl.u32 %v5855, 7
          %v5857 = vsub.s32 0, %v5856
          %v5858 = vrot.slane %v5828, %v5857
          %v5859 = vlaneseq
          %v5860 = vshrl.u32 %v5859, 7
          %v5861 = vsub.s32 0, %v5860
          %v5862 = vrot.slane %v5830, %v5861
          %v5871 = vadd.f32 %v5746, %v5834
          %v5872 = vadd.f32 %v5754, %v5838
          %v5873 = vadd.f32 %v5753, %v5842
          %v5874 = vadd.f32 %v5755, %v5846
          %v5875 = vadd.f32 %v5763, %v5850
          %v5876 = vadd.f32 %v5771, %v5854
          %v5877 = vadd.f32 %v5770, %v5858
          %v5878 = vadd.f32 %v5772, %v5862
          %v5887 = vcombine.low %v5871, %v5872
          %v5888 = vcombine.low %v5873, %v5874
          %v5890 = vunpack.c.l.s4 1983009808
          %v5891 = vunpack.c.0.s8 %v5890
          %v5892 = vlaneseq
          %v5893 = vshrl.u32 %v5892, 7
          %v5894 = vsub.s32 %v5891, %v5893
          %v5895 = vrot.slane %v5887, %v5894
          %v5897 = vunpack.c.l.s4 1983009808
          %v5898 = vunpack.c.0.s8 %v5897
          %v5899 = vlaneseq
          %v5900 = vshrl.u32 %v5899, 7
          %v5901 = vsub.s32 %v5898, %v5900
          %v5902 = vrot.slane %v5888, %v5901
          %v5903 = vcombine.low %v5895, %v5902
          %v5904 = vcombine.low %v5875, %v5876
          %v5905 = vcombine.low %v5877, %v5878
          %v5907 = vunpack.c.l.s4 1983009808
          %v5908 = vunpack.c.0.s8 %v5907
          %v5909 = vlaneseq
          %v5910 = vshrl.u32 %v5909, 7
          %v5911 = vsub.s32 %v5908, %v5910
          %v5912 = vrot.slane %v5904, %v5911
          %v5914 = vunpack.c.l.s4 1983009808
          %v5915 = vunpack.c.0.s8 %v5914
          %v5916 = vlaneseq
          %v5917 = vshrl.u32 %v5916, 7
          %v5918 = vsub.s32 %v5915, %v5917
          %v5919 = vrot.slane %v5905, %v5918
          %v5920 = vcombine.low %v5912, %v5919
          %s5923 = scalar_lea.vmem [#allocation5], 216
          %5924 = vst.msk [vmem:[%s5923 + $0x1] sm:$0xff] %vm5402, %v5903
          %5925 = vst.msk [vmem:[%s5923 + $0x9] sm:$0xff] %vm5402, %v5920
        $region80: #{db_fpn_forward.1} parent=63 // pred_fallthru
          _
        %p5926 = scmp.eq.s32.totalorder %s30, 1
        // Predicated region
        $region81: #{db_fpn_forward.1} parent=63 // pred_check
          %p5927 = pneg %p5926
        $region82: #{db_fpn_forward.1} parent=63 // pred_check_branch
          %5929 = sbr.rel (%p5927) target = $region84
        $region83: #{db_fpn_forward.1} parent=63 // pred_region
          %s5930 = scalar_lea.vmem [#allocation5], 216
          %5931 = vst.msk [vmem:[%s5930 + $0x1] sm:$0xff] %vm5402, 0.0
          %5932 = vst.msk [vmem:[%s5930 + $0x9] sm:$0xff] %vm5402, 0.0
        $region84: #{db_fpn_forward.1} parent=63 // pred_fallthru
          _
        %v5933 = vld [vmem:[#allocation5] sm:$0xff]
        %v5934 = vld [vmem:[#allocation5 + $0x8] sm:$0xff]
        %v5935 = vld [vmem:[#allocation5 + $0x10] sm:$0x3]
        %v5936 = vld [vmem:[#allocation5 + $0x18] sm:$0xff]
        %v5937 = vld [vmem:[#allocation5 + $0x20] sm:$0xff]
        %v5938 = vld [vmem:[#allocation5 + $0x28] sm:$0x3]
        %v5939 = vld [vmem:[#allocation5 + $0x30] sm:$0xff]
        %v5940 = vld [vmem:[#allocation5 + $0x38] sm:$0xff]
        %v5941 = vld [vmem:[#allocation5 + $0x40] sm:$0x3]
        %v5942 = vld [vmem:[#allocation5 + $0x48] sm:$0xff]
        %v5943 = vld [vmem:[#allocation5 + $0x50] sm:$0xff]
        %v5944 = vld [vmem:[#allocation5 + $0x58] sm:$0x3]
        %v5945 = vld [vmem:[#allocation5 + $0x60] sm:$0xff]
        %v5946 = vld [vmem:[#allocation5 + $0x68] sm:$0xff]
        %v5947 = vld [vmem:[#allocation5 + $0x70] sm:$0x3]
        %v5948 = vld [vmem:[#allocation5 + $0x78] sm:$0xff]
        %v5949 = vld [vmem:[#allocation5 + $0x80] sm:$0xff]
        %v5950 = vld [vmem:[#allocation5 + $0x88] sm:$0x3]
        %v5951 = vld [vmem:[#allocation5 + $0x90] sm:$0xff]
        %v5952 = vld [vmem:[#allocation5 + $0x98] sm:$0xff]
        %v5953 = vld [vmem:[#allocation5 + $0xa0] sm:$0x3]
        %v5954 = vld [vmem:[#allocation5 + $0xa8] sm:$0xff]
        %v5955 = vld [vmem:[#allocation5 + $0xb0] sm:$0xff]
        %v5956 = vld [vmem:[#allocation5 + $0xb8] sm:$0x3]
        %v5957 = vld [vmem:[#allocation5 + $0xc0] sm:$0xff]
        %v5958 = vld [vmem:[#allocation5 + $0xc8] sm:$0xff]
        %v5959 = vld [vmem:[#allocation5 + $0xd0] sm:$0x3]
        %v5960 = vld [vmem:[#allocation5 + $0xd8] sm:$0xff]
        %v5961 = vld [vmem:[#allocation5 + $0xe0] sm:$0xff]
        %v5962 = vld [vmem:[#allocation5 + $0xe8] sm:$0x3]
        %v5963 = vpack.c.bf16 %v5934, %v5933
        %v5964 = vpack.c.bf16 %v5937, %v5936
        %v5965 = vpack.c.bf16 %v5940, %v5939
        %v5966 = vpack.c.bf16 %v5943, %v5942
        %v5967 = vpack.c.bf16 %v5946, %v5945
        %v5968 = vpack.c.bf16 %v5949, %v5948
        %v5969 = vpack.c.bf16 %v5952, %v5951
        %v5970 = vpack.c.bf16 %v5955, %v5954
        %s5971 = scalar_lea.vmem %s10, 432
        %v5972 = vld [vmem:[%s5971] sm:$0xf]
        %v5973 = vld [vmem:[%s5971 + $0x4] sm:$0xf]
        %v5974 = vld [vmem:[%s5971 + $0x8] sm:$0xf]
        %v5975 = vld [vmem:[%s5971 + $0xc] sm:$0xf]
        %vm6000 = vcmask 1046528
        %v6001 = vrot.slane %v5933, 1
        %v6002 = vrot.slane %v5934, 1
        %v6003 = vsel %vm6000, %v6001, %v6002
        %v6004 = vrot.slane %v5935, 1
        %v6005 = vsel %vm6000, %v6002, %v6004
        %v6006 = vrot.slane %v5936, 1
        %v6007 = vrot.slane %v5937, 1
        %v6008 = vsel %vm6000, %v6006, %v6007
        %v6009 = vrot.slane %v5938, 1
        %v6010 = vsel %vm6000, %v6007, %v6009
        %v6011 = vrot.slane %v5939, 1
        %v6012 = vrot.slane %v5940, 1
        %v6013 = vsel %vm6000, %v6011, %v6012
        %v6014 = vrot.slane %v5941, 1
        %v6015 = vsel %vm6000, %v6012, %v6014
        %v6016 = vrot.slane %v5942, 1
        %v6017 = vrot.slane %v5943, 1
        %v6018 = vsel %vm6000, %v6016, %v6017
        %v6019 = vrot.slane %v5944, 1
        %v6020 = vsel %vm6000, %v6017, %v6019
        %v6021 = vrot.slane %v5945, 1
        %v6022 = vrot.slane %v5946, 1
        %v6023 = vsel %vm6000, %v6021, %v6022
        %v6024 = vrot.slane %v5947, 1
        %v6025 = vsel %vm6000, %v6022, %v6024
        %v6026 = vrot.slane %v5948, 1
        %v6027 = vrot.slane %v5949, 1
        %v6028 = vsel %vm6000, %v6026, %v6027
        %v6029 = vrot.slane %v5950, 1
        %v6030 = vsel %vm6000, %v6027, %v6029
        %v6031 = vrot.slane %v5951, 1
        %v6032 = vrot.slane %v5952, 1
        %v6033 = vsel %vm6000, %v6031, %v6032
        %v6034 = vrot.slane %v5953, 1
        %v6035 = vsel %vm6000, %v6032, %v6034
        %v6036 = vrot.slane %v5954, 1
        %v6037 = vrot.slane %v5955, 1
        %v6038 = vsel %vm6000, %v6036, %v6037
        %v6039 = vrot.slane %v5956, 1
        %v6040 = vsel %vm6000, %v6037, %v6039
        %v6057 = vpack.c.bf16 %v6005, %v6003
        %v6058 = vpack.c.bf16 %v6010, %v6008
        %v6059 = vpack.c.bf16 %v6015, %v6013
        %v6060 = vpack.c.bf16 %v6020, %v6018
        %v6061 = vpack.c.bf16 %v6025, %v6023
        %v6062 = vpack.c.bf16 %v6030, %v6028
        %v6063 = vpack.c.bf16 %v6035, %v6033
        %v6064 = vpack.c.bf16 %v6040, %v6038
        %s6065 = scalar_lea.vmem %s10, 448
        %v6066 = vld [vmem:[%s6065] sm:$0xf]
        %v6067 = vld [vmem:[%s6065 + $0x4] sm:$0xf]
        %v6068 = vld [vmem:[%s6065 + $0x8] sm:$0xf]
        %v6069 = vld [vmem:[%s6065 + $0xc] sm:$0xf]
        %v6074 = vunpack.c.l.b16 %v6066
        %v6075 = vunpack.c.l.b16 %v6067
        %v6076 = vunpack.c.l.b16 %v6068
        %v6077 = vunpack.c.l.b16 %v6069
        %v6078 = vpack.c.b16 %v6075, %v6074
        %v6079 = vpack.c.b16 %v6077, %v6076
        %v6083 = vsel %vm5402, %v6057, 0
        %v6086 = vsel %vm5402, %v6058, 0
        %v6089 = vsel %vm5402, %v6059, 0
        %v6092 = vsel %vm5402, %v6060, 0
        %v6095 = vsel %vm5402, %v6061, 0
        %v6098 = vsel %vm5402, %v6062, 0
        %v6101 = vsel %vm5402, %v6063, 0
        %v6104 = vsel %vm5402, %v6064, 0
        %6106 = vmatprep.subr.bf16.mxu0 0
        %6107 = vmatpush1.bf16.msra.mxu0 %v6078
        %6108 = vmatprep.subr.bf16.mxu0 0
        %6109 = vmatpush1.bf16.msra.mxu0 %v6079
        %6110 = vmatprep.subr.bf16.mxu0 0
        %6111 = vmatpush1.bf16.msra.mxu0 0
        %6112 = vmatprep.subr.bf16.mxu0 0
        %6113 = vmatpush1.bf16.msra.mxu0 0
        %6114 = vmatprep.subr.bf16.mxu0 0
        %6115 = vmatpush1.bf16.msra.mxu0 0
        %6116 = vmatprep.subr.bf16.mxu0 0
        %6117 = vmatpush1.bf16.msra.mxu0 0
        %6118 = vmatprep.subr.bf16.mxu0 0
        %6119 = vmatpush1.bf16.msra.mxu0 0
        %6120 = vmatprep.subr.bf16.mxu0 0
        %6121 = vmatpush1.bf16.msra.mxu0 0
        %6122 = vmatprep.subr.bf16.mxu0 0
        %6123 = vmatpush1.bf16.msra.mxu0 0
        %6124 = vmatprep.subr.bf16.mxu0 0
        %6125 = vmatpush1.bf16.msra.mxu0 0
        %6126 = vmatprep.subr.bf16.mxu0 0
        %6127 = vmatpush1.bf16.msra.mxu0 0
        %6128 = vmatprep.subr.bf16.mxu0 0
        %6129 = vmatpush1.bf16.msra.mxu0 0
        %6130 = vmatprep.subr.bf16.mxu0 0
        %6131 = vmatpush1.bf16.msra.mxu0 0
        %6132 = vmatprep.subr.bf16.mxu0 0
        %6133 = vmatpush1.bf16.msra.mxu0 0
        %6134 = vmatprep.subr.bf16.mxu0 0
        %6135 = vmatpush1.bf16.msra.mxu0 0
        %6136 = vmatprep.subr.bf16.mxu0 0
        %6137 = vmatpush1.bf16.msra.mxu0 0
        %6138 = vmatprep.mubr.bf16.mxu0 0
        %6139 = vmatmul.mubr.bf16.gmra.mrb[0].mxu0 %v6083
        %v6140 = vpop.f32.mrb[0].mxu0
        %v6141 = vadd.f32 0.0, %v6140
        %v6142 = vpop.f32.mrb[0].mxu0
        %v6143 = vpop.f32.mrb[0].mxu0
        %v6144 = vadd.f32 0.0, %v6143
        %v6145 = vpop.f32.mrb[0].mxu0
        %6146 = vmatprep.mubr.bf16.mxu0 0
        %6147 = vmatmul.mubr.bf16.gmra.mrb[0].mxu0 %v6086
        %v6148 = vpop.f32.mrb[0].mxu0
        %v6149 = vadd.f32 0.0, %v6148
        %v6150 = vpop.f32.mrb[0].mxu0
        %v6151 = vpop.f32.mrb[0].mxu0
        %v6152 = vadd.f32 0.0, %v6151
        %v6153 = vpop.f32.mrb[0].mxu0
        %6154 = vmatprep.mubr.bf16.mxu0 0
        %6155 = vmatmul.mubr.bf16.gmra.mrb[0].mxu0 %v6089
        %v6156 = vpop.f32.mrb[0].mxu0
        %v6157 = vadd.f32 0.0, %v6156
        %v6158 = vpop.f32.mrb[0].mxu0
        %v6159 = vpop.f32.mrb[0].mxu0
        %v6160 = vadd.f32 0.0, %v6159
        %v6161 = vpop.f32.mrb[0].mxu0
        %6162 = vmatprep.mubr.bf16.mxu0 0
        %6163 = vmatmul.mubr.bf16.gmra.mrb[0].mxu0 %v6092
        %v6164 = vpop.f32.mrb[0].mxu0
        %v6165 = vadd.f32 0.0, %v6164
        %v6166 = vpop.f32.mrb[0].mxu0
        %v6167 = vpop.f32.mrb[0].mxu0
        %v6168 = vadd.f32 0.0, %v6167
        %v6169 = vpop.f32.mrb[0].mxu0
        %6170 = vmatprep.mubr.bf16.mxu0 0
        %6171 = vmatmul.mubr.bf16.gmra.mrb[0].mxu0 %v6095
        %v6172 = vpop.f32.mrb[0].mxu0
        %v6173 = vadd.f32 0.0, %v6172
        %v6174 = vpop.f32.mrb[0].mxu0
        %v6175 = vpop.f32.mrb[0].mxu0
        %v6176 = vadd.f32 0.0, %v6175
        %v6177 = vpop.f32.mrb[0].mxu0
        %6178 = vmatprep.mubr.bf16.mxu0 0
        %6179 = vmatmul.mubr.bf16.gmra.mrb[0].mxu0 %v6098
        %v6180 = vpop.f32.mrb[0].mxu0
        %v6181 = vadd.f32 0.0, %v6180
        %v6182 = vpop.f32.mrb[0].mxu0
        %v6183 = vpop.f32.mrb[0].mxu0
        %v6184 = vadd.f32 0.0, %v6183
        %v6185 = vpop.f32.mrb[0].mxu0
        %6186 = vmatprep.mubr.bf16.mxu0 0
        %6187 = vmatmul.mubr.bf16.gmra.mrb[0].mxu0 %v6101
        %v6188 = vpop.f32.mrb[0].mxu0
        %v6189 = vadd.f32 0.0, %v6188
        %v6190 = vpop.f32.mrb[0].mxu0
        %v6191 = vpop.f32.mrb[0].mxu0
        %v6192 = vadd.f32 0.0, %v6191
        %v6193 = vpop.f32.mrb[0].mxu0
        %6194 = vmatprep.mubr.bf16.mxu0 0
        %6195 = vmatmul.mubr.bf16.gmra.mrb[0].mxu0 %v6104
        %v6196 = vpop.f32.mrb[0].mxu0
        %v6197 = vadd.f32 0.0, %v6196
        %v6198 = vpop.f32.mrb[0].mxu0
        %v6199 = vpop.f32.mrb[0].mxu0
        %v6200 = vadd.f32 0.0, %v6199
        %v6201 = vpop.f32.mrb[0].mxu0
        %6202 = vdwg.mxu0
        %v6207 = vunpack.c.l.b16 %v5972
        %v6208 = vunpack.c.l.b16 %v5973
        %v6209 = vunpack.c.l.b16 %v5974
        %v6210 = vunpack.c.l.b16 %v5975
        %v6211 = vpack.c.b16 %v6208, %v6207
        %v6212 = vpack.c.b16 %v6210, %v6209
        %v6216 = vsel %vm5402, %v5963, 0
        %v6219 = vsel %vm5402, %v5964, 0
        %v6222 = vsel %vm5402, %v5965, 0
        %v6225 = vsel %vm5402, %v5966, 0
        %v6228 = vsel %vm5402, %v5967, 0
        %v6231 = vsel %vm5402, %v5968, 0
        %v6234 = vsel %vm5402, %v5969, 0
        %v6237 = vsel %vm5402, %v5970, 0
        %6239 = vmatprep.subr.bf16.mxu0 0
        %6240 = vmatpush1.bf16.msra.mxu0 %v6211
        %6241 = vmatprep.subr.bf16.mxu0 0
        %6242 = vmatpush1.bf16.msra.mxu0 %v6212
        %6243 = vmatprep.subr.bf16.mxu0 0
        %6244 = vmatpush1.bf16.msra.mxu0 0
        %6245 = vmatprep.subr.bf16.mxu0 0
        %6246 = vmatpush1.bf16.msra.mxu0 0
        %6247 = vmatprep.subr.bf16.mxu0 0
        %6248 = vmatpush1.bf16.msra.mxu0 0
        %6249 = vmatprep.subr.bf16.mxu0 0
        %6250 = vmatpush1.bf16.msra.mxu0 0
        %6251 = vmatprep.subr.bf16.mxu0 0
        %6252 = vmatpush1.bf16.msra.mxu0 0
        %6253 = vmatprep.subr.bf16.mxu0 0
        %6254 = vmatpush1.bf16.msra.mxu0 0
        %6255 = vmatprep.subr.bf16.mxu0 0
        %6256 = vmatpush1.bf16.msra.mxu0 0
        %6257 = vmatprep.subr.bf16.mxu0 0
        %6258 = vmatpush1.bf16.msra.mxu0 0
        %6259 = vmatprep.subr.bf16.mxu0 0
        %6260 = vmatpush1.bf16.msra.mxu0 0
        %6261 = vmatprep.subr.bf16.mxu0 0
        %6262 = vmatpush1.bf16.msra.mxu0 0
        %6263 = vmatprep.subr.bf16.mxu0 0
        %6264 = vmatpush1.bf16.msra.mxu0 0
        %6265 = vmatprep.subr.bf16.mxu0 0
        %6266 = vmatpush1.bf16.msra.mxu0 0
        %6267 = vmatprep.subr.bf16.mxu0 0
        %6268 = vmatpush1.bf16.msra.mxu0 0
        %6269 = vmatprep.subr.bf16.mxu0 0
        %6270 = vmatpush1.bf16.msra.mxu0 0
        %6271 = vmatprep.mubr.bf16.mxu0 0
        %6272 = vmatmul.mubr.bf16.gmra.mrb[0].mxu0 %v6216
        %v6273 = vpop.f32.mrb[0].mxu0
        %v6274 = vadd.f32 %v6141, %v6273
        %v6275 = vpop.f32.mrb[0].mxu0
        %v6276 = vpop.f32.mrb[0].mxu0
        %v6277 = vadd.f32 %v6144, %v6276
        %v6278 = vpop.f32.mrb[0].mxu0
        %6279 = vmatprep.mubr.bf16.mxu0 0
        %6280 = vmatmul.mubr.bf16.gmra.mrb[0].mxu0 %v6219
        %v6281 = vpop.f32.mrb[0].mxu0
        %v6282 = vadd.f32 %v6149, %v6281
        %v6283 = vpop.f32.mrb[0].mxu0
        %v6284 = vpop.f32.mrb[0].mxu0
        %v6285 = vadd.f32 %v6152, %v6284
        %v6286 = vpop.f32.mrb[0].mxu0
        %6287 = vmatprep.mubr.bf16.mxu0 0
        %6288 = vmatmul.mubr.bf16.gmra.mrb[0].mxu0 %v6222
        %v6289 = vpop.f32.mrb[0].mxu0
        %v6290 = vadd.f32 %v6157, %v6289
        %v6291 = vpop.f32.mrb[0].mxu0
        %v6292 = vpop.f32.mrb[0].mxu0
        %v6293 = vadd.f32 %v6160, %v6292
        %v6294 = vpop.f32.mrb[0].mxu0
        %6295 = vmatprep.mubr.bf16.mxu0 0
        %6296 = vmatmul.mubr.bf16.gmra.mrb[0].mxu0 %v6225
        %v6297 = vpop.f32.mrb[0].mxu0
        %v6298 = vadd.f32 %v6165, %v6297
        %v6299 = vpop.f32.mrb[0].mxu0
        %v6300 = vpop.f32.mrb[0].mxu0
        %v6301 = vadd.f32 %v6168, %v6300
        %v6302 = vpop.f32.mrb[0].mxu0
        %6303 = vmatprep.mubr.bf16.mxu0 0
        %6304 = vmatmul.mubr.bf16.gmra.mrb[0].mxu0 %v6228
        %v6305 = vpop.f32.mrb[0].mxu0
        %v6306 = vadd.f32 %v6173, %v6305
        %v6307 = vpop.f32.mrb[0].mxu0
        %v6308 = vpop.f32.mrb[0].mxu0
        %v6309 = vadd.f32 %v6176, %v6308
        %v6310 = vpop.f32.mrb[0].mxu0
        %6311 = vmatprep.mubr.bf16.mxu0 0
        %6312 = vmatmul.mubr.bf16.gmra.mrb[0].mxu0 %v6231
        %v6313 = vpop.f32.mrb[0].mxu0
        %v6314 = vadd.f32 %v6181, %v6313
        %v6315 = vpop.f32.mrb[0].mxu0
        %v6316 = vpop.f32.mrb[0].mxu0
        %v6317 = vadd.f32 %v6184, %v6316
        %v6318 = vpop.f32.mrb[0].mxu0
        %6319 = vmatprep.mubr.bf16.mxu0 0
        %6320 = vmatmul.mubr.bf16.gmra.mrb[0].mxu0 %v6234
        %v6321 = vpop.f32.mrb[0].mxu0
        %v6322 = vadd.f32 %v6189, %v6321
        %v6323 = vpop.f32.mrb[0].mxu0
        %v6324 = vpop.f32.mrb[0].mxu0
        %v6325 = vadd.f32 %v6192, %v6324
        %v6326 = vpop.f32.mrb[0].mxu0
        %6327 = vmatprep.mubr.bf16.mxu0 0
        %6328 = vmatmul.mubr.bf16.gmra.mrb[0].mxu0 %v6237
        %v6329 = vpop.f32.mrb[0].mxu0
        %v6330 = vadd.f32 %v6197, %v6329
        %v6331 = vpop.f32.mrb[0].mxu0
        %v6332 = vpop.f32.mrb[0].mxu0
        %v6333 = vadd.f32 %v6200, %v6332
        %v6334 = vpop.f32.mrb[0].mxu0
        %6335 = vdwg.mxu0
        %vm6336 = vcmask 1045504
        %v6337 = vrot.slane %v5933, 2
        %v6338 = vrot.slane %v5934, 2
        %v6339 = vsel %vm6336, %v6337, %v6338
        %v6340 = vrot.slane %v5935, 2
        %v6341 = vsel %vm6336, %v6338, %v6340
        %v6342 = vrot.slane %v5936, 2
        %v6343 = vrot.slane %v5937, 2
        %v6344 = vsel %vm6336, %v6342, %v6343
        %v6345 = vrot.slane %v5938, 2
        %v6346 = vsel %vm6336, %v6343, %v6345
        %v6347 = vrot.slane %v5939, 2
        %v6348 = vrot.slane %v5940, 2
        %v6349 = vsel %vm6336, %v6347, %v6348
        %v6350 = vrot.slane %v5941, 2
        %v6351 = vsel %vm6336, %v6348, %v6350
        %v6352 = vrot.slane %v5942, 2
        %v6353 = vrot.slane %v5943, 2
        %v6354 = vsel %vm6336, %v6352, %v6353
        %v6355 = vrot.slane %v5944, 2
        %v6356 = vsel %vm6336, %v6353, %v6355
        %v6357 = vrot.slane %v5945, 2
        %v6358 = vrot.slane %v5946, 2
        %v6359 = vsel %vm6336, %v6357, %v6358
        %v6360 = vrot.slane %v5947, 2
        %v6361 = vsel %vm6336, %v6358, %v6360
        %v6362 = vrot.slane %v5948, 2
        %v6363 = vrot.slane %v5949, 2
        %v6364 = vsel %vm6336, %v6362, %v6363
        %v6365 = vrot.slane %v5950, 2
        %v6366 = vsel %vm6336, %v6363, %v6365
        %v6367 = vrot.slane %v5951, 2
        %v6368 = vrot.slane %v5952, 2
        %v6369 = vsel %vm6336, %v6367, %v6368
        %v6370 = vrot.slane %v5953, 2
        %v6371 = vsel %vm6336, %v6368, %v6370
        %v6372 = vrot.slane %v5954, 2
        %v6373 = vrot.slane %v5955, 2
        %v6374 = vsel %vm6336, %v6372, %v6373
        %v6375 = vrot.slane %v5956, 2
        %v6376 = vsel %vm6336, %v6373, %v6375
        %v6393 = vpack.c.bf16 %v6341, %v6339
        %v6394 = vpack.c.bf16 %v6346, %v6344
        %v6395 = vpack.c.bf16 %v6351, %v6349
        %v6396 = vpack.c.bf16 %v6356, %v6354
        %v6397 = vpack.c.bf16 %v6361, %v6359
        %v6398 = vpack.c.bf16 %v6366, %v6364
        %v6399 = vpack.c.bf16 %v6371, %v6369
        %v6400 = vpack.c.bf16 %v6376, %v6374
        %s6401 = scalar_lea.vmem %s10, 464
        %v6402 = vld [vmem:[%s6401] sm:$0xf]
        %v6403 = vld [vmem:[%s6401 + $0x4] sm:$0xf]
        %v6404 = vld [vmem:[%s6401 + $0x8] sm:$0xf]
        %v6405 = vld [vmem:[%s6401 + $0xc] sm:$0xf]
        %v6410 = vunpack.c.l.b16 %v6402
        %v6411 = vunpack.c.l.b16 %v6403
        %v6412 = vunpack.c.l.b16 %v6404
        %v6413 = vunpack.c.l.b16 %v6405
        %v6414 = vpack.c.b16 %v6411, %v6410
        %v6415 = vpack.c.b16 %v6413, %v6412
        %v6419 = vsel %vm5402, %v6393, 0
        %v6422 = vsel %vm5402, %v6394, 0
        %v6425 = vsel %vm5402, %v6395, 0
        %v6428 = vsel %vm5402, %v6396, 0
        %v6431 = vsel %vm5402, %v6397, 0
        %v6434 = vsel %vm5402, %v6398, 0
        %v6437 = vsel %vm5402, %v6399, 0
        %v6440 = vsel %vm5402, %v6400, 0
        %6442 = vmatprep.subr.bf16.mxu0 0
        %6443 = vmatpush1.bf16.msra.mxu0 %v6414
        %6444 = vmatprep.subr.bf16.mxu0 0
        %6445 = vmatpush1.bf16.msra.mxu0 %v6415
        %6446 = vmatprep.subr.bf16.mxu0 0
        %6447 = vmatpush1.bf16.msra.mxu0 0
        %6448 = vmatprep.subr.bf16.mxu0 0
        %6449 = vmatpush1.bf16.msra.mxu0 0
        %6450 = vmatprep.subr.bf16.mxu0 0
        %6451 = vmatpush1.bf16.msra.mxu0 0
        %6452 = vmatprep.subr.bf16.mxu0 0
        %6453 = vmatpush1.bf16.msra.mxu0 0
        %6454 = vmatprep.subr.bf16.mxu0 0
        %6455 = vmatpush1.bf16.msra.mxu0 0
        %6456 = vmatprep.subr.bf16.mxu0 0
        %6457 = vmatpush1.bf16.msra.mxu0 0
        %6458 = vmatprep.subr.bf16.mxu0 0
        %6459 = vmatpush1.bf16.msra.mxu0 0
        %6460 = vmatprep.subr.bf16.mxu0 0
        %6461 = vmatpush1.bf16.msra.mxu0 0
        %6462 = vmatprep.subr.bf16.mxu0 0
        %6463 = vmatpush1.bf16.msra.mxu0 0
        %6464 = vmatprep.subr.bf16.mxu0 0
        %6465 = vmatpush1.bf16.msra.mxu0 0
        %6466 = vmatprep.subr.bf16.mxu0 0
        %6467 = vmatpush1.bf16.msra.mxu0 0
        %6468 = vmatprep.subr.bf16.mxu0 0
        %6469 = vmatpush1.bf16.msra.mxu0 0
        %6470 = vmatprep.subr.bf16.mxu0 0
        %6471 = vmatpush1.bf16.msra.mxu0 0
        %6472 = vmatprep.subr.bf16.mxu0 0
        %6473 = vmatpush1.bf16.msra.mxu0 0
        %6474 = vmatprep.mubr.bf16.mxu0 0
        %6475 = vmatmul.mubr.bf16.gmra.mrb[0].mxu0 %v6419
        %v6476 = vpop.f32.mrb[0].mxu0
        %v6477 = vadd.f32 0.0, %v6476
        %v6478 = vpop.f32.mrb[0].mxu0
        %v6479 = vpop.f32.mrb[0].mxu0
        %v6480 = vadd.f32 0.0, %v6479
        %v6481 = vpop.f32.mrb[0].mxu0
        %6482 = vmatprep.mubr.bf16.mxu0 0
        %6483 = vmatmul.mubr.bf16.gmra.mrb[0].mxu0 %v6422
        %v6484 = vpop.f32.mrb[0].mxu0
        %v6485 = vadd.f32 0.0, %v6484
        %v6486 = vpop.f32.mrb[0].mxu0
        %v6487 = vpop.f32.mrb[0].mxu0
        %v6488 = vadd.f32 0.0, %v6487
        %v6489 = vpop.f32.mrb[0].mxu0
        %6490 = vmatprep.mubr.bf16.mxu0 0
        %6491 = vmatmul.mubr.bf16.gmra.mrb[0].mxu0 %v6425
        %v6492 = vpop.f32.mrb[0].mxu0
        %v6493 = vadd.f32 0.0, %v6492
        %v6494 = vpop.f32.mrb[0].mxu0
        %v6495 = vpop.f32.mrb[0].mxu0
        %v6496 = vadd.f32 0.0, %v6495
        %v6497 = vpop.f32.mrb[0].mxu0
        %6498 = vmatprep.mubr.bf16.mxu0 0
        %6499 = vmatmul.mubr.bf16.gmra.mrb[0].mxu0 %v6428
        %v6500 = vpop.f32.mrb[0].mxu0
        %v6501 = vadd.f32 0.0, %v6500
        %v6502 = vpop.f32.mrb[0].mxu0
        %v6503 = vpop.f32.mrb[0].mxu0
        %v6504 = vadd.f32 0.0, %v6503
        %v6505 = vpop.f32.mrb[0].mxu0
        %6506 = vmatprep.mubr.bf16.mxu0 0
        %6507 = vmatmul.mubr.bf16.gmra.mrb[0].mxu0 %v6431
        %v6508 = vpop.f32.mrb[0].mxu0
        %v6509 = vadd.f32 0.0, %v6508
        %v6510 = vpop.f32.mrb[0].mxu0
        %v6511 = vpop.f32.mrb[0].mxu0
        %v6512 = vadd.f32 0.0, %v6511
        %v6513 = vpop.f32.mrb[0].mxu0
        %6514 = vmatprep.mubr.bf16.mxu0 0
        %6515 = vmatmul.mubr.bf16.gmra.mrb[0].mxu0 %v6434
        %v6516 = vpop.f32.mrb[0].mxu0
        %v6517 = vadd.f32 0.0, %v6516
        %v6518 = vpop.f32.mrb[0].mxu0
        %v6519 = vpop.f32.mrb[0].mxu0
        %v6520 = vadd.f32 0.0, %v6519
        %v6521 = vpop.f32.mrb[0].mxu0
        %6522 = vmatprep.mubr.bf16.mxu0 0
        %6523 = vmatmul.mubr.bf16.gmra.mrb[0].mxu0 %v6437
        %v6524 = vpop.f32.mrb[0].mxu0
        %v6525 = vadd.f32 0.0, %v6524
        %v6526 = vpop.f32.mrb[0].mxu0
        %v6527 = vpop.f32.mrb[0].mxu0
        %v6528 = vadd.f32 0.0, %v6527
        %v6529 = vpop.f32.mrb[0].mxu0
        %6530 = vmatprep.mubr.bf16.mxu0 0
        %6531 = vmatmul.mubr.bf16.gmra.mrb[0].mxu0 %v6440
        %v6532 = vpop.f32.mrb[0].mxu0
        %v6533 = vadd.f32 0.0, %v6532
        %v6534 = vpop.f32.mrb[0].mxu0
        %v6535 = vpop.f32.mrb[0].mxu0
        %v6536 = vadd.f32 0.0, %v6535
        %v6537 = vpop.f32.mrb[0].mxu0
        %6538 = vdwg.mxu0
        %v6539 = vadd.f32 %v6274, %v6477
        %v6540 = vadd.f32 %v6277, %v6480
        %v6541 = vadd.f32 %v6282, %v6485
        %v6542 = vadd.f32 %v6285, %v6488
        %v6543 = vadd.f32 %v6290, %v6493
        %v6544 = vadd.f32 %v6293, %v6496
        %v6545 = vadd.f32 %v6298, %v6501
        %v6546 = vadd.f32 %v6301, %v6504
        %v6547 = vadd.f32 %v6306, %v6509
        %v6548 = vadd.f32 %v6309, %v6512
        %v6549 = vadd.f32 %v6314, %v6517
        %v6550 = vadd.f32 %v6317, %v6520
        %v6551 = vadd.f32 %v6322, %v6525
        %v6552 = vadd.f32 %v6325, %v6528
        %v6553 = vadd.f32 %v6330, %v6533
        %v6554 = vadd.f32 %v6333, %v6536
        %v6555 = vpack.c.bf16 %v5958, %v5957
        %s6556 = scalar_lea.vmem %s10, 480
        %v6557 = vld [vmem:[%s6556] sm:$0xf]
        %v6558 = vld [vmem:[%s6556 + $0x4] sm:$0xf]
        %v6559 = vld [vmem:[%s6556 + $0x8] sm:$0xf]
        %v6560 = vld [vmem:[%s6556 + $0xc] sm:$0xf]
        %v6565 = vunpack.c.l.b16 %v6557
        %v6566 = vunpack.c.l.b16 %v6558
        %v6567 = vunpack.c.l.b16 %v6559
        %v6568 = vunpack.c.l.b16 %v6560
        %v6569 = vpack.c.b16 %v6566, %v6565
        %v6570 = vpack.c.b16 %v6568, %v6567
        %v6574 = vsel %vm5402, %v6555, 0
        %6576 = vmatprep.subr.bf16.mxu0 0
        %6577 = vmatpush1.bf16.msra.mxu0 %v6569
        %6578 = vmatprep.subr.bf16.mxu0 0
        %6579 = vmatpush1.bf16.msra.mxu0 %v6570
        %6580 = vmatprep.subr.bf16.mxu0 0
        %6581 = vmatpush1.bf16.msra.mxu0 0
        %6582 = vmatprep.subr.bf16.mxu0 0
        %6583 = vmatpush1.bf16.msra.mxu0 0
        %6584 = vmatprep.subr.bf16.mxu0 0
        %6585 = vmatpush1.bf16.msra.mxu0 0
        %6586 = vmatprep.subr.bf16.mxu0 0
        %6587 = vmatpush1.bf16.msra.mxu0 0
        %6588 = vmatprep.subr.bf16.mxu0 0
        %6589 = vmatpush1.bf16.msra.mxu0 0
        %6590 = vmatprep.subr.bf16.mxu0 0
        %6591 = vmatpush1.bf16.msra.mxu0 0
        %6592 = vmatprep.subr.bf16.mxu0 0
        %6593 = vmatpush1.bf16.msra.mxu0 0
        %6594 = vmatprep.subr.bf16.mxu0 0
        %6595 = vmatpush1.bf16.msra.mxu0 0
        %6596 = vmatprep.subr.bf16.mxu0 0
        %6597 = vmatpush1.bf16.msra.mxu0 0
        %6598 = vmatprep.subr.bf16.mxu0 0
        %6599 = vmatpush1.bf16.msra.mxu0 0
        %6600 = vmatprep.subr.bf16.mxu0 0
        %6601 = vmatpush1.bf16.msra.mxu0 0
        %6602 = vmatprep.subr.bf16.mxu0 0
        %6603 = vmatpush1.bf16.msra.mxu0 0
        %6604 = vmatprep.subr.bf16.mxu0 0
        %6605 = vmatpush1.bf16.msra.mxu0 0
        %6606 = vmatprep.subr.bf16.mxu0 0
        %6607 = vmatpush1.bf16.msra.mxu0 0
        %6608 = vmatprep.mubr.bf16.mxu0 0
        %6609 = vmatmul.mubr.bf16.gmra.mrb[0].mxu0 %v6219
        %v6610 = vpop.f32.mrb[0].mxu0
        %v6611 = vadd.f32 0.0, %v6610
        %v6612 = vpop.f32.mrb[0].mxu0
        %v6613 = vpop.f32.mrb[0].mxu0
        %v6614 = vadd.f32 0.0, %v6613
        %v6615 = vpop.f32.mrb[0].mxu0
        %6616 = vmatprep.mubr.bf16.mxu0 0
        %6617 = vmatmul.mubr.bf16.gmra.mrb[0].mxu0 %v6222
        %v6618 = vpop.f32.mrb[0].mxu0
        %v6619 = vadd.f32 0.0, %v6618
        %v6620 = vpop.f32.mrb[0].mxu0
        %v6621 = vpop.f32.mrb[0].mxu0
        %v6622 = vadd.f32 0.0, %v6621
        %v6623 = vpop.f32.mrb[0].mxu0
        %6624 = vmatprep.mubr.bf16.mxu0 0
        %6625 = vmatmul.mubr.bf16.gmra.mrb[0].mxu0 %v6225
        %v6626 = vpop.f32.mrb[0].mxu0
        %v6627 = vadd.f32 0.0, %v6626
        %v6628 = vpop.f32.mrb[0].mxu0
        %v6629 = vpop.f32.mrb[0].mxu0
        %v6630 = vadd.f32 0.0, %v6629
        %v6631 = vpop.f32.mrb[0].mxu0
        %6632 = vmatprep.mubr.bf16.mxu0 0
        %6633 = vmatmul.mubr.bf16.gmra.mrb[0].mxu0 %v6228
        %v6634 = vpop.f32.mrb[0].mxu0
        %v6635 = vadd.f32 0.0, %v6634
        %v6636 = vpop.f32.mrb[0].mxu0
        %v6637 = vpop.f32.mrb[0].mxu0
        %v6638 = vadd.f32 0.0, %v6637
        %v6639 = vpop.f32.mrb[0].mxu0
        %6640 = vmatprep.mubr.bf16.mxu0 0
        %6641 = vmatmul.mubr.bf16.gmra.mrb[0].mxu0 %v6231
        %v6642 = vpop.f32.mrb[0].mxu0
        %v6643 = vadd.f32 0.0, %v6642
        %v6644 = vpop.f32.mrb[0].mxu0
        %v6645 = vpop.f32.mrb[0].mxu0
        %v6646 = vadd.f32 0.0, %v6645
        %v6647 = vpop.f32.mrb[0].mxu0
        %6648 = vmatprep.mubr.bf16.mxu0 0
        %6649 = vmatmul.mubr.bf16.gmra.mrb[0].mxu0 %v6234
        %v6650 = vpop.f32.mrb[0].mxu0
        %v6651 = vadd.f32 0.0, %v6650
        %v6652 = vpop.f32.mrb[0].mxu0
        %v6653 = vpop.f32.mrb[0].mxu0
        %v6654 = vadd.f32 0.0, %v6653
        %v6655 = vpop.f32.mrb[0].mxu0
        %6656 = vmatprep.mubr.bf16.mxu0 0
        %6657 = vmatmul.mubr.bf16.gmra.mrb[0].mxu0 %v6237
        %v6658 = vpop.f32.mrb[0].mxu0
        %v6659 = vadd.f32 0.0, %v6658
        %v6660 = vpop.f32.mrb[0].mxu0
        %v6661 = vpop.f32.mrb[0].mxu0
        %v6662 = vadd.f32 0.0, %v6661
        %v6663 = vpop.f32.mrb[0].mxu0
        %6664 = vmatprep.mubr.bf16.mxu0 0
        %6665 = vmatmul.mubr.bf16.gmra.mrb[0].mxu0 %v6574
        %v6666 = vpop.f32.mrb[0].mxu0
        %v6667 = vadd.f32 0.0, %v6666
        %v6668 = vpop.f32.mrb[0].mxu0
        %v6669 = vpop.f32.mrb[0].mxu0
        %v6670 = vadd.f32 0.0, %v6669
        %v6671 = vpop.f32.mrb[0].mxu0
        %6672 = vdwg.mxu0
        %v6673 = vadd.f32 %v6539, %v6611
        %v6674 = vadd.f32 %v6540, %v6614
        %v6675 = vadd.f32 %v6541, %v6619
        %v6676 = vadd.f32 %v6542, %v6622
        %v6677 = vadd.f32 %v6543, %v6627
        %v6678 = vadd.f32 %v6544, %v6630
        %v6679 = vadd.f32 %v6545, %v6635
        %v6680 = vadd.f32 %v6546, %v6638
        %v6681 = vadd.f32 %v6547, %v6643
        %v6682 = vadd.f32 %v6548, %v6646
        %v6683 = vadd.f32 %v6549, %v6651
        %v6684 = vadd.f32 %v6550, %v6654
        %v6685 = vadd.f32 %v6551, %v6659
        %v6686 = vadd.f32 %v6552, %v6662
        %v6687 = vadd.f32 %v6553, %v6667
        %v6688 = vadd.f32 %v6554, %v6670
        %v6692 = vrot.slane %v5957, 1
        %v6693 = vrot.slane %v5958, 1
        %v6694 = vsel %vm6000, %v6692, %v6693
        %v6695 = vrot.slane %v5959, 1
        %v6696 = vsel %vm6000, %v6693, %v6695
        %v6699 = vpack.c.bf16 %v6696, %v6694
        %s6700 = scalar_lea.vmem %s10, 496
        %v6701 = vld [vmem:[%s6700] sm:$0xf]
        %v6702 = vld [vmem:[%s6700 + $0x4] sm:$0xf]
        %v6703 = vld [vmem:[%s6700 + $0x8] sm:$0xf]
        %v6704 = vld [vmem:[%s6700 + $0xc] sm:$0xf]
        %v6709 = vunpack.c.l.b16 %v6701
        %v6710 = vunpack.c.l.b16 %v6702
        %v6711 = vunpack.c.l.b16 %v6703
        %v6712 = vunpack.c.l.b16 %v6704
        %v6713 = vpack.c.b16 %v6710, %v6709
        %v6714 = vpack.c.b16 %v6712, %v6711
        %v6718 = vsel %vm5402, %v6699, 0
        %6720 = vmatprep.subr.bf16.mxu0 0
        %6721 = vmatpush1.bf16.msra.mxu0 %v6713
        %6722 = vmatprep.subr.bf16.mxu0 0
        %6723 = vmatpush1.bf16.msra.mxu0 %v6714
        %6724 = vmatprep.subr.bf16.mxu0 0
        %6725 = vmatpush1.bf16.msra.mxu0 0
        %6726 = vmatprep.subr.bf16.mxu0 0
        %6727 = vmatpush1.bf16.msra.mxu0 0
        %6728 = vmatprep.subr.bf16.mxu0 0
        %6729 = vmatpush1.bf16.msra.mxu0 0
        %6730 = vmatprep.subr.bf16.mxu0 0
        %6731 = vmatpush1.bf16.msra.mxu0 0
        %6732 = vmatprep.subr.bf16.mxu0 0
        %6733 = vmatpush1.bf16.msra.mxu0 0
        %6734 = vmatprep.subr.bf16.mxu0 0
        %6735 = vmatpush1.bf16.msra.mxu0 0
        %6736 = vmatprep.subr.bf16.mxu0 0
        %6737 = vmatpush1.bf16.msra.mxu0 0
        %6738 = vmatprep.subr.bf16.mxu0 0
        %6739 = vmatpush1.bf16.msra.mxu0 0
        %6740 = vmatprep.subr.bf16.mxu0 0
        %6741 = vmatpush1.bf16.msra.mxu0 0
        %6742 = vmatprep.subr.bf16.mxu0 0
        %6743 = vmatpush1.bf16.msra.mxu0 0
        %6744 = vmatprep.subr.bf16.mxu0 0
        %6745 = vmatpush1.bf16.msra.mxu0 0
        %6746 = vmatprep.subr.bf16.mxu0 0
        %6747 = vmatpush1.bf16.msra.mxu0 0
        %6748 = vmatprep.subr.bf16.mxu0 0
        %6749 = vmatpush1.bf16.msra.mxu0 0
        %6750 = vmatprep.subr.bf16.mxu0 0
        %6751 = vmatpush1.bf16.msra.mxu0 0
        %6752 = vmatprep.mubr.bf16.mxu0 0
        %6753 = vmatmul.mubr.bf16.gmra.mrb[0].mxu0 %v6086
        %v6754 = vpop.f32.mrb[0].mxu0
        %v6755 = vadd.f32 0.0, %v6754
        %v6756 = vpop.f32.mrb[0].mxu0
        %v6757 = vpop.f32.mrb[0].mxu0
        %v6758 = vadd.f32 0.0, %v6757
        %v6759 = vpop.f32.mrb[0].mxu0
        %6760 = vmatprep.mubr.bf16.mxu0 0
        %6761 = vmatmul.mubr.bf16.gmra.mrb[0].mxu0 %v6089
        %v6762 = vpop.f32.mrb[0].mxu0
        %v6763 = vadd.f32 0.0, %v6762
        %v6764 = vpop.f32.mrb[0].mxu0
        %v6765 = vpop.f32.mrb[0].mxu0
        %v6766 = vadd.f32 0.0, %v6765
        %v6767 = vpop.f32.mrb[0].mxu0
        %6768 = vmatprep.mubr.bf16.mxu0 0
        %6769 = vmatmul.mubr.bf16.gmra.mrb[0].mxu0 %v6092
        %v6770 = vpop.f32.mrb[0].mxu0
        %v6771 = vadd.f32 0.0, %v6770
        %v6772 = vpop.f32.mrb[0].mxu0
        %v6773 = vpop.f32.mrb[0].mxu0
        %v6774 = vadd.f32 0.0, %v6773
        %v6775 = vpop.f32.mrb[0].mxu0
        %6776 = vmatprep.mubr.bf16.mxu0 0
        %6777 = vmatmul.mubr.bf16.gmra.mrb[0].mxu0 %v6095
        %v6778 = vpop.f32.mrb[0].mxu0
        %v6779 = vadd.f32 0.0, %v6778
        %v6780 = vpop.f32.mrb[0].mxu0
        %v6781 = vpop.f32.mrb[0].mxu0
        %v6782 = vadd.f32 0.0, %v6781
        %v6783 = vpop.f32.mrb[0].mxu0
        %6784 = vmatprep.mubr.bf16.mxu0 0
        %6785 = vmatmul.mubr.bf16.gmra.mrb[0].mxu0 %v6098
        %v6786 = vpop.f32.mrb[0].mxu0
        %v6787 = vadd.f32 0.0, %v6786
        %v6788 = vpop.f32.mrb[0].mxu0
        %v6789 = vpop.f32.mrb[0].mxu0
        %v6790 = vadd.f32 0.0, %v6789
        %v6791 = vpop.f32.mrb[0].mxu0
        %6792 = vmatprep.mubr.bf16.mxu0 0
        %6793 = vmatmul.mubr.bf16.gmra.mrb[0].mxu0 %v6101
        %v6794 = vpop.f32.mrb[0].mxu0
        %v6795 = vadd.f32 0.0, %v6794
        %v6796 = vpop.f32.mrb[0].mxu0
        %v6797 = vpop.f32.mrb[0].mxu0
        %v6798 = vadd.f32 0.0, %v6797
        %v6799 = vpop.f32.mrb[0].mxu0
        %6800 = vmatprep.mubr.bf16.mxu0 0
        %6801 = vmatmul.mubr.bf16.gmra.mrb[0].mxu0 %v6104
        %v6802 = vpop.f32.mrb[0].mxu0
        %v6803 = vadd.f32 0.0, %v6802
        %v6804 = vpop.f32.mrb[0].mxu0
        %v6805 = vpop.f32.mrb[0].mxu0
        %v6806 = vadd.f32 0.0, %v6805
        %v6807 = vpop.f32.mrb[0].mxu0
        %6808 = vmatprep.mubr.bf16.mxu0 0
        %6809 = vmatmul.mubr.bf16.gmra.mrb[0].mxu0 %v6718
        %v6810 = vpop.f32.mrb[0].mxu0
        %v6811 = vadd.f32 0.0, %v6810
        %v6812 = vpop.f32.mrb[0].mxu0
        %v6813 = vpop.f32.mrb[0].mxu0
        %v6814 = vadd.f32 0.0, %v6813
        %v6815 = vpop.f32.mrb[0].mxu0
        %6816 = vdwg.mxu0
        %v6817 = vadd.f32 %v6673, %v6755
        %v6818 = vadd.f32 %v6674, %v6758
        %v6819 = vadd.f32 %v6675, %v6763
        %v6820 = vadd.f32 %v6676, %v6766
        %v6821 = vadd.f32 %v6677, %v6771
        %v6822 = vadd.f32 %v6678, %v6774
        %v6823 = vadd.f32 %v6679, %v6779
        %v6824 = vadd.f32 %v6680, %v6782
        %v6825 = vadd.f32 %v6681, %v6787
        %v6826 = vadd.f32 %v6682, %v6790
        %v6827 = vadd.f32 %v6683, %v6795
        %v6828 = vadd.f32 %v6684, %v6798
        %v6829 = vadd.f32 %v6685, %v6803
        %v6830 = vadd.f32 %v6686, %v6806
        %v6831 = vadd.f32 %v6687, %v6811
        %v6832 = vadd.f32 %v6688, %v6814
        %v6833 = vrot.slane %v5957, 2
        %v6834 = vrot.slane %v5958, 2
        %v6835 = vsel %vm6336, %v6833, %v6834
        %v6836 = vrot.slane %v5959, 2
        %v6837 = vsel %vm6336, %v6834, %v6836
        %v6840 = vpack.c.bf16 %v6837, %v6835
        %s6841 = scalar_lea.vmem %s10, 512
        %v6842 = vld [vmem:[%s6841] sm:$0xf]
        %v6843 = vld [vmem:[%s6841 + $0x4] sm:$0xf]
        %v6844 = vld [vmem:[%s6841 + $0x8] sm:$0xf]
        %v6845 = vld [vmem:[%s6841 + $0xc] sm:$0xf]
        %v6850 = vunpack.c.l.b16 %v6842
        %v6851 = vunpack.c.l.b16 %v6843
        %v6852 = vunpack.c.l.b16 %v6844
        %v6853 = vunpack.c.l.b16 %v6845
        %v6854 = vpack.c.b16 %v6851, %v6850
        %v6855 = vpack.c.b16 %v6853, %v6852
        %v6859 = vsel %vm5402, %v6840, 0
        %6861 = vmatprep.subr.bf16.mxu0 0
        %6862 = vmatpush1.bf16.msra.mxu0 %v6854
        %6863 = vmatprep.subr.bf16.mxu0 0
        %6864 = vmatpush1.bf16.msra.mxu0 %v6855
        %6865 = vmatprep.subr.bf16.mxu0 0
        %6866 = vmatpush1.bf16.msra.mxu0 0
        %6867 = vmatprep.subr.bf16.mxu0 0
        %6868 = vmatpush1.bf16.msra.mxu0 0
        %6869 = vmatprep.subr.bf16.mxu0 0
        %6870 = vmatpush1.bf16.msra.mxu0 0
        %6871 = vmatprep.subr.bf16.mxu0 0
        %6872 = vmatpush1.bf16.msra.mxu0 0
        %6873 = vmatprep.subr.bf16.mxu0 0
        %6874 = vmatpush1.bf16.msra.mxu0 0
        %6875 = vmatprep.subr.bf16.mxu0 0
        %6876 = vmatpush1.bf16.msra.mxu0 0
        %6877 = vmatprep.subr.bf16.mxu0 0
        %6878 = vmatpush1.bf16.msra.mxu0 0
        %6879 = vmatprep.subr.bf16.mxu0 0
        %6880 = vmatpush1.bf16.msra.mxu0 0
        %6881 = vmatprep.subr.bf16.mxu0 0
        %6882 = vmatpush1.bf16.msra.mxu0 0
        %6883 = vmatprep.subr.bf16.mxu0 0
        %6884 = vmatpush1.bf16.msra.mxu0 0
        %6885 = vmatprep.subr.bf16.mxu0 0
        %6886 = vmatpush1.bf16.msra.mxu0 0
        %6887 = vmatprep.subr.bf16.mxu0 0
        %6888 = vmatpush1.bf16.msra.mxu0 0
        %6889 = vmatprep.subr.bf16.mxu0 0
        %6890 = vmatpush1.bf16.msra.mxu0 0
        %6891 = vmatprep.subr.bf16.mxu0 0
        %6892 = vmatpush1.bf16.msra.mxu0 0
        %6893 = vmatprep.mubr.bf16.mxu0 0
        %6894 = vmatmul.mubr.bf16.gmra.mrb[0].mxu0 %v6422
        %v6895 = vpop.f32.mrb[0].mxu0
        %v6896 = vadd.f32 0.0, %v6895
        %v6897 = vpop.f32.mrb[0].mxu0
        %v6898 = vpop.f32.mrb[0].mxu0
        %v6899 = vadd.f32 0.0, %v6898
        %v6900 = vpop.f32.mrb[0].mxu0
        %6901 = vmatprep.mubr.bf16.mxu0 0
        %6902 = vmatmul.mubr.bf16.gmra.mrb[0].mxu0 %v6425
        %v6903 = vpop.f32.mrb[0].mxu0
        %v6904 = vadd.f32 0.0, %v6903
        %v6905 = vpop.f32.mrb[0].mxu0
        %v6906 = vpop.f32.mrb[0].mxu0
        %v6907 = vadd.f32 0.0, %v6906
        %v6908 = vpop.f32.mrb[0].mxu0
        %6909 = vmatprep.mubr.bf16.mxu0 0
        %6910 = vmatmul.mubr.bf16.gmra.mrb[0].mxu0 %v6428
        %v6911 = vpop.f32.mrb[0].mxu0
        %v6912 = vadd.f32 0.0, %v6911
        %v6913 = vpop.f32.mrb[0].mxu0
        %v6914 = vpop.f32.mrb[0].mxu0
        %v6915 = vadd.f32 0.0, %v6914
        %v6916 = vpop.f32.mrb[0].mxu0
        %6917 = vmatprep.mubr.bf16.mxu0 0
        %6918 = vmatmul.mubr.bf16.gmra.mrb[0].mxu0 %v6431
        %v6919 = vpop.f32.mrb[0].mxu0
        %v6920 = vadd.f32 0.0, %v6919
        %v6921 = vpop.f32.mrb[0].mxu0
        %v6922 = vpop.f32.mrb[0].mxu0
        %v6923 = vadd.f32 0.0, %v6922
        %v6924 = vpop.f32.mrb[0].mxu0
        %6925 = vmatprep.mubr.bf16.mxu0 0
        %6926 = vmatmul.mubr.bf16.gmra.mrb[0].mxu0 %v6434
        %v6927 = vpop.f32.mrb[0].mxu0
        %v6928 = vadd.f32 0.0, %v6927
        %v6929 = vpop.f32.mrb[0].mxu0
        %v6930 = vpop.f32.mrb[0].mxu0
        %v6931 = vadd.f32 0.0, %v6930
        %v6932 = vpop.f32.mrb[0].mxu0
        %6933 = vmatprep.mubr.bf16.mxu0 0
        %6934 = vmatmul.mubr.bf16.gmra.mrb[0].mxu0 %v6437
        %v6935 = vpop.f32.mrb[0].mxu0
        %v6936 = vadd.f32 0.0, %v6935
        %v6937 = vpop.f32.mrb[0].mxu0
        %v6938 = vpop.f32.mrb[0].mxu0
        %v6939 = vadd.f32 0.0, %v6938
        %v6940 = vpop.f32.mrb[0].mxu0
        %6941 = vmatprep.mubr.bf16.mxu0 0
        %6942 = vmatmul.mubr.bf16.gmra.mrb[0].mxu0 %v6440
        %v6943 = vpop.f32.mrb[0].mxu0
        %v6944 = vadd.f32 0.0, %v6943
        %v6945 = vpop.f32.mrb[0].mxu0
        %v6946 = vpop.f32.mrb[0].mxu0
        %v6947 = vadd.f32 0.0, %v6946
        %v6948 = vpop.f32.mrb[0].mxu0
        %6949 = vmatprep.mubr.bf16.mxu0 0
        %6950 = vmatmul.mubr.bf16.gmra.mrb[0].mxu0 %v6859
        %v6951 = vpop.f32.mrb[0].mxu0
        %v6952 = vadd.f32 0.0, %v6951
        %v6953 = vpop.f32.mrb[0].mxu0
        %v6954 = vpop.f32.mrb[0].mxu0
        %v6955 = vadd.f32 0.0, %v6954
        %v6956 = vpop.f32.mrb[0].mxu0
        %6957 = vdwg.mxu0
        %v6958 = vadd.f32 %v6817, %v6896
        %v6959 = vadd.f32 %v6818, %v6899
        %v6960 = vadd.f32 %v6819, %v6904
        %v6961 = vadd.f32 %v6820, %v6907
        %v6962 = vadd.f32 %v6821, %v6912
        %v6963 = vadd.f32 %v6822, %v6915
        %v6964 = vadd.f32 %v6823, %v6920
        %v6965 = vadd.f32 %v6824, %v6923
        %v6966 = vadd.f32 %v6825, %v6928
        %v6967 = vadd.f32 %v6826, %v6931
        %v6968 = vadd.f32 %v6827, %v6936
        %v6969 = vadd.f32 %v6828, %v6939
        %v6970 = vadd.f32 %v6829, %v6944
        %v6971 = vadd.f32 %v6830, %v6947
        %v6972 = vadd.f32 %v6831, %v6952
        %v6973 = vadd.f32 %v6832, %v6955
        %v6974 = vpack.c.bf16 %v5961, %v5960
        %s6975 = scalar_lea.vmem %s10, 528
        %v6976 = vld [vmem:[%s6975] sm:$0xf]
        %v6977 = vld [vmem:[%s6975 + $0x4] sm:$0xf]
        %v6978 = vld [vmem:[%s6975 + $0x8] sm:$0xf]
        %v6979 = vld [vmem:[%s6975 + $0xc] sm:$0xf]
        %v6984 = vunpack.c.l.b16 %v6976
        %v6985 = vunpack.c.l.b16 %v6977
        %v6986 = vunpack.c.l.b16 %v6978
        %v6987 = vunpack.c.l.b16 %v6979
        %v6988 = vpack.c.b16 %v6985, %v6984
        %v6989 = vpack.c.b16 %v6987, %v6986
        %v6993 = vsel %vm5402, %v6974, 0
        %6995 = vmatprep.subr.bf16.mxu0 0
        %6996 = vmatpush1.bf16.msra.mxu0 %v6988
        %6997 = vmatprep.subr.bf16.mxu0 0
        %6998 = vmatpush1.bf16.msra.mxu0 %v6989
        %6999 = vmatprep.subr.bf16.mxu0 0
        %7000 = vmatpush1.bf16.msra.mxu0 0
        %7001 = vmatprep.subr.bf16.mxu0 0
        %7002 = vmatpush1.bf16.msra.mxu0 0
        %7003 = vmatprep.subr.bf16.mxu0 0
        %7004 = vmatpush1.bf16.msra.mxu0 0
        %7005 = vmatprep.subr.bf16.mxu0 0
        %7006 = vmatpush1.bf16.msra.mxu0 0
        %7007 = vmatprep.subr.bf16.mxu0 0
        %7008 = vmatpush1.bf16.msra.mxu0 0
        %7009 = vmatprep.subr.bf16.mxu0 0
        %7010 = vmatpush1.bf16.msra.mxu0 0
        %7011 = vmatprep.subr.bf16.mxu0 0
        %7012 = vmatpush1.bf16.msra.mxu0 0
        %7013 = vmatprep.subr.bf16.mxu0 0
        %7014 = vmatpush1.bf16.msra.mxu0 0
        %7015 = vmatprep.subr.bf16.mxu0 0
        %7016 = vmatpush1.bf16.msra.mxu0 0
        %7017 = vmatprep.subr.bf16.mxu0 0
        %7018 = vmatpush1.bf16.msra.mxu0 0
        %7019 = vmatprep.subr.bf16.mxu0 0
        %7020 = vmatpush1.bf16.msra.mxu0 0
        %7021 = vmatprep.subr.bf16.mxu0 0
        %7022 = vmatpush1.bf16.msra.mxu0 0
        %7023 = vmatprep.subr.bf16.mxu0 0
        %7024 = vmatpush1.bf16.msra.mxu0 0
        %7025 = vmatprep.subr.bf16.mxu0 0
        %7026 = vmatpush1.bf16.msra.mxu0 0
        %7027 = vmatprep.mubr.bf16.mxu0 0
        %7028 = vmatmul.mubr.bf16.gmra.mrb[0].mxu0 %v6222
        %v7029 = vpop.f32.mrb[0].mxu0
        %v7030 = vadd.f32 0.0, %v7029
        %v7031 = vpop.f32.mrb[0].mxu0
        %v7032 = vpop.f32.mrb[0].mxu0
        %v7033 = vadd.f32 0.0, %v7032
        %v7034 = vpop.f32.mrb[0].mxu0
        %7035 = vmatprep.mubr.bf16.mxu0 0
        %7036 = vmatmul.mubr.bf16.gmra.mrb[0].mxu0 %v6225
        %v7037 = vpop.f32.mrb[0].mxu0
        %v7038 = vadd.f32 0.0, %v7037
        %v7039 = vpop.f32.mrb[0].mxu0
        %v7040 = vpop.f32.mrb[0].mxu0
        %v7041 = vadd.f32 0.0, %v7040
        %v7042 = vpop.f32.mrb[0].mxu0
        %7043 = vmatprep.mubr.bf16.mxu0 0
        %7044 = vmatmul.mubr.bf16.gmra.mrb[0].mxu0 %v6228
        %v7045 = vpop.f32.mrb[0].mxu0
        %v7046 = vadd.f32 0.0, %v7045
        %v7047 = vpop.f32.mrb[0].mxu0
        %v7048 = vpop.f32.mrb[0].mxu0
        %v7049 = vadd.f32 0.0, %v7048
        %v7050 = vpop.f32.mrb[0].mxu0
        %7051 = vmatprep.mubr.bf16.mxu0 0
        %7052 = vmatmul.mubr.bf16.gmra.mrb[0].mxu0 %v6231
        %v7053 = vpop.f32.mrb[0].mxu0
        %v7054 = vadd.f32 0.0, %v7053
        %v7055 = vpop.f32.mrb[0].mxu0
        %v7056 = vpop.f32.mrb[0].mxu0
        %v7057 = vadd.f32 0.0, %v7056
        %v7058 = vpop.f32.mrb[0].mxu0
        %7059 = vmatprep.mubr.bf16.mxu0 0
        %7060 = vmatmul.mubr.bf16.gmra.mrb[0].mxu0 %v6234
        %v7061 = vpop.f32.mrb[0].mxu0
        %v7062 = vadd.f32 0.0, %v7061
        %v7063 = vpop.f32.mrb[0].mxu0
        %v7064 = vpop.f32.mrb[0].mxu0
        %v7065 = vadd.f32 0.0, %v7064
        %v7066 = vpop.f32.mrb[0].mxu0
        %7067 = vmatprep.mubr.bf16.mxu0 0
        %7068 = vmatmul.mubr.bf16.gmra.mrb[0].mxu0 %v6237
        %v7069 = vpop.f32.mrb[0].mxu0
        %v7070 = vadd.f32 0.0, %v7069
        %v7071 = vpop.f32.mrb[0].mxu0
        %v7072 = vpop.f32.mrb[0].mxu0
        %v7073 = vadd.f32 0.0, %v7072
        %v7074 = vpop.f32.mrb[0].mxu0
        %7075 = vmatprep.mubr.bf16.mxu0 0
        %7076 = vmatmul.mubr.bf16.gmra.mrb[0].mxu0 %v6574
        %v7077 = vpop.f32.mrb[0].mxu0
        %v7078 = vadd.f32 0.0, %v7077
        %v7079 = vpop.f32.mrb[0].mxu0
        %v7080 = vpop.f32.mrb[0].mxu0
        %v7081 = vadd.f32 0.0, %v7080
        %v7082 = vpop.f32.mrb[0].mxu0
        %7083 = vmatprep.mubr.bf16.mxu0 0
        %7084 = vmatmul.mubr.bf16.gmra.mrb[0].mxu0 %v6993
        %v7085 = vpop.f32.mrb[0].mxu0
        %v7086 = vadd.f32 0.0, %v7085
        %v7087 = vpop.f32.mrb[0].mxu0
        %v7088 = vpop.f32.mrb[0].mxu0
        %v7089 = vadd.f32 0.0, %v7088
        %v7090 = vpop.f32.mrb[0].mxu0
        %7091 = vdwg.mxu0
        %v7092 = vadd.f32 %v6958, %v7030
        %v7093 = vadd.f32 %v6959, %v7033
        %v7094 = vadd.f32 %v6960, %v7038
        %v7095 = vadd.f32 %v6961, %v7041
        %v7096 = vadd.f32 %v6962, %v7046
        %v7097 = vadd.f32 %v6963, %v7049
        %v7098 = vadd.f32 %v6964, %v7054
        %v7099 = vadd.f32 %v6965, %v7057
        %v7100 = vadd.f32 %v6966, %v7062
        %v7101 = vadd.f32 %v6967, %v7065
        %v7102 = vadd.f32 %v6968, %v7070
        %v7103 = vadd.f32 %v6969, %v7073
        %v7104 = vadd.f32 %v6970, %v7078
        %v7105 = vadd.f32 %v6971, %v7081
        %v7106 = vadd.f32 %v6972, %v7086
        %v7107 = vadd.f32 %v6973, %v7089
        %v7111 = vrot.slane %v5960, 1
        %v7112 = vrot.slane %v5961, 1
        %v7113 = vsel %vm6000, %v7111, %v7112
        %v7114 = vrot.slane %v5962, 1
        %v7115 = vsel %vm6000, %v7112, %v7114
        %v7118 = vpack.c.bf16 %v7115, %v7113
        %s7119 = scalar_lea.vmem %s10, 544
        %v7120 = vld [vmem:[%s7119] sm:$0xf]
        %v7121 = vld [vmem:[%s7119 + $0x4] sm:$0xf]
        %v7122 = vld [vmem:[%s7119 + $0x8] sm:$0xf]
        %v7123 = vld [vmem:[%s7119 + $0xc] sm:$0xf]
        %v7128 = vunpack.c.l.b16 %v7120
        %v7129 = vunpack.c.l.b16 %v7121
        %v7130 = vunpack.c.l.b16 %v7122
        %v7131 = vunpack.c.l.b16 %v7123
        %v7132 = vpack.c.b16 %v7129, %v7128
        %v7133 = vpack.c.b16 %v7131, %v7130
        %v7137 = vsel %vm5402, %v7118, 0
        %7139 = vmatprep.subr.bf16.mxu0 0
        %7140 = vmatpush1.bf16.msra.mxu0 %v7132
        %7141 = vmatprep.subr.bf16.mxu0 0
        %7142 = vmatpush1.bf16.msra.mxu0 %v7133
        %7143 = vmatprep.subr.bf16.mxu0 0
        %7144 = vmatpush1.bf16.msra.mxu0 0
        %7145 = vmatprep.subr.bf16.mxu0 0
        %7146 = vmatpush1.bf16.msra.mxu0 0
        %7147 = vmatprep.subr.bf16.mxu0 0
        %7148 = vmatpush1.bf16.msra.mxu0 0
        %7149 = vmatprep.subr.bf16.mxu0 0
        %7150 = vmatpush1.bf16.msra.mxu0 0
        %7151 = vmatprep.subr.bf16.mxu0 0
        %7152 = vmatpush1.bf16.msra.mxu0 0
        %7153 = vmatprep.subr.bf16.mxu0 0
        %7154 = vmatpush1.bf16.msra.mxu0 0
        %7155 = vmatprep.subr.bf16.mxu0 0
        %7156 = vmatpush1.bf16.msra.mxu0 0
        %7157 = vmatprep.subr.bf16.mxu0 0
        %7158 = vmatpush1.bf16.msra.mxu0 0
        %7159 = vmatprep.subr.bf16.mxu0 0
        %7160 = vmatpush1.bf16.msra.mxu0 0
        %7161 = vmatprep.subr.bf16.mxu0 0
        %7162 = vmatpush1.bf16.msra.mxu0 0
        %7163 = vmatprep.subr.bf16.mxu0 0
        %7164 = vmatpush1.bf16.msra.mxu0 0
        %7165 = vmatprep.subr.bf16.mxu0 0
        %7166 = vmatpush1.bf16.msra.mxu0 0
        %7167 = vmatprep.subr.bf16.mxu0 0
        %7168 = vmatpush1.bf16.msra.mxu0 0
        %7169 = vmatprep.subr.bf16.mxu0 0
        %7170 = vmatpush1.bf16.msra.mxu0 0
        %7171 = vmatprep.mubr.bf16.mxu0 0
        %7172 = vmatmul.mubr.bf16.gmra.mrb[0].mxu0 %v6089
        %v7173 = vpop.f32.mrb[0].mxu0
        %v7174 = vadd.f32 0.0, %v7173
        %v7175 = vpop.f32.mrb[0].mxu0
        %v7176 = vpop.f32.mrb[0].mxu0
        %v7177 = vadd.f32 0.0, %v7176
        %v7178 = vpop.f32.mrb[0].mxu0
        %7179 = vmatprep.mubr.bf16.mxu0 0
        %7180 = vmatmul.mubr.bf16.gmra.mrb[0].mxu0 %v6092
        %v7181 = vpop.f32.mrb[0].mxu0
        %v7182 = vadd.f32 0.0, %v7181
        %v7183 = vpop.f32.mrb[0].mxu0
        %v7184 = vpop.f32.mrb[0].mxu0
        %v7185 = vadd.f32 0.0, %v7184
        %v7186 = vpop.f32.mrb[0].mxu0
        %7187 = vmatprep.mubr.bf16.mxu0 0
        %7188 = vmatmul.mubr.bf16.gmra.mrb[0].mxu0 %v6095
        %v7189 = vpop.f32.mrb[0].mxu0
        %v7190 = vadd.f32 0.0, %v7189
        %v7191 = vpop.f32.mrb[0].mxu0
        %v7192 = vpop.f32.mrb[0].mxu0
        %v7193 = vadd.f32 0.0, %v7192
        %v7194 = vpop.f32.mrb[0].mxu0
        %7195 = vmatprep.mubr.bf16.mxu0 0
        %7196 = vmatmul.mubr.bf16.gmra.mrb[0].mxu0 %v6098
        %v7197 = vpop.f32.mrb[0].mxu0
        %v7198 = vadd.f32 0.0, %v7197
        %v7199 = vpop.f32.mrb[0].mxu0
        %v7200 = vpop.f32.mrb[0].mxu0
        %v7201 = vadd.f32 0.0, %v7200
        %v7202 = vpop.f32.mrb[0].mxu0
        %7203 = vmatprep.mubr.bf16.mxu0 0
        %7204 = vmatmul.mubr.bf16.gmra.mrb[0].mxu0 %v6101
        %v7205 = vpop.f32.mrb[0].mxu0
        %v7206 = vadd.f32 0.0, %v7205
        %v7207 = vpop.f32.mrb[0].mxu0
        %v7208 = vpop.f32.mrb[0].mxu0
        %v7209 = vadd.f32 0.0, %v7208
        %v7210 = vpop.f32.mrb[0].mxu0
        %7211 = vmatprep.mubr.bf16.mxu0 0
        %7212 = vmatmul.mubr.bf16.gmra.mrb[0].mxu0 %v6104
        %v7213 = vpop.f32.mrb[0].mxu0
        %v7214 = vadd.f32 0.0, %v7213
        %v7215 = vpop.f32.mrb[0].mxu0
        %v7216 = vpop.f32.mrb[0].mxu0
        %v7217 = vadd.f32 0.0, %v7216
        %v7218 = vpop.f32.mrb[0].mxu0
        %7219 = vmatprep.mubr.bf16.mxu0 0
        %7220 = vmatmul.mubr.bf16.gmra.mrb[0].mxu0 %v6718
        %v7221 = vpop.f32.mrb[0].mxu0
        %v7222 = vadd.f32 0.0, %v7221
        %v7223 = vpop.f32.mrb[0].mxu0
        %v7224 = vpop.f32.mrb[0].mxu0
        %v7225 = vadd.f32 0.0, %v7224
        %v7226 = vpop.f32.mrb[0].mxu0
        %7227 = vmatprep.mubr.bf16.mxu0 0
        %7228 = vmatmul.mubr.bf16.gmra.mrb[0].mxu0 %v7137
        %v7229 = vpop.f32.mrb[0].mxu0
        %v7230 = vadd.f32 0.0, %v7229
        %v7231 = vpop.f32.mrb[0].mxu0
        %v7232 = vpop.f32.mrb[0].mxu0
        %v7233 = vadd.f32 0.0, %v7232
        %v7234 = vpop.f32.mrb[0].mxu0
        %7235 = vdwg.mxu0
        %v7236 = vadd.f32 %v7092, %v7174
        %v7237 = vadd.f32 %v7093, %v7177
        %v7238 = vadd.f32 %v7094, %v7182
        %v7239 = vadd.f32 %v7095, %v7185
        %v7240 = vadd.f32 %v7096, %v7190
        %v7241 = vadd.f32 %v7097, %v7193
        %v7242 = vadd.f32 %v7098, %v7198
        %v7243 = vadd.f32 %v7099, %v7201
        %v7244 = vadd.f32 %v7100, %v7206
        %v7245 = vadd.f32 %v7101, %v7209
        %v7246 = vadd.f32 %v7102, %v7214
        %v7247 = vadd.f32 %v7103, %v7217
        %v7248 = vadd.f32 %v7104, %v7222
        %v7249 = vadd.f32 %v7105, %v7225
        %v7250 = vadd.f32 %v7106, %v7230
        %v7251 = vadd.f32 %v7107, %v7233
        %v7252 = vrot.slane %v5960, 2
        %v7253 = vrot.slane %v5961, 2
        %v7254 = vsel %vm6336, %v7252, %v7253
        %v7255 = vrot.slane %v5962, 2
        %v7256 = vsel %vm6336, %v7253, %v7255
        %v7259 = vpack.c.bf16 %v7256, %v7254
        %s7260 = scalar_lea.vmem %s10, 560
        %v7261 = vld [vmem:[%s7260] sm:$0xf]
        %v7262 = vld [vmem:[%s7260 + $0x4] sm:$0xf]
        %v7263 = vld [vmem:[%s7260 + $0x8] sm:$0xf]
        %v7264 = vld [vmem:[%s7260 + $0xc] sm:$0xf]
        %v7269 = vunpack.c.l.b16 %v7261
        %v7270 = vunpack.c.l.b16 %v7262
        %v7271 = vunpack.c.l.b16 %v7263
        %v7272 = vunpack.c.l.b16 %v7264
        %v7273 = vpack.c.b16 %v7270, %v7269
        %v7274 = vpack.c.b16 %v7272, %v7271
        %v7278 = vsel %vm5402, %v7259, 0
        %7280 = vmatprep.subr.bf16.mxu0 0
        %7281 = vmatpush1.bf16.msra.mxu0 %v7273
        %7282 = vmatprep.subr.bf16.mxu0 0
        %7283 = vmatpush1.bf16.msra.mxu0 %v7274
        %7284 = vmatprep.subr.bf16.mxu0 0
        %7285 = vmatpush1.bf16.msra.mxu0 0
        %7286 = vmatprep.subr.bf16.mxu0 0
        %7287 = vmatpush1.bf16.msra.mxu0 0
        %7288 = vmatprep.subr.bf16.mxu0 0
        %7289 = vmatpush1.bf16.msra.mxu0 0
        %7290 = vmatprep.subr.bf16.mxu0 0
        %7291 = vmatpush1.bf16.msra.mxu0 0
        %7292 = vmatprep.subr.bf16.mxu0 0
        %7293 = vmatpush1.bf16.msra.mxu0 0
        %7294 = vmatprep.subr.bf16.mxu0 0
        %7295 = vmatpush1.bf16.msra.mxu0 0
        %7296 = vmatprep.subr.bf16.mxu0 0
        %7297 = vmatpush1.bf16.msra.mxu0 0
        %7298 = vmatprep.subr.bf16.mxu0 0
        %7299 = vmatpush1.bf16.msra.mxu0 0
        %7300 = vmatprep.subr.bf16.mxu0 0
        %7301 = vmatpush1.bf16.msra.mxu0 0
        %7302 = vmatprep.subr.bf16.mxu0 0
        %7303 = vmatpush1.bf16.msra.mxu0 0
        %7304 = vmatprep.subr.bf16.mxu0 0
        %7305 = vmatpush1.bf16.msra.mxu0 0
        %7306 = vmatprep.subr.bf16.mxu0 0
        %7307 = vmatpush1.bf16.msra.mxu0 0
        %7308 = vmatprep.subr.bf16.mxu0 0
        %7309 = vmatpush1.bf16.msra.mxu0 0
        %7310 = vmatprep.subr.bf16.mxu0 0
        %7311 = vmatpush1.bf16.msra.mxu0 0
        %7312 = vmatprep.mubr.bf16.mxu0 0
        %7313 = vmatmul.mubr.bf16.gmra.mrb[0].mxu0 %v6425
        %v7314 = vpop.f32.mrb[0].mxu0
        %v7315 = vadd.f32 0.0, %v7314
        %v7316 = vpop.f32.mrb[0].mxu0
        %v7317 = vpop.f32.mrb[0].mxu0
        %v7318 = vadd.f32 0.0, %v7317
        %v7319 = vpop.f32.mrb[0].mxu0
        %7320 = vmatprep.mubr.bf16.mxu0 0
        %7321 = vmatmul.mubr.bf16.gmra.mrb[0].mxu0 %v6428
        %v7322 = vpop.f32.mrb[0].mxu0
        %v7323 = vadd.f32 0.0, %v7322
        %v7324 = vpop.f32.mrb[0].mxu0
        %v7325 = vpop.f32.mrb[0].mxu0
        %v7326 = vadd.f32 0.0, %v7325
        %v7327 = vpop.f32.mrb[0].mxu0
        %7328 = vmatprep.mubr.bf16.mxu0 0
        %7329 = vmatmul.mubr.bf16.gmra.mrb[0].mxu0 %v6431
        %v7330 = vpop.f32.mrb[0].mxu0
        %v7331 = vadd.f32 0.0, %v7330
        %v7332 = vpop.f32.mrb[0].mxu0
        %v7333 = vpop.f32.mrb[0].mxu0
        %v7334 = vadd.f32 0.0, %v7333
        %v7335 = vpop.f32.mrb[0].mxu0
        %7336 = vmatprep.mubr.bf16.mxu0 0
        %7337 = vmatmul.mubr.bf16.gmra.mrb[0].mxu0 %v6434
        %v7338 = vpop.f32.mrb[0].mxu0
        %v7339 = vadd.f32 0.0, %v7338
        %v7340 = vpop.f32.mrb[0].mxu0
        %v7341 = vpop.f32.mrb[0].mxu0
        %v7342 = vadd.f32 0.0, %v7341
        %v7343 = vpop.f32.mrb[0].mxu0
        %7344 = vmatprep.mubr.bf16.mxu0 0
        %7345 = vmatmul.mubr.bf16.gmra.mrb[0].mxu0 %v6437
        %v7346 = vpop.f32.mrb[0].mxu0
        %v7347 = vadd.f32 0.0, %v7346
        %v7348 = vpop.f32.mrb[0].mxu0
        %v7349 = vpop.f32.mrb[0].mxu0
        %v7350 = vadd.f32 0.0, %v7349
        %v7351 = vpop.f32.mrb[0].mxu0
        %7352 = vmatprep.mubr.bf16.mxu0 0
        %7353 = vmatmul.mubr.bf16.gmra.mrb[0].mxu0 %v6440
        %v7354 = vpop.f32.mrb[0].mxu0
        %v7355 = vadd.f32 0.0, %v7354
        %v7356 = vpop.f32.mrb[0].mxu0
        %v7357 = vpop.f32.mrb[0].mxu0
        %v7358 = vadd.f32 0.0, %v7357
        %v7359 = vpop.f32.mrb[0].mxu0
        %7360 = vmatprep.mubr.bf16.mxu0 0
        %7361 = vmatmul.mubr.bf16.gmra.mrb[0].mxu0 %v6859
        %v7362 = vpop.f32.mrb[0].mxu0
        %v7363 = vadd.f32 0.0, %v7362
        %v7364 = vpop.f32.mrb[0].mxu0
        %v7365 = vpop.f32.mrb[0].mxu0
        %v7366 = vadd.f32 0.0, %v7365
        %v7367 = vpop.f32.mrb[0].mxu0
        %7368 = vmatprep.mubr.bf16.mxu0 0
        %7369 = vmatmul.mubr.bf16.gmra.mrb[0].mxu0 %v7278
        %v7370 = vpop.f32.mrb[0].mxu0
        %v7371 = vadd.f32 0.0, %v7370
        %v7372 = vpop.f32.mrb[0].mxu0
        %v7373 = vpop.f32.mrb[0].mxu0
        %v7374 = vadd.f32 0.0, %v7373
        %v7375 = vpop.f32.mrb[0].mxu0
        %7376 = vdwg.mxu0
        %v7377 = vadd.f32 %v7236, %v7315
        %v7378 = vadd.f32 %v7237, %v7318
        %v7379 = vadd.f32 %v7238, %v7323
        %v7380 = vadd.f32 %v7239, %v7326
        %v7381 = vadd.f32 %v7240, %v7331
        %v7382 = vadd.f32 %v7241, %v7334
        %v7383 = vadd.f32 %v7242, %v7339
        %v7384 = vadd.f32 %v7243, %v7342
        %v7385 = vadd.f32 %v7244, %v7347
        %v7386 = vadd.f32 %v7245, %v7350
        %v7387 = vadd.f32 %v7246, %v7355
        %v7388 = vadd.f32 %v7247, %v7358
        %v7389 = vadd.f32 %v7248, %v7363
        %v7390 = vadd.f32 %v7249, %v7366
        %v7391 = vadd.f32 %v7250, %v7371
        %v7392 = vadd.f32 %v7251, %v7374
        %s7393 = smul.u32 %s30, 2
        %s7394 = scalar_lea.vmem [#allocation6], %s7393
        %v7395 = vld [vmem:[%s7394] sm:$0x3]
        %s7396 = smul.u32 %s4082, 4
        %s7397 = scalar_lea.vmem [#allocation7], %s7396
        %v7398 = vld [vmem:[%s7397] sm:$0xf]
        %v7399 = vld [vmem:[%s7397 + $0x4] sm:$0xf]
        %s7400 = smul.u32 %s4081, 8
        %s7401 = scalar_lea.vmem [#allocation8], %s7400
        %v7402 = vld [vmem:[%s7401] sm:$0xff]
        %v7403 = vld [vmem:[%s7401 + $0x8] sm:$0xff]
        %v7404 = vld [vmem:[%s7401 + $0x10] sm:$0xff]
        %v7405 = vld [vmem:[%s7401 + $0x18] sm:$0xff]
        %v7408 = vunpack.c.l.s4 1966171168
        %v7409 = vunpack.c.0.s8 %v7408
        %v7410 = vlaneseq
        %v7411 = vshrl.u32 %v7410, 7
        %v7412 = vsub.s32 %v7409, %v7411
        %v7413 = vrot.slane %v7395, %v7412
        %v7414 = vcombine.high %v7413, %v7413
        %v7416 = vunpack.c.l.s4 1966171168
        %v7417 = vunpack.c.0.s8 %v7416
        %v7418 = vlaneseq
        %v7419 = vshrl.u32 %v7418, 7
        %v7420 = vsub.s32 %v7417, %v7419
        %v7421 = vrot.slane %v7413, %v7420
        %v7423 = vunpack.c.l.s4 1966171168
        %v7424 = vunpack.c.0.s8 %v7423
        %v7425 = vlaneseq
        %v7426 = vshrl.u32 %v7425, 7
        %v7427 = vsub.s32 %v7424, %v7426
        %v7428 = vrot.slane %v7414, %v7427
        %v7429 = vlaneseq
        %v7430 = vshrl.u32 %v7429, 7
        %v7431 = vsub.s32 0, %v7430
        %v7432 = vrot.slane %v7421, %v7431
        %v7433 = vlaneseq
        %v7434 = vshrl.u32 %v7433, 7
        %v7435 = vsub.s32 0, %v7434
        %v7436 = vrot.slane %v7428, %v7435
        %v7442 = vunpack.c.l.s4 1966171168
        %v7443 = vunpack.c.0.s8 %v7442
        %v7444 = vlaneseq
        %v7445 = vshrl.u32 %v7444, 7
        %v7446 = vsub.s32 %v7443, %v7445
        %v7447 = vrot.slane %v7398, %v7446
        %v7448 = vcombine.high %v7447, %v7447
        %v7450 = vunpack.c.l.s4 1966171168
        %v7451 = vunpack.c.0.s8 %v7450
        %v7452 = vlaneseq
        %v7453 = vshrl.u32 %v7452, 7
        %v7454 = vsub.s32 %v7451, %v7453
        %v7455 = vrot.slane %v7447, %v7454
        %v7457 = vunpack.c.l.s4 1966171168
        %v7458 = vunpack.c.0.s8 %v7457
        %v7459 = vlaneseq
        %v7460 = vshrl.u32 %v7459, 7
        %v7461 = vsub.s32 %v7458, %v7460
        %v7462 = vrot.slane %v7448, %v7461
        %v7463 = vcombine.high %v7455, %v7455
        %v7464 = vcombine.high %v7462, %v7462
        %v7466 = vunpack.c.l.s4 1966171168
        %v7467 = vunpack.c.0.s8 %v7466
        %v7468 = vlaneseq
        %v7469 = vshrl.u32 %v7468, 7
        %v7470 = vsub.s32 %v7467, %v7469
        %v7471 = vrot.slane %v7399, %v7470
        %v7472 = vcombine.high %v7471, %v7471
        %v7474 = vunpack.c.l.s4 1966171168
        %v7475 = vunpack.c.0.s8 %v7474
        %v7476 = vlaneseq
        %v7477 = vshrl.u32 %v7476, 7
        %v7478 = vsub.s32 %v7475, %v7477
        %v7479 = vrot.slane %v7471, %v7478
        %v7481 = vunpack.c.l.s4 1966171168
        %v7482 = vunpack.c.0.s8 %v7481
        %v7483 = vlaneseq
        %v7484 = vshrl.u32 %v7483, 7
        %v7485 = vsub.s32 %v7482, %v7484
        %v7486 = vrot.slane %v7472, %v7485
        %v7487 = vcombine.high %v7479, %v7479
        %v7488 = vcombine.high %v7486, %v7486
        %v7489 = vlaneseq
        %v7490 = vshrl.u32 %v7489, 7
        %v7491 = vsub.s32 0, %v7490
        %v7492 = vrot.slane %v7455, %v7491
        %v7493 = vlaneseq
        %v7494 = vshrl.u32 %v7493, 7
        %v7495 = vsub.s32 0, %v7494
        %v7496 = vrot.slane %v7462, %v7495
        %v7497 = vlaneseq
        %v7498 = vshrl.u32 %v7497, 7
        %v7499 = vsub.s32 0, %v7498
        %v7500 = vrot.slane %v7463, %v7499
        %v7501 = vlaneseq
        %v7502 = vshrl.u32 %v7501, 7
        %v7503 = vsub.s32 0, %v7502
        %v7504 = vrot.slane %v7464, %v7503
        %v7505 = vlaneseq
        %v7506 = vshrl.u32 %v7505, 7
        %v7507 = vsub.s32 0, %v7506
        %v7508 = vrot.slane %v7479, %v7507
        %v7509 = vlaneseq
        %v7510 = vshrl.u32 %v7509, 7
        %v7511 = vsub.s32 0, %v7510
        %v7512 = vrot.slane %v7486, %v7511
        %v7513 = vlaneseq
        %v7514 = vshrl.u32 %v7513, 7
        %v7515 = vsub.s32 0, %v7514
        %v7516 = vrot.slane %v7487, %v7515
        %v7517 = vlaneseq
        %v7518 = vshrl.u32 %v7517, 7
        %v7519 = vsub.s32 0, %v7518
        %v7520 = vrot.slane %v7488, %v7519
        %v7525 = vcombine.high %v7402, %v7402
        %v7527 = vunpack.c.l.s4 1966171168
        %v7528 = vunpack.c.0.s8 %v7527
        %v7529 = vlaneseq
        %v7530 = vshrl.u32 %v7529, 7
        %v7531 = vsub.s32 %v7528, %v7530
        %v7532 = vrot.slane %v7402, %v7531
        %v7534 = vunpack.c.l.s4 1966171168
        %v7535 = vunpack.c.0.s8 %v7534
        %v7536 = vlaneseq
        %v7537 = vshrl.u32 %v7536, 7
        %v7538 = vsub.s32 %v7535, %v7537
        %v7539 = vrot.slane %v7525, %v7538
        %v7540 = vcombine.high %v7532, %v7532
        %v7541 = vcombine.high %v7539, %v7539
        %v7543 = vunpack.c.l.s4 1966171168
        %v7544 = vunpack.c.0.s8 %v7543
        %v7545 = vlaneseq
        %v7546 = vshrl.u32 %v7545, 7
        %v7547 = vsub.s32 %v7544, %v7546
        %v7548 = vrot.slane %v7532, %v7547
        %v7550 = vunpack.c.l.s4 1966171168
        %v7551 = vunpack.c.0.s8 %v7550
        %v7552 = vlaneseq
        %v7553 = vshrl.u32 %v7552, 7
        %v7554 = vsub.s32 %v7551, %v7553
        %v7555 = vrot.slane %v7539, %v7554
        %v7557 = vunpack.c.l.s4 1966171168
        %v7558 = vunpack.c.0.s8 %v7557
        %v7559 = vlaneseq
        %v7560 = vshrl.u32 %v7559, 7
        %v7561 = vsub.s32 %v7558, %v7560
        %v7562 = vrot.slane %v7540, %v7561
        %v7564 = vunpack.c.l.s4 1966171168
        %v7565 = vunpack.c.0.s8 %v7564
        %v7566 = vlaneseq
        %v7567 = vshrl.u32 %v7566, 7
        %v7568 = vsub.s32 %v7565, %v7567
        %v7569 = vrot.slane %v7541, %v7568
        %v7570 = vcombine.high %v7548, %v7548
        %v7571 = vcombine.high %v7555, %v7555
        %v7572 = vcombine.high %v7562, %v7562
        %v7573 = vcombine.high %v7569, %v7569
        %v7574 = vcombine.high %v7403, %v7403
        %v7576 = vunpack.c.l.s4 1966171168
        %v7577 = vunpack.c.0.s8 %v7576
        %v7578 = vlaneseq
        %v7579 = vshrl.u32 %v7578, 7
        %v7580 = vsub.s32 %v7577, %v7579
        %v7581 = vrot.slane %v7403, %v7580
        %v7583 = vunpack.c.l.s4 1966171168
        %v7584 = vunpack.c.0.s8 %v7583
        %v7585 = vlaneseq
        %v7586 = vshrl.u32 %v7585, 7
        %v7587 = vsub.s32 %v7584, %v7586
        %v7588 = vrot.slane %v7574, %v7587
        %v7589 = vcombine.high %v7581, %v7581
        %v7590 = vcombine.high %v7588, %v7588
        %v7592 = vunpack.c.l.s4 1966171168
        %v7593 = vunpack.c.0.s8 %v7592
        %v7594 = vlaneseq
        %v7595 = vshrl.u32 %v7594, 7
        %v7596 = vsub.s32 %v7593, %v7595
        %v7597 = vrot.slane %v7581, %v7596
        %v7599 = vunpack.c.l.s4 1966171168
        %v7600 = vunpack.c.0.s8 %v7599
        %v7601 = vlaneseq
        %v7602 = vshrl.u32 %v7601, 7
        %v7603 = vsub.s32 %v7600, %v7602
        %v7604 = vrot.slane %v7588, %v7603
        %v7606 = vunpack.c.l.s4 1966171168
        %v7607 = vunpack.c.0.s8 %v7606
        %v7608 = vlaneseq
        %v7609 = vshrl.u32 %v7608, 7
        %v7610 = vsub.s32 %v7607, %v7609
        %v7611 = vrot.slane %v7589, %v7610
        %v7613 = vunpack.c.l.s4 1966171168
        %v7614 = vunpack.c.0.s8 %v7613
        %v7615 = vlaneseq
        %v7616 = vshrl.u32 %v7615, 7
        %v7617 = vsub.s32 %v7614, %v7616
        %v7618 = vrot.slane %v7590, %v7617
        %v7619 = vcombine.high %v7597, %v7597
        %v7620 = vcombine.high %v7604, %v7604
        %v7621 = vcombine.high %v7611, %v7611
        %v7622 = vcombine.high %v7618, %v7618
        %v7623 = vcombine.high %v7404, %v7404
        %v7625 = vunpack.c.l.s4 1966171168
        %v7626 = vunpack.c.0.s8 %v7625
        %v7627 = vlaneseq
        %v7628 = vshrl.u32 %v7627, 7
        %v7629 = vsub.s32 %v7626, %v7628
        %v7630 = vrot.slane %v7404, %v7629
        %v7632 = vunpack.c.l.s4 1966171168
        %v7633 = vunpack.c.0.s8 %v7632
        %v7634 = vlaneseq
        %v7635 = vshrl.u32 %v7634, 7
        %v7636 = vsub.s32 %v7633, %v7635
        %v7637 = vrot.slane %v7623, %v7636
        %v7638 = vcombine.high %v7630, %v7630
        %v7639 = vcombine.high %v7637, %v7637
        %v7641 = vunpack.c.l.s4 1966171168
        %v7642 = vunpack.c.0.s8 %v7641
        %v7643 = vlaneseq
        %v7644 = vshrl.u32 %v7643, 7
        %v7645 = vsub.s32 %v7642, %v7644
        %v7646 = vrot.slane %v7630, %v7645
        %v7648 = vunpack.c.l.s4 1966171168
        %v7649 = vunpack.c.0.s8 %v7648
        %v7650 = vlaneseq
        %v7651 = vshrl.u32 %v7650, 7
        %v7652 = vsub.s32 %v7649, %v7651
        %v7653 = vrot.slane %v7637, %v7652
        %v7655 = vunpack.c.l.s4 1966171168
        %v7656 = vunpack.c.0.s8 %v7655
        %v7657 = vlaneseq
        %v7658 = vshrl.u32 %v7657, 7
        %v7659 = vsub.s32 %v7656, %v7658
        %v7660 = vrot.slane %v7638, %v7659
        %v7662 = vunpack.c.l.s4 1966171168
        %v7663 = vunpack.c.0.s8 %v7662
        %v7664 = vlaneseq
        %v7665 = vshrl.u32 %v7664, 7
        %v7666 = vsub.s32 %v7663, %v7665
        %v7667 = vrot.slane %v7639, %v7666
        %v7668 = vcombine.high %v7646, %v7646
        %v7669 = vcombine.high %v7653, %v7653
        %v7670 = vcombine.high %v7660, %v7660
        %v7671 = vcombine.high %v7667, %v7667
        %v7672 = vcombine.high %v7405, %v7405
        %v7674 = vunpack.c.l.s4 1966171168
        %v7675 = vunpack.c.0.s8 %v7674
        %v7676 = vlaneseq
        %v7677 = vshrl.u32 %v7676, 7
        %v7678 = vsub.s32 %v7675, %v7677
        %v7679 = vrot.slane %v7405, %v7678
        %v7681 = vunpack.c.l.s4 1966171168
        %v7682 = vunpack.c.0.s8 %v7681
        %v7683 = vlaneseq
        %v7684 = vshrl.u32 %v7683, 7
        %v7685 = vsub.s32 %v7682, %v7684
        %v7686 = vrot.slane %v7672, %v7685
        %v7687 = vcombine.high %v7679, %v7679
        %v7688 = vcombine.high %v7686, %v7686
        %v7690 = vunpack.c.l.s4 1966171168
        %v7691 = vunpack.c.0.s8 %v7690
        %v7692 = vlaneseq
        %v7693 = vshrl.u32 %v7692, 7
        %v7694 = vsub.s32 %v7691, %v7693
        %v7695 = vrot.slane %v7679, %v7694
        %v7697 = vunpack.c.l.s4 1966171168
        %v7698 = vunpack.c.0.s8 %v7697
        %v7699 = vlaneseq
        %v7700 = vshrl.u32 %v7699, 7
        %v7701 = vsub.s32 %v7698, %v7700
        %v7702 = vrot.slane %v7686, %v7701
        %v7704 = vunpack.c.l.s4 1966171168
        %v7705 = vunpack.c.0.s8 %v7704
        %v7706 = vlaneseq
        %v7707 = vshrl.u32 %v7706, 7
        %v7708 = vsub.s32 %v7705, %v7707
        %v7709 = vrot.slane %v7687, %v7708
        %v7711 = vunpack.c.l.s4 1966171168
        %v7712 = vunpack.c.0.s8 %v7711
        %v7713 = vlaneseq
        %v7714 = vshrl.u32 %v7713, 7
        %v7715 = vsub.s32 %v7712, %v7714
        %v7716 = vrot.slane %v7688, %v7715
        %v7717 = vcombine.high %v7695, %v7695
        %v7718 = vcombine.high %v7702, %v7702
        %v7719 = vcombine.high %v7709, %v7709
        %v7720 = vcombine.high %v7716, %v7716
        %v7721 = vlaneseq
        %v7722 = vshrl.u32 %v7721, 7
        %v7723 = vsub.s32 0, %v7722
        %v7724 = vrot.slane %v7548, %v7723
        %v7725 = vlaneseq
        %v7726 = vshrl.u32 %v7725, 7
        %v7727 = vsub.s32 0, %v7726
        %v7728 = vrot.slane %v7562, %v7727
        %v7729 = vlaneseq
        %v7730 = vshrl.u32 %v7729, 7
        %v7731 = vsub.s32 0, %v7730
        %v7732 = vrot.slane %v7570, %v7731
        %v7733 = vlaneseq
        %v7734 = vshrl.u32 %v7733, 7
        %v7735 = vsub.s32 0, %v7734
        %v7736 = vrot.slane %v7572, %v7735
        %v7737 = vlaneseq
        %v7738 = vshrl.u32 %v7737, 7
        %v7739 = vsub.s32 0, %v7738
        %v7740 = vrot.slane %v7555, %v7739
        %v7741 = vlaneseq
        %v7742 = vshrl.u32 %v7741, 7
        %v7743 = vsub.s32 0, %v7742
        %v7744 = vrot.slane %v7569, %v7743
        %v7745 = vlaneseq
        %v7746 = vshrl.u32 %v7745, 7
        %v7747 = vsub.s32 0, %v7746
        %v7748 = vrot.slane %v7571, %v7747
        %v7749 = vlaneseq
        %v7750 = vshrl.u32 %v7749, 7
        %v7751 = vsub.s32 0, %v7750
        %v7752 = vrot.slane %v7573, %v7751
        %v7753 = vlaneseq
        %v7754 = vshrl.u32 %v7753, 7
        %v7755 = vsub.s32 0, %v7754
        %v7756 = vrot.slane %v7597, %v7755
        %v7757 = vlaneseq
        %v7758 = vshrl.u32 %v7757, 7
        %v7759 = vsub.s32 0, %v7758
        %v7760 = vrot.slane %v7611, %v7759
        %v7761 = vlaneseq
        %v7762 = vshrl.u32 %v7761, 7
        %v7763 = vsub.s32 0, %v7762
        %v7764 = vrot.slane %v7619, %v7763
        %v7765 = vlaneseq
        %v7766 = vshrl.u32 %v7765, 7
        %v7767 = vsub.s32 0, %v7766
        %v7768 = vrot.slane %v7621, %v7767
        %v7769 = vlaneseq
        %v7770 = vshrl.u32 %v7769, 7
        %v7771 = vsub.s32 0, %v7770
        %v7772 = vrot.slane %v7604, %v7771
        %v7773 = vlaneseq
        %v7774 = vshrl.u32 %v7773, 7
        %v7775 = vsub.s32 0, %v7774
        %v7776 = vrot.slane %v7618, %v7775
        %v7777 = vlaneseq
        %v7778 = vshrl.u32 %v7777, 7
        %v7779 = vsub.s32 0, %v7778
        %v7780 = vrot.slane %v7620, %v7779
        %v7781 = vlaneseq
        %v7782 = vshrl.u32 %v7781, 7
        %v7783 = vsub.s32 0, %v7782
        %v7784 = vrot.slane %v7622, %v7783
        %v7785 = vlaneseq
        %v7786 = vshrl.u32 %v7785, 7
        %v7787 = vsub.s32 0, %v7786
        %v7788 = vrot.slane %v7646, %v7787
        %v7789 = vlaneseq
        %v7790 = vshrl.u32 %v7789, 7
        %v7791 = vsub.s32 0, %v7790
        %v7792 = vrot.slane %v7660, %v7791
        %v7793 = vlaneseq
        %v7794 = vshrl.u32 %v7793, 7
        %v7795 = vsub.s32 0, %v7794
        %v7796 = vrot.slane %v7668, %v7795
        %v7797 = vlaneseq
        %v7798 = vshrl.u32 %v7797, 7
        %v7799 = vsub.s32 0, %v7798
        %v7800 = vrot.slane %v7670, %v7799
        %v7801 = vlaneseq
        %v7802 = vshrl.u32 %v7801, 7
        %v7803 = vsub.s32 0, %v7802
        %v7804 = vrot.slane %v7653, %v7803
        %v7805 = vlaneseq
        %v7806 = vshrl.u32 %v7805, 7
        %v7807 = vsub.s32 0, %v7806
        %v7808 = vrot.slane %v7667, %v7807
        %v7809 = vlaneseq
        %v7810 = vshrl.u32 %v7809, 7
        %v7811 = vsub.s32 0, %v7810
        %v7812 = vrot.slane %v7669, %v7811
        %v7813 = vlaneseq
        %v7814 = vshrl.u32 %v7813, 7
        %v7815 = vsub.s32 0, %v7814
        %v7816 = vrot.slane %v7671, %v7815
        %v7817 = vlaneseq
        %v7818 = vshrl.u32 %v7817, 7
        %v7819 = vsub.s32 0, %v7818
        %v7820 = vrot.slane %v7695, %v7819
        %v7821 = vlaneseq
        %v7822 = vshrl.u32 %v7821, 7
        %v7823 = vsub.s32 0, %v7822
        %v7824 = vrot.slane %v7709, %v7823
        %v7825 = vlaneseq
        %v7826 = vshrl.u32 %v7825, 7
        %v7827 = vsub.s32 0, %v7826
        %v7828 = vrot.slane %v7717, %v7827
        %v7829 = vlaneseq
        %v7830 = vshrl.u32 %v7829, 7
        %v7831 = vsub.s32 0, %v7830
        %v7832 = vrot.slane %v7719, %v7831
        %v7833 = vlaneseq
        %v7834 = vshrl.u32 %v7833, 7
        %v7835 = vsub.s32 0, %v7834
        %v7836 = vrot.slane %v7702, %v7835
        %v7837 = vlaneseq
        %v7838 = vshrl.u32 %v7837, 7
        %v7839 = vsub.s32 0, %v7838
        %v7840 = vrot.slane %v7716, %v7839
        %v7841 = vlaneseq
        %v7842 = vshrl.u32 %v7841, 7
        %v7843 = vsub.s32 0, %v7842
        %v7844 = vrot.slane %v7718, %v7843
        %v7845 = vlaneseq
        %v7846 = vshrl.u32 %v7845, 7
        %v7847 = vsub.s32 0, %v7846
        %v7848 = vrot.slane %v7720, %v7847
        %v7849 = vcombine.low %v7492, %v7496
        %v7850 = vcombine.low %v7500, %v7504
        %v7851 = vcombine.low %v7508, %v7512
        %v7852 = vcombine.low %v7516, %v7520
        %7853 = vrot.lane.b32.xlu0 %v7849, 8
        %v7854 = vpop.permute.xlu0 %7853
        %7855 = vrot.lane.b32.xlu0 %v7850, 8
        %v7856 = vpop.permute.xlu0 %7855
        %7857 = vrot.lane.b32.xlu0 %v7851, 8
        %v7858 = vpop.permute.xlu0 %7857
        %7859 = vrot.lane.b32.xlu0 %v7852, 8
        %v7860 = vpop.permute.xlu0 %7859
        %v7865 = vcombine.low %v7724, %v7728
        %v7866 = vcombine.low %v7732, %v7736
        %v7868 = vunpack.c.l.s4 1983009808
        %v7869 = vunpack.c.0.s8 %v7868
        %v7870 = vlaneseq
        %v7871 = vshrl.u32 %v7870, 7
        %v7872 = vsub.s32 %v7869, %v7871
        %v7873 = vrot.slane %v7865, %v7872
        %v7875 = vunpack.c.l.s4 1983009808
        %v7876 = vunpack.c.0.s8 %v7875
        %v7877 = vlaneseq
        %v7878 = vshrl.u32 %v7877, 7
        %v7879 = vsub.s32 %v7876, %v7878
        %v7880 = vrot.slane %v7866, %v7879
        %v7881 = vcombine.low %v7873, %v7880
        %v7882 = vcombine.low %v7740, %v7744
        %v7883 = vcombine.low %v7748, %v7752
        %v7885 = vunpack.c.l.s4 1983009808
        %v7886 = vunpack.c.0.s8 %v7885
        %v7887 = vlaneseq
        %v7888 = vshrl.u32 %v7887, 7
        %v7889 = vsub.s32 %v7886, %v7888
        %v7890 = vrot.slane %v7882, %v7889
        %v7892 = vunpack.c.l.s4 1983009808
        %v7893 = vunpack.c.0.s8 %v7892
        %v7894 = vlaneseq
        %v7895 = vshrl.u32 %v7894, 7
        %v7896 = vsub.s32 %v7893, %v7895
        %v7897 = vrot.slane %v7883, %v7896
        %v7898 = vcombine.low %v7890, %v7897
        %v7899 = vcombine.low %v7756, %v7760
        %v7900 = vcombine.low %v7764, %v7768
        %v7902 = vunpack.c.l.s4 1983009808
        %v7903 = vunpack.c.0.s8 %v7902
        %v7904 = vlaneseq
        %v7905 = vshrl.u32 %v7904, 7
        %v7906 = vsub.s32 %v7903, %v7905
        %v7907 = vrot.slane %v7899, %v7906
        %v7909 = vunpack.c.l.s4 1983009808
        %v7910 = vunpack.c.0.s8 %v7909
        %v7911 = vlaneseq
        %v7912 = vshrl.u32 %v7911, 7
        %v7913 = vsub.s32 %v7910, %v7912
        %v7914 = vrot.slane %v7900, %v7913
        %v7915 = vcombine.low %v7907, %v7914
        %v7916 = vcombine.low %v7772, %v7776
        %v7917 = vcombine.low %v7780, %v7784
        %v7919 = vunpack.c.l.s4 1983009808
        %v7920 = vunpack.c.0.s8 %v7919
        %v7921 = vlaneseq
        %v7922 = vshrl.u32 %v7921, 7
        %v7923 = vsub.s32 %v7920, %v7922
        %v7924 = vrot.slane %v7916, %v7923
        %v7926 = vunpack.c.l.s4 1983009808
        %v7927 = vunpack.c.0.s8 %v7926
        %v7928 = vlaneseq
        %v7929 = vshrl.u32 %v7928, 7
        %v7930 = vsub.s32 %v7927, %v7929
        %v7931 = vrot.slane %v7917, %v7930
        %v7932 = vcombine.low %v7924, %v7931
        %v7933 = vcombine.low %v7788, %v7792
        %v7934 = vcombine.low %v7796, %v7800
        %v7936 = vunpack.c.l.s4 1983009808
        %v7937 = vunpack.c.0.s8 %v7936
        %v7938 = vlaneseq
        %v7939 = vshrl.u32 %v7938, 7
        %v7940 = vsub.s32 %v7937, %v7939
        %v7941 = vrot.slane %v7933, %v7940
        %v7943 = vunpack.c.l.s4 1983009808
        %v7944 = vunpack.c.0.s8 %v7943
        %v7945 = vlaneseq
        %v7946 = vshrl.u32 %v7945, 7
        %v7947 = vsub.s32 %v7944, %v7946
        %v7948 = vrot.slane %v7934, %v7947
        %v7949 = vcombine.low %v7941, %v7948
        %v7950 = vcombine.low %v7804, %v7808
        %v7951 = vcombine.low %v7812, %v7816
        %v7953 = vunpack.c.l.s4 1983009808
        %v7954 = vunpack.c.0.s8 %v7953
        %v7955 = vlaneseq
        %v7956 = vshrl.u32 %v7955, 7
        %v7957 = vsub.s32 %v7954, %v7956
        %v7958 = vrot.slane %v7950, %v7957
        %v7960 = vunpack.c.l.s4 1983009808
        %v7961 = vunpack.c.0.s8 %v7960
        %v7962 = vlaneseq
        %v7963 = vshrl.u32 %v7962, 7
        %v7964 = vsub.s32 %v7961, %v7963
        %v7965 = vrot.slane %v7951, %v7964
        %v7966 = vcombine.low %v7958, %v7965
        %v7967 = vcombine.low %v7820, %v7824
        %v7968 = vcombine.low %v7828, %v7832
        %v7970 = vunpack.c.l.s4 1983009808
        %v7971 = vunpack.c.0.s8 %v7970
        %v7972 = vlaneseq
        %v7973 = vshrl.u32 %v7972, 7
        %v7974 = vsub.s32 %v7971, %v7973
        %v7975 = vrot.slane %v7967, %v7974
        %v7977 = vunpack.c.l.s4 1983009808
        %v7978 = vunpack.c.0.s8 %v7977
        %v7979 = vlaneseq
        %v7980 = vshrl.u32 %v7979, 7
        %v7981 = vsub.s32 %v7978, %v7980
        %v7982 = vrot.slane %v7968, %v7981
        %v7983 = vcombine.low %v7975, %v7982
        %v7984 = vcombine.low %v7836, %v7840
        %v7985 = vcombine.low %v7844, %v7848
        %v7987 = vunpack.c.l.s4 1983009808
        %v7988 = vunpack.c.0.s8 %v7987
        %v7989 = vlaneseq
        %v7990 = vshrl.u32 %v7989, 7
        %v7991 = vsub.s32 %v7988, %v7990
        %v7992 = vrot.slane %v7984, %v7991
        %v7994 = vunpack.c.l.s4 1983009808
        %v7995 = vunpack.c.0.s8 %v7994
        %v7996 = vlaneseq
        %v7997 = vshrl.u32 %v7996, 7
        %v7998 = vsub.s32 %v7995, %v7997
        %v7999 = vrot.slane %v7985, %v7998
        %v8000 = vcombine.low %v7992, %v7999
        %8001 = vrot.lane.b32.xlu0 %v7881, 16
        %v8002 = vpop.permute.xlu0 %8001
        %8003 = vrot.lane.b32.xlu0 %v7898, 16
        %v8004 = vpop.permute.xlu0 %8003
        %8005 = vrot.lane.b32.xlu0 %v7915, 16
        %v8006 = vpop.permute.xlu0 %8005
        %8007 = vrot.lane.b32.xlu0 %v7932, 16
        %v8008 = vpop.permute.xlu0 %8007
        %8009 = vrot.lane.b32.xlu0 %v7949, 16
        %v8010 = vpop.permute.xlu0 %8009
        %8011 = vrot.lane.b32.xlu0 %v7966, 16
        %v8012 = vpop.permute.xlu0 %8011
        %8013 = vrot.lane.b32.xlu0 %v7983, 16
        %v8014 = vpop.permute.xlu0 %8013
        %8015 = vrot.lane.b32.xlu0 %v8000, 16
        %v8016 = vpop.permute.xlu0 %8015
        %8041 = vrot.lane.b32.xlu0 %v7377, 24
        %v8042 = vpop.permute.xlu0 %8041
        %8043 = vrot.lane.b32.xlu0 %v7378, 24
        %v8044 = vpop.permute.xlu0 %8043
        %8045 = vrot.lane.b32.xlu0 %v7379, 24
        %v8046 = vpop.permute.xlu0 %8045
        %8047 = vrot.lane.b32.xlu0 %v7380, 24
        %v8048 = vpop.permute.xlu0 %8047
        %8049 = vrot.lane.b32.xlu0 %v7381, 24
        %v8050 = vpop.permute.xlu0 %8049
        %8051 = vrot.lane.b32.xlu0 %v7382, 24
        %v8052 = vpop.permute.xlu0 %8051
        %8053 = vrot.lane.b32.xlu0 %v7383, 24
        %v8054 = vpop.permute.xlu0 %8053
        %8055 = vrot.lane.b32.xlu0 %v7384, 24
        %v8056 = vpop.permute.xlu0 %8055
        %8057 = vrot.lane.b32.xlu0 %v7385, 24
        %v8058 = vpop.permute.xlu0 %8057
        %8059 = vrot.lane.b32.xlu0 %v7386, 24
        %v8060 = vpop.permute.xlu0 %8059
        %8061 = vrot.lane.b32.xlu0 %v7387, 24
        %v8062 = vpop.permute.xlu0 %8061
        %8063 = vrot.lane.b32.xlu0 %v7388, 24
        %v8064 = vpop.permute.xlu0 %8063
        %8065 = vrot.lane.b32.xlu0 %v7389, 24
        %v8066 = vpop.permute.xlu0 %8065
        %8067 = vrot.lane.b32.xlu0 %v7390, 24
        %v8068 = vpop.permute.xlu0 %8067
        %8069 = vrot.lane.b32.xlu0 %v7391, 24
        %v8070 = vpop.permute.xlu0 %8069
        %8071 = vrot.lane.b32.xlu0 %v7392, 24
        %v8072 = vpop.permute.xlu0 %8071
        %vm8089 = vcmask 64512
        %v8090 = vsel %vm8089, %v7432, %v7854
        %v8091 = vsel %vm8089, %v7436, %v7856
        %v8092 = vsel %vm8089, %v7432, %v7858
        %v8093 = vsel %vm8089, %v7436, %v7860
        %vm8094 = vcmask 130048
        %v8095 = vsel %vm8094, %v8090, %v8002
        %v8096 = vsel %vm8094, %v8091, %v8004
        %v8097 = vsel %vm8094, %v8090, %v8006
        %v8098 = vsel %vm8094, %v8091, %v8008
        %v8099 = vsel %vm8094, %v8092, %v8010
        %v8100 = vsel %vm8094, %v8093, %v8012
        %v8101 = vsel %vm8094, %v8092, %v8014
        %v8102 = vsel %vm8094, %v8093, %v8016
        %vm8103 = vcmask 195584
        %v8104 = vsel %vm8103, %v8095, %v8042
        %v8105 = vsel %vm8103, %v8096, %v8044
        %v8106 = vsel %vm8103, %v8095, %v8046
        %v8107 = vsel %vm8103, %v8096, %v8048
        %v8108 = vsel %vm8103, %v8097, %v8050
        %v8109 = vsel %vm8103, %v8098, %v8052
        %v8110 = vsel %vm8103, %v8097, %v8054
        %v8111 = vsel %vm8103, %v8098, %v8056
        %v8112 = vsel %vm8103, %v8099, %v8058
        %v8113 = vsel %vm8103, %v8100, %v8060
        %v8114 = vsel %vm8103, %v8099, %v8062
        %v8115 = vsel %vm8103, %v8100, %v8064
        %v8116 = vsel %vm8103, %v8101, %v8066
        %v8117 = vsel %vm8103, %v8102, %v8068
        %v8118 = vsel %vm8103, %v8101, %v8070
        %v8119 = vsel %vm8103, %v8102, %v8072
        %8120 = vst.msk [vmem:[%s539] sm:$0xff] %vm5402, %v8104
        %8121 = vst.msk [vmem:[%s539 + $0x8] sm:$0xff] %vm5402, %v8105
        %8122 = vst.msk [vmem:[%s539 + $0x10] sm:$0xff] %vm5402, %v8106
        %8123 = vst.msk [vmem:[%s539 + $0x18] sm:$0xff] %vm5402, %v8107
        %8124 = vst.msk [vmem:[%s539 + $0x20] sm:$0xff] %vm5402, %v8108
        %8125 = vst.msk [vmem:[%s539 + $0x28] sm:$0xff] %vm5402, %v8109
        %8126 = vst.msk [vmem:[%s539 + $0x30] sm:$0xff] %vm5402, %v8110
        %8127 = vst.msk [vmem:[%s539 + $0x38] sm:$0xff] %vm5402, %v8111
        %8128 = vst.msk [vmem:[%s539 + $0x40] sm:$0xff] %vm5402, %v8112
        %8129 = vst.msk [vmem:[%s539 + $0x48] sm:$0xff] %vm5402, %v8113
        %8130 = vst.msk [vmem:[%s539 + $0x50] sm:$0xff] %vm5402, %v8114
        %8131 = vst.msk [vmem:[%s539 + $0x58] sm:$0xff] %vm5402, %v8115
        %8132 = vst.msk [vmem:[%s539 + $0x60] sm:$0xff] %vm5402, %v8116
        %8133 = vst.msk [vmem:[%s539 + $0x68] sm:$0xff] %vm5402, %v8117
        %8134 = vst.msk [vmem:[%s539 + $0x70] sm:$0xff] %vm5402, %v8118
        %8135 = vst.msk [vmem:[%s539 + $0x78] sm:$0xff] %vm5402, %v8119
        %s8136 = sand.u32 %s330, 1
        %s8137 = scalar_lea.sflag [#allocation10], %s8136
        %s8138 = sand.u32 %s330, 1
        %s8139 = smul.addr %s8138, 128
        %s8140 = scalar_lea.vmem [#allocation9], %s8139
        // Predicated region
        $region85: #{db_fpn_forward.1} parent=63 // pred_check
          %p8141 = pneg %p340
        $region86: #{db_fpn_forward.1} parent=63 // pred_check_branch
          %8143 = sbr.rel (%p8141) target = $region88
        $region87: #{db_fpn_forward.1} parent=63 // pred_region
          %s8144 = smul.u32 8, %s30
          %s8146 = ssub.s32 2048, 2048
          %8147 = vsyncadd %s8137, %s8146
          %s8148 = smul.addr %s8144, 2
          %s8149 = smul.addr %s29, 32
          %s8150 = sadd.s32 %s8148, %s8149
          %s8151 = smul.addr %s8150, 128
          %s8152 = scalar_lea.hbm %s11, %s8151
          %s8153 = sshll.u32 %s8140, 4
          %s8154 = int_to_ptr.vmem [resolvable:$true] %s8153
          %8159 = dma.vmem_to_hbm [thread:$0]  %s8154, 2048, %s8152, %s8137, 128, 128, 8
        $region88: #{db_fpn_forward.1} parent=63 // pred_fallthru
          _
      $region64: #{db_fpn_forward.1} parent=5 // pred_fallthru
        _
      %p8160 = scmp.le.s32.totalorder 2, %s20
      // Predicated region
      $region89: #{db_fpn_forward.1} parent=5 // pred_check
        %p8161 = pneg %p8160
      $region90: #{db_fpn_forward.1} parent=5 // pred_check_branch
        %8163 = sbr.rel (%p8161) target = $region92
      $region91: #{db_fpn_forward.1} parent=5 // pred_region
        %s8164 = ssub.s32 %s20, 2
        // Predicated region
        $region93: #{db_fpn_forward.1} parent=91 // pred_check
          %p8165 = pneg %p346
        $region94: #{db_fpn_forward.1} parent=91 // pred_check_branch
          %8167 = sbr.rel (%p8165) target = $region96
        $region95: #{db_fpn_forward.1} parent=91 // pred_region
          %s8168 = sand.u32 %s331, 1
          %s8169 = scalar_lea.sflag [#allocation10], %s8168
          %s8170 = sand.u32 %s331, 1
          %s8171 = smul.addr %s8170, 128
          %s8172 = scalar_lea.vmem [#allocation9], %s8171
          %8173 = dma.done %s8169, 2048
        $region96: #{db_fpn_forward.1} parent=91 // pred_fallthru
          _
      $region92: #{db_fpn_forward.1} parent=5 // pred_fallthru
        _
    $region6: #{db_fpn_forward.1} parent=1 // loop_footer
      %s24 = sadd.s32 1, %s20
    $region7: #{db_fpn_forward.1} parent=1 // loop_footer_branch
      %19 = sbr.rel target = $region3
    $region8: #{db_fpn_forward.1} parent=1 // loop_exit
      _
    %8174 = vsyncpa [#allocation10], 1
    %s8175 = scalar_lea.sflag [#allocation10], 1
    %8176 = vsyncpa %s8175, 1

</llo_original>
